<compile_context>
chip_gen: v6e
topology: v6e:2x2x1
jax: 0.10.0
libtpu: 0.0.40
codegen_flags: <defaults>
</compile_context>

<pallas_src>
import functools

import jax
import jax.numpy as jnp
import numpy as np
from jax.experimental import pallas as pl
from jax.experimental.pallas import tpu as pltpu


def _round_up(n, m):
    return (n + m - 1) // m * m


def _fused_pinn_kernel(x_ref, m_ref, w1_ref, b1_ref, w2_ref, b2_ref,
                       w3_ref, b3_ref, o_ref, *, shifts):
    """All three conv3x3 layers for one tile of images.

    x_ref : (1, cin_pad, N)   channels on sublanes, N = imgs*H*W on lanes
    m_ref : (9, N)            f32 border-validity masks, one row per tap
    w*_ref: (cout, 9*cin)     packed weights, K index = (dy*3+dx)*cin + cin_idx
    b*_ref: (cout, 1)
    o_ref : (1, cout_pad, N)
    """
    n = x_ref.shape[-1]

    # Hoist the 9 mask rows (shared by all three layers).
    masks = [m_ref[t:t + 1, :] for t in range(9)]

    def conv3x3(act, w_ref, b_ref, relu):
        cout, k9 = w_ref.shape
        cin = k9 // 9
        acc = jnp.zeros((cout, n), jnp.float32)
        for t, s in enumerate(shifts):
            sh = (-s) % n                       # tap[p] = act[p + s]
            tap = act if sh == 0 else pltpu.roll(act, sh, axis=1)
            if t != 4:                          # centre-tap mask is all ones
                tap = tap * masks[t]
            acc = acc + jnp.dot(w_ref[:, t * cin:(t + 1) * cin], tap,
                                preferred_element_type=jnp.float32)
        y = acc + b_ref[...]
        return jnp.maximum(y, 0.0) if relu else y

    a0 = x_ref[0]                               # (cin_pad, N) f32
    a1 = conv3x3(a0, w1_ref, b1_ref, True)      # (32, N)
    a2 = conv3x3(a1, w2_ref, b2_ref, True)      # (64, N)
    a3 = conv3x3(a2, w3_ref, b3_ref, False)     # (8, N)  cout padded 5->8
    o_ref[0] = a3.astype(o_ref.dtype)


def _pack_weight(w_oihw, cin_pad):
    """OIHW -> (O, 9*cin_pad) with K index = (dy*3+dx)*cin_pad + cin."""
    o, i, kh, kw = w_oihw.shape
    w = jnp.transpose(w_oihw, (0, 2, 3, 1))     # (O, 3, 3, I)
    if cin_pad > i:
        w = jnp.pad(w, ((0, 0), (0, 0), (0, 0), (0, cin_pad - i)))
    return w.reshape(o, kh * kw * cin_pad)


@jax.jit
def pinn_with_cnn_forward(x_nchw, params):
    B, cin, H, W = x_nchw.shape
    HW = H * W
    cin_pad = _round_up(cin, 8)

    # Fold a few images into the matmul N dimension per grid step.
    imgs = min(B, 4)
    n_steps = -(-B // imgs)
    B_pad = n_steps * imgs
    N = imgs * HW

    # NCHW -> (steps, cin, imgs*HW): channels on sublanes, batch folded into
    # the lane dimension (layout plumbing done once by XLA in the wrapper).
    x = x_nchw.reshape(B, cin, HW)
    if B_pad > B:
        x = jnp.pad(x, ((0, B_pad - B), (0, 0), (0, 0)))
    x = x.reshape(n_steps, imgs, cin, HW).transpose(0, 2, 1, 3)
    x = x.reshape(n_steps, cin, N)
    x = jnp.pad(x, ((0, 0), (0, cin_pad - cin), (0, 0)))         # (steps, 8, N)

    w1 = _pack_weight(params["w1"], cin_pad)                     # (32, 72)
    w2 = _pack_weight(params["w2"], int(params["w2"].shape[1]))  # (64, 288)
    w3 = _pack_weight(params["w3"], int(params["w3"].shape[1]))  # (5, 576)
    cout = int(params["w3"].shape[0])
    cout_pad = _round_up(cout, 8)
    w3 = jnp.pad(w3, ((0, cout_pad - cout), (0, 0)))             # (8, 576)
    b1 = params["b1"][:, None]                                   # (32, 1)
    b2 = params["b2"][:, None]                                   # (64, 1)
    b3 = jnp.pad(params["b3"], (0, cout_pad - cout))[:, None]    # (8, 1)

    # Static tap shifts (flattened-HW lane offsets) + border-validity masks,
    # tiled across the images folded into each step's lane dimension.
    shifts = []
    masks = np.empty((9, HW), np.float32)
    hh, ww = np.divmod(np.arange(HW), W)
    t = 0
    for dy in (-1, 0, 1):
        for dx in (-1, 0, 1):
            shifts.append(dy * W + dx)
            masks[t] = ((hh + dy >= 0) & (hh + dy < H) &
                        (ww + dx >= 0) & (ww + dx < W)).astype(np.float32)
            t += 1
    masks = jnp.asarray(np.tile(masks, (1, imgs)))               # (9, N)

    flops = 2 * n_steps * N * sum(int(w.shape[0]) * int(w.shape[1])
                                  for w in (w1, w2, w3))
    bytes_accessed = int(4 * (x.size + masks.size + w1.size + w2.size + w3.size
                              + b1.size + b2.size + b3.size
                              + n_steps * cout_pad * N))

    kernel = functools.partial(_fused_pinn_kernel, shifts=tuple(shifts))
    full2d = lambda a: pl.BlockSpec(a.shape, lambda i: (0, 0))

    out = pl.pallas_call(
        kernel,
        out_shape=jax.ShapeDtypeStruct((n_steps, cout_pad, N), jnp.float32),
        grid=(n_steps,),
        in_specs=[
            pl.BlockSpec((1, cin_pad, N), lambda i: (i, 0, 0)),
            full2d(masks),
            full2d(w1), full2d(b1),
            full2d(w2), full2d(b2),
            full2d(w3), full2d(b3),
        ],
        out_specs=pl.BlockSpec((1, cout_pad, N), lambda i: (i, 0, 0)),
        compiler_params=pltpu.CompilerParams(
            dimension_semantics=("parallel",),
            vmem_limit_bytes=32 * 1024 * 1024,
        ),
        cost_estimate=pl.CostEstimate(
            flops=flops, transcendentals=0, bytes_accessed=bytes_accessed),
    )(x, masks, w1, b1, w2, b2, w3, b3)

    # (steps, cout_pad, imgs*HW) -> (B, cout, H, W), dropping padding.
    out = out.reshape(n_steps, cout_pad, imgs, HW).transpose(0, 2, 1, 3)
    out = out.reshape(B_pad, cout_pad, HW)[:B, :cout]
    return out.reshape(B, cout, H, W)


def init_params(key):
    """Deterministic synthetic parameters (PyTorch OIHW convention)."""
    keys = jax.random.split(key, 6)
    shapes = [(32, 4, 3, 3), (64, 32, 3, 3), (5, 64, 3, 3)]
    params = {}
    for i, (oihw, kw, kb) in enumerate(zip(shapes, keys[:3], keys[3:]), start=1):
        fan_in = oihw[1] * oihw[2] * oihw[3]
        params[f"w{i}"] = jax.random.normal(kw, oihw, jnp.float32) / np.sqrt(fan_in)
        params[f"b{i}"] = jax.random.normal(kb, (oihw[0],), jnp.float32) * 0.01
    return params


def _reference_forward(x_nchw, params):
    """Pure-JAX reference (lax.conv) for correctness checking."""
    x = jnp.transpose(x_nchw, (0, 2, 3, 1))
    dn = ("NHWC", "HWIO", "NHWC")
    for i, relu in ((1, True), (2, True), (3, False)):
        w = jnp.transpose(params[f"w{i}"], (2, 3, 1, 0))
        x = jax.lax.conv_general_dilated(
            x, w, window_strides=(1, 1), padding="SAME", dimension_numbers=dn,
        ) + params[f"b{i}"][None, None, None, :]
        if relu:
            x = jnp.maximum(x, 0.0)
    return jnp.transpose(x, (0, 3, 1, 2))


if __name__ == "__main__":
    key = jax.random.PRNGKey(0)
    k_x, k_p = jax.random.split(key)

    # Small shapes consistent with the module: batch=2, in_channels=4, 16x16.
    x = jax.random.normal(k_x, (2, 4, 16, 16), jnp.float32)
    params = init_params(k_p)

    out = jax.block_until_ready(pinn_with_cnn_forward(x, params))
    ref = jax.block_until_ready(_reference_forward(x, params))

    assert out.shape == (2, 5, 16, 16), out.shape
    np.testing.assert_allclose(np.asarray(out), np.asarray(ref), atol=1e-4, rtol=1e-4)

    print("KERNEL_OK")
</pallas_src>

<mosaic_0001>
module attributes {stable_mosaic.version = 11 : i64} {
  func.func @_fused_pinn_kernel(%arg0: i32, %arg1: memref<1x8x512xf32, #tpu.memory_space<vmem>>, %arg2: memref<9x512xf32, #tpu.memory_space<vmem>>, %arg3: memref<32x72xf32, #tpu.memory_space<vmem>>, %arg4: memref<32x1xf32, #tpu.memory_space<vmem>>, %arg5: memref<64x288xf32, #tpu.memory_space<vmem>>, %arg6: memref<64x1xf32, #tpu.memory_space<vmem>>, %arg7: memref<8x576xf32, #tpu.memory_space<vmem>>, %arg8: memref<8x1xf32, #tpu.memory_space<vmem>>, %arg9: memref<1x8x512xf32, #tpu.memory_space<vmem>>) attributes {dimension_semantics = [#tpu.dimension_semantics<parallel>], iteration_bounds = array<i64: 1>, scalar_prefetch = 0 : i64, scratch_operands = 0 : i64, tpu.core_type = #tpu.core_type<tc>, window_params = [{transform_indices = @transform_0, window_bounds = array<i64: 1, 8, 512>}, {pipeline_mode = #tpu.pipeline_mode<synchronous>, transform_indices = @transform_1, window_bounds = array<i64: 9, 512>}, {pipeline_mode = #tpu.pipeline_mode<synchronous>, transform_indices = @transform_2, window_bounds = array<i64: 32, 72>}, {pipeline_mode = #tpu.pipeline_mode<synchronous>, transform_indices = @transform_3, window_bounds = array<i64: 32, 1>}, {pipeline_mode = #tpu.pipeline_mode<synchronous>, transform_indices = @transform_4, window_bounds = array<i64: 64, 288>}, {pipeline_mode = #tpu.pipeline_mode<synchronous>, transform_indices = @transform_5, window_bounds = array<i64: 64, 1>}, {pipeline_mode = #tpu.pipeline_mode<synchronous>, transform_indices = @transform_6, window_bounds = array<i64: 8, 576>}, {pipeline_mode = #tpu.pipeline_mode<synchronous>, transform_indices = @transform_7, window_bounds = array<i64: 8, 1>}, {transform_indices = @transform_8, window_bounds = array<i64: 1, 8, 512>}]} {
    %c0 = arith.constant 0 : index
    %c0_0 = arith.constant 0 : index
    %0 = vector.load %arg2[%c0, %c0_0] : memref<9x512xf32, #tpu.memory_space<vmem>>, vector<1x512xf32>
    %c1 = arith.constant 1 : index
    %c0_1 = arith.constant 0 : index
    %1 = vector.load %arg2[%c1, %c0_1] : memref<9x512xf32, #tpu.memory_space<vmem>>, vector<1x512xf32>
    %c2 = arith.constant 2 : index
    %c0_2 = arith.constant 0 : index
    %2 = vector.load %arg2[%c2, %c0_2] : memref<9x512xf32, #tpu.memory_space<vmem>>, vector<1x512xf32>
    %c3 = arith.constant 3 : index
    %c0_3 = arith.constant 0 : index
    %3 = vector.load %arg2[%c3, %c0_3] : memref<9x512xf32, #tpu.memory_space<vmem>>, vector<1x512xf32>
    %c5 = arith.constant 5 : index
    %c0_4 = arith.constant 0 : index
    %4 = vector.load %arg2[%c5, %c0_4] : memref<9x512xf32, #tpu.memory_space<vmem>>, vector<1x512xf32>
    %c6 = arith.constant 6 : index
    %c0_5 = arith.constant 0 : index
    %5 = vector.load %arg2[%c6, %c0_5] : memref<9x512xf32, #tpu.memory_space<vmem>>, vector<1x512xf32>
    %c7 = arith.constant 7 : index
    %c0_6 = arith.constant 0 : index
    %6 = vector.load %arg2[%c7, %c0_6] : memref<9x512xf32, #tpu.memory_space<vmem>>, vector<1x512xf32>
    %c8 = arith.constant 8 : index
    %c0_7 = arith.constant 0 : index
    %7 = vector.load %arg2[%c8, %c0_7] : memref<9x512xf32, #tpu.memory_space<vmem>>, vector<1x512xf32>
    %c0_8 = arith.constant 0 : index
    %c0_9 = arith.constant 0 : index
    %c0_10 = arith.constant 0 : index
    %8 = vector.load %arg1[%c0_8, %c0_9, %c0_10] : memref<1x8x512xf32, #tpu.memory_space<vmem>>, vector<1x8x512xf32>
    %9 = vector.shape_cast %8 : vector<1x8x512xf32> to vector<8x512xf32>
    %cst = arith.constant 0.000000e+00 : f32
    %10 = vector.broadcast %cst : f32 to vector<32x512xf32>
    %c17_i32 = arith.constant 17 : i32
    %11 = tpu.dynamic_rotate %9 by %c17_i32 dim 1 : vector<8x512xf32>, i32 -> vector<8x512xf32>
    %12 = vector.broadcast %0 : vector<1x512xf32> to vector<8x512xf32>
    %13 = arith.mulf %11, %12 : vector<8x512xf32>
    %c0_11 = arith.constant 0 : index
    %c0_12 = arith.constant 0 : index
    %14 = vector.load %arg3[%c0_11, %c0_12] : memref<32x72xf32, #tpu.memory_space<vmem>>, vector<32x8xf32>
    %cst_13 = arith.constant dense<0.000000e+00> : vector<32x512xf32>
    %15 = tpu.matmul %14, %13, %cst_13 {dimension_numbers = #tpu.dot_dimension_numbers<[1], [0], [0], [1], [0, 0, 1, 1], [], []>} : vector<32x8xf32>, vector<8x512xf32>, vector<32x512xf32> -> vector<32x512xf32>
    %16 = arith.addf %10, %15 : vector<32x512xf32>
    %c16_i32 = arith.constant 16 : i32
    %17 = tpu.dynamic_rotate %9 by %c16_i32 dim 1 : vector<8x512xf32>, i32 -> vector<8x512xf32>
    %18 = vector.broadcast %1 : vector<1x512xf32> to vector<8x512xf32>
    %19 = arith.mulf %17, %18 : vector<8x512xf32>
    %c0_14 = arith.constant 0 : index
    %c8_15 = arith.constant 8 : index
    %20 = vector.load %arg3[%c0_14, %c8_15] : memref<32x72xf32, #tpu.memory_space<vmem>>, vector<32x8xf32>
    %cst_16 = arith.constant dense<0.000000e+00> : vector<32x512xf32>
    %21 = tpu.matmul %20, %19, %cst_16 {dimension_numbers = #tpu.dot_dimension_numbers<[1], [0], [0], [1], [0, 0, 1, 1], [], []>} : vector<32x8xf32>, vector<8x512xf32>, vector<32x512xf32> -> vector<32x512xf32>
    %22 = arith.addf %16, %21 : vector<32x512xf32>
    %c15_i32 = arith.constant 15 : i32
    %23 = tpu.dynamic_rotate %9 by %c15_i32 dim 1 : vector<8x512xf32>, i32 -> vector<8x512xf32>
    %24 = vector.broadcast %2 : vector<1x512xf32> to vector<8x512xf32>
    %25 = arith.mulf %23, %24 : vector<8x512xf32>
    %c0_17 = arith.constant 0 : index
    %c16 = arith.constant 16 : index
    %26 = vector.load %arg3[%c0_17, %c16] : memref<32x72xf32, #tpu.memory_space<vmem>>, vector<32x8xf32>
    %cst_18 = arith.constant dense<0.000000e+00> : vector<32x512xf32>
    %27 = tpu.matmul %26, %25, %cst_18 {dimension_numbers = #tpu.dot_dimension_numbers<[1], [0], [0], [1], [0, 0, 1, 1], [], []>} : vector<32x8xf32>, vector<8x512xf32>, vector<32x512xf32> -> vector<32x512xf32>
    %28 = arith.addf %22, %27 : vector<32x512xf32>
    %c1_i32 = arith.constant 1 : i32
    %29 = tpu.dynamic_rotate %9 by %c1_i32 dim 1 : vector<8x512xf32>, i32 -> vector<8x512xf32>
    %30 = vector.broadcast %3 : vector<1x512xf32> to vector<8x512xf32>
    %31 = arith.mulf %29, %30 : vector<8x512xf32>
    %c0_19 = arith.constant 0 : index
    %c24 = arith.constant 24 : index
    %32 = vector.load %arg3[%c0_19, %c24] : memref<32x72xf32, #tpu.memory_space<vmem>>, vector<32x8xf32>
    %cst_20 = arith.constant dense<0.000000e+00> : vector<32x512xf32>
    %33 = tpu.matmul %32, %31, %cst_20 {dimension_numbers = #tpu.dot_dimension_numbers<[1], [0], [0], [1], [0, 0, 1, 1], [], []>} : vector<32x8xf32>, vector<8x512xf32>, vector<32x512xf32> -> vector<32x512xf32>
    %34 = arith.addf %28, %33 : vector<32x512xf32>
    %c0_21 = arith.constant 0 : index
    %c32 = arith.constant 32 : index
    %35 = vector.load %arg3[%c0_21, %c32] : memref<32x72xf32, #tpu.memory_space<vmem>>, vector<32x8xf32>
    %cst_22 = arith.constant dense<0.000000e+00> : vector<32x512xf32>
    %36 = tpu.matmul %35, %9, %cst_22 {dimension_numbers = #tpu.dot_dimension_numbers<[1], [0], [0], [1], [0, 0, 1, 1], [], []>} : vector<32x8xf32>, vector<8x512xf32>, vector<32x512xf32> -> vector<32x512xf32>
    %37 = arith.addf %34, %36 : vector<32x512xf32>
    %c511_i32 = arith.constant 511 : i32
    %38 = tpu.dynamic_rotate %9 by %c511_i32 dim 1 : vector<8x512xf32>, i32 -> vector<8x512xf32>
    %39 = vector.broadcast %4 : vector<1x512xf32> to vector<8x512xf32>
    %40 = arith.mulf %38, %39 : vector<8x512xf32>
    %c0_23 = arith.constant 0 : index
    %c40 = arith.constant 40 : index
    %41 = vector.load %arg3[%c0_23, %c40] : memref<32x72xf32, #tpu.memory_space<vmem>>, vector<32x8xf32>
    %cst_24 = arith.constant dense<0.000000e+00> : vector<32x512xf32>
    %42 = tpu.matmul %41, %40, %cst_24 {dimension_numbers = #tpu.dot_dimension_numbers<[1], [0], [0], [1], [0, 0, 1, 1], [], []>} : vector<32x8xf32>, vector<8x512xf32>, vector<32x512xf32> -> vector<32x512xf32>
    %43 = arith.addf %37, %42 : vector<32x512xf32>
    %c497_i32 = arith.constant 497 : i32
    %44 = tpu.dynamic_rotate %9 by %c497_i32 dim 1 : vector<8x512xf32>, i32 -> vector<8x512xf32>
    %45 = vector.broadcast %5 : vector<1x512xf32> to vector<8x512xf32>
    %46 = arith.mulf %44, %45 : vector<8x512xf32>
    %c0_25 = arith.constant 0 : index
    %c48 = arith.constant 48 : index
    %47 = vector.load %arg3[%c0_25, %c48] : memref<32x72xf32, #tpu.memory_space<vmem>>, vector<32x8xf32>
    %cst_26 = arith.constant dense<0.000000e+00> : vector<32x512xf32>
    %48 = tpu.matmul %47, %46, %cst_26 {dimension_numbers = #tpu.dot_dimension_numbers<[1], [0], [0], [1], [0, 0, 1, 1], [], []>} : vector<32x8xf32>, vector<8x512xf32>, vector<32x512xf32> -> vector<32x512xf32>
    %49 = arith.addf %43, %48 : vector<32x512xf32>
    %c496_i32 = arith.constant 496 : i32
    %50 = tpu.dynamic_rotate %9 by %c496_i32 dim 1 : vector<8x512xf32>, i32 -> vector<8x512xf32>
    %51 = vector.broadcast %6 : vector<1x512xf32> to vector<8x512xf32>
    %52 = arith.mulf %50, %51 : vector<8x512xf32>
    %c0_27 = arith.constant 0 : index
    %c56 = arith.constant 56 : index
    %53 = vector.load %arg3[%c0_27, %c56] : memref<32x72xf32, #tpu.memory_space<vmem>>, vector<32x8xf32>
    %cst_28 = arith.constant dense<0.000000e+00> : vector<32x512xf32>
    %54 = tpu.matmul %53, %52, %cst_28 {dimension_numbers = #tpu.dot_dimension_numbers<[1], [0], [0], [1], [0, 0, 1, 1], [], []>} : vector<32x8xf32>, vector<8x512xf32>, vector<32x512xf32> -> vector<32x512xf32>
    %55 = arith.addf %49, %54 : vector<32x512xf32>
    %c495_i32 = arith.constant 495 : i32
    %56 = tpu.dynamic_rotate %9 by %c495_i32 dim 1 : vector<8x512xf32>, i32 -> vector<8x512xf32>
    %57 = vector.broadcast %7 : vector<1x512xf32> to vector<8x512xf32>
    %58 = arith.mulf %56, %57 : vector<8x512xf32>
    %c0_29 = arith.constant 0 : index
    %c64 = arith.constant 64 : index
    %59 = vector.load %arg3[%c0_29, %c64] : memref<32x72xf32, #tpu.memory_space<vmem>>, vector<32x8xf32>
    %cst_30 = arith.constant dense<0.000000e+00> : vector<32x512xf32>
    %60 = tpu.matmul %59, %58, %cst_30 {dimension_numbers = #tpu.dot_dimension_numbers<[1], [0], [0], [1], [0, 0, 1, 1], [], []>} : vector<32x8xf32>, vector<8x512xf32>, vector<32x512xf32> -> vector<32x512xf32>
    %61 = arith.addf %55, %60 : vector<32x512xf32>
    %c0_31 = arith.constant 0 : index
    %c0_32 = arith.constant 0 : index
    %62 = vector.load %arg4[%c0_31, %c0_32] : memref<32x1xf32, #tpu.memory_space<vmem>>, vector<32x1xf32>
    %63 = vector.broadcast %62 : vector<32x1xf32> to vector<32x512xf32>
    %64 = arith.addf %61, %63 : vector<32x512xf32>
    %cst_33 = arith.constant 0.000000e+00 : f32
    %65 = vector.broadcast %cst_33 : f32 to vector<32x512xf32>
    %66 = arith.maximumf %64, %65 : vector<32x512xf32>
    %cst_34 = arith.constant 0.000000e+00 : f32
    %67 = vector.broadcast %cst_34 : f32 to vector<64x512xf32>
    %c17_i32_35 = arith.constant 17 : i32
    %68 = tpu.dynamic_rotate %66 by %c17_i32_35 dim 1 : vector<32x512xf32>, i32 -> vector<32x512xf32>
    %69 = vector.broadcast %0 : vector<1x512xf32> to vector<32x512xf32>
    %70 = arith.mulf %68, %69 : vector<32x512xf32>
    %c0_36 = arith.constant 0 : index
    %c0_37 = arith.constant 0 : index
    %71 = vector.load %arg5[%c0_36, %c0_37] : memref<64x288xf32, #tpu.memory_space<vmem>>, vector<64x32xf32>
    %cst_38 = arith.constant dense<0.000000e+00> : vector<64x512xf32>
    %72 = tpu.matmul %71, %70, %cst_38 {dimension_numbers = #tpu.dot_dimension_numbers<[1], [0], [0], [1], [0, 0, 1, 1], [], []>} : vector<64x32xf32>, vector<32x512xf32>, vector<64x512xf32> -> vector<64x512xf32>
    %73 = arith.addf %67, %72 : vector<64x512xf32>
    %c16_i32_39 = arith.constant 16 : i32
    %74 = tpu.dynamic_rotate %66 by %c16_i32_39 dim 1 : vector<32x512xf32>, i32 -> vector<32x512xf32>
    %75 = vector.broadcast %1 : vector<1x512xf32> to vector<32x512xf32>
    %76 = arith.mulf %74, %75 : vector<32x512xf32>
    %c0_40 = arith.constant 0 : index
    %c32_41 = arith.constant 32 : index
    %77 = vector.load %arg5[%c0_40, %c32_41] : memref<64x288xf32, #tpu.memory_space<vmem>>, vector<64x32xf32>
    %cst_42 = arith.constant dense<0.000000e+00> : vector<64x512xf32>
    %78 = tpu.matmul %77, %76, %cst_42 {dimension_numbers = #tpu.dot_dimension_numbers<[1], [0], [0], [1], [0, 0, 1, 1], [], []>} : vector<64x32xf32>, vector<32x512xf32>, vector<64x512xf32> -> vector<64x512xf32>
    %79 = arith.addf %73, %78 : vector<64x512xf32>
    %c15_i32_43 = arith.constant 15 : i32
    %80 = tpu.dynamic_rotate %66 by %c15_i32_43 dim 1 : vector<32x512xf32>, i32 -> vector<32x512xf32>
    %81 = vector.broadcast %2 : vector<1x512xf32> to vector<32x512xf32>
    %82 = arith.mulf %80, %81 : vector<32x512xf32>
    %c0_44 = arith.constant 0 : index
    %c64_45 = arith.constant 64 : index
    %83 = vector.load %arg5[%c0_44, %c64_45] : memref<64x288xf32, #tpu.memory_space<vmem>>, vector<64x32xf32>
    %cst_46 = arith.constant dense<0.000000e+00> : vector<64x512xf32>
    %84 = tpu.matmul %83, %82, %cst_46 {dimension_numbers = #tpu.dot_dimension_numbers<[1], [0], [0], [1], [0, 0, 1, 1], [], []>} : vector<64x32xf32>, vector<32x512xf32>, vector<64x512xf32> -> vector<64x512xf32>
    %85 = arith.addf %79, %84 : vector<64x512xf32>
    %c1_i32_47 = arith.constant 1 : i32
    %86 = tpu.dynamic_rotate %66 by %c1_i32_47 dim 1 : vector<32x512xf32>, i32 -> vector<32x512xf32>
    %87 = vector.broadcast %3 : vector<1x512xf32> to vector<32x512xf32>
    %88 = arith.mulf %86, %87 : vector<32x512xf32>
    %c0_48 = arith.constant 0 : index
    %c96 = arith.constant 96 : index
    %89 = vector.load %arg5[%c0_48, %c96] : memref<64x288xf32, #tpu.memory_space<vmem>>, vector<64x32xf32>
    %cst_49 = arith.constant dense<0.000000e+00> : vector<64x512xf32>
    %90 = tpu.matmul %89, %88, %cst_49 {dimension_numbers = #tpu.dot_dimension_numbers<[1], [0], [0], [1], [0, 0, 1, 1], [], []>} : vector<64x32xf32>, vector<32x512xf32>, vector<64x512xf32> -> vector<64x512xf32>
    %91 = arith.addf %85, %90 : vector<64x512xf32>
    %c0_50 = arith.constant 0 : index
    %c128 = arith.constant 128 : index
    %92 = vector.load %arg5[%c0_50, %c128] : memref<64x288xf32, #tpu.memory_space<vmem>>, vector<64x32xf32>
    %cst_51 = arith.constant dense<0.000000e+00> : vector<64x512xf32>
    %93 = tpu.matmul %92, %66, %cst_51 {dimension_numbers = #tpu.dot_dimension_numbers<[1], [0], [0], [1], [0, 0, 1, 1], [], []>} : vector<64x32xf32>, vector<32x512xf32>, vector<64x512xf32> -> vector<64x512xf32>
    %94 = arith.addf %91, %93 : vector<64x512xf32>
    %c511_i32_52 = arith.constant 511 : i32
    %95 = tpu.dynamic_rotate %66 by %c511_i32_52 dim 1 : vector<32x512xf32>, i32 -> vector<32x512xf32>
    %96 = vector.broadcast %4 : vector<1x512xf32> to vector<32x512xf32>
    %97 = arith.mulf %95, %96 : vector<32x512xf32>
    %c0_53 = arith.constant 0 : index
    %c160 = arith.constant 160 : index
    %98 = vector.load %arg5[%c0_53, %c160] : memref<64x288xf32, #tpu.memory_space<vmem>>, vector<64x32xf32>
    %cst_54 = arith.constant dense<0.000000e+00> : vector<64x512xf32>
    %99 = tpu.matmul %98, %97, %cst_54 {dimension_numbers = #tpu.dot_dimension_numbers<[1], [0], [0], [1], [0, 0, 1, 1], [], []>} : vector<64x32xf32>, vector<32x512xf32>, vector<64x512xf32> -> vector<64x512xf32>
    %100 = arith.addf %94, %99 : vector<64x512xf32>
    %c497_i32_55 = arith.constant 497 : i32
    %101 = tpu.dynamic_rotate %66 by %c497_i32_55 dim 1 : vector<32x512xf32>, i32 -> vector<32x512xf32>
    %102 = vector.broadcast %5 : vector<1x512xf32> to vector<32x512xf32>
    %103 = arith.mulf %101, %102 : vector<32x512xf32>
    %c0_56 = arith.constant 0 : index
    %c192 = arith.constant 192 : index
    %104 = vector.load %arg5[%c0_56, %c192] : memref<64x288xf32, #tpu.memory_space<vmem>>, vector<64x32xf32>
    %cst_57 = arith.constant dense<0.000000e+00> : vector<64x512xf32>
    %105 = tpu.matmul %104, %103, %cst_57 {dimension_numbers = #tpu.dot_dimension_numbers<[1], [0], [0], [1], [0, 0, 1, 1], [], []>} : vector<64x32xf32>, vector<32x512xf32>, vector<64x512xf32> -> vector<64x512xf32>
    %106 = arith.addf %100, %105 : vector<64x512xf32>
    %c496_i32_58 = arith.constant 496 : i32
    %107 = tpu.dynamic_rotate %66 by %c496_i32_58 dim 1 : vector<32x512xf32>, i32 -> vector<32x512xf32>
    %108 = vector.broadcast %6 : vector<1x512xf32> to vector<32x512xf32>
    %109 = arith.mulf %107, %108 : vector<32x512xf32>
    %c0_59 = arith.constant 0 : index
    %c224 = arith.constant 224 : index
    %110 = vector.load %arg5[%c0_59, %c224] : memref<64x288xf32, #tpu.memory_space<vmem>>, vector<64x32xf32>
    %cst_60 = arith.constant dense<0.000000e+00> : vector<64x512xf32>
    %111 = tpu.matmul %110, %109, %cst_60 {dimension_numbers = #tpu.dot_dimension_numbers<[1], [0], [0], [1], [0, 0, 1, 1], [], []>} : vector<64x32xf32>, vector<32x512xf32>, vector<64x512xf32> -> vector<64x512xf32>
    %112 = arith.addf %106, %111 : vector<64x512xf32>
    %c495_i32_61 = arith.constant 495 : i32
    %113 = tpu.dynamic_rotate %66 by %c495_i32_61 dim 1 : vector<32x512xf32>, i32 -> vector<32x512xf32>
    %114 = vector.broadcast %7 : vector<1x512xf32> to vector<32x512xf32>
    %115 = arith.mulf %113, %114 : vector<32x512xf32>
    %c0_62 = arith.constant 0 : index
    %c256 = arith.constant 256 : index
    %116 = vector.load %arg5[%c0_62, %c256] : memref<64x288xf32, #tpu.memory_space<vmem>>, vector<64x32xf32>
    %cst_63 = arith.constant dense<0.000000e+00> : vector<64x512xf32>
    %117 = tpu.matmul %116, %115, %cst_63 {dimension_numbers = #tpu.dot_dimension_numbers<[1], [0], [0], [1], [0, 0, 1, 1], [], []>} : vector<64x32xf32>, vector<32x512xf32>, vector<64x512xf32> -> vector<64x512xf32>
    %118 = arith.addf %112, %117 : vector<64x512xf32>
    %c0_64 = arith.constant 0 : index
    %c0_65 = arith.constant 0 : index
    %119 = vector.load %arg6[%c0_64, %c0_65] : memref<64x1xf32, #tpu.memory_space<vmem>>, vector<64x1xf32>
    %120 = vector.broadcast %119 : vector<64x1xf32> to vector<64x512xf32>
    %121 = arith.addf %118, %120 : vector<64x512xf32>
    %cst_66 = arith.constant 0.000000e+00 : f32
    %122 = vector.broadcast %cst_66 : f32 to vector<64x512xf32>
    %123 = arith.maximumf %121, %122 : vector<64x512xf32>
    %cst_67 = arith.constant 0.000000e+00 : f32
    %124 = vector.broadcast %cst_67 : f32 to vector<8x512xf32>
    %c17_i32_68 = arith.constant 17 : i32
    %125 = tpu.dynamic_rotate %123 by %c17_i32_68 dim 1 : vector<64x512xf32>, i32 -> vector<64x512xf32>
    %126 = vector.broadcast %0 : vector<1x512xf32> to vector<64x512xf32>
    %127 = arith.mulf %125, %126 : vector<64x512xf32>
    %c0_69 = arith.constant 0 : index
    %c0_70 = arith.constant 0 : index
    %128 = vector.load %arg7[%c0_69, %c0_70] : memref<8x576xf32, #tpu.memory_space<vmem>>, vector<8x64xf32>
    %cst_71 = arith.constant dense<0.000000e+00> : vector<8x512xf32>
    %129 = tpu.matmul %128, %127, %cst_71 {dimension_numbers = #tpu.dot_dimension_numbers<[1], [0], [0], [1], [0, 0, 1, 1], [], []>} : vector<8x64xf32>, vector<64x512xf32>, vector<8x512xf32> -> vector<8x512xf32>
    %130 = arith.addf %124, %129 : vector<8x512xf32>
    %c16_i32_72 = arith.constant 16 : i32
    %131 = tpu.dynamic_rotate %123 by %c16_i32_72 dim 1 : vector<64x512xf32>, i32 -> vector<64x512xf32>
    %132 = vector.broadcast %1 : vector<1x512xf32> to vector<64x512xf32>
    %133 = arith.mulf %131, %132 : vector<64x512xf32>
    %c0_73 = arith.constant 0 : index
    %c64_74 = arith.constant 64 : index
    %134 = vector.load %arg7[%c0_73, %c64_74] : memref<8x576xf32, #tpu.memory_space<vmem>>, vector<8x64xf32>
    %cst_75 = arith.constant dense<0.000000e+00> : vector<8x512xf32>
    %135 = tpu.matmul %134, %133, %cst_75 {dimension_numbers = #tpu.dot_dimension_numbers<[1], [0], [0], [1], [0, 0, 1, 1], [], []>} : vector<8x64xf32>, vector<64x512xf32>, vector<8x512xf32> -> vector<8x512xf32>
    %136 = arith.addf %130, %135 : vector<8x512xf32>
    %c15_i32_76 = arith.constant 15 : i32
    %137 = tpu.dynamic_rotate %123 by %c15_i32_76 dim 1 : vector<64x512xf32>, i32 -> vector<64x512xf32>
    %138 = vector.broadcast %2 : vector<1x512xf32> to vector<64x512xf32>
    %139 = arith.mulf %137, %138 : vector<64x512xf32>
    %c0_77 = arith.constant 0 : index
    %c128_78 = arith.constant 128 : index
    %140 = vector.load %arg7[%c0_77, %c128_78] : memref<8x576xf32, #tpu.memory_space<vmem>>, vector<8x64xf32>
    %cst_79 = arith.constant dense<0.000000e+00> : vector<8x512xf32>
    %141 = tpu.matmul %140, %139, %cst_79 {dimension_numbers = #tpu.dot_dimension_numbers<[1], [0], [0], [1], [0, 0, 1, 1], [], []>} : vector<8x64xf32>, vector<64x512xf32>, vector<8x512xf32> -> vector<8x512xf32>
    %142 = arith.addf %136, %141 : vector<8x512xf32>
    %c1_i32_80 = arith.constant 1 : i32
    %143 = tpu.dynamic_rotate %123 by %c1_i32_80 dim 1 : vector<64x512xf32>, i32 -> vector<64x512xf32>
    %144 = vector.broadcast %3 : vector<1x512xf32> to vector<64x512xf32>
    %145 = arith.mulf %143, %144 : vector<64x512xf32>
    %c0_81 = arith.constant 0 : index
    %c192_82 = arith.constant 192 : index
    %146 = vector.load %arg7[%c0_81, %c192_82] : memref<8x576xf32, #tpu.memory_space<vmem>>, vector<8x64xf32>
    %cst_83 = arith.constant dense<0.000000e+00> : vector<8x512xf32>
    %147 = tpu.matmul %146, %145, %cst_83 {dimension_numbers = #tpu.dot_dimension_numbers<[1], [0], [0], [1], [0, 0, 1, 1], [], []>} : vector<8x64xf32>, vector<64x512xf32>, vector<8x512xf32> -> vector<8x512xf32>
    %148 = arith.addf %142, %147 : vector<8x512xf32>
    %c0_84 = arith.constant 0 : index
    %c256_85 = arith.constant 256 : index
    %149 = vector.load %arg7[%c0_84, %c256_85] : memref<8x576xf32, #tpu.memory_space<vmem>>, vector<8x64xf32>
    %cst_86 = arith.constant dense<0.000000e+00> : vector<8x512xf32>
    %150 = tpu.matmul %149, %123, %cst_86 {dimension_numbers = #tpu.dot_dimension_numbers<[1], [0], [0], [1], [0, 0, 1, 1], [], []>} : vector<8x64xf32>, vector<64x512xf32>, vector<8x512xf32> -> vector<8x512xf32>
    %151 = arith.addf %148, %150 : vector<8x512xf32>
    %c511_i32_87 = arith.constant 511 : i32
    %152 = tpu.dynamic_rotate %123 by %c511_i32_87 dim 1 : vector<64x512xf32>, i32 -> vector<64x512xf32>
    %153 = vector.broadcast %4 : vector<1x512xf32> to vector<64x512xf32>
    %154 = arith.mulf %152, %153 : vector<64x512xf32>
    %c0_88 = arith.constant 0 : index
    %c320 = arith.constant 320 : index
    %155 = vector.load %arg7[%c0_88, %c320] : memref<8x576xf32, #tpu.memory_space<vmem>>, vector<8x64xf32>
    %cst_89 = arith.constant dense<0.000000e+00> : vector<8x512xf32>
    %156 = tpu.matmul %155, %154, %cst_89 {dimension_numbers = #tpu.dot_dimension_numbers<[1], [0], [0], [1], [0, 0, 1, 1], [], []>} : vector<8x64xf32>, vector<64x512xf32>, vector<8x512xf32> -> vector<8x512xf32>
    %157 = arith.addf %151, %156 : vector<8x512xf32>
    %c497_i32_90 = arith.constant 497 : i32
    %158 = tpu.dynamic_rotate %123 by %c497_i32_90 dim 1 : vector<64x512xf32>, i32 -> vector<64x512xf32>
    %159 = vector.broadcast %5 : vector<1x512xf32> to vector<64x512xf32>
    %160 = arith.mulf %158, %159 : vector<64x512xf32>
    %c0_91 = arith.constant 0 : index
    %c384 = arith.constant 384 : index
    %161 = vector.load %arg7[%c0_91, %c384] : memref<8x576xf32, #tpu.memory_space<vmem>>, vector<8x64xf32>
    %cst_92 = arith.constant dense<0.000000e+00> : vector<8x512xf32>
    %162 = tpu.matmul %161, %160, %cst_92 {dimension_numbers = #tpu.dot_dimension_numbers<[1], [0], [0], [1], [0, 0, 1, 1], [], []>} : vector<8x64xf32>, vector<64x512xf32>, vector<8x512xf32> -> vector<8x512xf32>
    %163 = arith.addf %157, %162 : vector<8x512xf32>
    %c496_i32_93 = arith.constant 496 : i32
    %164 = tpu.dynamic_rotate %123 by %c496_i32_93 dim 1 : vector<64x512xf32>, i32 -> vector<64x512xf32>
    %165 = vector.broadcast %6 : vector<1x512xf32> to vector<64x512xf32>
    %166 = arith.mulf %164, %165 : vector<64x512xf32>
    %c0_94 = arith.constant 0 : index
    %c448 = arith.constant 448 : index
    %167 = vector.load %arg7[%c0_94, %c448] : memref<8x576xf32, #tpu.memory_space<vmem>>, vector<8x64xf32>
    %cst_95 = arith.constant dense<0.000000e+00> : vector<8x512xf32>
    %168 = tpu.matmul %167, %166, %cst_95 {dimension_numbers = #tpu.dot_dimension_numbers<[1], [0], [0], [1], [0, 0, 1, 1], [], []>} : vector<8x64xf32>, vector<64x512xf32>, vector<8x512xf32> -> vector<8x512xf32>
    %169 = arith.addf %163, %168 : vector<8x512xf32>
    %c495_i32_96 = arith.constant 495 : i32
    %170 = tpu.dynamic_rotate %123 by %c495_i32_96 dim 1 : vector<64x512xf32>, i32 -> vector<64x512xf32>
    %171 = vector.broadcast %7 : vector<1x512xf32> to vector<64x512xf32>
    %172 = arith.mulf %170, %171 : vector<64x512xf32>
    %c0_97 = arith.constant 0 : index
    %c512 = arith.constant 512 : index
    %173 = vector.load %arg7[%c0_97, %c512] : memref<8x576xf32, #tpu.memory_space<vmem>>, vector<8x64xf32>
    %cst_98 = arith.constant dense<0.000000e+00> : vector<8x512xf32>
    %174 = tpu.matmul %173, %172, %cst_98 {dimension_numbers = #tpu.dot_dimension_numbers<[1], [0], [0], [1], [0, 0, 1, 1], [], []>} : vector<8x64xf32>, vector<64x512xf32>, vector<8x512xf32> -> vector<8x512xf32>
    %175 = arith.addf %169, %174 : vector<8x512xf32>
    %c0_99 = arith.constant 0 : index
    %c0_100 = arith.constant 0 : index
    %176 = vector.load %arg8[%c0_99, %c0_100] : memref<8x1xf32, #tpu.memory_space<vmem>>, vector<8x1xf32>
    %177 = vector.broadcast %176 : vector<8x1xf32> to vector<8x512xf32>
    %178 = arith.addf %175, %177 : vector<8x512xf32>
    %c0_101 = arith.constant 0 : index
    %c0_102 = arith.constant 0 : index
    %c0_103 = arith.constant 0 : index
    %179 = vector.load %arg9[%c0_101, %c0_102, %c0_103] : memref<1x8x512xf32, #tpu.memory_space<vmem>>, vector<1x8x512xf32>
    %180 = vector.shape_cast %179 : vector<1x8x512xf32> to vector<8x512xf32>
    %181 = vector.shape_cast %178 : vector<8x512xf32> to vector<1x8x512xf32>
    tpu.vector_store %arg9[%c0_101, %c0_102, %c0_103], %181 {strides = array<i32>} : memref<1x8x512xf32, #tpu.memory_space<vmem>>, vector<1x8x512xf32>,
    return
  }
  func.func @transform_0(%arg0: i32) -> (i32, i32, i32) {
    %c0_i32 = arith.constant 0 : i32
    %c0_i32_0 = arith.constant 0 : i32
    %c0_i32_1 = arith.constant 0 : i32
    return %arg0, %c0_i32, %c0_i32_0 : i32, i32, i32
  }
  func.func @transform_1(%arg0: i32) -> (i32, i32) {
    %c0_i32 = arith.constant 0 : i32
    %c0_i32_0 = arith.constant 0 : i32
    %c0_i32_1 = arith.constant 0 : i32
    return %c0_i32, %c0_i32_0 : i32, i32
  }
  func.func @transform_2(%arg0: i32) -> (i32, i32) {
    %c0_i32 = arith.constant 0 : i32
    %c0_i32_0 = arith.constant 0 : i32
    %c0_i32_1 = arith.constant 0 : i32
    return %c0_i32, %c0_i32_0 : i32, i32
  }
  func.func @transform_3(%arg0: i32) -> (i32, i32) {
    %c0_i32 = arith.constant 0 : i32
    %c0_i32_0 = arith.constant 0 : i32
    %c0_i32_1 = arith.constant 0 : i32
    return %c0_i32, %c0_i32_0 : i32, i32
  }
  func.func @transform_4(%arg0: i32) -> (i32, i32) {
    %c0_i32 = arith.constant 0 : i32
    %c0_i32_0 = arith.constant 0 : i32
    %c0_i32_1 = arith.constant 0 : i32
    return %c0_i32, %c0_i32_0 : i32, i32
  }
  func.func @transform_5(%arg0: i32) -> (i32, i32) {
    %c0_i32 = arith.constant 0 : i32
    %c0_i32_0 = arith.constant 0 : i32
    %c0_i32_1 = arith.constant 0 : i32
    return %c0_i32, %c0_i32_0 : i32, i32
  }
  func.func @transform_6(%arg0: i32) -> (i32, i32) {
    %c0_i32 = arith.constant 0 : i32
    %c0_i32_0 = arith.constant 0 : i32
    %c0_i32_1 = arith.constant 0 : i32
    return %c0_i32, %c0_i32_0 : i32, i32
  }
  func.func @transform_7(%arg0: i32) -> (i32, i32) {
    %c0_i32 = arith.constant 0 : i32
    %c0_i32_0 = arith.constant 0 : i32
    %c0_i32_1 = arith.constant 0 : i32
    return %c0_i32, %c0_i32_0 : i32, i32
  }
  func.func @transform_8(%arg0: i32) -> (i32, i32, i32) {
    %c0_i32 = arith.constant 0 : i32
    %c0_i32_0 = arith.constant 0 : i32
    %c0_i32_1 = arith.constant 0 : i32
    return %arg0, %c0_i32, %c0_i32_0 : i32, i32, i32
  }
}

</mosaic_0001>

<llo_original>
// kernel: pinn_with_cnn_forward.1
$region0: #{pinn_with_cnn_forward.1}
  #allocation0 [shape = 'u32[]', space=smem, size = 0x4, offset = 0x4, fixed_abs, tag = 'smem constant byte address 0x4 - core index']
  #allocation1 [shape = 'u32[144,128]{1,0:T(1,128)}', space=vmem, size = 0x12000, scoped, tag = 'internal scratch']
  %s0 = inlined_call_operand.vmem [shape: f32[1,8,512], index: 0, kind: input, shape index: {}]
  %s1 = inlined_call_operand.vmem [shape: f32[9,512], index: 1, kind: input, shape index: {}]
  %s2 = inlined_call_operand.vmem [shape: f32[32,72], index: 2, kind: input, shape index: {}]
  %s3 = inlined_call_operand.vmem [shape: f32[32,1], index: 3, kind: input, shape index: {}]
  %s4 = inlined_call_operand.vmem [shape: f32[64,288], index: 4, kind: input, shape index: {}]
  %s5 = inlined_call_operand.vmem [shape: f32[64,1], index: 5, kind: input, shape index: {}]
  %s6 = inlined_call_operand.vmem [shape: f32[8,576], index: 6, kind: input, shape index: {}]
  %s7 = inlined_call_operand.vmem [shape: f32[8,1], index: 7, kind: input, shape index: {}]
  %s8 = inlined_call_operand.vmem [shape: f32[1,8,512], index: 8, kind: output, shape index: {}]
  %s9 = sld [smem:[#allocation0]]
  $region42: #{pinn_with_cnn_forward.1} parent=0
    _
  %s11 = ssub.s32 1, %s9
  %s12 = scalar_select 0, %s11, %s9
  // Predicated region
  $region2: #{pinn_with_cnn_forward.1} parent=0 // pred_check
    _
  $region3: #{pinn_with_cnn_forward.1} parent=0 // pred_check_branch
    %14 = sbr.rel (0) target = $region5
  $region4: #{pinn_with_cnn_forward.1} parent=0 // pred_region
    _
  $region5: #{pinn_with_cnn_forward.1} parent=0 // pred_fallthru
    _
  // Predicated region
  $region6: #{pinn_with_cnn_forward.1} parent=0 // pred_check
    _
  $region7: #{pinn_with_cnn_forward.1} parent=0 // pred_check_branch
    %16 = sbr.rel (0) target = $region9
  $region8: #{pinn_with_cnn_forward.1} parent=0 // pred_region
    _
  $region9: #{pinn_with_cnn_forward.1} parent=0 // pred_fallthru
    _
  // Predicated region
  $region10: #{pinn_with_cnn_forward.1} parent=0 // pred_check
    _
  $region11: #{pinn_with_cnn_forward.1} parent=0 // pred_check_branch
    %18 = sbr.rel (0) target = $region13
  $region12: #{pinn_with_cnn_forward.1} parent=0 // pred_region
    _
  $region13: #{pinn_with_cnn_forward.1} parent=0 // pred_fallthru
    _
  // Predicated region
  $region14: #{pinn_with_cnn_forward.1} parent=0 // pred_check
    _
  $region15: #{pinn_with_cnn_forward.1} parent=0 // pred_check_branch
    %20 = sbr.rel (0) target = $region17
  $region16: #{pinn_with_cnn_forward.1} parent=0 // pred_region
    _
  $region17: #{pinn_with_cnn_forward.1} parent=0 // pred_fallthru
    _
  // Predicated region
  $region18: #{pinn_with_cnn_forward.1} parent=0 // pred_check
    _
  $region19: #{pinn_with_cnn_forward.1} parent=0 // pred_check_branch
    %22 = sbr.rel (0) target = $region21
  $region20: #{pinn_with_cnn_forward.1} parent=0 // pred_region
    _
  $region21: #{pinn_with_cnn_forward.1} parent=0 // pred_fallthru
    _
  // Predicated region
  $region22: #{pinn_with_cnn_forward.1} parent=0 // pred_check
    _
  $region23: #{pinn_with_cnn_forward.1} parent=0 // pred_check_branch
    %24 = sbr.rel (0) target = $region25
  $region24: #{pinn_with_cnn_forward.1} parent=0 // pred_region
    _
  $region25: #{pinn_with_cnn_forward.1} parent=0 // pred_fallthru
    _
  // Predicated region
  $region26: #{pinn_with_cnn_forward.1} parent=0 // pred_check
    _
  $region27: #{pinn_with_cnn_forward.1} parent=0 // pred_check_branch
    %26 = sbr.rel (0) target = $region29
  $region28: #{pinn_with_cnn_forward.1} parent=0 // pred_region
    _
  $region29: #{pinn_with_cnn_forward.1} parent=0 // pred_fallthru
    _
  // Predicated region
  $region30: #{pinn_with_cnn_forward.1} parent=0 // pred_check
    _
  $region31: #{pinn_with_cnn_forward.1} parent=0 // pred_check_branch
    %28 = sbr.rel (0) target = $region33
  $region32: #{pinn_with_cnn_forward.1} parent=0 // pred_region
    _
  $region33: #{pinn_with_cnn_forward.1} parent=0 // pred_fallthru
    _
  %v29 = vld [vmem:[%s1] ss:$8 sm:$0xf]
  %s30 = scalar_lea.vmem %s1, 1
  %v31 = vld [vmem:[%s30] ss:$8 sm:$0xf]
  %s32 = scalar_lea.vmem %s1, 2
  %v33 = vld [vmem:[%s32] ss:$8 sm:$0xf]
  %s34 = scalar_lea.vmem %s1, 3
  %v35 = vld [vmem:[%s34] ss:$8 sm:$0xf]
  %s36 = scalar_lea.vmem %s1, 5
  %v37 = vld [vmem:[%s36] ss:$8 sm:$0xf]
  %s38 = scalar_lea.vmem %s1, 6
  %v39 = vld [vmem:[%s38] ss:$8 sm:$0xf]
  %s40 = scalar_lea.vmem %s1, 7
  %v41 = vld [vmem:[%s40] ss:$8 sm:$0xf]
  %s42 = scalar_lea.vmem %s1, 32
  %v43 = vld [vmem:[%s42] ss:$8 sm:$0xf]
  %v44 = vld [vmem:[%s0] sm:$0xff]
  %v45 = vld [vmem:[%s0 + $0x8] sm:$0xff]
  %v46 = vld [vmem:[%s0 + $0x10] sm:$0xff]
  %v47 = vld [vmem:[%s0 + $0x18] sm:$0xff]
  %48 = vrot.lane.b32.xlu0 %v44, 17
  %v49 = vpop.permute.xlu0 %48
  %50 = vrot.lane.b32.xlu0 %v45, 17
  %v51 = vpop.permute.xlu0 %50
  %52 = vrot.lane.b32.xlu0 %v46, 17
  %v53 = vpop.permute.xlu0 %52
  %54 = vrot.lane.b32.xlu0 %v47, 17
  %v55 = vpop.permute.xlu0 %54
  %v56 = vlaneseq
  %v57 = vand.u32 %v56, 127
  %vm58 = vcmp.lt.s32.totalorder %v57, 17
  %v59 = vsel %vm58, %v53, %v55
  %v60 = vsel %vm58, %v51, %v53
  %v61 = vsel %vm58, %v49, %v51
  %v62 = vsel %vm58, %v55, %v49
  %v64 = vlaneseq
  %v65 = vshrl.u32 %v64, 7
  %v66 = vsub.s32 0, %v65
  %v67 = vrot.slane %v29, %v66
  %v68 = vlaneseq
  %v69 = vshrl.u32 %v68, 7
  %v70 = vsub.s32 1, %v69
  %v71 = vrot.slane %v29, %v70
  %v72 = vlaneseq
  %v73 = vshrl.u32 %v72, 7
  %v74 = vsub.s32 2, %v73
  %v75 = vrot.slane %v29, %v74
  %v76 = vlaneseq
  %v77 = vshrl.u32 %v76, 7
  %v78 = vsub.s32 3, %v77
  %v79 = vrot.slane %v29, %v78
  %v84 = vmul.f32 %v62, %v67
  %v85 = vmul.f32 %v61, %v71
  %v86 = vmul.f32 %v60, %v75
  %v87 = vmul.f32 %v59, %v79
  %v88 = vld [vmem:[%s2] sm:$0xff]
  %v89 = vld [vmem:[%s2 + $0x8] sm:$0xff]
  %v90 = vld [vmem:[%s2 + $0x10] sm:$0xff]
  %v91 = vld [vmem:[%s2 + $0x18] sm:$0xff]
  %92 = vrot.lane.b32.xlu0 %v44, 16
  %v93 = vpop.permute.xlu0 %92
  %94 = vrot.lane.b32.xlu0 %v45, 16
  %v95 = vpop.permute.xlu0 %94
  %96 = vrot.lane.b32.xlu0 %v46, 16
  %v97 = vpop.permute.xlu0 %96
  %98 = vrot.lane.b32.xlu0 %v47, 16
  %v99 = vpop.permute.xlu0 %98
  %vm100 = vcmp.lt.s32.totalorder %v57, 16
  %v101 = vsel %vm100, %v97, %v99
  %v102 = vsel %vm100, %v95, %v97
  %v103 = vsel %vm100, %v93, %v95
  %v104 = vsel %vm100, %v99, %v93
  %v106 = vlaneseq
  %v107 = vshrl.u32 %v106, 7
  %v108 = vsub.s32 0, %v107
  %v109 = vrot.slane %v31, %v108
  %v110 = vlaneseq
  %v111 = vshrl.u32 %v110, 7
  %v112 = vsub.s32 1, %v111
  %v113 = vrot.slane %v31, %v112
  %v114 = vlaneseq
  %v115 = vshrl.u32 %v114, 7
  %v116 = vsub.s32 2, %v115
  %v117 = vrot.slane %v31, %v116
  %v118 = vlaneseq
  %v119 = vshrl.u32 %v118, 7
  %v120 = vsub.s32 3, %v119
  %v121 = vrot.slane %v31, %v120
  %v126 = vmul.f32 %v104, %v109
  %v127 = vmul.f32 %v103, %v113
  %v128 = vmul.f32 %v102, %v117
  %v129 = vmul.f32 %v101, %v121
  %134 = vrot.lane.b32.xlu0 %v88, 120
  %v135 = vpop.permute.xlu0 %134
  %136 = vrot.lane.b32.xlu0 %v89, 120
  %v137 = vpop.permute.xlu0 %136
  %138 = vrot.lane.b32.xlu0 %v90, 120
  %v139 = vpop.permute.xlu0 %138
  %140 = vrot.lane.b32.xlu0 %v91, 120
  %v141 = vpop.permute.xlu0 %140
  %vm142 = vcmask 64512
  %v143 = vsel %vm142, %v135, 0
  %v145 = vsel %vm142, %v137, 0
  %v147 = vsel %vm142, %v139, 0
  %v149 = vsel %vm142, %v141, 0
  %151 = vmatprep.subr.mxu0 0.0
  %152 = vmatpush1.msra.mxu0 0.0
  %153 = vmatprep.subr.mxu0 0.0
  %154 = vmatpush1.msra.mxu0 0.0
  %155 = vmatprep.subr.mxu0 0.0
  %156 = vmatpush1.msra.mxu0 0.0
  %157 = vmatprep.subr.mxu0 0.0
  %158 = vmatpush1.msra.mxu0 0.0
  %159 = vmatprep.subr.mxu0 0.0
  %160 = vmatpush1.msra.mxu0 0.0
  %161 = vmatprep.subr.mxu0 0.0
  %162 = vmatpush1.msra.mxu0 0.0
  %163 = vmatprep.subr.mxu0 0.0
  %164 = vmatpush1.msra.mxu0 0.0
  %165 = vmatprep.subr.mxu0 0.0
  %166 = vmatpush1.msra.mxu0 0.0
  %167 = vmatprep.subr.mxu0 0.0
  %168 = vmatpush1.msra.mxu0 0.0
  %169 = vmatprep.subr.mxu0 0.0
  %170 = vmatpush1.msra.mxu0 0.0
  %171 = vmatprep.subr.mxu0 0.0
  %172 = vmatpush1.msra.mxu0 0.0
  %173 = vmatprep.subr.mxu0 0.0
  %174 = vmatpush1.msra.mxu0 0.0
  %175 = vmatprep.subr.mxu0 0.0
  %176 = vmatpush1.msra.mxu0 0.0
  %177 = vmatprep.subr.mxu0 0.0
  %178 = vmatpush1.msra.mxu0 0.0
  %179 = vmatprep.subr.mxu0 0.0
  %180 = vmatpush1.msra.mxu0 0.0
  %181 = vmatprep.subr.mxu0 %v127
  %182 = vmatpush1.msra.mxu0 %v126
  %183 = vmatprep.subr.mxu0 0.0
  %184 = vmatpush2.msra.mxu0 0.0
  %185 = vmatprep.subr.mxu0 0.0
  %186 = vmatpush2.msra.mxu0 0.0
  %187 = vmatprep.subr.mxu0 0.0
  %188 = vmatpush2.msra.mxu0 0.0
  %189 = vmatprep.subr.mxu0 0.0
  %190 = vmatpush2.msra.mxu0 0.0
  %191 = vmatprep.subr.mxu0 0.0
  %192 = vmatpush2.msra.mxu0 0.0
  %193 = vmatprep.subr.mxu0 0.0
  %194 = vmatpush2.msra.mxu0 0.0
  %195 = vmatprep.subr.mxu0 0.0
  %196 = vmatpush2.msra.mxu0 0.0
  %197 = vmatprep.subr.mxu0 0.0
  %198 = vmatpush2.msra.mxu0 0.0
  %199 = vmatprep.subr.mxu0 0.0
  %200 = vmatpush2.msra.mxu0 0.0
  %201 = vmatprep.subr.mxu0 0.0
  %202 = vmatpush2.msra.mxu0 0.0
  %203 = vmatprep.subr.mxu0 0.0
  %204 = vmatpush2.msra.mxu0 0.0
  %205 = vmatprep.subr.mxu0 0.0
  %206 = vmatpush2.msra.mxu0 0.0
  %207 = vmatprep.subr.mxu0 0.0
  %208 = vmatpush2.msra.mxu0 0.0
  %209 = vmatprep.subr.mxu0 0.0
  %210 = vmatpush2.msra.mxu0 0.0
  %211 = vmatprep.subr.mxu0 0.0
  %212 = vmatpush2.msra.mxu0 0.0
  %213 = vmatprep.subr.mxu0 0.0
  %214 = vmatpush2.msra.mxu0 0.0
  %215 = vmatprep.mubr.f32.mxu0 0.0
  %216 = vmatmul.mubr.f32.gmra.mxu0 %v143
  %v217 = vpop.f32.mrf.mxu0
  %v218 = vadd.f32 0.0, %v217
  %v219 = vpop.f32.mrf.mxu0
  %v220 = vadd.f32 0.0, %v219
  %221 = vmatprep.mubr.f32.mxu0 0.0
  %222 = vmatmul.mubr.f32.gmra.mxu0 %v145
  %v223 = vpop.f32.mrf.mxu0
  %v224 = vadd.f32 0.0, %v223
  %v225 = vpop.f32.mrf.mxu0
  %v226 = vadd.f32 0.0, %v225
  %227 = vmatprep.mubr.f32.mxu0 0.0
  %228 = vmatmul.mubr.f32.gmra.mxu0 %v147
  %v229 = vpop.f32.mrf.mxu0
  %v230 = vadd.f32 0.0, %v229
  %v231 = vpop.f32.mrf.mxu0
  %v232 = vadd.f32 0.0, %v231
  %233 = vmatprep.mubr.f32.mxu0 0.0
  %234 = vmatmul.mubr.f32.gmra.mxu0 %v149
  %v235 = vpop.f32.mrf.mxu0
  %v236 = vadd.f32 0.0, %v235
  %v237 = vpop.f32.mrf.mxu0
  %v238 = vadd.f32 0.0, %v237
  %239 = vdwg.mxu0
  %240 = vmatprep.subr.mxu0 0.0
  %241 = vmatpush1.msra.mxu0 0.0
  %242 = vmatprep.subr.mxu0 0.0
  %243 = vmatpush1.msra.mxu0 0.0
  %244 = vmatprep.subr.mxu0 0.0
  %245 = vmatpush1.msra.mxu0 0.0
  %246 = vmatprep.subr.mxu0 0.0
  %247 = vmatpush1.msra.mxu0 0.0
  %248 = vmatprep.subr.mxu0 0.0
  %249 = vmatpush1.msra.mxu0 0.0
  %250 = vmatprep.subr.mxu0 0.0
  %251 = vmatpush1.msra.mxu0 0.0
  %252 = vmatprep.subr.mxu0 0.0
  %253 = vmatpush1.msra.mxu0 0.0
  %254 = vmatprep.subr.mxu0 0.0
  %255 = vmatpush1.msra.mxu0 0.0
  %256 = vmatprep.subr.mxu0 0.0
  %257 = vmatpush1.msra.mxu0 0.0
  %258 = vmatprep.subr.mxu0 0.0
  %259 = vmatpush1.msra.mxu0 0.0
  %260 = vmatprep.subr.mxu0 0.0
  %261 = vmatpush1.msra.mxu0 0.0
  %262 = vmatprep.subr.mxu0 0.0
  %263 = vmatpush1.msra.mxu0 0.0
  %264 = vmatprep.subr.mxu0 0.0
  %265 = vmatpush1.msra.mxu0 0.0
  %266 = vmatprep.subr.mxu0 0.0
  %267 = vmatpush1.msra.mxu0 0.0
  %268 = vmatprep.subr.mxu0 0.0
  %269 = vmatpush1.msra.mxu0 0.0
  %270 = vmatprep.subr.mxu0 %v129
  %271 = vmatpush1.msra.mxu0 %v128
  %272 = vmatprep.subr.mxu0 0.0
  %273 = vmatpush2.msra.mxu0 0.0
  %274 = vmatprep.subr.mxu0 0.0
  %275 = vmatpush2.msra.mxu0 0.0
  %276 = vmatprep.subr.mxu0 0.0
  %277 = vmatpush2.msra.mxu0 0.0
  %278 = vmatprep.subr.mxu0 0.0
  %279 = vmatpush2.msra.mxu0 0.0
  %280 = vmatprep.subr.mxu0 0.0
  %281 = vmatpush2.msra.mxu0 0.0
  %282 = vmatprep.subr.mxu0 0.0
  %283 = vmatpush2.msra.mxu0 0.0
  %284 = vmatprep.subr.mxu0 0.0
  %285 = vmatpush2.msra.mxu0 0.0
  %286 = vmatprep.subr.mxu0 0.0
  %287 = vmatpush2.msra.mxu0 0.0
  %288 = vmatprep.subr.mxu0 0.0
  %289 = vmatpush2.msra.mxu0 0.0
  %290 = vmatprep.subr.mxu0 0.0
  %291 = vmatpush2.msra.mxu0 0.0
  %292 = vmatprep.subr.mxu0 0.0
  %293 = vmatpush2.msra.mxu0 0.0
  %294 = vmatprep.subr.mxu0 0.0
  %295 = vmatpush2.msra.mxu0 0.0
  %296 = vmatprep.subr.mxu0 0.0
  %297 = vmatpush2.msra.mxu0 0.0
  %298 = vmatprep.subr.mxu0 0.0
  %299 = vmatpush2.msra.mxu0 0.0
  %300 = vmatprep.subr.mxu0 0.0
  %301 = vmatpush2.msra.mxu0 0.0
  %302 = vmatprep.subr.mxu0 0.0
  %303 = vmatpush2.msra.mxu0 0.0
  %304 = vmatprep.mubr.f32.mxu0 0.0
  %305 = vmatmul.mubr.f32.gmra.mxu0 %v143
  %v306 = vpop.f32.mrf.mxu0
  %v307 = vadd.f32 0.0, %v306
  %v308 = vpop.f32.mrf.mxu0
  %v309 = vadd.f32 0.0, %v308
  %310 = vmatprep.mubr.f32.mxu0 0.0
  %311 = vmatmul.mubr.f32.gmra.mxu0 %v145
  %v312 = vpop.f32.mrf.mxu0
  %v313 = vadd.f32 0.0, %v312
  %v314 = vpop.f32.mrf.mxu0
  %v315 = vadd.f32 0.0, %v314
  %316 = vmatprep.mubr.f32.mxu0 0.0
  %317 = vmatmul.mubr.f32.gmra.mxu0 %v147
  %v318 = vpop.f32.mrf.mxu0
  %v319 = vadd.f32 0.0, %v318
  %v320 = vpop.f32.mrf.mxu0
  %v321 = vadd.f32 0.0, %v320
  %322 = vmatprep.mubr.f32.mxu0 0.0
  %323 = vmatmul.mubr.f32.gmra.mxu0 %v149
  %v324 = vpop.f32.mrf.mxu0
  %v325 = vadd.f32 0.0, %v324
  %v326 = vpop.f32.mrf.mxu0
  %v327 = vadd.f32 0.0, %v326
  %328 = vdwg.mxu0
  %v329 = vsel %vm142, %v88, 0
  %v331 = vsel %vm142, %v89, 0
  %v333 = vsel %vm142, %v90, 0
  %v335 = vsel %vm142, %v91, 0
  %337 = vmatprep.subr.mxu0 0.0
  %338 = vmatpush1.msra.mxu0 0.0
  %339 = vmatprep.subr.mxu0 0.0
  %340 = vmatpush1.msra.mxu0 0.0
  %341 = vmatprep.subr.mxu0 0.0
  %342 = vmatpush1.msra.mxu0 0.0
  %343 = vmatprep.subr.mxu0 0.0
  %344 = vmatpush1.msra.mxu0 0.0
  %345 = vmatprep.subr.mxu0 0.0
  %346 = vmatpush1.msra.mxu0 0.0
  %347 = vmatprep.subr.mxu0 0.0
  %348 = vmatpush1.msra.mxu0 0.0
  %349 = vmatprep.subr.mxu0 0.0
  %350 = vmatpush1.msra.mxu0 0.0
  %351 = vmatprep.subr.mxu0 0.0
  %352 = vmatpush1.msra.mxu0 0.0
  %353 = vmatprep.subr.mxu0 0.0
  %354 = vmatpush1.msra.mxu0 0.0
  %355 = vmatprep.subr.mxu0 0.0
  %356 = vmatpush1.msra.mxu0 0.0
  %357 = vmatprep.subr.mxu0 0.0
  %358 = vmatpush1.msra.mxu0 0.0
  %359 = vmatprep.subr.mxu0 0.0
  %360 = vmatpush1.msra.mxu0 0.0
  %361 = vmatprep.subr.mxu0 0.0
  %362 = vmatpush1.msra.mxu0 0.0
  %363 = vmatprep.subr.mxu0 0.0
  %364 = vmatpush1.msra.mxu0 0.0
  %365 = vmatprep.subr.mxu0 0.0
  %366 = vmatpush1.msra.mxu0 0.0
  %367 = vmatprep.subr.mxu0 %v85
  %368 = vmatpush1.msra.mxu0 %v84
  %369 = vmatprep.subr.mxu0 0.0
  %370 = vmatpush2.msra.mxu0 0.0
  %371 = vmatprep.subr.mxu0 0.0
  %372 = vmatpush2.msra.mxu0 0.0
  %373 = vmatprep.subr.mxu0 0.0
  %374 = vmatpush2.msra.mxu0 0.0
  %375 = vmatprep.subr.mxu0 0.0
  %376 = vmatpush2.msra.mxu0 0.0
  %377 = vmatprep.subr.mxu0 0.0
  %378 = vmatpush2.msra.mxu0 0.0
  %379 = vmatprep.subr.mxu0 0.0
  %380 = vmatpush2.msra.mxu0 0.0
  %381 = vmatprep.subr.mxu0 0.0
  %382 = vmatpush2.msra.mxu0 0.0
  %383 = vmatprep.subr.mxu0 0.0
  %384 = vmatpush2.msra.mxu0 0.0
  %385 = vmatprep.subr.mxu0 0.0
  %386 = vmatpush2.msra.mxu0 0.0
  %387 = vmatprep.subr.mxu0 0.0
  %388 = vmatpush2.msra.mxu0 0.0
  %389 = vmatprep.subr.mxu0 0.0
  %390 = vmatpush2.msra.mxu0 0.0
  %391 = vmatprep.subr.mxu0 0.0
  %392 = vmatpush2.msra.mxu0 0.0
  %393 = vmatprep.subr.mxu0 0.0
  %394 = vmatpush2.msra.mxu0 0.0
  %395 = vmatprep.subr.mxu0 0.0
  %396 = vmatpush2.msra.mxu0 0.0
  %397 = vmatprep.subr.mxu0 0.0
  %398 = vmatpush2.msra.mxu0 0.0
  %399 = vmatprep.subr.mxu0 0.0
  %400 = vmatpush2.msra.mxu0 0.0
  %401 = vmatprep.mubr.f32.mxu0 0.0
  %402 = vmatmul.mubr.f32.gmra.mxu0 %v329
  %v403 = vpop.f32.mrf.mxu0
  %v404 = vadd.f32 %v218, %v403
  %v405 = vpop.f32.mrf.mxu0
  %v406 = vadd.f32 %v220, %v405
  %407 = vmatprep.mubr.f32.mxu0 0.0
  %408 = vmatmul.mubr.f32.gmra.mxu0 %v331
  %v409 = vpop.f32.mrf.mxu0
  %v410 = vadd.f32 %v224, %v409
  %v411 = vpop.f32.mrf.mxu0
  %v412 = vadd.f32 %v226, %v411
  %413 = vmatprep.mubr.f32.mxu0 0.0
  %414 = vmatmul.mubr.f32.gmra.mxu0 %v333
  %v415 = vpop.f32.mrf.mxu0
  %v416 = vadd.f32 %v230, %v415
  %v417 = vpop.f32.mrf.mxu0
  %v418 = vadd.f32 %v232, %v417
  %419 = vmatprep.mubr.f32.mxu0 0.0
  %420 = vmatmul.mubr.f32.gmra.mxu0 %v335
  %v421 = vpop.f32.mrf.mxu0
  %v422 = vadd.f32 %v236, %v421
  %v423 = vpop.f32.mrf.mxu0
  %v424 = vadd.f32 %v238, %v423
  %425 = vdwg.mxu0
  %426 = vmatprep.subr.mxu0 0.0
  %427 = vmatpush1.msra.mxu0 0.0
  %428 = vmatprep.subr.mxu0 0.0
  %429 = vmatpush1.msra.mxu0 0.0
  %430 = vmatprep.subr.mxu0 0.0
  %431 = vmatpush1.msra.mxu0 0.0
  %432 = vmatprep.subr.mxu0 0.0
  %433 = vmatpush1.msra.mxu0 0.0
  %434 = vmatprep.subr.mxu0 0.0
  %435 = vmatpush1.msra.mxu0 0.0
  %436 = vmatprep.subr.mxu0 0.0
  %437 = vmatpush1.msra.mxu0 0.0
  %438 = vmatprep.subr.mxu0 0.0
  %439 = vmatpush1.msra.mxu0 0.0
  %440 = vmatprep.subr.mxu0 0.0
  %441 = vmatpush1.msra.mxu0 0.0
  %442 = vmatprep.subr.mxu0 0.0
  %443 = vmatpush1.msra.mxu0 0.0
  %444 = vmatprep.subr.mxu0 0.0
  %445 = vmatpush1.msra.mxu0 0.0
  %446 = vmatprep.subr.mxu0 0.0
  %447 = vmatpush1.msra.mxu0 0.0
  %448 = vmatprep.subr.mxu0 0.0
  %449 = vmatpush1.msra.mxu0 0.0
  %450 = vmatprep.subr.mxu0 0.0
  %451 = vmatpush1.msra.mxu0 0.0
  %452 = vmatprep.subr.mxu0 0.0
  %453 = vmatpush1.msra.mxu0 0.0
  %454 = vmatprep.subr.mxu0 0.0
  %455 = vmatpush1.msra.mxu0 0.0
  %456 = vmatprep.subr.mxu0 %v87
  %457 = vmatpush1.msra.mxu0 %v86
  %458 = vmatprep.subr.mxu0 0.0
  %459 = vmatpush2.msra.mxu0 0.0
  %460 = vmatprep.subr.mxu0 0.0
  %461 = vmatpush2.msra.mxu0 0.0
  %462 = vmatprep.subr.mxu0 0.0
  %463 = vmatpush2.msra.mxu0 0.0
  %464 = vmatprep.subr.mxu0 0.0
  %465 = vmatpush2.msra.mxu0 0.0
  %466 = vmatprep.subr.mxu0 0.0
  %467 = vmatpush2.msra.mxu0 0.0
  %468 = vmatprep.subr.mxu0 0.0
  %469 = vmatpush2.msra.mxu0 0.0
  %470 = vmatprep.subr.mxu0 0.0
  %471 = vmatpush2.msra.mxu0 0.0
  %472 = vmatprep.subr.mxu0 0.0
  %473 = vmatpush2.msra.mxu0 0.0
  %474 = vmatprep.subr.mxu0 0.0
  %475 = vmatpush2.msra.mxu0 0.0
  %476 = vmatprep.subr.mxu0 0.0
  %477 = vmatpush2.msra.mxu0 0.0
  %478 = vmatprep.subr.mxu0 0.0
  %479 = vmatpush2.msra.mxu0 0.0
  %480 = vmatprep.subr.mxu0 0.0
  %481 = vmatpush2.msra.mxu0 0.0
  %482 = vmatprep.subr.mxu0 0.0
  %483 = vmatpush2.msra.mxu0 0.0
  %484 = vmatprep.subr.mxu0 0.0
  %485 = vmatpush2.msra.mxu0 0.0
  %486 = vmatprep.subr.mxu0 0.0
  %487 = vmatpush2.msra.mxu0 0.0
  %488 = vmatprep.subr.mxu0 0.0
  %489 = vmatpush2.msra.mxu0 0.0
  %490 = vmatprep.mubr.f32.mxu0 0.0
  %491 = vmatmul.mubr.f32.gmra.mxu0 %v329
  %v492 = vpop.f32.mrf.mxu0
  %v493 = vadd.f32 %v307, %v492
  %v494 = vpop.f32.mrf.mxu0
  %v495 = vadd.f32 %v309, %v494
  %496 = vmatprep.mubr.f32.mxu0 0.0
  %497 = vmatmul.mubr.f32.gmra.mxu0 %v331
  %v498 = vpop.f32.mrf.mxu0
  %v499 = vadd.f32 %v313, %v498
  %v500 = vpop.f32.mrf.mxu0
  %v501 = vadd.f32 %v315, %v500
  %502 = vmatprep.mubr.f32.mxu0 0.0
  %503 = vmatmul.mubr.f32.gmra.mxu0 %v333
  %v504 = vpop.f32.mrf.mxu0
  %v505 = vadd.f32 %v319, %v504
  %v506 = vpop.f32.mrf.mxu0
  %v507 = vadd.f32 %v321, %v506
  %508 = vmatprep.mubr.f32.mxu0 0.0
  %509 = vmatmul.mubr.f32.gmra.mxu0 %v335
  %v510 = vpop.f32.mrf.mxu0
  %v511 = vadd.f32 %v325, %v510
  %v512 = vpop.f32.mrf.mxu0
  %v513 = vadd.f32 %v327, %v512
  %514 = vdwg.mxu0
  %515 = vrot.lane.b32.xlu0 %v44, 15
  %v516 = vpop.permute.xlu0 %515
  %517 = vrot.lane.b32.xlu0 %v45, 15
  %v518 = vpop.permute.xlu0 %517
  %519 = vrot.lane.b32.xlu0 %v46, 15
  %v520 = vpop.permute.xlu0 %519
  %521 = vrot.lane.b32.xlu0 %v47, 15
  %v522 = vpop.permute.xlu0 %521
  %vm523 = vcmp.lt.s32.totalorder %v57, 15
  %v524 = vsel %vm523, %v520, %v522
  %v525 = vsel %vm523, %v518, %v520
  %v526 = vsel %vm523, %v516, %v518
  %v527 = vsel %vm523, %v522, %v516
  %v529 = vlaneseq
  %v530 = vshrl.u32 %v529, 7
  %v531 = vsub.s32 0, %v530
  %v532 = vrot.slane %v33, %v531
  %v533 = vlaneseq
  %v534 = vshrl.u32 %v533, 7
  %v535 = vsub.s32 1, %v534
  %v536 = vrot.slane %v33, %v535
  %v537 = vlaneseq
  %v538 = vshrl.u32 %v537, 7
  %v539 = vsub.s32 2, %v538
  %v540 = vrot.slane %v33, %v539
  %v541 = vlaneseq
  %v542 = vshrl.u32 %v541, 7
  %v543 = vsub.s32 3, %v542
  %v544 = vrot.slane %v33, %v543
  %v549 = vmul.f32 %v527, %v532
  %v550 = vmul.f32 %v526, %v536
  %v551 = vmul.f32 %v525, %v540
  %v552 = vmul.f32 %v524, %v544
  %553 = vrot.lane.b32.xlu0 %v88, 112
  %v554 = vpop.permute.xlu0 %553
  %555 = vrot.lane.b32.xlu0 %v89, 112
  %v556 = vpop.permute.xlu0 %555
  %557 = vrot.lane.b32.xlu0 %v90, 112
  %v558 = vpop.permute.xlu0 %557
  %559 = vrot.lane.b32.xlu0 %v91, 112
  %v560 = vpop.permute.xlu0 %559
  %v561 = vsel %vm142, %v554, 0
  %v563 = vsel %vm142, %v556, 0
  %v565 = vsel %vm142, %v558, 0
  %v567 = vsel %vm142, %v560, 0
  %569 = vmatprep.subr.mxu0 0.0
  %570 = vmatpush1.msra.mxu0 0.0
  %571 = vmatprep.subr.mxu0 0.0
  %572 = vmatpush1.msra.mxu0 0.0
  %573 = vmatprep.subr.mxu0 0.0
  %574 = vmatpush1.msra.mxu0 0.0
  %575 = vmatprep.subr.mxu0 0.0
  %576 = vmatpush1.msra.mxu0 0.0
  %577 = vmatprep.subr.mxu0 0.0
  %578 = vmatpush1.msra.mxu0 0.0
  %579 = vmatprep.subr.mxu0 0.0
  %580 = vmatpush1.msra.mxu0 0.0
  %581 = vmatprep.subr.mxu0 0.0
  %582 = vmatpush1.msra.mxu0 0.0
  %583 = vmatprep.subr.mxu0 0.0
  %584 = vmatpush1.msra.mxu0 0.0
  %585 = vmatprep.subr.mxu0 0.0
  %586 = vmatpush1.msra.mxu0 0.0
  %587 = vmatprep.subr.mxu0 0.0
  %588 = vmatpush1.msra.mxu0 0.0
  %589 = vmatprep.subr.mxu0 0.0
  %590 = vmatpush1.msra.mxu0 0.0
  %591 = vmatprep.subr.mxu0 0.0
  %592 = vmatpush1.msra.mxu0 0.0
  %593 = vmatprep.subr.mxu0 0.0
  %594 = vmatpush1.msra.mxu0 0.0
  %595 = vmatprep.subr.mxu0 0.0
  %596 = vmatpush1.msra.mxu0 0.0
  %597 = vmatprep.subr.mxu0 0.0
  %598 = vmatpush1.msra.mxu0 0.0
  %599 = vmatprep.subr.mxu0 %v550
  %600 = vmatpush1.msra.mxu0 %v549
  %601 = vmatprep.subr.mxu0 0.0
  %602 = vmatpush2.msra.mxu0 0.0
  %603 = vmatprep.subr.mxu0 0.0
  %604 = vmatpush2.msra.mxu0 0.0
  %605 = vmatprep.subr.mxu0 0.0
  %606 = vmatpush2.msra.mxu0 0.0
  %607 = vmatprep.subr.mxu0 0.0
  %608 = vmatpush2.msra.mxu0 0.0
  %609 = vmatprep.subr.mxu0 0.0
  %610 = vmatpush2.msra.mxu0 0.0
  %611 = vmatprep.subr.mxu0 0.0
  %612 = vmatpush2.msra.mxu0 0.0
  %613 = vmatprep.subr.mxu0 0.0
  %614 = vmatpush2.msra.mxu0 0.0
  %615 = vmatprep.subr.mxu0 0.0
  %616 = vmatpush2.msra.mxu0 0.0
  %617 = vmatprep.subr.mxu0 0.0
  %618 = vmatpush2.msra.mxu0 0.0
  %619 = vmatprep.subr.mxu0 0.0
  %620 = vmatpush2.msra.mxu0 0.0
  %621 = vmatprep.subr.mxu0 0.0
  %622 = vmatpush2.msra.mxu0 0.0
  %623 = vmatprep.subr.mxu0 0.0
  %624 = vmatpush2.msra.mxu0 0.0
  %625 = vmatprep.subr.mxu0 0.0
  %626 = vmatpush2.msra.mxu0 0.0
  %627 = vmatprep.subr.mxu0 0.0
  %628 = vmatpush2.msra.mxu0 0.0
  %629 = vmatprep.subr.mxu0 0.0
  %630 = vmatpush2.msra.mxu0 0.0
  %631 = vmatprep.subr.mxu0 0.0
  %632 = vmatpush2.msra.mxu0 0.0
  %633 = vmatprep.mubr.f32.mxu0 0.0
  %634 = vmatmul.mubr.f32.gmra.mxu0 %v561
  %v635 = vpop.f32.mrf.mxu0
  %v636 = vadd.f32 0.0, %v635
  %v637 = vpop.f32.mrf.mxu0
  %v638 = vadd.f32 0.0, %v637
  %639 = vmatprep.mubr.f32.mxu0 0.0
  %640 = vmatmul.mubr.f32.gmra.mxu0 %v563
  %v641 = vpop.f32.mrf.mxu0
  %v642 = vadd.f32 0.0, %v641
  %v643 = vpop.f32.mrf.mxu0
  %v644 = vadd.f32 0.0, %v643
  %645 = vmatprep.mubr.f32.mxu0 0.0
  %646 = vmatmul.mubr.f32.gmra.mxu0 %v565
  %v647 = vpop.f32.mrf.mxu0
  %v648 = vadd.f32 0.0, %v647
  %v649 = vpop.f32.mrf.mxu0
  %v650 = vadd.f32 0.0, %v649
  %651 = vmatprep.mubr.f32.mxu0 0.0
  %652 = vmatmul.mubr.f32.gmra.mxu0 %v567
  %v653 = vpop.f32.mrf.mxu0
  %v654 = vadd.f32 0.0, %v653
  %v655 = vpop.f32.mrf.mxu0
  %v656 = vadd.f32 0.0, %v655
  %657 = vdwg.mxu0
  %658 = vmatprep.subr.mxu0 0.0
  %659 = vmatpush1.msra.mxu0 0.0
  %660 = vmatprep.subr.mxu0 0.0
  %661 = vmatpush1.msra.mxu0 0.0
  %662 = vmatprep.subr.mxu0 0.0
  %663 = vmatpush1.msra.mxu0 0.0
  %664 = vmatprep.subr.mxu0 0.0
  %665 = vmatpush1.msra.mxu0 0.0
  %666 = vmatprep.subr.mxu0 0.0
  %667 = vmatpush1.msra.mxu0 0.0
  %668 = vmatprep.subr.mxu0 0.0
  %669 = vmatpush1.msra.mxu0 0.0
  %670 = vmatprep.subr.mxu0 0.0
  %671 = vmatpush1.msra.mxu0 0.0
  %672 = vmatprep.subr.mxu0 0.0
  %673 = vmatpush1.msra.mxu0 0.0
  %674 = vmatprep.subr.mxu0 0.0
  %675 = vmatpush1.msra.mxu0 0.0
  %676 = vmatprep.subr.mxu0 0.0
  %677 = vmatpush1.msra.mxu0 0.0
  %678 = vmatprep.subr.mxu0 0.0
  %679 = vmatpush1.msra.mxu0 0.0
  %680 = vmatprep.subr.mxu0 0.0
  %681 = vmatpush1.msra.mxu0 0.0
  %682 = vmatprep.subr.mxu0 0.0
  %683 = vmatpush1.msra.mxu0 0.0
  %684 = vmatprep.subr.mxu0 0.0
  %685 = vmatpush1.msra.mxu0 0.0
  %686 = vmatprep.subr.mxu0 0.0
  %687 = vmatpush1.msra.mxu0 0.0
  %688 = vmatprep.subr.mxu0 %v552
  %689 = vmatpush1.msra.mxu0 %v551
  %690 = vmatprep.subr.mxu0 0.0
  %691 = vmatpush2.msra.mxu0 0.0
  %692 = vmatprep.subr.mxu0 0.0
  %693 = vmatpush2.msra.mxu0 0.0
  %694 = vmatprep.subr.mxu0 0.0
  %695 = vmatpush2.msra.mxu0 0.0
  %696 = vmatprep.subr.mxu0 0.0
  %697 = vmatpush2.msra.mxu0 0.0
  %698 = vmatprep.subr.mxu0 0.0
  %699 = vmatpush2.msra.mxu0 0.0
  %700 = vmatprep.subr.mxu0 0.0
  %701 = vmatpush2.msra.mxu0 0.0
  %702 = vmatprep.subr.mxu0 0.0
  %703 = vmatpush2.msra.mxu0 0.0
  %704 = vmatprep.subr.mxu0 0.0
  %705 = vmatpush2.msra.mxu0 0.0
  %706 = vmatprep.subr.mxu0 0.0
  %707 = vmatpush2.msra.mxu0 0.0
  %708 = vmatprep.subr.mxu0 0.0
  %709 = vmatpush2.msra.mxu0 0.0
  %710 = vmatprep.subr.mxu0 0.0
  %711 = vmatpush2.msra.mxu0 0.0
  %712 = vmatprep.subr.mxu0 0.0
  %713 = vmatpush2.msra.mxu0 0.0
  %714 = vmatprep.subr.mxu0 0.0
  %715 = vmatpush2.msra.mxu0 0.0
  %716 = vmatprep.subr.mxu0 0.0
  %717 = vmatpush2.msra.mxu0 0.0
  %718 = vmatprep.subr.mxu0 0.0
  %719 = vmatpush2.msra.mxu0 0.0
  %720 = vmatprep.subr.mxu0 0.0
  %721 = vmatpush2.msra.mxu0 0.0
  %722 = vmatprep.mubr.f32.mxu0 0.0
  %723 = vmatmul.mubr.f32.gmra.mxu0 %v561
  %v724 = vpop.f32.mrf.mxu0
  %v725 = vadd.f32 0.0, %v724
  %v726 = vpop.f32.mrf.mxu0
  %v727 = vadd.f32 0.0, %v726
  %728 = vmatprep.mubr.f32.mxu0 0.0
  %729 = vmatmul.mubr.f32.gmra.mxu0 %v563
  %v730 = vpop.f32.mrf.mxu0
  %v731 = vadd.f32 0.0, %v730
  %v732 = vpop.f32.mrf.mxu0
  %v733 = vadd.f32 0.0, %v732
  %734 = vmatprep.mubr.f32.mxu0 0.0
  %735 = vmatmul.mubr.f32.gmra.mxu0 %v565
  %v736 = vpop.f32.mrf.mxu0
  %v737 = vadd.f32 0.0, %v736
  %v738 = vpop.f32.mrf.mxu0
  %v739 = vadd.f32 0.0, %v738
  %740 = vmatprep.mubr.f32.mxu0 0.0
  %741 = vmatmul.mubr.f32.gmra.mxu0 %v567
  %v742 = vpop.f32.mrf.mxu0
  %v743 = vadd.f32 0.0, %v742
  %v744 = vpop.f32.mrf.mxu0
  %v745 = vadd.f32 0.0, %v744
  %746 = vdwg.mxu0
  %v747 = vadd.f32 %v404, %v636
  %v748 = vadd.f32 %v406, %v638
  %v749 = vadd.f32 %v493, %v725
  %v750 = vadd.f32 %v495, %v727
  %v751 = vadd.f32 %v410, %v642
  %v752 = vadd.f32 %v412, %v644
  %v753 = vadd.f32 %v499, %v731
  %v754 = vadd.f32 %v501, %v733
  %v755 = vadd.f32 %v416, %v648
  %v756 = vadd.f32 %v418, %v650
  %v757 = vadd.f32 %v505, %v737
  %v758 = vadd.f32 %v507, %v739
  %v759 = vadd.f32 %v422, %v654
  %v760 = vadd.f32 %v424, %v656
  %v761 = vadd.f32 %v511, %v743
  %v762 = vadd.f32 %v513, %v745
  %763 = vrot.lane.b32.xlu0 %v44, 1
  %v764 = vpop.permute.xlu0 %763
  %765 = vrot.lane.b32.xlu0 %v45, 1
  %v766 = vpop.permute.xlu0 %765
  %767 = vrot.lane.b32.xlu0 %v46, 1
  %v768 = vpop.permute.xlu0 %767
  %769 = vrot.lane.b32.xlu0 %v47, 1
  %v770 = vpop.permute.xlu0 %769
  %vm771 = vcmp.lt.s32.totalorder %v57, 1
  %v772 = vsel %vm771, %v768, %v770
  %v773 = vsel %vm771, %v766, %v768
  %v774 = vsel %vm771, %v764, %v766
  %v775 = vsel %vm771, %v770, %v764
  %v777 = vlaneseq
  %v778 = vshrl.u32 %v777, 7
  %v779 = vsub.s32 0, %v778
  %v780 = vrot.slane %v35, %v779
  %v781 = vlaneseq
  %v782 = vshrl.u32 %v781, 7
  %v783 = vsub.s32 1, %v782
  %v784 = vrot.slane %v35, %v783
  %v785 = vlaneseq
  %v786 = vshrl.u32 %v785, 7
  %v787 = vsub.s32 2, %v786
  %v788 = vrot.slane %v35, %v787
  %v789 = vlaneseq
  %v790 = vshrl.u32 %v789, 7
  %v791 = vsub.s32 3, %v790
  %v792 = vrot.slane %v35, %v791
  %v797 = vmul.f32 %v775, %v780
  %v798 = vmul.f32 %v774, %v784
  %v799 = vmul.f32 %v773, %v788
  %v800 = vmul.f32 %v772, %v792
  %801 = vrot.lane.b32.xlu0 %v88, 104
  %v802 = vpop.permute.xlu0 %801
  %803 = vrot.lane.b32.xlu0 %v89, 104
  %v804 = vpop.permute.xlu0 %803
  %805 = vrot.lane.b32.xlu0 %v90, 104
  %v806 = vpop.permute.xlu0 %805
  %807 = vrot.lane.b32.xlu0 %v91, 104
  %v808 = vpop.permute.xlu0 %807
  %v809 = vsel %vm142, %v802, 0
  %v811 = vsel %vm142, %v804, 0
  %v813 = vsel %vm142, %v806, 0
  %v815 = vsel %vm142, %v808, 0
  %817 = vmatprep.subr.mxu0 0.0
  %818 = vmatpush1.msra.mxu0 0.0
  %819 = vmatprep.subr.mxu0 0.0
  %820 = vmatpush1.msra.mxu0 0.0
  %821 = vmatprep.subr.mxu0 0.0
  %822 = vmatpush1.msra.mxu0 0.0
  %823 = vmatprep.subr.mxu0 0.0
  %824 = vmatpush1.msra.mxu0 0.0
  %825 = vmatprep.subr.mxu0 0.0
  %826 = vmatpush1.msra.mxu0 0.0
  %827 = vmatprep.subr.mxu0 0.0
  %828 = vmatpush1.msra.mxu0 0.0
  %829 = vmatprep.subr.mxu0 0.0
  %830 = vmatpush1.msra.mxu0 0.0
  %831 = vmatprep.subr.mxu0 0.0
  %832 = vmatpush1.msra.mxu0 0.0
  %833 = vmatprep.subr.mxu0 0.0
  %834 = vmatpush1.msra.mxu0 0.0
  %835 = vmatprep.subr.mxu0 0.0
  %836 = vmatpush1.msra.mxu0 0.0
  %837 = vmatprep.subr.mxu0 0.0
  %838 = vmatpush1.msra.mxu0 0.0
  %839 = vmatprep.subr.mxu0 0.0
  %840 = vmatpush1.msra.mxu0 0.0
  %841 = vmatprep.subr.mxu0 0.0
  %842 = vmatpush1.msra.mxu0 0.0
  %843 = vmatprep.subr.mxu0 0.0
  %844 = vmatpush1.msra.mxu0 0.0
  %845 = vmatprep.subr.mxu0 0.0
  %846 = vmatpush1.msra.mxu0 0.0
  %847 = vmatprep.subr.mxu0 %v798
  %848 = vmatpush1.msra.mxu0 %v797
  %849 = vmatprep.subr.mxu0 0.0
  %850 = vmatpush2.msra.mxu0 0.0
  %851 = vmatprep.subr.mxu0 0.0
  %852 = vmatpush2.msra.mxu0 0.0
  %853 = vmatprep.subr.mxu0 0.0
  %854 = vmatpush2.msra.mxu0 0.0
  %855 = vmatprep.subr.mxu0 0.0
  %856 = vmatpush2.msra.mxu0 0.0
  %857 = vmatprep.subr.mxu0 0.0
  %858 = vmatpush2.msra.mxu0 0.0
  %859 = vmatprep.subr.mxu0 0.0
  %860 = vmatpush2.msra.mxu0 0.0
  %861 = vmatprep.subr.mxu0 0.0
  %862 = vmatpush2.msra.mxu0 0.0
  %863 = vmatprep.subr.mxu0 0.0
  %864 = vmatpush2.msra.mxu0 0.0
  %865 = vmatprep.subr.mxu0 0.0
  %866 = vmatpush2.msra.mxu0 0.0
  %867 = vmatprep.subr.mxu0 0.0
  %868 = vmatpush2.msra.mxu0 0.0
  %869 = vmatprep.subr.mxu0 0.0
  %870 = vmatpush2.msra.mxu0 0.0
  %871 = vmatprep.subr.mxu0 0.0
  %872 = vmatpush2.msra.mxu0 0.0
  %873 = vmatprep.subr.mxu0 0.0
  %874 = vmatpush2.msra.mxu0 0.0
  %875 = vmatprep.subr.mxu0 0.0
  %876 = vmatpush2.msra.mxu0 0.0
  %877 = vmatprep.subr.mxu0 0.0
  %878 = vmatpush2.msra.mxu0 0.0
  %879 = vmatprep.subr.mxu0 0.0
  %880 = vmatpush2.msra.mxu0 0.0
  %881 = vmatprep.mubr.f32.mxu0 0.0
  %882 = vmatmul.mubr.f32.gmra.mxu0 %v809
  %v883 = vpop.f32.mrf.mxu0
  %v884 = vadd.f32 0.0, %v883
  %v885 = vpop.f32.mrf.mxu0
  %v886 = vadd.f32 0.0, %v885
  %887 = vmatprep.mubr.f32.mxu0 0.0
  %888 = vmatmul.mubr.f32.gmra.mxu0 %v811
  %v889 = vpop.f32.mrf.mxu0
  %v890 = vadd.f32 0.0, %v889
  %v891 = vpop.f32.mrf.mxu0
  %v892 = vadd.f32 0.0, %v891
  %893 = vmatprep.mubr.f32.mxu0 0.0
  %894 = vmatmul.mubr.f32.gmra.mxu0 %v813
  %v895 = vpop.f32.mrf.mxu0
  %v896 = vadd.f32 0.0, %v895
  %v897 = vpop.f32.mrf.mxu0
  %v898 = vadd.f32 0.0, %v897
  %899 = vmatprep.mubr.f32.mxu0 0.0
  %900 = vmatmul.mubr.f32.gmra.mxu0 %v815
  %v901 = vpop.f32.mrf.mxu0
  %v902 = vadd.f32 0.0, %v901
  %v903 = vpop.f32.mrf.mxu0
  %v904 = vadd.f32 0.0, %v903
  %905 = vdwg.mxu0
  %906 = vmatprep.subr.mxu0 0.0
  %907 = vmatpush1.msra.mxu0 0.0
  %908 = vmatprep.subr.mxu0 0.0
  %909 = vmatpush1.msra.mxu0 0.0
  %910 = vmatprep.subr.mxu0 0.0
  %911 = vmatpush1.msra.mxu0 0.0
  %912 = vmatprep.subr.mxu0 0.0
  %913 = vmatpush1.msra.mxu0 0.0
  %914 = vmatprep.subr.mxu0 0.0
  %915 = vmatpush1.msra.mxu0 0.0
  %916 = vmatprep.subr.mxu0 0.0
  %917 = vmatpush1.msra.mxu0 0.0
  %918 = vmatprep.subr.mxu0 0.0
  %919 = vmatpush1.msra.mxu0 0.0
  %920 = vmatprep.subr.mxu0 0.0
  %921 = vmatpush1.msra.mxu0 0.0
  %922 = vmatprep.subr.mxu0 0.0
  %923 = vmatpush1.msra.mxu0 0.0
  %924 = vmatprep.subr.mxu0 0.0
  %925 = vmatpush1.msra.mxu0 0.0
  %926 = vmatprep.subr.mxu0 0.0
  %927 = vmatpush1.msra.mxu0 0.0
  %928 = vmatprep.subr.mxu0 0.0
  %929 = vmatpush1.msra.mxu0 0.0
  %930 = vmatprep.subr.mxu0 0.0
  %931 = vmatpush1.msra.mxu0 0.0
  %932 = vmatprep.subr.mxu0 0.0
  %933 = vmatpush1.msra.mxu0 0.0
  %934 = vmatprep.subr.mxu0 0.0
  %935 = vmatpush1.msra.mxu0 0.0
  %936 = vmatprep.subr.mxu0 %v800
  %937 = vmatpush1.msra.mxu0 %v799
  %938 = vmatprep.subr.mxu0 0.0
  %939 = vmatpush2.msra.mxu0 0.0
  %940 = vmatprep.subr.mxu0 0.0
  %941 = vmatpush2.msra.mxu0 0.0
  %942 = vmatprep.subr.mxu0 0.0
  %943 = vmatpush2.msra.mxu0 0.0
  %944 = vmatprep.subr.mxu0 0.0
  %945 = vmatpush2.msra.mxu0 0.0
  %946 = vmatprep.subr.mxu0 0.0
  %947 = vmatpush2.msra.mxu0 0.0
  %948 = vmatprep.subr.mxu0 0.0
  %949 = vmatpush2.msra.mxu0 0.0
  %950 = vmatprep.subr.mxu0 0.0
  %951 = vmatpush2.msra.mxu0 0.0
  %952 = vmatprep.subr.mxu0 0.0
  %953 = vmatpush2.msra.mxu0 0.0
  %954 = vmatprep.subr.mxu0 0.0
  %955 = vmatpush2.msra.mxu0 0.0
  %956 = vmatprep.subr.mxu0 0.0
  %957 = vmatpush2.msra.mxu0 0.0
  %958 = vmatprep.subr.mxu0 0.0
  %959 = vmatpush2.msra.mxu0 0.0
  %960 = vmatprep.subr.mxu0 0.0
  %961 = vmatpush2.msra.mxu0 0.0
  %962 = vmatprep.subr.mxu0 0.0
  %963 = vmatpush2.msra.mxu0 0.0
  %964 = vmatprep.subr.mxu0 0.0
  %965 = vmatpush2.msra.mxu0 0.0
  %966 = vmatprep.subr.mxu0 0.0
  %967 = vmatpush2.msra.mxu0 0.0
  %968 = vmatprep.subr.mxu0 0.0
  %969 = vmatpush2.msra.mxu0 0.0
  %970 = vmatprep.mubr.f32.mxu0 0.0
  %971 = vmatmul.mubr.f32.gmra.mxu0 %v809
  %v972 = vpop.f32.mrf.mxu0
  %v973 = vadd.f32 0.0, %v972
  %v974 = vpop.f32.mrf.mxu0
  %v975 = vadd.f32 0.0, %v974
  %976 = vmatprep.mubr.f32.mxu0 0.0
  %977 = vmatmul.mubr.f32.gmra.mxu0 %v811
  %v978 = vpop.f32.mrf.mxu0
  %v979 = vadd.f32 0.0, %v978
  %v980 = vpop.f32.mrf.mxu0
  %v981 = vadd.f32 0.0, %v980
  %982 = vmatprep.mubr.f32.mxu0 0.0
  %983 = vmatmul.mubr.f32.gmra.mxu0 %v813
  %v984 = vpop.f32.mrf.mxu0
  %v985 = vadd.f32 0.0, %v984
  %v986 = vpop.f32.mrf.mxu0
  %v987 = vadd.f32 0.0, %v986
  %988 = vmatprep.mubr.f32.mxu0 0.0
  %989 = vmatmul.mubr.f32.gmra.mxu0 %v815
  %v990 = vpop.f32.mrf.mxu0
  %v991 = vadd.f32 0.0, %v990
  %v992 = vpop.f32.mrf.mxu0
  %v993 = vadd.f32 0.0, %v992
  %994 = vdwg.mxu0
  %v995 = vadd.f32 %v747, %v884
  %v996 = vadd.f32 %v748, %v886
  %v997 = vadd.f32 %v749, %v973
  %v998 = vadd.f32 %v750, %v975
  %v999 = vadd.f32 %v751, %v890
  %v1000 = vadd.f32 %v752, %v892
  %v1001 = vadd.f32 %v753, %v979
  %v1002 = vadd.f32 %v754, %v981
  %v1003 = vadd.f32 %v755, %v896
  %v1004 = vadd.f32 %v756, %v898
  %v1005 = vadd.f32 %v757, %v985
  %v1006 = vadd.f32 %v758, %v987
  %v1007 = vadd.f32 %v759, %v902
  %v1008 = vadd.f32 %v760, %v904
  %v1009 = vadd.f32 %v761, %v991
  %v1010 = vadd.f32 %v762, %v993
  %1011 = vrot.lane.b32.xlu0 %v88, 96
  %v1012 = vpop.permute.xlu0 %1011
  %1013 = vrot.lane.b32.xlu0 %v89, 96
  %v1014 = vpop.permute.xlu0 %1013
  %1015 = vrot.lane.b32.xlu0 %v90, 96
  %v1016 = vpop.permute.xlu0 %1015
  %1017 = vrot.lane.b32.xlu0 %v91, 96
  %v1018 = vpop.permute.xlu0 %1017
  %v1019 = vsel %vm142, %v1012, 0
  %v1021 = vsel %vm142, %v1014, 0
  %v1023 = vsel %vm142, %v1016, 0
  %v1025 = vsel %vm142, %v1018, 0
  %1027 = vmatprep.subr.mxu0 0.0
  %1028 = vmatpush1.msra.mxu0 0.0
  %1029 = vmatprep.subr.mxu0 0.0
  %1030 = vmatpush1.msra.mxu0 0.0
  %1031 = vmatprep.subr.mxu0 0.0
  %1032 = vmatpush1.msra.mxu0 0.0
  %1033 = vmatprep.subr.mxu0 0.0
  %1034 = vmatpush1.msra.mxu0 0.0
  %1035 = vmatprep.subr.mxu0 0.0
  %1036 = vmatpush1.msra.mxu0 0.0
  %1037 = vmatprep.subr.mxu0 0.0
  %1038 = vmatpush1.msra.mxu0 0.0
  %1039 = vmatprep.subr.mxu0 0.0
  %1040 = vmatpush1.msra.mxu0 0.0
  %1041 = vmatprep.subr.mxu0 0.0
  %1042 = vmatpush1.msra.mxu0 0.0
  %1043 = vmatprep.subr.mxu0 0.0
  %1044 = vmatpush1.msra.mxu0 0.0
  %1045 = vmatprep.subr.mxu0 0.0
  %1046 = vmatpush1.msra.mxu0 0.0
  %1047 = vmatprep.subr.mxu0 0.0
  %1048 = vmatpush1.msra.mxu0 0.0
  %1049 = vmatprep.subr.mxu0 0.0
  %1050 = vmatpush1.msra.mxu0 0.0
  %1051 = vmatprep.subr.mxu0 0.0
  %1052 = vmatpush1.msra.mxu0 0.0
  %1053 = vmatprep.subr.mxu0 0.0
  %1054 = vmatpush1.msra.mxu0 0.0
  %1055 = vmatprep.subr.mxu0 0.0
  %1056 = vmatpush1.msra.mxu0 0.0
  %1057 = vmatprep.subr.mxu0 %v45
  %1058 = vmatpush1.msra.mxu0 %v44
  %1059 = vmatprep.subr.mxu0 0.0
  %1060 = vmatpush2.msra.mxu0 0.0
  %1061 = vmatprep.subr.mxu0 0.0
  %1062 = vmatpush2.msra.mxu0 0.0
  %1063 = vmatprep.subr.mxu0 0.0
  %1064 = vmatpush2.msra.mxu0 0.0
  %1065 = vmatprep.subr.mxu0 0.0
  %1066 = vmatpush2.msra.mxu0 0.0
  %1067 = vmatprep.subr.mxu0 0.0
  %1068 = vmatpush2.msra.mxu0 0.0
  %1069 = vmatprep.subr.mxu0 0.0
  %1070 = vmatpush2.msra.mxu0 0.0
  %1071 = vmatprep.subr.mxu0 0.0
  %1072 = vmatpush2.msra.mxu0 0.0
  %1073 = vmatprep.subr.mxu0 0.0
  %1074 = vmatpush2.msra.mxu0 0.0
  %1075 = vmatprep.subr.mxu0 0.0
  %1076 = vmatpush2.msra.mxu0 0.0
  %1077 = vmatprep.subr.mxu0 0.0
  %1078 = vmatpush2.msra.mxu0 0.0
  %1079 = vmatprep.subr.mxu0 0.0
  %1080 = vmatpush2.msra.mxu0 0.0
  %1081 = vmatprep.subr.mxu0 0.0
  %1082 = vmatpush2.msra.mxu0 0.0
  %1083 = vmatprep.subr.mxu0 0.0
  %1084 = vmatpush2.msra.mxu0 0.0
  %1085 = vmatprep.subr.mxu0 0.0
  %1086 = vmatpush2.msra.mxu0 0.0
  %1087 = vmatprep.subr.mxu0 0.0
  %1088 = vmatpush2.msra.mxu0 0.0
  %1089 = vmatprep.subr.mxu0 0.0
  %1090 = vmatpush2.msra.mxu0 0.0
  %1091 = vmatprep.mubr.f32.mxu0 0.0
  %1092 = vmatmul.mubr.f32.gmra.mxu0 %v1019
  %v1093 = vpop.f32.mrf.mxu0
  %v1094 = vadd.f32 0.0, %v1093
  %v1095 = vpop.f32.mrf.mxu0
  %v1096 = vadd.f32 0.0, %v1095
  %1097 = vmatprep.mubr.f32.mxu0 0.0
  %1098 = vmatmul.mubr.f32.gmra.mxu0 %v1021
  %v1099 = vpop.f32.mrf.mxu0
  %v1100 = vadd.f32 0.0, %v1099
  %v1101 = vpop.f32.mrf.mxu0
  %v1102 = vadd.f32 0.0, %v1101
  %1103 = vmatprep.mubr.f32.mxu0 0.0
  %1104 = vmatmul.mubr.f32.gmra.mxu0 %v1023
  %v1105 = vpop.f32.mrf.mxu0
  %v1106 = vadd.f32 0.0, %v1105
  %v1107 = vpop.f32.mrf.mxu0
  %v1108 = vadd.f32 0.0, %v1107
  %1109 = vmatprep.mubr.f32.mxu0 0.0
  %1110 = vmatmul.mubr.f32.gmra.mxu0 %v1025
  %v1111 = vpop.f32.mrf.mxu0
  %v1112 = vadd.f32 0.0, %v1111
  %v1113 = vpop.f32.mrf.mxu0
  %v1114 = vadd.f32 0.0, %v1113
  %1115 = vdwg.mxu0
  %1116 = vmatprep.subr.mxu0 0.0
  %1117 = vmatpush1.msra.mxu0 0.0
  %1118 = vmatprep.subr.mxu0 0.0
  %1119 = vmatpush1.msra.mxu0 0.0
  %1120 = vmatprep.subr.mxu0 0.0
  %1121 = vmatpush1.msra.mxu0 0.0
  %1122 = vmatprep.subr.mxu0 0.0
  %1123 = vmatpush1.msra.mxu0 0.0
  %1124 = vmatprep.subr.mxu0 0.0
  %1125 = vmatpush1.msra.mxu0 0.0
  %1126 = vmatprep.subr.mxu0 0.0
  %1127 = vmatpush1.msra.mxu0 0.0
  %1128 = vmatprep.subr.mxu0 0.0
  %1129 = vmatpush1.msra.mxu0 0.0
  %1130 = vmatprep.subr.mxu0 0.0
  %1131 = vmatpush1.msra.mxu0 0.0
  %1132 = vmatprep.subr.mxu0 0.0
  %1133 = vmatpush1.msra.mxu0 0.0
  %1134 = vmatprep.subr.mxu0 0.0
  %1135 = vmatpush1.msra.mxu0 0.0
  %1136 = vmatprep.subr.mxu0 0.0
  %1137 = vmatpush1.msra.mxu0 0.0
  %1138 = vmatprep.subr.mxu0 0.0
  %1139 = vmatpush1.msra.mxu0 0.0
  %1140 = vmatprep.subr.mxu0 0.0
  %1141 = vmatpush1.msra.mxu0 0.0
  %1142 = vmatprep.subr.mxu0 0.0
  %1143 = vmatpush1.msra.mxu0 0.0
  %1144 = vmatprep.subr.mxu0 0.0
  %1145 = vmatpush1.msra.mxu0 0.0
  %1146 = vmatprep.subr.mxu0 %v47
  %1147 = vmatpush1.msra.mxu0 %v46
  %1148 = vmatprep.subr.mxu0 0.0
  %1149 = vmatpush2.msra.mxu0 0.0
  %1150 = vmatprep.subr.mxu0 0.0
  %1151 = vmatpush2.msra.mxu0 0.0
  %1152 = vmatprep.subr.mxu0 0.0
  %1153 = vmatpush2.msra.mxu0 0.0
  %1154 = vmatprep.subr.mxu0 0.0
  %1155 = vmatpush2.msra.mxu0 0.0
  %1156 = vmatprep.subr.mxu0 0.0
  %1157 = vmatpush2.msra.mxu0 0.0
  %1158 = vmatprep.subr.mxu0 0.0
  %1159 = vmatpush2.msra.mxu0 0.0
  %1160 = vmatprep.subr.mxu0 0.0
  %1161 = vmatpush2.msra.mxu0 0.0
  %1162 = vmatprep.subr.mxu0 0.0
  %1163 = vmatpush2.msra.mxu0 0.0
  %1164 = vmatprep.subr.mxu0 0.0
  %1165 = vmatpush2.msra.mxu0 0.0
  %1166 = vmatprep.subr.mxu0 0.0
  %1167 = vmatpush2.msra.mxu0 0.0
  %1168 = vmatprep.subr.mxu0 0.0
  %1169 = vmatpush2.msra.mxu0 0.0
  %1170 = vmatprep.subr.mxu0 0.0
  %1171 = vmatpush2.msra.mxu0 0.0
  %1172 = vmatprep.subr.mxu0 0.0
  %1173 = vmatpush2.msra.mxu0 0.0
  %1174 = vmatprep.subr.mxu0 0.0
  %1175 = vmatpush2.msra.mxu0 0.0
  %1176 = vmatprep.subr.mxu0 0.0
  %1177 = vmatpush2.msra.mxu0 0.0
  %1178 = vmatprep.subr.mxu0 0.0
  %1179 = vmatpush2.msra.mxu0 0.0
  %1180 = vmatprep.mubr.f32.mxu0 0.0
  %1181 = vmatmul.mubr.f32.gmra.mxu0 %v1019
  %v1182 = vpop.f32.mrf.mxu0
  %v1183 = vadd.f32 0.0, %v1182
  %v1184 = vpop.f32.mrf.mxu0
  %v1185 = vadd.f32 0.0, %v1184
  %1186 = vmatprep.mubr.f32.mxu0 0.0
  %1187 = vmatmul.mubr.f32.gmra.mxu0 %v1021
  %v1188 = vpop.f32.mrf.mxu0
  %v1189 = vadd.f32 0.0, %v1188
  %v1190 = vpop.f32.mrf.mxu0
  %v1191 = vadd.f32 0.0, %v1190
  %1192 = vmatprep.mubr.f32.mxu0 0.0
  %1193 = vmatmul.mubr.f32.gmra.mxu0 %v1023
  %v1194 = vpop.f32.mrf.mxu0
  %v1195 = vadd.f32 0.0, %v1194
  %v1196 = vpop.f32.mrf.mxu0
  %v1197 = vadd.f32 0.0, %v1196
  %1198 = vmatprep.mubr.f32.mxu0 0.0
  %1199 = vmatmul.mubr.f32.gmra.mxu0 %v1025
  %v1200 = vpop.f32.mrf.mxu0
  %v1201 = vadd.f32 0.0, %v1200
  %v1202 = vpop.f32.mrf.mxu0
  %v1203 = vadd.f32 0.0, %v1202
  %1204 = vdwg.mxu0
  %v1205 = vadd.f32 %v995, %v1094
  %v1206 = vadd.f32 %v996, %v1096
  %v1207 = vadd.f32 %v997, %v1183
  %v1208 = vadd.f32 %v998, %v1185
  %v1209 = vadd.f32 %v999, %v1100
  %v1210 = vadd.f32 %v1000, %v1102
  %v1211 = vadd.f32 %v1001, %v1189
  %v1212 = vadd.f32 %v1002, %v1191
  %v1213 = vadd.f32 %v1003, %v1106
  %v1214 = vadd.f32 %v1004, %v1108
  %v1215 = vadd.f32 %v1005, %v1195
  %v1216 = vadd.f32 %v1006, %v1197
  %v1217 = vadd.f32 %v1007, %v1112
  %v1218 = vadd.f32 %v1008, %v1114
  %v1219 = vadd.f32 %v1009, %v1201
  %v1220 = vadd.f32 %v1010, %v1203
  %1221 = vrot.lane.b32.xlu0 %v44, 127
  %v1222 = vpop.permute.xlu0 %1221
  %1223 = vrot.lane.b32.xlu0 %v45, 127
  %v1224 = vpop.permute.xlu0 %1223
  %1225 = vrot.lane.b32.xlu0 %v46, 127
  %v1226 = vpop.permute.xlu0 %1225
  %1227 = vrot.lane.b32.xlu0 %v47, 127
  %v1228 = vpop.permute.xlu0 %1227
  %vm1229 = vcmp.lt.s32.totalorder %v57, 127
  %v1230 = vsel %vm1229, %v1226, %v1228
  %v1231 = vsel %vm1229, %v1224, %v1226
  %v1232 = vsel %vm1229, %v1222, %v1224
  %v1233 = vsel %vm1229, %v1228, %v1222
  %v1235 = vlaneseq
  %v1236 = vshrl.u32 %v1235, 7
  %v1237 = vsub.s32 0, %v1236
  %v1238 = vrot.slane %v37, %v1237
  %v1239 = vlaneseq
  %v1240 = vshrl.u32 %v1239, 7
  %v1241 = vsub.s32 1, %v1240
  %v1242 = vrot.slane %v37, %v1241
  %v1243 = vlaneseq
  %v1244 = vshrl.u32 %v1243, 7
  %v1245 = vsub.s32 2, %v1244
  %v1246 = vrot.slane %v37, %v1245
  %v1247 = vlaneseq
  %v1248 = vshrl.u32 %v1247, 7
  %v1249 = vsub.s32 3, %v1248
  %v1250 = vrot.slane %v37, %v1249
  %v1255 = vmul.f32 %v1232, %v1238
  %v1256 = vmul.f32 %v1231, %v1242
  %v1257 = vmul.f32 %v1230, %v1246
  %v1258 = vmul.f32 %v1233, %v1250
  %1259 = vrot.lane.b32.xlu0 %v88, 88
  %v1260 = vpop.permute.xlu0 %1259
  %1261 = vrot.lane.b32.xlu0 %v89, 88
  %v1262 = vpop.permute.xlu0 %1261
  %1263 = vrot.lane.b32.xlu0 %v90, 88
  %v1264 = vpop.permute.xlu0 %1263
  %1265 = vrot.lane.b32.xlu0 %v91, 88
  %v1266 = vpop.permute.xlu0 %1265
  %v1267 = vsel %vm142, %v1260, 0
  %v1269 = vsel %vm142, %v1262, 0
  %v1271 = vsel %vm142, %v1264, 0
  %v1273 = vsel %vm142, %v1266, 0
  %1275 = vmatprep.subr.mxu0 0.0
  %1276 = vmatpush1.msra.mxu0 0.0
  %1277 = vmatprep.subr.mxu0 0.0
  %1278 = vmatpush1.msra.mxu0 0.0
  %1279 = vmatprep.subr.mxu0 0.0
  %1280 = vmatpush1.msra.mxu0 0.0
  %1281 = vmatprep.subr.mxu0 0.0
  %1282 = vmatpush1.msra.mxu0 0.0
  %1283 = vmatprep.subr.mxu0 0.0
  %1284 = vmatpush1.msra.mxu0 0.0
  %1285 = vmatprep.subr.mxu0 0.0
  %1286 = vmatpush1.msra.mxu0 0.0
  %1287 = vmatprep.subr.mxu0 0.0
  %1288 = vmatpush1.msra.mxu0 0.0
  %1289 = vmatprep.subr.mxu0 0.0
  %1290 = vmatpush1.msra.mxu0 0.0
  %1291 = vmatprep.subr.mxu0 0.0
  %1292 = vmatpush1.msra.mxu0 0.0
  %1293 = vmatprep.subr.mxu0 0.0
  %1294 = vmatpush1.msra.mxu0 0.0
  %1295 = vmatprep.subr.mxu0 0.0
  %1296 = vmatpush1.msra.mxu0 0.0
  %1297 = vmatprep.subr.mxu0 0.0
  %1298 = vmatpush1.msra.mxu0 0.0
  %1299 = vmatprep.subr.mxu0 0.0
  %1300 = vmatpush1.msra.mxu0 0.0
  %1301 = vmatprep.subr.mxu0 0.0
  %1302 = vmatpush1.msra.mxu0 0.0
  %1303 = vmatprep.subr.mxu0 0.0
  %1304 = vmatpush1.msra.mxu0 0.0
  %1305 = vmatprep.subr.mxu0 %v1256
  %1306 = vmatpush1.msra.mxu0 %v1255
  %1307 = vmatprep.subr.mxu0 0.0
  %1308 = vmatpush2.msra.mxu0 0.0
  %1309 = vmatprep.subr.mxu0 0.0
  %1310 = vmatpush2.msra.mxu0 0.0
  %1311 = vmatprep.subr.mxu0 0.0
  %1312 = vmatpush2.msra.mxu0 0.0
  %1313 = vmatprep.subr.mxu0 0.0
  %1314 = vmatpush2.msra.mxu0 0.0
  %1315 = vmatprep.subr.mxu0 0.0
  %1316 = vmatpush2.msra.mxu0 0.0
  %1317 = vmatprep.subr.mxu0 0.0
  %1318 = vmatpush2.msra.mxu0 0.0
  %1319 = vmatprep.subr.mxu0 0.0
  %1320 = vmatpush2.msra.mxu0 0.0
  %1321 = vmatprep.subr.mxu0 0.0
  %1322 = vmatpush2.msra.mxu0 0.0
  %1323 = vmatprep.subr.mxu0 0.0
  %1324 = vmatpush2.msra.mxu0 0.0
  %1325 = vmatprep.subr.mxu0 0.0
  %1326 = vmatpush2.msra.mxu0 0.0
  %1327 = vmatprep.subr.mxu0 0.0
  %1328 = vmatpush2.msra.mxu0 0.0
  %1329 = vmatprep.subr.mxu0 0.0
  %1330 = vmatpush2.msra.mxu0 0.0
  %1331 = vmatprep.subr.mxu0 0.0
  %1332 = vmatpush2.msra.mxu0 0.0
  %1333 = vmatprep.subr.mxu0 0.0
  %1334 = vmatpush2.msra.mxu0 0.0
  %1335 = vmatprep.subr.mxu0 0.0
  %1336 = vmatpush2.msra.mxu0 0.0
  %1337 = vmatprep.subr.mxu0 0.0
  %1338 = vmatpush2.msra.mxu0 0.0
  %1339 = vmatprep.mubr.f32.mxu0 0.0
  %1340 = vmatmul.mubr.f32.gmra.mxu0 %v1267
  %v1341 = vpop.f32.mrf.mxu0
  %v1342 = vadd.f32 0.0, %v1341
  %v1343 = vpop.f32.mrf.mxu0
  %v1344 = vadd.f32 0.0, %v1343
  %1345 = vmatprep.mubr.f32.mxu0 0.0
  %1346 = vmatmul.mubr.f32.gmra.mxu0 %v1269
  %v1347 = vpop.f32.mrf.mxu0
  %v1348 = vadd.f32 0.0, %v1347
  %v1349 = vpop.f32.mrf.mxu0
  %v1350 = vadd.f32 0.0, %v1349
  %1351 = vmatprep.mubr.f32.mxu0 0.0
  %1352 = vmatmul.mubr.f32.gmra.mxu0 %v1271
  %v1353 = vpop.f32.mrf.mxu0
  %v1354 = vadd.f32 0.0, %v1353
  %v1355 = vpop.f32.mrf.mxu0
  %v1356 = vadd.f32 0.0, %v1355
  %1357 = vmatprep.mubr.f32.mxu0 0.0
  %1358 = vmatmul.mubr.f32.gmra.mxu0 %v1273
  %v1359 = vpop.f32.mrf.mxu0
  %v1360 = vadd.f32 0.0, %v1359
  %v1361 = vpop.f32.mrf.mxu0
  %v1362 = vadd.f32 0.0, %v1361
  %1363 = vdwg.mxu0
  %1364 = vmatprep.subr.mxu0 0.0
  %1365 = vmatpush1.msra.mxu0 0.0
  %1366 = vmatprep.subr.mxu0 0.0
  %1367 = vmatpush1.msra.mxu0 0.0
  %1368 = vmatprep.subr.mxu0 0.0
  %1369 = vmatpush1.msra.mxu0 0.0
  %1370 = vmatprep.subr.mxu0 0.0
  %1371 = vmatpush1.msra.mxu0 0.0
  %1372 = vmatprep.subr.mxu0 0.0
  %1373 = vmatpush1.msra.mxu0 0.0
  %1374 = vmatprep.subr.mxu0 0.0
  %1375 = vmatpush1.msra.mxu0 0.0
  %1376 = vmatprep.subr.mxu0 0.0
  %1377 = vmatpush1.msra.mxu0 0.0
  %1378 = vmatprep.subr.mxu0 0.0
  %1379 = vmatpush1.msra.mxu0 0.0
  %1380 = vmatprep.subr.mxu0 0.0
  %1381 = vmatpush1.msra.mxu0 0.0
  %1382 = vmatprep.subr.mxu0 0.0
  %1383 = vmatpush1.msra.mxu0 0.0
  %1384 = vmatprep.subr.mxu0 0.0
  %1385 = vmatpush1.msra.mxu0 0.0
  %1386 = vmatprep.subr.mxu0 0.0
  %1387 = vmatpush1.msra.mxu0 0.0
  %1388 = vmatprep.subr.mxu0 0.0
  %1389 = vmatpush1.msra.mxu0 0.0
  %1390 = vmatprep.subr.mxu0 0.0
  %1391 = vmatpush1.msra.mxu0 0.0
  %1392 = vmatprep.subr.mxu0 0.0
  %1393 = vmatpush1.msra.mxu0 0.0
  %1394 = vmatprep.subr.mxu0 %v1258
  %1395 = vmatpush1.msra.mxu0 %v1257
  %1396 = vmatprep.subr.mxu0 0.0
  %1397 = vmatpush2.msra.mxu0 0.0
  %1398 = vmatprep.subr.mxu0 0.0
  %1399 = vmatpush2.msra.mxu0 0.0
  %1400 = vmatprep.subr.mxu0 0.0
  %1401 = vmatpush2.msra.mxu0 0.0
  %1402 = vmatprep.subr.mxu0 0.0
  %1403 = vmatpush2.msra.mxu0 0.0
  %1404 = vmatprep.subr.mxu0 0.0
  %1405 = vmatpush2.msra.mxu0 0.0
  %1406 = vmatprep.subr.mxu0 0.0
  %1407 = vmatpush2.msra.mxu0 0.0
  %1408 = vmatprep.subr.mxu0 0.0
  %1409 = vmatpush2.msra.mxu0 0.0
  %1410 = vmatprep.subr.mxu0 0.0
  %1411 = vmatpush2.msra.mxu0 0.0
  %1412 = vmatprep.subr.mxu0 0.0
  %1413 = vmatpush2.msra.mxu0 0.0
  %1414 = vmatprep.subr.mxu0 0.0
  %1415 = vmatpush2.msra.mxu0 0.0
  %1416 = vmatprep.subr.mxu0 0.0
  %1417 = vmatpush2.msra.mxu0 0.0
  %1418 = vmatprep.subr.mxu0 0.0
  %1419 = vmatpush2.msra.mxu0 0.0
  %1420 = vmatprep.subr.mxu0 0.0
  %1421 = vmatpush2.msra.mxu0 0.0
  %1422 = vmatprep.subr.mxu0 0.0
  %1423 = vmatpush2.msra.mxu0 0.0
  %1424 = vmatprep.subr.mxu0 0.0
  %1425 = vmatpush2.msra.mxu0 0.0
  %1426 = vmatprep.subr.mxu0 0.0
  %1427 = vmatpush2.msra.mxu0 0.0
  %1428 = vmatprep.mubr.f32.mxu0 0.0
  %1429 = vmatmul.mubr.f32.gmra.mxu0 %v1267
  %v1430 = vpop.f32.mrf.mxu0
  %v1431 = vadd.f32 0.0, %v1430
  %v1432 = vpop.f32.mrf.mxu0
  %v1433 = vadd.f32 0.0, %v1432
  %1434 = vmatprep.mubr.f32.mxu0 0.0
  %1435 = vmatmul.mubr.f32.gmra.mxu0 %v1269
  %v1436 = vpop.f32.mrf.mxu0
  %v1437 = vadd.f32 0.0, %v1436
  %v1438 = vpop.f32.mrf.mxu0
  %v1439 = vadd.f32 0.0, %v1438
  %1440 = vmatprep.mubr.f32.mxu0 0.0
  %1441 = vmatmul.mubr.f32.gmra.mxu0 %v1271
  %v1442 = vpop.f32.mrf.mxu0
  %v1443 = vadd.f32 0.0, %v1442
  %v1444 = vpop.f32.mrf.mxu0
  %v1445 = vadd.f32 0.0, %v1444
  %1446 = vmatprep.mubr.f32.mxu0 0.0
  %1447 = vmatmul.mubr.f32.gmra.mxu0 %v1273
  %v1448 = vpop.f32.mrf.mxu0
  %v1449 = vadd.f32 0.0, %v1448
  %v1450 = vpop.f32.mrf.mxu0
  %v1451 = vadd.f32 0.0, %v1450
  %1452 = vdwg.mxu0
  %v1453 = vadd.f32 %v1205, %v1342
  %v1454 = vadd.f32 %v1206, %v1344
  %v1455 = vadd.f32 %v1207, %v1431
  %v1456 = vadd.f32 %v1208, %v1433
  %v1457 = vadd.f32 %v1209, %v1348
  %v1458 = vadd.f32 %v1210, %v1350
  %v1459 = vadd.f32 %v1211, %v1437
  %v1460 = vadd.f32 %v1212, %v1439
  %v1461 = vadd.f32 %v1213, %v1354
  %v1462 = vadd.f32 %v1214, %v1356
  %v1463 = vadd.f32 %v1215, %v1443
  %v1464 = vadd.f32 %v1216, %v1445
  %v1465 = vadd.f32 %v1217, %v1360
  %v1466 = vadd.f32 %v1218, %v1362
  %v1467 = vadd.f32 %v1219, %v1449
  %v1468 = vadd.f32 %v1220, %v1451
  %1469 = vrot.lane.b32.xlu0 %v44, 113
  %v1470 = vpop.permute.xlu0 %1469
  %1471 = vrot.lane.b32.xlu0 %v45, 113
  %v1472 = vpop.permute.xlu0 %1471
  %1473 = vrot.lane.b32.xlu0 %v46, 113
  %v1474 = vpop.permute.xlu0 %1473
  %1475 = vrot.lane.b32.xlu0 %v47, 113
  %v1476 = vpop.permute.xlu0 %1475
  %vm1477 = vcmp.lt.s32.totalorder %v57, 113
  %v1478 = vsel %vm1477, %v1474, %v1476
  %v1479 = vsel %vm1477, %v1472, %v1474
  %v1480 = vsel %vm1477, %v1470, %v1472
  %v1481 = vsel %vm1477, %v1476, %v1470
  %v1483 = vlaneseq
  %v1484 = vshrl.u32 %v1483, 7
  %v1485 = vsub.s32 0, %v1484
  %v1486 = vrot.slane %v39, %v1485
  %v1487 = vlaneseq
  %v1488 = vshrl.u32 %v1487, 7
  %v1489 = vsub.s32 1, %v1488
  %v1490 = vrot.slane %v39, %v1489
  %v1491 = vlaneseq
  %v1492 = vshrl.u32 %v1491, 7
  %v1493 = vsub.s32 2, %v1492
  %v1494 = vrot.slane %v39, %v1493
  %v1495 = vlaneseq
  %v1496 = vshrl.u32 %v1495, 7
  %v1497 = vsub.s32 3, %v1496
  %v1498 = vrot.slane %v39, %v1497
  %v1503 = vmul.f32 %v1480, %v1486
  %v1504 = vmul.f32 %v1479, %v1490
  %v1505 = vmul.f32 %v1478, %v1494
  %v1506 = vmul.f32 %v1481, %v1498
  %1507 = vrot.lane.b32.xlu0 %v88, 80
  %v1508 = vpop.permute.xlu0 %1507
  %1509 = vrot.lane.b32.xlu0 %v89, 80
  %v1510 = vpop.permute.xlu0 %1509
  %1511 = vrot.lane.b32.xlu0 %v90, 80
  %v1512 = vpop.permute.xlu0 %1511
  %1513 = vrot.lane.b32.xlu0 %v91, 80
  %v1514 = vpop.permute.xlu0 %1513
  %v1515 = vsel %vm142, %v1508, 0
  %v1517 = vsel %vm142, %v1510, 0
  %v1519 = vsel %vm142, %v1512, 0
  %v1521 = vsel %vm142, %v1514, 0
  %1523 = vmatprep.subr.mxu0 0.0
  %1524 = vmatpush1.msra.mxu0 0.0
  %1525 = vmatprep.subr.mxu0 0.0
  %1526 = vmatpush1.msra.mxu0 0.0
  %1527 = vmatprep.subr.mxu0 0.0
  %1528 = vmatpush1.msra.mxu0 0.0
  %1529 = vmatprep.subr.mxu0 0.0
  %1530 = vmatpush1.msra.mxu0 0.0
  %1531 = vmatprep.subr.mxu0 0.0
  %1532 = vmatpush1.msra.mxu0 0.0
  %1533 = vmatprep.subr.mxu0 0.0
  %1534 = vmatpush1.msra.mxu0 0.0
  %1535 = vmatprep.subr.mxu0 0.0
  %1536 = vmatpush1.msra.mxu0 0.0
  %1537 = vmatprep.subr.mxu0 0.0
  %1538 = vmatpush1.msra.mxu0 0.0
  %1539 = vmatprep.subr.mxu0 0.0
  %1540 = vmatpush1.msra.mxu0 0.0
  %1541 = vmatprep.subr.mxu0 0.0
  %1542 = vmatpush1.msra.mxu0 0.0
  %1543 = vmatprep.subr.mxu0 0.0
  %1544 = vmatpush1.msra.mxu0 0.0
  %1545 = vmatprep.subr.mxu0 0.0
  %1546 = vmatpush1.msra.mxu0 0.0
  %1547 = vmatprep.subr.mxu0 0.0
  %1548 = vmatpush1.msra.mxu0 0.0
  %1549 = vmatprep.subr.mxu0 0.0
  %1550 = vmatpush1.msra.mxu0 0.0
  %1551 = vmatprep.subr.mxu0 0.0
  %1552 = vmatpush1.msra.mxu0 0.0
  %1553 = vmatprep.subr.mxu0 %v1504
  %1554 = vmatpush1.msra.mxu0 %v1503
  %1555 = vmatprep.subr.mxu0 0.0
  %1556 = vmatpush2.msra.mxu0 0.0
  %1557 = vmatprep.subr.mxu0 0.0
  %1558 = vmatpush2.msra.mxu0 0.0
  %1559 = vmatprep.subr.mxu0 0.0
  %1560 = vmatpush2.msra.mxu0 0.0
  %1561 = vmatprep.subr.mxu0 0.0
  %1562 = vmatpush2.msra.mxu0 0.0
  %1563 = vmatprep.subr.mxu0 0.0
  %1564 = vmatpush2.msra.mxu0 0.0
  %1565 = vmatprep.subr.mxu0 0.0
  %1566 = vmatpush2.msra.mxu0 0.0
  %1567 = vmatprep.subr.mxu0 0.0
  %1568 = vmatpush2.msra.mxu0 0.0
  %1569 = vmatprep.subr.mxu0 0.0
  %1570 = vmatpush2.msra.mxu0 0.0
  %1571 = vmatprep.subr.mxu0 0.0
  %1572 = vmatpush2.msra.mxu0 0.0
  %1573 = vmatprep.subr.mxu0 0.0
  %1574 = vmatpush2.msra.mxu0 0.0
  %1575 = vmatprep.subr.mxu0 0.0
  %1576 = vmatpush2.msra.mxu0 0.0
  %1577 = vmatprep.subr.mxu0 0.0
  %1578 = vmatpush2.msra.mxu0 0.0
  %1579 = vmatprep.subr.mxu0 0.0
  %1580 = vmatpush2.msra.mxu0 0.0
  %1581 = vmatprep.subr.mxu0 0.0
  %1582 = vmatpush2.msra.mxu0 0.0
  %1583 = vmatprep.subr.mxu0 0.0
  %1584 = vmatpush2.msra.mxu0 0.0
  %1585 = vmatprep.subr.mxu0 0.0
  %1586 = vmatpush2.msra.mxu0 0.0
  %1587 = vmatprep.mubr.f32.mxu0 0.0
  %1588 = vmatmul.mubr.f32.gmra.mxu0 %v1515
  %v1589 = vpop.f32.mrf.mxu0
  %v1590 = vadd.f32 0.0, %v1589
  %v1591 = vpop.f32.mrf.mxu0
  %v1592 = vadd.f32 0.0, %v1591
  %1593 = vmatprep.mubr.f32.mxu0 0.0
  %1594 = vmatmul.mubr.f32.gmra.mxu0 %v1517
  %v1595 = vpop.f32.mrf.mxu0
  %v1596 = vadd.f32 0.0, %v1595
  %v1597 = vpop.f32.mrf.mxu0
  %v1598 = vadd.f32 0.0, %v1597
  %1599 = vmatprep.mubr.f32.mxu0 0.0
  %1600 = vmatmul.mubr.f32.gmra.mxu0 %v1519
  %v1601 = vpop.f32.mrf.mxu0
  %v1602 = vadd.f32 0.0, %v1601
  %v1603 = vpop.f32.mrf.mxu0
  %v1604 = vadd.f32 0.0, %v1603
  %1605 = vmatprep.mubr.f32.mxu0 0.0
  %1606 = vmatmul.mubr.f32.gmra.mxu0 %v1521
  %v1607 = vpop.f32.mrf.mxu0
  %v1608 = vadd.f32 0.0, %v1607
  %v1609 = vpop.f32.mrf.mxu0
  %v1610 = vadd.f32 0.0, %v1609
  %1611 = vdwg.mxu0
  %1612 = vmatprep.subr.mxu0 0.0
  %1613 = vmatpush1.msra.mxu0 0.0
  %1614 = vmatprep.subr.mxu0 0.0
  %1615 = vmatpush1.msra.mxu0 0.0
  %1616 = vmatprep.subr.mxu0 0.0
  %1617 = vmatpush1.msra.mxu0 0.0
  %1618 = vmatprep.subr.mxu0 0.0
  %1619 = vmatpush1.msra.mxu0 0.0
  %1620 = vmatprep.subr.mxu0 0.0
  %1621 = vmatpush1.msra.mxu0 0.0
  %1622 = vmatprep.subr.mxu0 0.0
  %1623 = vmatpush1.msra.mxu0 0.0
  %1624 = vmatprep.subr.mxu0 0.0
  %1625 = vmatpush1.msra.mxu0 0.0
  %1626 = vmatprep.subr.mxu0 0.0
  %1627 = vmatpush1.msra.mxu0 0.0
  %1628 = vmatprep.subr.mxu0 0.0
  %1629 = vmatpush1.msra.mxu0 0.0
  %1630 = vmatprep.subr.mxu0 0.0
  %1631 = vmatpush1.msra.mxu0 0.0
  %1632 = vmatprep.subr.mxu0 0.0
  %1633 = vmatpush1.msra.mxu0 0.0
  %1634 = vmatprep.subr.mxu0 0.0
  %1635 = vmatpush1.msra.mxu0 0.0
  %1636 = vmatprep.subr.mxu0 0.0
  %1637 = vmatpush1.msra.mxu0 0.0
  %1638 = vmatprep.subr.mxu0 0.0
  %1639 = vmatpush1.msra.mxu0 0.0
  %1640 = vmatprep.subr.mxu0 0.0
  %1641 = vmatpush1.msra.mxu0 0.0
  %1642 = vmatprep.subr.mxu0 %v1506
  %1643 = vmatpush1.msra.mxu0 %v1505
  %1644 = vmatprep.subr.mxu0 0.0
  %1645 = vmatpush2.msra.mxu0 0.0
  %1646 = vmatprep.subr.mxu0 0.0
  %1647 = vmatpush2.msra.mxu0 0.0
  %1648 = vmatprep.subr.mxu0 0.0
  %1649 = vmatpush2.msra.mxu0 0.0
  %1650 = vmatprep.subr.mxu0 0.0
  %1651 = vmatpush2.msra.mxu0 0.0
  %1652 = vmatprep.subr.mxu0 0.0
  %1653 = vmatpush2.msra.mxu0 0.0
  %1654 = vmatprep.subr.mxu0 0.0
  %1655 = vmatpush2.msra.mxu0 0.0
  %1656 = vmatprep.subr.mxu0 0.0
  %1657 = vmatpush2.msra.mxu0 0.0
  %1658 = vmatprep.subr.mxu0 0.0
  %1659 = vmatpush2.msra.mxu0 0.0
  %1660 = vmatprep.subr.mxu0 0.0
  %1661 = vmatpush2.msra.mxu0 0.0
  %1662 = vmatprep.subr.mxu0 0.0
  %1663 = vmatpush2.msra.mxu0 0.0
  %1664 = vmatprep.subr.mxu0 0.0
  %1665 = vmatpush2.msra.mxu0 0.0
  %1666 = vmatprep.subr.mxu0 0.0
  %1667 = vmatpush2.msra.mxu0 0.0
  %1668 = vmatprep.subr.mxu0 0.0
  %1669 = vmatpush2.msra.mxu0 0.0
  %1670 = vmatprep.subr.mxu0 0.0
  %1671 = vmatpush2.msra.mxu0 0.0
  %1672 = vmatprep.subr.mxu0 0.0
  %1673 = vmatpush2.msra.mxu0 0.0
  %1674 = vmatprep.subr.mxu0 0.0
  %1675 = vmatpush2.msra.mxu0 0.0
  %1676 = vmatprep.mubr.f32.mxu0 0.0
  %1677 = vmatmul.mubr.f32.gmra.mxu0 %v1515
  %v1678 = vpop.f32.mrf.mxu0
  %v1679 = vadd.f32 0.0, %v1678
  %v1680 = vpop.f32.mrf.mxu0
  %v1681 = vadd.f32 0.0, %v1680
  %1682 = vmatprep.mubr.f32.mxu0 0.0
  %1683 = vmatmul.mubr.f32.gmra.mxu0 %v1517
  %v1684 = vpop.f32.mrf.mxu0
  %v1685 = vadd.f32 0.0, %v1684
  %v1686 = vpop.f32.mrf.mxu0
  %v1687 = vadd.f32 0.0, %v1686
  %1688 = vmatprep.mubr.f32.mxu0 0.0
  %1689 = vmatmul.mubr.f32.gmra.mxu0 %v1519
  %v1690 = vpop.f32.mrf.mxu0
  %v1691 = vadd.f32 0.0, %v1690
  %v1692 = vpop.f32.mrf.mxu0
  %v1693 = vadd.f32 0.0, %v1692
  %1694 = vmatprep.mubr.f32.mxu0 0.0
  %1695 = vmatmul.mubr.f32.gmra.mxu0 %v1521
  %v1696 = vpop.f32.mrf.mxu0
  %v1697 = vadd.f32 0.0, %v1696
  %v1698 = vpop.f32.mrf.mxu0
  %v1699 = vadd.f32 0.0, %v1698
  %1700 = vdwg.mxu0
  %v1701 = vadd.f32 %v1453, %v1590
  %v1702 = vadd.f32 %v1454, %v1592
  %v1703 = vadd.f32 %v1455, %v1679
  %v1704 = vadd.f32 %v1456, %v1681
  %v1705 = vadd.f32 %v1457, %v1596
  %v1706 = vadd.f32 %v1458, %v1598
  %v1707 = vadd.f32 %v1459, %v1685
  %v1708 = vadd.f32 %v1460, %v1687
  %v1709 = vadd.f32 %v1461, %v1602
  %v1710 = vadd.f32 %v1462, %v1604
  %v1711 = vadd.f32 %v1463, %v1691
  %v1712 = vadd.f32 %v1464, %v1693
  %v1713 = vadd.f32 %v1465, %v1608
  %v1714 = vadd.f32 %v1466, %v1610
  %v1715 = vadd.f32 %v1467, %v1697
  %v1716 = vadd.f32 %v1468, %v1699
  %1717 = vrot.lane.b32.xlu0 %v44, 112
  %v1718 = vpop.permute.xlu0 %1717
  %1719 = vrot.lane.b32.xlu0 %v45, 112
  %v1720 = vpop.permute.xlu0 %1719
  %1721 = vrot.lane.b32.xlu0 %v46, 112
  %v1722 = vpop.permute.xlu0 %1721
  %1723 = vrot.lane.b32.xlu0 %v47, 112
  %v1724 = vpop.permute.xlu0 %1723
  %vm1725 = vcmp.lt.s32.totalorder %v57, 112
  %v1726 = vsel %vm1725, %v1722, %v1724
  %v1727 = vsel %vm1725, %v1720, %v1722
  %v1728 = vsel %vm1725, %v1718, %v1720
  %v1729 = vsel %vm1725, %v1724, %v1718
  %v1731 = vlaneseq
  %v1732 = vshrl.u32 %v1731, 7
  %v1733 = vsub.s32 0, %v1732
  %v1734 = vrot.slane %v41, %v1733
  %v1735 = vlaneseq
  %v1736 = vshrl.u32 %v1735, 7
  %v1737 = vsub.s32 1, %v1736
  %v1738 = vrot.slane %v41, %v1737
  %v1739 = vlaneseq
  %v1740 = vshrl.u32 %v1739, 7
  %v1741 = vsub.s32 2, %v1740
  %v1742 = vrot.slane %v41, %v1741
  %v1743 = vlaneseq
  %v1744 = vshrl.u32 %v1743, 7
  %v1745 = vsub.s32 3, %v1744
  %v1746 = vrot.slane %v41, %v1745
  %v1751 = vmul.f32 %v1728, %v1734
  %v1752 = vmul.f32 %v1727, %v1738
  %v1753 = vmul.f32 %v1726, %v1742
  %v1754 = vmul.f32 %v1729, %v1746
  %1755 = vrot.lane.b32.xlu0 %v88, 72
  %v1756 = vpop.permute.xlu0 %1755
  %1757 = vrot.lane.b32.xlu0 %v89, 72
  %v1758 = vpop.permute.xlu0 %1757
  %1759 = vrot.lane.b32.xlu0 %v90, 72
  %v1760 = vpop.permute.xlu0 %1759
  %1761 = vrot.lane.b32.xlu0 %v91, 72
  %v1762 = vpop.permute.xlu0 %1761
  %v1763 = vsel %vm142, %v1756, 0
  %v1765 = vsel %vm142, %v1758, 0
  %v1767 = vsel %vm142, %v1760, 0
  %v1769 = vsel %vm142, %v1762, 0
  %1771 = vmatprep.subr.mxu0 0.0
  %1772 = vmatpush1.msra.mxu0 0.0
  %1773 = vmatprep.subr.mxu0 0.0
  %1774 = vmatpush1.msra.mxu0 0.0
  %1775 = vmatprep.subr.mxu0 0.0
  %1776 = vmatpush1.msra.mxu0 0.0
  %1777 = vmatprep.subr.mxu0 0.0
  %1778 = vmatpush1.msra.mxu0 0.0
  %1779 = vmatprep.subr.mxu0 0.0
  %1780 = vmatpush1.msra.mxu0 0.0
  %1781 = vmatprep.subr.mxu0 0.0
  %1782 = vmatpush1.msra.mxu0 0.0
  %1783 = vmatprep.subr.mxu0 0.0
  %1784 = vmatpush1.msra.mxu0 0.0
  %1785 = vmatprep.subr.mxu0 0.0
  %1786 = vmatpush1.msra.mxu0 0.0
  %1787 = vmatprep.subr.mxu0 0.0
  %1788 = vmatpush1.msra.mxu0 0.0
  %1789 = vmatprep.subr.mxu0 0.0
  %1790 = vmatpush1.msra.mxu0 0.0
  %1791 = vmatprep.subr.mxu0 0.0
  %1792 = vmatpush1.msra.mxu0 0.0
  %1793 = vmatprep.subr.mxu0 0.0
  %1794 = vmatpush1.msra.mxu0 0.0
  %1795 = vmatprep.subr.mxu0 0.0
  %1796 = vmatpush1.msra.mxu0 0.0
  %1797 = vmatprep.subr.mxu0 0.0
  %1798 = vmatpush1.msra.mxu0 0.0
  %1799 = vmatprep.subr.mxu0 0.0
  %1800 = vmatpush1.msra.mxu0 0.0
  %1801 = vmatprep.subr.mxu0 %v1752
  %1802 = vmatpush1.msra.mxu0 %v1751
  %1803 = vmatprep.subr.mxu0 0.0
  %1804 = vmatpush2.msra.mxu0 0.0
  %1805 = vmatprep.subr.mxu0 0.0
  %1806 = vmatpush2.msra.mxu0 0.0
  %1807 = vmatprep.subr.mxu0 0.0
  %1808 = vmatpush2.msra.mxu0 0.0
  %1809 = vmatprep.subr.mxu0 0.0
  %1810 = vmatpush2.msra.mxu0 0.0
  %1811 = vmatprep.subr.mxu0 0.0
  %1812 = vmatpush2.msra.mxu0 0.0
  %1813 = vmatprep.subr.mxu0 0.0
  %1814 = vmatpush2.msra.mxu0 0.0
  %1815 = vmatprep.subr.mxu0 0.0
  %1816 = vmatpush2.msra.mxu0 0.0
  %1817 = vmatprep.subr.mxu0 0.0
  %1818 = vmatpush2.msra.mxu0 0.0
  %1819 = vmatprep.subr.mxu0 0.0
  %1820 = vmatpush2.msra.mxu0 0.0
  %1821 = vmatprep.subr.mxu0 0.0
  %1822 = vmatpush2.msra.mxu0 0.0
  %1823 = vmatprep.subr.mxu0 0.0
  %1824 = vmatpush2.msra.mxu0 0.0
  %1825 = vmatprep.subr.mxu0 0.0
  %1826 = vmatpush2.msra.mxu0 0.0
  %1827 = vmatprep.subr.mxu0 0.0
  %1828 = vmatpush2.msra.mxu0 0.0
  %1829 = vmatprep.subr.mxu0 0.0
  %1830 = vmatpush2.msra.mxu0 0.0
  %1831 = vmatprep.subr.mxu0 0.0
  %1832 = vmatpush2.msra.mxu0 0.0
  %1833 = vmatprep.subr.mxu0 0.0
  %1834 = vmatpush2.msra.mxu0 0.0
  %1835 = vmatprep.mubr.f32.mxu0 0.0
  %1836 = vmatmul.mubr.f32.gmra.mxu0 %v1763
  %v1837 = vpop.f32.mrf.mxu0
  %v1838 = vadd.f32 0.0, %v1837
  %v1839 = vpop.f32.mrf.mxu0
  %v1840 = vadd.f32 0.0, %v1839
  %1841 = vmatprep.mubr.f32.mxu0 0.0
  %1842 = vmatmul.mubr.f32.gmra.mxu0 %v1765
  %v1843 = vpop.f32.mrf.mxu0
  %v1844 = vadd.f32 0.0, %v1843
  %v1845 = vpop.f32.mrf.mxu0
  %v1846 = vadd.f32 0.0, %v1845
  %1847 = vmatprep.mubr.f32.mxu0 0.0
  %1848 = vmatmul.mubr.f32.gmra.mxu0 %v1767
  %v1849 = vpop.f32.mrf.mxu0
  %v1850 = vadd.f32 0.0, %v1849
  %v1851 = vpop.f32.mrf.mxu0
  %v1852 = vadd.f32 0.0, %v1851
  %1853 = vmatprep.mubr.f32.mxu0 0.0
  %1854 = vmatmul.mubr.f32.gmra.mxu0 %v1769
  %v1855 = vpop.f32.mrf.mxu0
  %v1856 = vadd.f32 0.0, %v1855
  %v1857 = vpop.f32.mrf.mxu0
  %v1858 = vadd.f32 0.0, %v1857
  %1859 = vdwg.mxu0
  %1860 = vmatprep.subr.mxu0 0.0
  %1861 = vmatpush1.msra.mxu0 0.0
  %1862 = vmatprep.subr.mxu0 0.0
  %1863 = vmatpush1.msra.mxu0 0.0
  %1864 = vmatprep.subr.mxu0 0.0
  %1865 = vmatpush1.msra.mxu0 0.0
  %1866 = vmatprep.subr.mxu0 0.0
  %1867 = vmatpush1.msra.mxu0 0.0
  %1868 = vmatprep.subr.mxu0 0.0
  %1869 = vmatpush1.msra.mxu0 0.0
  %1870 = vmatprep.subr.mxu0 0.0
  %1871 = vmatpush1.msra.mxu0 0.0
  %1872 = vmatprep.subr.mxu0 0.0
  %1873 = vmatpush1.msra.mxu0 0.0
  %1874 = vmatprep.subr.mxu0 0.0
  %1875 = vmatpush1.msra.mxu0 0.0
  %1876 = vmatprep.subr.mxu0 0.0
  %1877 = vmatpush1.msra.mxu0 0.0
  %1878 = vmatprep.subr.mxu0 0.0
  %1879 = vmatpush1.msra.mxu0 0.0
  %1880 = vmatprep.subr.mxu0 0.0
  %1881 = vmatpush1.msra.mxu0 0.0
  %1882 = vmatprep.subr.mxu0 0.0
  %1883 = vmatpush1.msra.mxu0 0.0
  %1884 = vmatprep.subr.mxu0 0.0
  %1885 = vmatpush1.msra.mxu0 0.0
  %1886 = vmatprep.subr.mxu0 0.0
  %1887 = vmatpush1.msra.mxu0 0.0
  %1888 = vmatprep.subr.mxu0 0.0
  %1889 = vmatpush1.msra.mxu0 0.0
  %1890 = vmatprep.subr.mxu0 %v1754
  %1891 = vmatpush1.msra.mxu0 %v1753
  %1892 = vmatprep.subr.mxu0 0.0
  %1893 = vmatpush2.msra.mxu0 0.0
  %1894 = vmatprep.subr.mxu0 0.0
  %1895 = vmatpush2.msra.mxu0 0.0
  %1896 = vmatprep.subr.mxu0 0.0
  %1897 = vmatpush2.msra.mxu0 0.0
  %1898 = vmatprep.subr.mxu0 0.0
  %1899 = vmatpush2.msra.mxu0 0.0
  %1900 = vmatprep.subr.mxu0 0.0
  %1901 = vmatpush2.msra.mxu0 0.0
  %1902 = vmatprep.subr.mxu0 0.0
  %1903 = vmatpush2.msra.mxu0 0.0
  %1904 = vmatprep.subr.mxu0 0.0
  %1905 = vmatpush2.msra.mxu0 0.0
  %1906 = vmatprep.subr.mxu0 0.0
  %1907 = vmatpush2.msra.mxu0 0.0
  %1908 = vmatprep.subr.mxu0 0.0
  %1909 = vmatpush2.msra.mxu0 0.0
  %1910 = vmatprep.subr.mxu0 0.0
  %1911 = vmatpush2.msra.mxu0 0.0
  %1912 = vmatprep.subr.mxu0 0.0
  %1913 = vmatpush2.msra.mxu0 0.0
  %1914 = vmatprep.subr.mxu0 0.0
  %1915 = vmatpush2.msra.mxu0 0.0
  %1916 = vmatprep.subr.mxu0 0.0
  %1917 = vmatpush2.msra.mxu0 0.0
  %1918 = vmatprep.subr.mxu0 0.0
  %1919 = vmatpush2.msra.mxu0 0.0
  %1920 = vmatprep.subr.mxu0 0.0
  %1921 = vmatpush2.msra.mxu0 0.0
  %1922 = vmatprep.subr.mxu0 0.0
  %1923 = vmatpush2.msra.mxu0 0.0
  %1924 = vmatprep.mubr.f32.mxu0 0.0
  %1925 = vmatmul.mubr.f32.gmra.mxu0 %v1763
  %v1926 = vpop.f32.mrf.mxu0
  %v1927 = vadd.f32 0.0, %v1926
  %v1928 = vpop.f32.mrf.mxu0
  %v1929 = vadd.f32 0.0, %v1928
  %1930 = vmatprep.mubr.f32.mxu0 0.0
  %1931 = vmatmul.mubr.f32.gmra.mxu0 %v1765
  %v1932 = vpop.f32.mrf.mxu0
  %v1933 = vadd.f32 0.0, %v1932
  %v1934 = vpop.f32.mrf.mxu0
  %v1935 = vadd.f32 0.0, %v1934
  %1936 = vmatprep.mubr.f32.mxu0 0.0
  %1937 = vmatmul.mubr.f32.gmra.mxu0 %v1767
  %v1938 = vpop.f32.mrf.mxu0
  %v1939 = vadd.f32 0.0, %v1938
  %v1940 = vpop.f32.mrf.mxu0
  %v1941 = vadd.f32 0.0, %v1940
  %1942 = vmatprep.mubr.f32.mxu0 0.0
  %1943 = vmatmul.mubr.f32.gmra.mxu0 %v1769
  %v1944 = vpop.f32.mrf.mxu0
  %v1945 = vadd.f32 0.0, %v1944
  %v1946 = vpop.f32.mrf.mxu0
  %v1947 = vadd.f32 0.0, %v1946
  %1948 = vdwg.mxu0
  %v1949 = vadd.f32 %v1701, %v1838
  %v1950 = vadd.f32 %v1702, %v1840
  %v1951 = vadd.f32 %v1703, %v1927
  %v1952 = vadd.f32 %v1704, %v1929
  %v1953 = vadd.f32 %v1705, %v1844
  %v1954 = vadd.f32 %v1706, %v1846
  %v1955 = vadd.f32 %v1707, %v1933
  %v1956 = vadd.f32 %v1708, %v1935
  %v1957 = vadd.f32 %v1709, %v1850
  %v1958 = vadd.f32 %v1710, %v1852
  %v1959 = vadd.f32 %v1711, %v1939
  %v1960 = vadd.f32 %v1712, %v1941
  %v1961 = vadd.f32 %v1713, %v1856
  %v1962 = vadd.f32 %v1714, %v1858
  %v1963 = vadd.f32 %v1715, %v1945
  %v1964 = vadd.f32 %v1716, %v1947
  %1965 = vrot.lane.b32.xlu0 %v44, 111
  %v1966 = vpop.permute.xlu0 %1965
  %1967 = vrot.lane.b32.xlu0 %v45, 111
  %v1968 = vpop.permute.xlu0 %1967
  %1969 = vrot.lane.b32.xlu0 %v46, 111
  %v1970 = vpop.permute.xlu0 %1969
  %1971 = vrot.lane.b32.xlu0 %v47, 111
  %v1972 = vpop.permute.xlu0 %1971
  %vm1973 = vcmp.lt.s32.totalorder %v57, 111
  %v1974 = vsel %vm1973, %v1970, %v1972
  %v1975 = vsel %vm1973, %v1968, %v1970
  %v1976 = vsel %vm1973, %v1966, %v1968
  %v1977 = vsel %vm1973, %v1972, %v1966
  %v1979 = vlaneseq
  %v1980 = vshrl.u32 %v1979, 7
  %v1981 = vsub.s32 0, %v1980
  %v1982 = vrot.slane %v43, %v1981
  %v1983 = vlaneseq
  %v1984 = vshrl.u32 %v1983, 7
  %v1985 = vsub.s32 1, %v1984
  %v1986 = vrot.slane %v43, %v1985
  %v1987 = vlaneseq
  %v1988 = vshrl.u32 %v1987, 7
  %v1989 = vsub.s32 2, %v1988
  %v1990 = vrot.slane %v43, %v1989
  %v1991 = vlaneseq
  %v1992 = vshrl.u32 %v1991, 7
  %v1993 = vsub.s32 3, %v1992
  %v1994 = vrot.slane %v43, %v1993
  %v1999 = vmul.f32 %v1976, %v1982
  %v2000 = vmul.f32 %v1975, %v1986
  %v2001 = vmul.f32 %v1974, %v1990
  %v2002 = vmul.f32 %v1977, %v1994
  %2003 = vrot.lane.b32.xlu0 %v88, 64
  %v2004 = vpop.permute.xlu0 %2003
  %2005 = vrot.lane.b32.xlu0 %v89, 64
  %v2006 = vpop.permute.xlu0 %2005
  %2007 = vrot.lane.b32.xlu0 %v90, 64
  %v2008 = vpop.permute.xlu0 %2007
  %2009 = vrot.lane.b32.xlu0 %v91, 64
  %v2010 = vpop.permute.xlu0 %2009
  %v2011 = vsel %vm142, %v2004, 0
  %v2013 = vsel %vm142, %v2006, 0
  %v2015 = vsel %vm142, %v2008, 0
  %v2017 = vsel %vm142, %v2010, 0
  %2019 = vmatprep.subr.mxu0 0.0
  %2020 = vmatpush1.msra.mxu0 0.0
  %2021 = vmatprep.subr.mxu0 0.0
  %2022 = vmatpush1.msra.mxu0 0.0
  %2023 = vmatprep.subr.mxu0 0.0
  %2024 = vmatpush1.msra.mxu0 0.0
  %2025 = vmatprep.subr.mxu0 0.0
  %2026 = vmatpush1.msra.mxu0 0.0
  %2027 = vmatprep.subr.mxu0 0.0
  %2028 = vmatpush1.msra.mxu0 0.0
  %2029 = vmatprep.subr.mxu0 0.0
  %2030 = vmatpush1.msra.mxu0 0.0
  %2031 = vmatprep.subr.mxu0 0.0
  %2032 = vmatpush1.msra.mxu0 0.0
  %2033 = vmatprep.subr.mxu0 0.0
  %2034 = vmatpush1.msra.mxu0 0.0
  %2035 = vmatprep.subr.mxu0 0.0
  %2036 = vmatpush1.msra.mxu0 0.0
  %2037 = vmatprep.subr.mxu0 0.0
  %2038 = vmatpush1.msra.mxu0 0.0
  %2039 = vmatprep.subr.mxu0 0.0
  %2040 = vmatpush1.msra.mxu0 0.0
  %2041 = vmatprep.subr.mxu0 0.0
  %2042 = vmatpush1.msra.mxu0 0.0
  %2043 = vmatprep.subr.mxu0 0.0
  %2044 = vmatpush1.msra.mxu0 0.0
  %2045 = vmatprep.subr.mxu0 0.0
  %2046 = vmatpush1.msra.mxu0 0.0
  %2047 = vmatprep.subr.mxu0 0.0
  %2048 = vmatpush1.msra.mxu0 0.0
  %2049 = vmatprep.subr.mxu0 %v2000
  %2050 = vmatpush1.msra.mxu0 %v1999
  %2051 = vmatprep.subr.mxu0 0.0
  %2052 = vmatpush2.msra.mxu0 0.0
  %2053 = vmatprep.subr.mxu0 0.0
  %2054 = vmatpush2.msra.mxu0 0.0
  %2055 = vmatprep.subr.mxu0 0.0
  %2056 = vmatpush2.msra.mxu0 0.0
  %2057 = vmatprep.subr.mxu0 0.0
  %2058 = vmatpush2.msra.mxu0 0.0
  %2059 = vmatprep.subr.mxu0 0.0
  %2060 = vmatpush2.msra.mxu0 0.0
  %2061 = vmatprep.subr.mxu0 0.0
  %2062 = vmatpush2.msra.mxu0 0.0
  %2063 = vmatprep.subr.mxu0 0.0
  %2064 = vmatpush2.msra.mxu0 0.0
  %2065 = vmatprep.subr.mxu0 0.0
  %2066 = vmatpush2.msra.mxu0 0.0
  %2067 = vmatprep.subr.mxu0 0.0
  %2068 = vmatpush2.msra.mxu0 0.0
  %2069 = vmatprep.subr.mxu0 0.0
  %2070 = vmatpush2.msra.mxu0 0.0
  %2071 = vmatprep.subr.mxu0 0.0
  %2072 = vmatpush2.msra.mxu0 0.0
  %2073 = vmatprep.subr.mxu0 0.0
  %2074 = vmatpush2.msra.mxu0 0.0
  %2075 = vmatprep.subr.mxu0 0.0
  %2076 = vmatpush2.msra.mxu0 0.0
  %2077 = vmatprep.subr.mxu0 0.0
  %2078 = vmatpush2.msra.mxu0 0.0
  %2079 = vmatprep.subr.mxu0 0.0
  %2080 = vmatpush2.msra.mxu0 0.0
  %2081 = vmatprep.subr.mxu0 0.0
  %2082 = vmatpush2.msra.mxu0 0.0
  %2083 = vmatprep.mubr.f32.mxu0 0.0
  %2084 = vmatmul.mubr.f32.gmra.mxu0 %v2011
  %v2085 = vpop.f32.mrf.mxu0
  %v2086 = vadd.f32 0.0, %v2085
  %v2087 = vpop.f32.mrf.mxu0
  %v2088 = vadd.f32 0.0, %v2087
  %2089 = vmatprep.mubr.f32.mxu0 0.0
  %2090 = vmatmul.mubr.f32.gmra.mxu0 %v2013
  %v2091 = vpop.f32.mrf.mxu0
  %v2092 = vadd.f32 0.0, %v2091
  %v2093 = vpop.f32.mrf.mxu0
  %v2094 = vadd.f32 0.0, %v2093
  %2095 = vmatprep.mubr.f32.mxu0 0.0
  %2096 = vmatmul.mubr.f32.gmra.mxu0 %v2015
  %v2097 = vpop.f32.mrf.mxu0
  %v2098 = vadd.f32 0.0, %v2097
  %v2099 = vpop.f32.mrf.mxu0
  %v2100 = vadd.f32 0.0, %v2099
  %2101 = vmatprep.mubr.f32.mxu0 0.0
  %2102 = vmatmul.mubr.f32.gmra.mxu0 %v2017
  %v2103 = vpop.f32.mrf.mxu0
  %v2104 = vadd.f32 0.0, %v2103
  %v2105 = vpop.f32.mrf.mxu0
  %v2106 = vadd.f32 0.0, %v2105
  %2107 = vdwg.mxu0
  %2108 = vmatprep.subr.mxu0 0.0
  %2109 = vmatpush1.msra.mxu0 0.0
  %2110 = vmatprep.subr.mxu0 0.0
  %2111 = vmatpush1.msra.mxu0 0.0
  %2112 = vmatprep.subr.mxu0 0.0
  %2113 = vmatpush1.msra.mxu0 0.0
  %2114 = vmatprep.subr.mxu0 0.0
  %2115 = vmatpush1.msra.mxu0 0.0
  %2116 = vmatprep.subr.mxu0 0.0
  %2117 = vmatpush1.msra.mxu0 0.0
  %2118 = vmatprep.subr.mxu0 0.0
  %2119 = vmatpush1.msra.mxu0 0.0
  %2120 = vmatprep.subr.mxu0 0.0
  %2121 = vmatpush1.msra.mxu0 0.0
  %2122 = vmatprep.subr.mxu0 0.0
  %2123 = vmatpush1.msra.mxu0 0.0
  %2124 = vmatprep.subr.mxu0 0.0
  %2125 = vmatpush1.msra.mxu0 0.0
  %2126 = vmatprep.subr.mxu0 0.0
  %2127 = vmatpush1.msra.mxu0 0.0
  %2128 = vmatprep.subr.mxu0 0.0
  %2129 = vmatpush1.msra.mxu0 0.0
  %2130 = vmatprep.subr.mxu0 0.0
  %2131 = vmatpush1.msra.mxu0 0.0
  %2132 = vmatprep.subr.mxu0 0.0
  %2133 = vmatpush1.msra.mxu0 0.0
  %2134 = vmatprep.subr.mxu0 0.0
  %2135 = vmatpush1.msra.mxu0 0.0
  %2136 = vmatprep.subr.mxu0 0.0
  %2137 = vmatpush1.msra.mxu0 0.0
  %2138 = vmatprep.subr.mxu0 %v2002
  %2139 = vmatpush1.msra.mxu0 %v2001
  %2140 = vmatprep.subr.mxu0 0.0
  %2141 = vmatpush2.msra.mxu0 0.0
  %2142 = vmatprep.subr.mxu0 0.0
  %2143 = vmatpush2.msra.mxu0 0.0
  %2144 = vmatprep.subr.mxu0 0.0
  %2145 = vmatpush2.msra.mxu0 0.0
  %2146 = vmatprep.subr.mxu0 0.0
  %2147 = vmatpush2.msra.mxu0 0.0
  %2148 = vmatprep.subr.mxu0 0.0
  %2149 = vmatpush2.msra.mxu0 0.0
  %2150 = vmatprep.subr.mxu0 0.0
  %2151 = vmatpush2.msra.mxu0 0.0
  %2152 = vmatprep.subr.mxu0 0.0
  %2153 = vmatpush2.msra.mxu0 0.0
  %2154 = vmatprep.subr.mxu0 0.0
  %2155 = vmatpush2.msra.mxu0 0.0
  %2156 = vmatprep.subr.mxu0 0.0
  %2157 = vmatpush2.msra.mxu0 0.0
  %2158 = vmatprep.subr.mxu0 0.0
  %2159 = vmatpush2.msra.mxu0 0.0
  %2160 = vmatprep.subr.mxu0 0.0
  %2161 = vmatpush2.msra.mxu0 0.0
  %2162 = vmatprep.subr.mxu0 0.0
  %2163 = vmatpush2.msra.mxu0 0.0
  %2164 = vmatprep.subr.mxu0 0.0
  %2165 = vmatpush2.msra.mxu0 0.0
  %2166 = vmatprep.subr.mxu0 0.0
  %2167 = vmatpush2.msra.mxu0 0.0
  %2168 = vmatprep.subr.mxu0 0.0
  %2169 = vmatpush2.msra.mxu0 0.0
  %2170 = vmatprep.subr.mxu0 0.0
  %2171 = vmatpush2.msra.mxu0 0.0
  %2172 = vmatprep.mubr.f32.mxu0 0.0
  %2173 = vmatmul.mubr.f32.gmra.mxu0 %v2011
  %v2174 = vpop.f32.mrf.mxu0
  %v2175 = vadd.f32 0.0, %v2174
  %v2176 = vpop.f32.mrf.mxu0
  %v2177 = vadd.f32 0.0, %v2176
  %2178 = vmatprep.mubr.f32.mxu0 0.0
  %2179 = vmatmul.mubr.f32.gmra.mxu0 %v2013
  %v2180 = vpop.f32.mrf.mxu0
  %v2181 = vadd.f32 0.0, %v2180
  %v2182 = vpop.f32.mrf.mxu0
  %v2183 = vadd.f32 0.0, %v2182
  %2184 = vmatprep.mubr.f32.mxu0 0.0
  %2185 = vmatmul.mubr.f32.gmra.mxu0 %v2015
  %v2186 = vpop.f32.mrf.mxu0
  %v2187 = vadd.f32 0.0, %v2186
  %v2188 = vpop.f32.mrf.mxu0
  %v2189 = vadd.f32 0.0, %v2188
  %2190 = vmatprep.mubr.f32.mxu0 0.0
  %2191 = vmatmul.mubr.f32.gmra.mxu0 %v2017
  %v2192 = vpop.f32.mrf.mxu0
  %v2193 = vadd.f32 0.0, %v2192
  %v2194 = vpop.f32.mrf.mxu0
  %v2195 = vadd.f32 0.0, %v2194
  %2196 = vdwg.mxu0
  %v2197 = vadd.f32 %v1949, %v2086
  %v2198 = vadd.f32 %v1950, %v2088
  %v2199 = vadd.f32 %v1951, %v2175
  %v2200 = vadd.f32 %v1952, %v2177
  %v2201 = vadd.f32 %v1953, %v2092
  %v2202 = vadd.f32 %v1954, %v2094
  %v2203 = vadd.f32 %v1955, %v2181
  %v2204 = vadd.f32 %v1956, %v2183
  %v2205 = vadd.f32 %v1957, %v2098
  %v2206 = vadd.f32 %v1958, %v2100
  %v2207 = vadd.f32 %v1959, %v2187
  %v2208 = vadd.f32 %v1960, %v2189
  %v2209 = vadd.f32 %v1961, %v2104
  %v2210 = vadd.f32 %v1962, %v2106
  %v2211 = vadd.f32 %v1963, %v2193
  %v2212 = vadd.f32 %v1964, %v2195
  %v2213 = vld [vmem:[%s3] sm:$0xff]
  %v2214 = vld [vmem:[%s3 + $0x8] sm:$0xff]
  %v2215 = vld [vmem:[%s3 + $0x10] sm:$0xff]
  %v2216 = vld [vmem:[%s3 + $0x18] sm:$0xff]
  %2218 = vset.pattern.permute.xlu0 0
  %2219 = vperm.xlu0 %2218, %v2213
  %v2220 = vpop.permute.xlu0 %2219
  %2223 = vset.pattern.permute.xlu0 0
  %2224 = vperm.xlu0 %2223, %v2214
  %v2225 = vpop.permute.xlu0 %2224
  %2228 = vset.pattern.permute.xlu0 0
  %2229 = vperm.xlu0 %2228, %v2215
  %v2230 = vpop.permute.xlu0 %2229
  %2233 = vset.pattern.permute.xlu0 0
  %2234 = vperm.xlu0 %2233, %v2216
  %v2235 = vpop.permute.xlu0 %2234
  %v2237 = vadd.f32 %v2197, %v2220
  %v2238 = vadd.f32 %v2198, %v2220
  %v2239 = vadd.f32 %v2199, %v2220
  %v2240 = vadd.f32 %v2200, %v2220
  %v2241 = vadd.f32 %v2201, %v2225
  %v2242 = vadd.f32 %v2202, %v2225
  %v2243 = vadd.f32 %v2203, %v2225
  %v2244 = vadd.f32 %v2204, %v2225
  %v2245 = vadd.f32 %v2205, %v2230
  %v2246 = vadd.f32 %v2206, %v2230
  %v2247 = vadd.f32 %v2207, %v2230
  %v2248 = vadd.f32 %v2208, %v2230
  %v2249 = vadd.f32 %v2209, %v2235
  %v2250 = vadd.f32 %v2210, %v2235
  %v2251 = vadd.f32 %v2211, %v2235
  %v2252 = vadd.f32 %v2212, %v2235
  %v2253 = vmax.f32 %v2237, 0.0
  %v2254 = vmax.f32 %v2238, 0.0
  %v2255 = vmax.f32 %v2239, 0.0
  %v2256 = vmax.f32 %v2240, 0.0
  %v2257 = vmax.f32 %v2241, 0.0
  %v2258 = vmax.f32 %v2242, 0.0
  %v2259 = vmax.f32 %v2243, 0.0
  %v2260 = vmax.f32 %v2244, 0.0
  %v2261 = vmax.f32 %v2245, 0.0
  %v2262 = vmax.f32 %v2246, 0.0
  %v2263 = vmax.f32 %v2247, 0.0
  %v2264 = vmax.f32 %v2248, 0.0
  %v2265 = vmax.f32 %v2249, 0.0
  %v2266 = vmax.f32 %v2250, 0.0
  %v2267 = vmax.f32 %v2251, 0.0
  %v2268 = vmax.f32 %v2252, 0.0
  %2269 = vrot.lane.b32.xlu0 %v2253, 17
  %v2270 = vpop.permute.xlu0 %2269
  %2271 = vrot.lane.b32.xlu0 %v2257, 17
  %v2272 = vpop.permute.xlu0 %2271
  %2273 = vrot.lane.b32.xlu0 %v2261, 17
  %v2274 = vpop.permute.xlu0 %2273
  %2275 = vrot.lane.b32.xlu0 %v2265, 17
  %v2276 = vpop.permute.xlu0 %2275
  %2277 = vrot.lane.b32.xlu0 %v2254, 17
  %v2278 = vpop.permute.xlu0 %2277
  %2279 = vrot.lane.b32.xlu0 %v2258, 17
  %v2280 = vpop.permute.xlu0 %2279
  %2281 = vrot.lane.b32.xlu0 %v2262, 17
  %v2282 = vpop.permute.xlu0 %2281
  %2283 = vrot.lane.b32.xlu0 %v2266, 17
  %v2284 = vpop.permute.xlu0 %2283
  %2285 = vrot.lane.b32.xlu0 %v2255, 17
  %v2286 = vpop.permute.xlu0 %2285
  %2287 = vrot.lane.b32.xlu0 %v2259, 17
  %v2288 = vpop.permute.xlu0 %2287
  %2289 = vrot.lane.b32.xlu0 %v2263, 17
  %v2290 = vpop.permute.xlu0 %2289
  %2291 = vrot.lane.b32.xlu0 %v2267, 17
  %v2292 = vpop.permute.xlu0 %2291
  %2293 = vrot.lane.b32.xlu0 %v2256, 17
  %v2294 = vpop.permute.xlu0 %2293
  %2295 = vrot.lane.b32.xlu0 %v2260, 17
  %v2296 = vpop.permute.xlu0 %2295
  %2297 = vrot.lane.b32.xlu0 %v2264, 17
  %v2298 = vpop.permute.xlu0 %2297
  %2299 = vrot.lane.b32.xlu0 %v2268, 17
  %v2300 = vpop.permute.xlu0 %2299
  %v2301 = vsel %vm58, %v2286, %v2294
  %v2302 = vsel %vm58, %v2288, %v2296
  %v2303 = vsel %vm58, %v2290, %v2298
  %v2304 = vsel %vm58, %v2292, %v2300
  %v2305 = vsel %vm58, %v2278, %v2286
  %v2306 = vsel %vm58, %v2280, %v2288
  %v2307 = vsel %vm58, %v2282, %v2290
  %v2308 = vsel %vm58, %v2284, %v2292
  %v2309 = vsel %vm58, %v2270, %v2278
  %v2310 = vsel %vm58, %v2272, %v2280
  %v2311 = vsel %vm58, %v2274, %v2282
  %v2312 = vsel %vm58, %v2276, %v2284
  %v2313 = vsel %vm58, %v2294, %v2270
  %v2314 = vsel %vm58, %v2296, %v2272
  %v2315 = vsel %vm58, %v2298, %v2274
  %v2316 = vsel %vm58, %v2300, %v2276
  %v2317 = vmul.f32 %v2313, %v67
  %v2318 = vmul.f32 %v2309, %v71
  %v2319 = vmul.f32 %v2305, %v75
  %v2320 = vmul.f32 %v2301, %v79
  %v2321 = vmul.f32 %v2314, %v67
  %v2322 = vmul.f32 %v2310, %v71
  %v2323 = vmul.f32 %v2306, %v75
  %v2324 = vmul.f32 %v2302, %v79
  %v2325 = vmul.f32 %v2315, %v67
  %v2326 = vmul.f32 %v2311, %v71
  %v2327 = vmul.f32 %v2307, %v75
  %v2328 = vmul.f32 %v2303, %v79
  %v2329 = vmul.f32 %v2316, %v67
  %v2330 = vmul.f32 %v2312, %v71
  %v2331 = vmul.f32 %v2308, %v75
  %v2332 = vmul.f32 %v2304, %v79
  %v2333 = vld [vmem:[%s4] sm:$0xff]
  %v2334 = vld [vmem:[%s4 + $0x18] sm:$0xff]
  %v2335 = vld [vmem:[%s4 + $0x30] sm:$0xff]
  %v2336 = vld [vmem:[%s4 + $0x48] sm:$0xff]
  %v2337 = vld [vmem:[%s4 + $0x60] sm:$0xff]
  %v2338 = vld [vmem:[%s4 + $0x78] sm:$0xff]
  %v2339 = vld [vmem:[%s4 + $0x90] sm:$0xff]
  %v2340 = vld [vmem:[%s4 + $0xa8] sm:$0xff]
  %2341 = vrot.lane.b32.xlu0 %v2253, 16
  %v2342 = vpop.permute.xlu0 %2341
  %2343 = vrot.lane.b32.xlu0 %v2257, 16
  %v2344 = vpop.permute.xlu0 %2343
  %2345 = vrot.lane.b32.xlu0 %v2261, 16
  %v2346 = vpop.permute.xlu0 %2345
  %2347 = vrot.lane.b32.xlu0 %v2265, 16
  %v2348 = vpop.permute.xlu0 %2347
  %2349 = vrot.lane.b32.xlu0 %v2254, 16
  %v2350 = vpop.permute.xlu0 %2349
  %2351 = vrot.lane.b32.xlu0 %v2258, 16
  %v2352 = vpop.permute.xlu0 %2351
  %2353 = vrot.lane.b32.xlu0 %v2262, 16
  %v2354 = vpop.permute.xlu0 %2353
  %2355 = vrot.lane.b32.xlu0 %v2266, 16
  %v2356 = vpop.permute.xlu0 %2355
  %2357 = vrot.lane.b32.xlu0 %v2255, 16
  %v2358 = vpop.permute.xlu0 %2357
  %2359 = vrot.lane.b32.xlu0 %v2259, 16
  %v2360 = vpop.permute.xlu0 %2359
  %2361 = vrot.lane.b32.xlu0 %v2263, 16
  %v2362 = vpop.permute.xlu0 %2361
  %2363 = vrot.lane.b32.xlu0 %v2267, 16
  %v2364 = vpop.permute.xlu0 %2363
  %2365 = vrot.lane.b32.xlu0 %v2256, 16
  %v2366 = vpop.permute.xlu0 %2365
  %2367 = vrot.lane.b32.xlu0 %v2260, 16
  %v2368 = vpop.permute.xlu0 %2367
  %2369 = vrot.lane.b32.xlu0 %v2264, 16
  %v2370 = vpop.permute.xlu0 %2369
  %2371 = vrot.lane.b32.xlu0 %v2268, 16
  %v2372 = vpop.permute.xlu0 %2371
  %v2373 = vsel %vm100, %v2358, %v2366
  %v2374 = vsel %vm100, %v2360, %v2368
  %v2375 = vsel %vm100, %v2362, %v2370
  %v2376 = vsel %vm100, %v2364, %v2372
  %v2377 = vsel %vm100, %v2350, %v2358
  %v2378 = vsel %vm100, %v2352, %v2360
  %v2379 = vsel %vm100, %v2354, %v2362
  %v2380 = vsel %vm100, %v2356, %v2364
  %v2381 = vsel %vm100, %v2342, %v2350
  %v2382 = vsel %vm100, %v2344, %v2352
  %v2383 = vsel %vm100, %v2346, %v2354
  %v2384 = vsel %vm100, %v2348, %v2356
  %v2385 = vsel %vm100, %v2366, %v2342
  %v2386 = vsel %vm100, %v2368, %v2344
  %v2387 = vsel %vm100, %v2370, %v2346
  %v2388 = vsel %vm100, %v2372, %v2348
  %v2389 = vmul.f32 %v2385, %v109
  %v2390 = vmul.f32 %v2381, %v113
  %v2391 = vmul.f32 %v2377, %v117
  %v2392 = vmul.f32 %v2373, %v121
  %v2393 = vmul.f32 %v2386, %v109
  %v2394 = vmul.f32 %v2382, %v113
  %v2395 = vmul.f32 %v2378, %v117
  %v2396 = vmul.f32 %v2374, %v121
  %v2397 = vmul.f32 %v2387, %v109
  %v2398 = vmul.f32 %v2383, %v113
  %v2399 = vmul.f32 %v2379, %v117
  %v2400 = vmul.f32 %v2375, %v121
  %v2401 = vmul.f32 %v2388, %v109
  %v2402 = vmul.f32 %v2384, %v113
  %v2403 = vmul.f32 %v2380, %v117
  %v2404 = vmul.f32 %v2376, %v121
  %2413 = vrot.lane.b32.xlu0 %v2333, 96
  %v2414 = vpop.permute.xlu0 %2413
  %2415 = vrot.lane.b32.xlu0 %v2334, 96
  %v2416 = vpop.permute.xlu0 %2415
  %2417 = vrot.lane.b32.xlu0 %v2335, 96
  %v2418 = vpop.permute.xlu0 %2417
  %2419 = vrot.lane.b32.xlu0 %v2336, 96
  %v2420 = vpop.permute.xlu0 %2419
  %2421 = vrot.lane.b32.xlu0 %v2337, 96
  %v2422 = vpop.permute.xlu0 %2421
  %2423 = vrot.lane.b32.xlu0 %v2338, 96
  %v2424 = vpop.permute.xlu0 %2423
  %2425 = vrot.lane.b32.xlu0 %v2339, 96
  %v2426 = vpop.permute.xlu0 %2425
  %2427 = vrot.lane.b32.xlu0 %v2340, 96
  %v2428 = vpop.permute.xlu0 %2427
  %vm2429 = vcmask 261120
  %v2430 = vsel %vm2429, %v2414, 0
  %v2432 = vsel %vm2429, %v2416, 0
  %v2434 = vsel %vm2429, %v2418, 0
  %v2436 = vsel %vm2429, %v2420, 0
  %v2438 = vsel %vm2429, %v2422, 0
  %v2440 = vsel %vm2429, %v2424, 0
  %v2442 = vsel %vm2429, %v2426, 0
  %v2444 = vsel %vm2429, %v2428, 0
  %2446 = vmatprep.subr.mxu0 0.0
  %2447 = vmatpush1.msra.mxu0 0.0
  %2448 = vmatprep.subr.mxu0 0.0
  %2449 = vmatpush1.msra.mxu0 0.0
  %2450 = vmatprep.subr.mxu0 0.0
  %2451 = vmatpush1.msra.mxu0 0.0
  %2452 = vmatprep.subr.mxu0 0.0
  %2453 = vmatpush1.msra.mxu0 0.0
  %2454 = vmatprep.subr.mxu0 0.0
  %2455 = vmatpush1.msra.mxu0 0.0
  %2456 = vmatprep.subr.mxu0 0.0
  %2457 = vmatpush1.msra.mxu0 0.0
  %2458 = vmatprep.subr.mxu0 0.0
  %2459 = vmatpush1.msra.mxu0 0.0
  %2460 = vmatprep.subr.mxu0 0.0
  %2461 = vmatpush1.msra.mxu0 0.0
  %2462 = vmatprep.subr.mxu0 0.0
  %2463 = vmatpush1.msra.mxu0 0.0
  %2464 = vmatprep.subr.mxu0 0.0
  %2465 = vmatpush1.msra.mxu0 0.0
  %2466 = vmatprep.subr.mxu0 0.0
  %2467 = vmatpush1.msra.mxu0 0.0
  %2468 = vmatprep.subr.mxu0 0.0
  %2469 = vmatpush1.msra.mxu0 0.0
  %2470 = vmatprep.subr.mxu0 %v2402
  %2471 = vmatpush1.msra.mxu0 %v2401
  %2472 = vmatprep.subr.mxu0 %v2398
  %2473 = vmatpush1.msra.mxu0 %v2397
  %2474 = vmatprep.subr.mxu0 %v2394
  %2475 = vmatpush1.msra.mxu0 %v2393
  %2476 = vmatprep.subr.mxu0 %v2390
  %2477 = vmatpush1.msra.mxu0 %v2389
  %2478 = vmatprep.subr.mxu0 0.0
  %2479 = vmatpush2.msra.mxu0 0.0
  %2480 = vmatprep.subr.mxu0 0.0
  %2481 = vmatpush2.msra.mxu0 0.0
  %2482 = vmatprep.subr.mxu0 0.0
  %2483 = vmatpush2.msra.mxu0 0.0
  %2484 = vmatprep.subr.mxu0 0.0
  %2485 = vmatpush2.msra.mxu0 0.0
  %2486 = vmatprep.subr.mxu0 0.0
  %2487 = vmatpush2.msra.mxu0 0.0
  %2488 = vmatprep.subr.mxu0 0.0
  %2489 = vmatpush2.msra.mxu0 0.0
  %2490 = vmatprep.subr.mxu0 0.0
  %2491 = vmatpush2.msra.mxu0 0.0
  %2492 = vmatprep.subr.mxu0 0.0
  %2493 = vmatpush2.msra.mxu0 0.0
  %2494 = vmatprep.subr.mxu0 0.0
  %2495 = vmatpush2.msra.mxu0 0.0
  %2496 = vmatprep.subr.mxu0 0.0
  %2497 = vmatpush2.msra.mxu0 0.0
  %2498 = vmatprep.subr.mxu0 0.0
  %2499 = vmatpush2.msra.mxu0 0.0
  %2500 = vmatprep.subr.mxu0 0.0
  %2501 = vmatpush2.msra.mxu0 0.0
  %2502 = vmatprep.subr.mxu0 0.0
  %2503 = vmatpush2.msra.mxu0 0.0
  %2504 = vmatprep.subr.mxu0 0.0
  %2505 = vmatpush2.msra.mxu0 0.0
  %2506 = vmatprep.subr.mxu0 0.0
  %2507 = vmatpush2.msra.mxu0 0.0
  %2508 = vmatprep.subr.mxu0 0.0
  %2509 = vmatpush2.msra.mxu0 0.0
  %2510 = vmatprep.mubr.f32.mxu0 0.0
  %2511 = vmatmul.mubr.f32.gmra.mxu0 %v2430
  %v2512 = vpop.f32.mrf.mxu0
  %v2513 = vadd.f32 0.0, %v2512
  %v2514 = vpop.f32.mrf.mxu0
  %v2515 = vadd.f32 0.0, %v2514
  %2516 = vmatprep.mubr.f32.mxu0 0.0
  %2517 = vmatmul.mubr.f32.gmra.mxu0 %v2432
  %v2518 = vpop.f32.mrf.mxu0
  %v2519 = vadd.f32 0.0, %v2518
  %v2520 = vpop.f32.mrf.mxu0
  %v2521 = vadd.f32 0.0, %v2520
  %2522 = vmatprep.mubr.f32.mxu0 0.0
  %2523 = vmatmul.mubr.f32.gmra.mxu0 %v2434
  %v2524 = vpop.f32.mrf.mxu0
  %v2525 = vadd.f32 0.0, %v2524
  %v2526 = vpop.f32.mrf.mxu0
  %v2527 = vadd.f32 0.0, %v2526
  %2528 = vmatprep.mubr.f32.mxu0 0.0
  %2529 = vmatmul.mubr.f32.gmra.mxu0 %v2436
  %v2530 = vpop.f32.mrf.mxu0
  %v2531 = vadd.f32 0.0, %v2530
  %v2532 = vpop.f32.mrf.mxu0
  %v2533 = vadd.f32 0.0, %v2532
  %2534 = vmatprep.mubr.f32.mxu0 0.0
  %2535 = vmatmul.mubr.f32.gmra.mxu0 %v2438
  %v2536 = vpop.f32.mrf.mxu0
  %v2537 = vadd.f32 0.0, %v2536
  %v2538 = vpop.f32.mrf.mxu0
  %v2539 = vadd.f32 0.0, %v2538
  %2540 = vmatprep.mubr.f32.mxu0 0.0
  %2541 = vmatmul.mubr.f32.gmra.mxu0 %v2440
  %v2542 = vpop.f32.mrf.mxu0
  %v2543 = vadd.f32 0.0, %v2542
  %v2544 = vpop.f32.mrf.mxu0
  %v2545 = vadd.f32 0.0, %v2544
  %2546 = vmatprep.mubr.f32.mxu0 0.0
  %2547 = vmatmul.mubr.f32.gmra.mxu0 %v2442
  %v2548 = vpop.f32.mrf.mxu0
  %v2549 = vadd.f32 0.0, %v2548
  %v2550 = vpop.f32.mrf.mxu0
  %v2551 = vadd.f32 0.0, %v2550
  %2552 = vmatprep.mubr.f32.mxu0 0.0
  %2553 = vmatmul.mubr.f32.gmra.mxu0 %v2444
  %v2554 = vpop.f32.mrf.mxu0
  %v2555 = vadd.f32 0.0, %v2554
  %v2556 = vpop.f32.mrf.mxu0
  %v2557 = vadd.f32 0.0, %v2556
  %2558 = vdwg.mxu0
  %2559 = vmatprep.subr.mxu0 0.0
  %2560 = vmatpush1.msra.mxu0 0.0
  %2561 = vmatprep.subr.mxu0 0.0
  %2562 = vmatpush1.msra.mxu0 0.0
  %2563 = vmatprep.subr.mxu0 0.0
  %2564 = vmatpush1.msra.mxu0 0.0
  %2565 = vmatprep.subr.mxu0 0.0
  %2566 = vmatpush1.msra.mxu0 0.0
  %2567 = vmatprep.subr.mxu0 0.0
  %2568 = vmatpush1.msra.mxu0 0.0
  %2569 = vmatprep.subr.mxu0 0.0
  %2570 = vmatpush1.msra.mxu0 0.0
  %2571 = vmatprep.subr.mxu0 0.0
  %2572 = vmatpush1.msra.mxu0 0.0
  %2573 = vmatprep.subr.mxu0 0.0
  %2574 = vmatpush1.msra.mxu0 0.0
  %2575 = vmatprep.subr.mxu0 0.0
  %2576 = vmatpush1.msra.mxu0 0.0
  %2577 = vmatprep.subr.mxu0 0.0
  %2578 = vmatpush1.msra.mxu0 0.0
  %2579 = vmatprep.subr.mxu0 0.0
  %2580 = vmatpush1.msra.mxu0 0.0
  %2581 = vmatprep.subr.mxu0 0.0
  %2582 = vmatpush1.msra.mxu0 0.0
  %2583 = vmatprep.subr.mxu0 %v2404
  %2584 = vmatpush1.msra.mxu0 %v2403
  %2585 = vmatprep.subr.mxu0 %v2400
  %2586 = vmatpush1.msra.mxu0 %v2399
  %2587 = vmatprep.subr.mxu0 %v2396
  %2588 = vmatpush1.msra.mxu0 %v2395
  %2589 = vmatprep.subr.mxu0 %v2392
  %2590 = vmatpush1.msra.mxu0 %v2391
  %2591 = vmatprep.subr.mxu0 0.0
  %2592 = vmatpush2.msra.mxu0 0.0
  %2593 = vmatprep.subr.mxu0 0.0
  %2594 = vmatpush2.msra.mxu0 0.0
  %2595 = vmatprep.subr.mxu0 0.0
  %2596 = vmatpush2.msra.mxu0 0.0
  %2597 = vmatprep.subr.mxu0 0.0
  %2598 = vmatpush2.msra.mxu0 0.0
  %2599 = vmatprep.subr.mxu0 0.0
  %2600 = vmatpush2.msra.mxu0 0.0
  %2601 = vmatprep.subr.mxu0 0.0
  %2602 = vmatpush2.msra.mxu0 0.0
  %2603 = vmatprep.subr.mxu0 0.0
  %2604 = vmatpush2.msra.mxu0 0.0
  %2605 = vmatprep.subr.mxu0 0.0
  %2606 = vmatpush2.msra.mxu0 0.0
  %2607 = vmatprep.subr.mxu0 0.0
  %2608 = vmatpush2.msra.mxu0 0.0
  %2609 = vmatprep.subr.mxu0 0.0
  %2610 = vmatpush2.msra.mxu0 0.0
  %2611 = vmatprep.subr.mxu0 0.0
  %2612 = vmatpush2.msra.mxu0 0.0
  %2613 = vmatprep.subr.mxu0 0.0
  %2614 = vmatpush2.msra.mxu0 0.0
  %2615 = vmatprep.subr.mxu0 0.0
  %2616 = vmatpush2.msra.mxu0 0.0
  %2617 = vmatprep.subr.mxu0 0.0
  %2618 = vmatpush2.msra.mxu0 0.0
  %2619 = vmatprep.subr.mxu0 0.0
  %2620 = vmatpush2.msra.mxu0 0.0
  %2621 = vmatprep.subr.mxu0 0.0
  %2622 = vmatpush2.msra.mxu0 0.0
  %2623 = vmatprep.mubr.f32.mxu0 0.0
  %2624 = vmatmul.mubr.f32.gmra.mxu0 %v2430
  %v2625 = vpop.f32.mrf.mxu0
  %v2626 = vadd.f32 0.0, %v2625
  %v2627 = vpop.f32.mrf.mxu0
  %v2628 = vadd.f32 0.0, %v2627
  %2629 = vmatprep.mubr.f32.mxu0 0.0
  %2630 = vmatmul.mubr.f32.gmra.mxu0 %v2432
  %v2631 = vpop.f32.mrf.mxu0
  %v2632 = vadd.f32 0.0, %v2631
  %v2633 = vpop.f32.mrf.mxu0
  %v2634 = vadd.f32 0.0, %v2633
  %2635 = vmatprep.mubr.f32.mxu0 0.0
  %2636 = vmatmul.mubr.f32.gmra.mxu0 %v2434
  %v2637 = vpop.f32.mrf.mxu0
  %v2638 = vadd.f32 0.0, %v2637
  %v2639 = vpop.f32.mrf.mxu0
  %v2640 = vadd.f32 0.0, %v2639
  %2641 = vmatprep.mubr.f32.mxu0 0.0
  %2642 = vmatmul.mubr.f32.gmra.mxu0 %v2436
  %v2643 = vpop.f32.mrf.mxu0
  %v2644 = vadd.f32 0.0, %v2643
  %v2645 = vpop.f32.mrf.mxu0
  %v2646 = vadd.f32 0.0, %v2645
  %2647 = vmatprep.mubr.f32.mxu0 0.0
  %2648 = vmatmul.mubr.f32.gmra.mxu0 %v2438
  %v2649 = vpop.f32.mrf.mxu0
  %v2650 = vadd.f32 0.0, %v2649
  %v2651 = vpop.f32.mrf.mxu0
  %v2652 = vadd.f32 0.0, %v2651
  %2653 = vmatprep.mubr.f32.mxu0 0.0
  %2654 = vmatmul.mubr.f32.gmra.mxu0 %v2440
  %v2655 = vpop.f32.mrf.mxu0
  %v2656 = vadd.f32 0.0, %v2655
  %v2657 = vpop.f32.mrf.mxu0
  %v2658 = vadd.f32 0.0, %v2657
  %2659 = vmatprep.mubr.f32.mxu0 0.0
  %2660 = vmatmul.mubr.f32.gmra.mxu0 %v2442
  %v2661 = vpop.f32.mrf.mxu0
  %v2662 = vadd.f32 0.0, %v2661
  %v2663 = vpop.f32.mrf.mxu0
  %v2664 = vadd.f32 0.0, %v2663
  %2665 = vmatprep.mubr.f32.mxu0 0.0
  %2666 = vmatmul.mubr.f32.gmra.mxu0 %v2444
  %v2667 = vpop.f32.mrf.mxu0
  %v2668 = vadd.f32 0.0, %v2667
  %v2669 = vpop.f32.mrf.mxu0
  %v2670 = vadd.f32 0.0, %v2669
  %2671 = vdwg.mxu0
  %v2672 = vsel %vm2429, %v2333, 0
  %v2674 = vsel %vm2429, %v2334, 0
  %v2676 = vsel %vm2429, %v2335, 0
  %v2678 = vsel %vm2429, %v2336, 0
  %v2680 = vsel %vm2429, %v2337, 0
  %v2682 = vsel %vm2429, %v2338, 0
  %v2684 = vsel %vm2429, %v2339, 0
  %v2686 = vsel %vm2429, %v2340, 0
  %2688 = vmatprep.subr.mxu0 0.0
  %2689 = vmatpush1.msra.mxu0 0.0
  %2690 = vmatprep.subr.mxu0 0.0
  %2691 = vmatpush1.msra.mxu0 0.0
  %2692 = vmatprep.subr.mxu0 0.0
  %2693 = vmatpush1.msra.mxu0 0.0
  %2694 = vmatprep.subr.mxu0 0.0
  %2695 = vmatpush1.msra.mxu0 0.0
  %2696 = vmatprep.subr.mxu0 0.0
  %2697 = vmatpush1.msra.mxu0 0.0
  %2698 = vmatprep.subr.mxu0 0.0
  %2699 = vmatpush1.msra.mxu0 0.0
  %2700 = vmatprep.subr.mxu0 0.0
  %2701 = vmatpush1.msra.mxu0 0.0
  %2702 = vmatprep.subr.mxu0 0.0
  %2703 = vmatpush1.msra.mxu0 0.0
  %2704 = vmatprep.subr.mxu0 0.0
  %2705 = vmatpush1.msra.mxu0 0.0
  %2706 = vmatprep.subr.mxu0 0.0
  %2707 = vmatpush1.msra.mxu0 0.0
  %2708 = vmatprep.subr.mxu0 0.0
  %2709 = vmatpush1.msra.mxu0 0.0
  %2710 = vmatprep.subr.mxu0 0.0
  %2711 = vmatpush1.msra.mxu0 0.0
  %2712 = vmatprep.subr.mxu0 %v2330
  %2713 = vmatpush1.msra.mxu0 %v2329
  %2714 = vmatprep.subr.mxu0 %v2326
  %2715 = vmatpush1.msra.mxu0 %v2325
  %2716 = vmatprep.subr.mxu0 %v2322
  %2717 = vmatpush1.msra.mxu0 %v2321
  %2718 = vmatprep.subr.mxu0 %v2318
  %2719 = vmatpush1.msra.mxu0 %v2317
  %2720 = vmatprep.subr.mxu0 0.0
  %2721 = vmatpush2.msra.mxu0 0.0
  %2722 = vmatprep.subr.mxu0 0.0
  %2723 = vmatpush2.msra.mxu0 0.0
  %2724 = vmatprep.subr.mxu0 0.0
  %2725 = vmatpush2.msra.mxu0 0.0
  %2726 = vmatprep.subr.mxu0 0.0
  %2727 = vmatpush2.msra.mxu0 0.0
  %2728 = vmatprep.subr.mxu0 0.0
  %2729 = vmatpush2.msra.mxu0 0.0
  %2730 = vmatprep.subr.mxu0 0.0
  %2731 = vmatpush2.msra.mxu0 0.0
  %2732 = vmatprep.subr.mxu0 0.0
  %2733 = vmatpush2.msra.mxu0 0.0
  %2734 = vmatprep.subr.mxu0 0.0
  %2735 = vmatpush2.msra.mxu0 0.0
  %2736 = vmatprep.subr.mxu0 0.0
  %2737 = vmatpush2.msra.mxu0 0.0
  %2738 = vmatprep.subr.mxu0 0.0
  %2739 = vmatpush2.msra.mxu0 0.0
  %2740 = vmatprep.subr.mxu0 0.0
  %2741 = vmatpush2.msra.mxu0 0.0
  %2742 = vmatprep.subr.mxu0 0.0
  %2743 = vmatpush2.msra.mxu0 0.0
  %2744 = vmatprep.subr.mxu0 0.0
  %2745 = vmatpush2.msra.mxu0 0.0
  %2746 = vmatprep.subr.mxu0 0.0
  %2747 = vmatpush2.msra.mxu0 0.0
  %2748 = vmatprep.subr.mxu0 0.0
  %2749 = vmatpush2.msra.mxu0 0.0
  %2750 = vmatprep.subr.mxu0 0.0
  %2751 = vmatpush2.msra.mxu0 0.0
  %2752 = vmatprep.mubr.f32.mxu0 0.0
  %2753 = vmatmul.mubr.f32.gmra.mxu0 %v2672
  %v2754 = vpop.f32.mrf.mxu0
  %v2755 = vadd.f32 %v2513, %v2754
  %v2756 = vpop.f32.mrf.mxu0
  %v2757 = vadd.f32 %v2515, %v2756
  %2758 = vmatprep.mubr.f32.mxu0 0.0
  %2759 = vmatmul.mubr.f32.gmra.mxu0 %v2674
  %v2760 = vpop.f32.mrf.mxu0
  %v2761 = vadd.f32 %v2519, %v2760
  %v2762 = vpop.f32.mrf.mxu0
  %v2763 = vadd.f32 %v2521, %v2762
  %2764 = vmatprep.mubr.f32.mxu0 0.0
  %2765 = vmatmul.mubr.f32.gmra.mxu0 %v2676
  %v2766 = vpop.f32.mrf.mxu0
  %v2767 = vadd.f32 %v2525, %v2766
  %v2768 = vpop.f32.mrf.mxu0
  %v2769 = vadd.f32 %v2527, %v2768
  %2770 = vmatprep.mubr.f32.mxu0 0.0
  %2771 = vmatmul.mubr.f32.gmra.mxu0 %v2678
  %v2772 = vpop.f32.mrf.mxu0
  %v2773 = vadd.f32 %v2531, %v2772
  %v2774 = vpop.f32.mrf.mxu0
  %v2775 = vadd.f32 %v2533, %v2774
  %2776 = vmatprep.mubr.f32.mxu0 0.0
  %2777 = vmatmul.mubr.f32.gmra.mxu0 %v2680
  %v2778 = vpop.f32.mrf.mxu0
  %v2779 = vadd.f32 %v2537, %v2778
  %v2780 = vpop.f32.mrf.mxu0
  %v2781 = vadd.f32 %v2539, %v2780
  %2782 = vmatprep.mubr.f32.mxu0 0.0
  %2783 = vmatmul.mubr.f32.gmra.mxu0 %v2682
  %v2784 = vpop.f32.mrf.mxu0
  %v2785 = vadd.f32 %v2543, %v2784
  %v2786 = vpop.f32.mrf.mxu0
  %v2787 = vadd.f32 %v2545, %v2786
  %2788 = vmatprep.mubr.f32.mxu0 0.0
  %2789 = vmatmul.mubr.f32.gmra.mxu0 %v2684
  %v2790 = vpop.f32.mrf.mxu0
  %v2791 = vadd.f32 %v2549, %v2790
  %v2792 = vpop.f32.mrf.mxu0
  %v2793 = vadd.f32 %v2551, %v2792
  %2794 = vmatprep.mubr.f32.mxu0 0.0
  %2795 = vmatmul.mubr.f32.gmra.mxu0 %v2686
  %v2796 = vpop.f32.mrf.mxu0
  %v2797 = vadd.f32 %v2555, %v2796
  %v2798 = vpop.f32.mrf.mxu0
  %v2799 = vadd.f32 %v2557, %v2798
  %2800 = vdwg.mxu0
  %2801 = vmatprep.subr.mxu0 0.0
  %2802 = vmatpush1.msra.mxu0 0.0
  %2803 = vmatprep.subr.mxu0 0.0
  %2804 = vmatpush1.msra.mxu0 0.0
  %2805 = vmatprep.subr.mxu0 0.0
  %2806 = vmatpush1.msra.mxu0 0.0
  %2807 = vmatprep.subr.mxu0 0.0
  %2808 = vmatpush1.msra.mxu0 0.0
  %2809 = vmatprep.subr.mxu0 0.0
  %2810 = vmatpush1.msra.mxu0 0.0
  %2811 = vmatprep.subr.mxu0 0.0
  %2812 = vmatpush1.msra.mxu0 0.0
  %2813 = vmatprep.subr.mxu0 0.0
  %2814 = vmatpush1.msra.mxu0 0.0
  %2815 = vmatprep.subr.mxu0 0.0
  %2816 = vmatpush1.msra.mxu0 0.0
  %2817 = vmatprep.subr.mxu0 0.0
  %2818 = vmatpush1.msra.mxu0 0.0
  %2819 = vmatprep.subr.mxu0 0.0
  %2820 = vmatpush1.msra.mxu0 0.0
  %2821 = vmatprep.subr.mxu0 0.0
  %2822 = vmatpush1.msra.mxu0 0.0
  %2823 = vmatprep.subr.mxu0 0.0
  %2824 = vmatpush1.msra.mxu0 0.0
  %2825 = vmatprep.subr.mxu0 %v2332
  %2826 = vmatpush1.msra.mxu0 %v2331
  %2827 = vmatprep.subr.mxu0 %v2328
  %2828 = vmatpush1.msra.mxu0 %v2327
  %2829 = vmatprep.subr.mxu0 %v2324
  %2830 = vmatpush1.msra.mxu0 %v2323
  %2831 = vmatprep.subr.mxu0 %v2320
  %2832 = vmatpush1.msra.mxu0 %v2319
  %2833 = vmatprep.subr.mxu0 0.0
  %2834 = vmatpush2.msra.mxu0 0.0
  %2835 = vmatprep.subr.mxu0 0.0
  %2836 = vmatpush2.msra.mxu0 0.0
  %2837 = vmatprep.subr.mxu0 0.0
  %2838 = vmatpush2.msra.mxu0 0.0
  %2839 = vmatprep.subr.mxu0 0.0
  %2840 = vmatpush2.msra.mxu0 0.0
  %2841 = vmatprep.subr.mxu0 0.0
  %2842 = vmatpush2.msra.mxu0 0.0
  %2843 = vmatprep.subr.mxu0 0.0
  %2844 = vmatpush2.msra.mxu0 0.0
  %2845 = vmatprep.subr.mxu0 0.0
  %2846 = vmatpush2.msra.mxu0 0.0
  %2847 = vmatprep.subr.mxu0 0.0
  %2848 = vmatpush2.msra.mxu0 0.0
  %2849 = vmatprep.subr.mxu0 0.0
  %2850 = vmatpush2.msra.mxu0 0.0
  %2851 = vmatprep.subr.mxu0 0.0
  %2852 = vmatpush2.msra.mxu0 0.0
  %2853 = vmatprep.subr.mxu0 0.0
  %2854 = vmatpush2.msra.mxu0 0.0
  %2855 = vmatprep.subr.mxu0 0.0
  %2856 = vmatpush2.msra.mxu0 0.0
  %2857 = vmatprep.subr.mxu0 0.0
  %2858 = vmatpush2.msra.mxu0 0.0
  %2859 = vmatprep.subr.mxu0 0.0
  %2860 = vmatpush2.msra.mxu0 0.0
  %2861 = vmatprep.subr.mxu0 0.0
  %2862 = vmatpush2.msra.mxu0 0.0
  %2863 = vmatprep.subr.mxu0 0.0
  %2864 = vmatpush2.msra.mxu0 0.0
  %2865 = vmatprep.mubr.f32.mxu0 0.0
  %2866 = vmatmul.mubr.f32.gmra.mxu0 %v2672
  %v2867 = vpop.f32.mrf.mxu0
  %v2868 = vadd.f32 %v2626, %v2867
  %v2869 = vpop.f32.mrf.mxu0
  %v2870 = vadd.f32 %v2628, %v2869
  %2871 = vmatprep.mubr.f32.mxu0 0.0
  %2872 = vmatmul.mubr.f32.gmra.mxu0 %v2674
  %v2873 = vpop.f32.mrf.mxu0
  %v2874 = vadd.f32 %v2632, %v2873
  %v2875 = vpop.f32.mrf.mxu0
  %v2876 = vadd.f32 %v2634, %v2875
  %2877 = vmatprep.mubr.f32.mxu0 0.0
  %2878 = vmatmul.mubr.f32.gmra.mxu0 %v2676
  %v2879 = vpop.f32.mrf.mxu0
  %v2880 = vadd.f32 %v2638, %v2879
  %v2881 = vpop.f32.mrf.mxu0
  %v2882 = vadd.f32 %v2640, %v2881
  %2883 = vmatprep.mubr.f32.mxu0 0.0
  %2884 = vmatmul.mubr.f32.gmra.mxu0 %v2678
  %v2885 = vpop.f32.mrf.mxu0
  %v2886 = vadd.f32 %v2644, %v2885
  %v2887 = vpop.f32.mrf.mxu0
  %v2888 = vadd.f32 %v2646, %v2887
  %2889 = vmatprep.mubr.f32.mxu0 0.0
  %2890 = vmatmul.mubr.f32.gmra.mxu0 %v2680
  %v2891 = vpop.f32.mrf.mxu0
  %v2892 = vadd.f32 %v2650, %v2891
  %v2893 = vpop.f32.mrf.mxu0
  %v2894 = vadd.f32 %v2652, %v2893
  %2895 = vmatprep.mubr.f32.mxu0 0.0
  %2896 = vmatmul.mubr.f32.gmra.mxu0 %v2682
  %v2897 = vpop.f32.mrf.mxu0
  %v2898 = vadd.f32 %v2656, %v2897
  %v2899 = vpop.f32.mrf.mxu0
  %v2900 = vadd.f32 %v2658, %v2899
  %2901 = vmatprep.mubr.f32.mxu0 0.0
  %2902 = vmatmul.mubr.f32.gmra.mxu0 %v2684
  %v2903 = vpop.f32.mrf.mxu0
  %v2904 = vadd.f32 %v2662, %v2903
  %v2905 = vpop.f32.mrf.mxu0
  %v2906 = vadd.f32 %v2664, %v2905
  %2907 = vmatprep.mubr.f32.mxu0 0.0
  %2908 = vmatmul.mubr.f32.gmra.mxu0 %v2686
  %v2909 = vpop.f32.mrf.mxu0
  %v2910 = vadd.f32 %v2668, %v2909
  %v2911 = vpop.f32.mrf.mxu0
  %v2912 = vadd.f32 %v2670, %v2911
  %2913 = vdwg.mxu0
  %2914 = vrot.lane.b32.xlu0 %v2253, 15
  %v2915 = vpop.permute.xlu0 %2914
  %2916 = vrot.lane.b32.xlu0 %v2257, 15
  %v2917 = vpop.permute.xlu0 %2916
  %2918 = vrot.lane.b32.xlu0 %v2261, 15
  %v2919 = vpop.permute.xlu0 %2918
  %2920 = vrot.lane.b32.xlu0 %v2265, 15
  %v2921 = vpop.permute.xlu0 %2920
  %2922 = vrot.lane.b32.xlu0 %v2254, 15
  %v2923 = vpop.permute.xlu0 %2922
  %2924 = vrot.lane.b32.xlu0 %v2258, 15
  %v2925 = vpop.permute.xlu0 %2924
  %2926 = vrot.lane.b32.xlu0 %v2262, 15
  %v2927 = vpop.permute.xlu0 %2926
  %2928 = vrot.lane.b32.xlu0 %v2266, 15
  %v2929 = vpop.permute.xlu0 %2928
  %2930 = vrot.lane.b32.xlu0 %v2255, 15
  %v2931 = vpop.permute.xlu0 %2930
  %2932 = vrot.lane.b32.xlu0 %v2259, 15
  %v2933 = vpop.permute.xlu0 %2932
  %2934 = vrot.lane.b32.xlu0 %v2263, 15
  %v2935 = vpop.permute.xlu0 %2934
  %2936 = vrot.lane.b32.xlu0 %v2267, 15
  %v2937 = vpop.permute.xlu0 %2936
  %2938 = vrot.lane.b32.xlu0 %v2256, 15
  %v2939 = vpop.permute.xlu0 %2938
  %2940 = vrot.lane.b32.xlu0 %v2260, 15
  %v2941 = vpop.permute.xlu0 %2940
  %2942 = vrot.lane.b32.xlu0 %v2264, 15
  %v2943 = vpop.permute.xlu0 %2942
  %2944 = vrot.lane.b32.xlu0 %v2268, 15
  %v2945 = vpop.permute.xlu0 %2944
  %v2946 = vsel %vm523, %v2931, %v2939
  %v2947 = vsel %vm523, %v2933, %v2941
  %v2948 = vsel %vm523, %v2935, %v2943
  %v2949 = vsel %vm523, %v2937, %v2945
  %v2950 = vsel %vm523, %v2923, %v2931
  %v2951 = vsel %vm523, %v2925, %v2933
  %v2952 = vsel %vm523, %v2927, %v2935
  %v2953 = vsel %vm523, %v2929, %v2937
  %v2954 = vsel %vm523, %v2915, %v2923
  %v2955 = vsel %vm523, %v2917, %v2925
  %v2956 = vsel %vm523, %v2919, %v2927
  %v2957 = vsel %vm523, %v2921, %v2929
  %v2958 = vsel %vm523, %v2939, %v2915
  %v2959 = vsel %vm523, %v2941, %v2917
  %v2960 = vsel %vm523, %v2943, %v2919
  %v2961 = vsel %vm523, %v2945, %v2921
  %v2962 = vmul.f32 %v2958, %v532
  %v2963 = vmul.f32 %v2954, %v536
  %v2964 = vmul.f32 %v2950, %v540
  %v2965 = vmul.f32 %v2946, %v544
  %v2966 = vmul.f32 %v2959, %v532
  %v2967 = vmul.f32 %v2955, %v536
  %v2968 = vmul.f32 %v2951, %v540
  %v2969 = vmul.f32 %v2947, %v544
  %v2970 = vmul.f32 %v2960, %v532
  %v2971 = vmul.f32 %v2956, %v536
  %v2972 = vmul.f32 %v2952, %v540
  %v2973 = vmul.f32 %v2948, %v544
  %v2974 = vmul.f32 %v2961, %v532
  %v2975 = vmul.f32 %v2957, %v536
  %v2976 = vmul.f32 %v2953, %v540
  %v2977 = vmul.f32 %v2949, %v544
  %2978 = vrot.lane.b32.xlu0 %v2333, 64
  %v2979 = vpop.permute.xlu0 %2978
  %2980 = vrot.lane.b32.xlu0 %v2334, 64
  %v2981 = vpop.permute.xlu0 %2980
  %2982 = vrot.lane.b32.xlu0 %v2335, 64
  %v2983 = vpop.permute.xlu0 %2982
  %2984 = vrot.lane.b32.xlu0 %v2336, 64
  %v2985 = vpop.permute.xlu0 %2984
  %2986 = vrot.lane.b32.xlu0 %v2337, 64
  %v2987 = vpop.permute.xlu0 %2986
  %2988 = vrot.lane.b32.xlu0 %v2338, 64
  %v2989 = vpop.permute.xlu0 %2988
  %2990 = vrot.lane.b32.xlu0 %v2339, 64
  %v2991 = vpop.permute.xlu0 %2990
  %2992 = vrot.lane.b32.xlu0 %v2340, 64
  %v2993 = vpop.permute.xlu0 %2992
  %v2994 = vsel %vm2429, %v2979, 0
  %v2996 = vsel %vm2429, %v2981, 0
  %v2998 = vsel %vm2429, %v2983, 0
  %v3000 = vsel %vm2429, %v2985, 0
  %v3002 = vsel %vm2429, %v2987, 0
  %v3004 = vsel %vm2429, %v2989, 0
  %v3006 = vsel %vm2429, %v2991, 0
  %v3008 = vsel %vm2429, %v2993, 0
  %3010 = vmatprep.subr.mxu0 0.0
  %3011 = vmatpush1.msra.mxu0 0.0
  %3012 = vmatprep.subr.mxu0 0.0
  %3013 = vmatpush1.msra.mxu0 0.0
  %3014 = vmatprep.subr.mxu0 0.0
  %3015 = vmatpush1.msra.mxu0 0.0
  %3016 = vmatprep.subr.mxu0 0.0
  %3017 = vmatpush1.msra.mxu0 0.0
  %3018 = vmatprep.subr.mxu0 0.0
  %3019 = vmatpush1.msra.mxu0 0.0
  %3020 = vmatprep.subr.mxu0 0.0
  %3021 = vmatpush1.msra.mxu0 0.0
  %3022 = vmatprep.subr.mxu0 0.0
  %3023 = vmatpush1.msra.mxu0 0.0
  %3024 = vmatprep.subr.mxu0 0.0
  %3025 = vmatpush1.msra.mxu0 0.0
  %3026 = vmatprep.subr.mxu0 0.0
  %3027 = vmatpush1.msra.mxu0 0.0
  %3028 = vmatprep.subr.mxu0 0.0
  %3029 = vmatpush1.msra.mxu0 0.0
  %3030 = vmatprep.subr.mxu0 0.0
  %3031 = vmatpush1.msra.mxu0 0.0
  %3032 = vmatprep.subr.mxu0 0.0
  %3033 = vmatpush1.msra.mxu0 0.0
  %3034 = vmatprep.subr.mxu0 %v2975
  %3035 = vmatpush1.msra.mxu0 %v2974
  %3036 = vmatprep.subr.mxu0 %v2971
  %3037 = vmatpush1.msra.mxu0 %v2970
  %3038 = vmatprep.subr.mxu0 %v2967
  %3039 = vmatpush1.msra.mxu0 %v2966
  %3040 = vmatprep.subr.mxu0 %v2963
  %3041 = vmatpush1.msra.mxu0 %v2962
  %3042 = vmatprep.subr.mxu0 0.0
  %3043 = vmatpush2.msra.mxu0 0.0
  %3044 = vmatprep.subr.mxu0 0.0
  %3045 = vmatpush2.msra.mxu0 0.0
  %3046 = vmatprep.subr.mxu0 0.0
  %3047 = vmatpush2.msra.mxu0 0.0
  %3048 = vmatprep.subr.mxu0 0.0
  %3049 = vmatpush2.msra.mxu0 0.0
  %3050 = vmatprep.subr.mxu0 0.0
  %3051 = vmatpush2.msra.mxu0 0.0
  %3052 = vmatprep.subr.mxu0 0.0
  %3053 = vmatpush2.msra.mxu0 0.0
  %3054 = vmatprep.subr.mxu0 0.0
  %3055 = vmatpush2.msra.mxu0 0.0
  %3056 = vmatprep.subr.mxu0 0.0
  %3057 = vmatpush2.msra.mxu0 0.0
  %3058 = vmatprep.subr.mxu0 0.0
  %3059 = vmatpush2.msra.mxu0 0.0
  %3060 = vmatprep.subr.mxu0 0.0
  %3061 = vmatpush2.msra.mxu0 0.0
  %3062 = vmatprep.subr.mxu0 0.0
  %3063 = vmatpush2.msra.mxu0 0.0
  %3064 = vmatprep.subr.mxu0 0.0
  %3065 = vmatpush2.msra.mxu0 0.0
  %3066 = vmatprep.subr.mxu0 0.0
  %3067 = vmatpush2.msra.mxu0 0.0
  %3068 = vmatprep.subr.mxu0 0.0
  %3069 = vmatpush2.msra.mxu0 0.0
  %3070 = vmatprep.subr.mxu0 0.0
  %3071 = vmatpush2.msra.mxu0 0.0
  %3072 = vmatprep.subr.mxu0 0.0
  %3073 = vmatpush2.msra.mxu0 0.0
  %3074 = vmatprep.mubr.f32.mxu0 0.0
  %3075 = vmatmul.mubr.f32.gmra.mxu0 %v2994
  %v3076 = vpop.f32.mrf.mxu0
  %v3077 = vadd.f32 0.0, %v3076
  %v3078 = vpop.f32.mrf.mxu0
  %v3079 = vadd.f32 0.0, %v3078
  %3080 = vmatprep.mubr.f32.mxu0 0.0
  %3081 = vmatmul.mubr.f32.gmra.mxu0 %v2996
  %v3082 = vpop.f32.mrf.mxu0
  %v3083 = vadd.f32 0.0, %v3082
  %v3084 = vpop.f32.mrf.mxu0
  %v3085 = vadd.f32 0.0, %v3084
  %3086 = vmatprep.mubr.f32.mxu0 0.0
  %3087 = vmatmul.mubr.f32.gmra.mxu0 %v2998
  %v3088 = vpop.f32.mrf.mxu0
  %v3089 = vadd.f32 0.0, %v3088
  %v3090 = vpop.f32.mrf.mxu0
  %v3091 = vadd.f32 0.0, %v3090
  %3092 = vmatprep.mubr.f32.mxu0 0.0
  %3093 = vmatmul.mubr.f32.gmra.mxu0 %v3000
  %v3094 = vpop.f32.mrf.mxu0
  %v3095 = vadd.f32 0.0, %v3094
  %v3096 = vpop.f32.mrf.mxu0
  %v3097 = vadd.f32 0.0, %v3096
  %3098 = vmatprep.mubr.f32.mxu0 0.0
  %3099 = vmatmul.mubr.f32.gmra.mxu0 %v3002
  %v3100 = vpop.f32.mrf.mxu0
  %v3101 = vadd.f32 0.0, %v3100
  %v3102 = vpop.f32.mrf.mxu0
  %v3103 = vadd.f32 0.0, %v3102
  %3104 = vmatprep.mubr.f32.mxu0 0.0
  %3105 = vmatmul.mubr.f32.gmra.mxu0 %v3004
  %v3106 = vpop.f32.mrf.mxu0
  %v3107 = vadd.f32 0.0, %v3106
  %v3108 = vpop.f32.mrf.mxu0
  %v3109 = vadd.f32 0.0, %v3108
  %3110 = vmatprep.mubr.f32.mxu0 0.0
  %3111 = vmatmul.mubr.f32.gmra.mxu0 %v3006
  %v3112 = vpop.f32.mrf.mxu0
  %v3113 = vadd.f32 0.0, %v3112
  %v3114 = vpop.f32.mrf.mxu0
  %v3115 = vadd.f32 0.0, %v3114
  %3116 = vmatprep.mubr.f32.mxu0 0.0
  %3117 = vmatmul.mubr.f32.gmra.mxu0 %v3008
  %v3118 = vpop.f32.mrf.mxu0
  %v3119 = vadd.f32 0.0, %v3118
  %v3120 = vpop.f32.mrf.mxu0
  %v3121 = vadd.f32 0.0, %v3120
  %3122 = vdwg.mxu0
  %3123 = vmatprep.subr.mxu0 0.0
  %3124 = vmatpush1.msra.mxu0 0.0
  %3125 = vmatprep.subr.mxu0 0.0
  %3126 = vmatpush1.msra.mxu0 0.0
  %3127 = vmatprep.subr.mxu0 0.0
  %3128 = vmatpush1.msra.mxu0 0.0
  %3129 = vmatprep.subr.mxu0 0.0
  %3130 = vmatpush1.msra.mxu0 0.0
  %3131 = vmatprep.subr.mxu0 0.0
  %3132 = vmatpush1.msra.mxu0 0.0
  %3133 = vmatprep.subr.mxu0 0.0
  %3134 = vmatpush1.msra.mxu0 0.0
  %3135 = vmatprep.subr.mxu0 0.0
  %3136 = vmatpush1.msra.mxu0 0.0
  %3137 = vmatprep.subr.mxu0 0.0
  %3138 = vmatpush1.msra.mxu0 0.0
  %3139 = vmatprep.subr.mxu0 0.0
  %3140 = vmatpush1.msra.mxu0 0.0
  %3141 = vmatprep.subr.mxu0 0.0
  %3142 = vmatpush1.msra.mxu0 0.0
  %3143 = vmatprep.subr.mxu0 0.0
  %3144 = vmatpush1.msra.mxu0 0.0
  %3145 = vmatprep.subr.mxu0 0.0
  %3146 = vmatpush1.msra.mxu0 0.0
  %3147 = vmatprep.subr.mxu0 %v2977
  %3148 = vmatpush1.msra.mxu0 %v2976
  %3149 = vmatprep.subr.mxu0 %v2973
  %3150 = vmatpush1.msra.mxu0 %v2972
  %3151 = vmatprep.subr.mxu0 %v2969
  %3152 = vmatpush1.msra.mxu0 %v2968
  %3153 = vmatprep.subr.mxu0 %v2965
  %3154 = vmatpush1.msra.mxu0 %v2964
  %3155 = vmatprep.subr.mxu0 0.0
  %3156 = vmatpush2.msra.mxu0 0.0
  %3157 = vmatprep.subr.mxu0 0.0
  %3158 = vmatpush2.msra.mxu0 0.0
  %3159 = vmatprep.subr.mxu0 0.0
  %3160 = vmatpush2.msra.mxu0 0.0
  %3161 = vmatprep.subr.mxu0 0.0
  %3162 = vmatpush2.msra.mxu0 0.0
  %3163 = vmatprep.subr.mxu0 0.0
  %3164 = vmatpush2.msra.mxu0 0.0
  %3165 = vmatprep.subr.mxu0 0.0
  %3166 = vmatpush2.msra.mxu0 0.0
  %3167 = vmatprep.subr.mxu0 0.0
  %3168 = vmatpush2.msra.mxu0 0.0
  %3169 = vmatprep.subr.mxu0 0.0
  %3170 = vmatpush2.msra.mxu0 0.0
  %3171 = vmatprep.subr.mxu0 0.0
  %3172 = vmatpush2.msra.mxu0 0.0
  %3173 = vmatprep.subr.mxu0 0.0
  %3174 = vmatpush2.msra.mxu0 0.0
  %3175 = vmatprep.subr.mxu0 0.0
  %3176 = vmatpush2.msra.mxu0 0.0
  %3177 = vmatprep.subr.mxu0 0.0
  %3178 = vmatpush2.msra.mxu0 0.0
  %3179 = vmatprep.subr.mxu0 0.0
  %3180 = vmatpush2.msra.mxu0 0.0
  %3181 = vmatprep.subr.mxu0 0.0
  %3182 = vmatpush2.msra.mxu0 0.0
  %3183 = vmatprep.subr.mxu0 0.0
  %3184 = vmatpush2.msra.mxu0 0.0
  %3185 = vmatprep.subr.mxu0 0.0
  %3186 = vmatpush2.msra.mxu0 0.0
  %3187 = vmatprep.mubr.f32.mxu0 0.0
  %3188 = vmatmul.mubr.f32.gmra.mxu0 %v2994
  %v3189 = vpop.f32.mrf.mxu0
  %v3190 = vadd.f32 0.0, %v3189
  %v3191 = vpop.f32.mrf.mxu0
  %v3192 = vadd.f32 0.0, %v3191
  %3193 = vmatprep.mubr.f32.mxu0 0.0
  %3194 = vmatmul.mubr.f32.gmra.mxu0 %v2996
  %v3195 = vpop.f32.mrf.mxu0
  %v3196 = vadd.f32 0.0, %v3195
  %v3197 = vpop.f32.mrf.mxu0
  %v3198 = vadd.f32 0.0, %v3197
  %3199 = vmatprep.mubr.f32.mxu0 0.0
  %3200 = vmatmul.mubr.f32.gmra.mxu0 %v2998
  %v3201 = vpop.f32.mrf.mxu0
  %v3202 = vadd.f32 0.0, %v3201
  %v3203 = vpop.f32.mrf.mxu0
  %v3204 = vadd.f32 0.0, %v3203
  %3205 = vmatprep.mubr.f32.mxu0 0.0
  %3206 = vmatmul.mubr.f32.gmra.mxu0 %v3000
  %v3207 = vpop.f32.mrf.mxu0
  %v3208 = vadd.f32 0.0, %v3207
  %v3209 = vpop.f32.mrf.mxu0
  %v3210 = vadd.f32 0.0, %v3209
  %3211 = vmatprep.mubr.f32.mxu0 0.0
  %3212 = vmatmul.mubr.f32.gmra.mxu0 %v3002
  %v3213 = vpop.f32.mrf.mxu0
  %v3214 = vadd.f32 0.0, %v3213
  %v3215 = vpop.f32.mrf.mxu0
  %v3216 = vadd.f32 0.0, %v3215
  %3217 = vmatprep.mubr.f32.mxu0 0.0
  %3218 = vmatmul.mubr.f32.gmra.mxu0 %v3004
  %v3219 = vpop.f32.mrf.mxu0
  %v3220 = vadd.f32 0.0, %v3219
  %v3221 = vpop.f32.mrf.mxu0
  %v3222 = vadd.f32 0.0, %v3221
  %3223 = vmatprep.mubr.f32.mxu0 0.0
  %3224 = vmatmul.mubr.f32.gmra.mxu0 %v3006
  %v3225 = vpop.f32.mrf.mxu0
  %v3226 = vadd.f32 0.0, %v3225
  %v3227 = vpop.f32.mrf.mxu0
  %v3228 = vadd.f32 0.0, %v3227
  %3229 = vmatprep.mubr.f32.mxu0 0.0
  %3230 = vmatmul.mubr.f32.gmra.mxu0 %v3008
  %v3231 = vpop.f32.mrf.mxu0
  %v3232 = vadd.f32 0.0, %v3231
  %v3233 = vpop.f32.mrf.mxu0
  %v3234 = vadd.f32 0.0, %v3233
  %3235 = vdwg.mxu0
  %v3236 = vadd.f32 %v2755, %v3077
  %v3237 = vadd.f32 %v2757, %v3079
  %v3238 = vadd.f32 %v2868, %v3190
  %v3239 = vadd.f32 %v2870, %v3192
  %v3240 = vadd.f32 %v2761, %v3083
  %v3241 = vadd.f32 %v2763, %v3085
  %v3242 = vadd.f32 %v2874, %v3196
  %v3243 = vadd.f32 %v2876, %v3198
  %v3244 = vadd.f32 %v2767, %v3089
  %v3245 = vadd.f32 %v2769, %v3091
  %v3246 = vadd.f32 %v2880, %v3202
  %v3247 = vadd.f32 %v2882, %v3204
  %v3248 = vadd.f32 %v2773, %v3095
  %v3249 = vadd.f32 %v2775, %v3097
  %v3250 = vadd.f32 %v2886, %v3208
  %v3251 = vadd.f32 %v2888, %v3210
  %v3252 = vadd.f32 %v2779, %v3101
  %v3253 = vadd.f32 %v2781, %v3103
  %v3254 = vadd.f32 %v2892, %v3214
  %v3255 = vadd.f32 %v2894, %v3216
  %v3256 = vadd.f32 %v2785, %v3107
  %v3257 = vadd.f32 %v2787, %v3109
  %v3258 = vadd.f32 %v2898, %v3220
  %v3259 = vadd.f32 %v2900, %v3222
  %v3260 = vadd.f32 %v2791, %v3113
  %v3261 = vadd.f32 %v2793, %v3115
  %v3262 = vadd.f32 %v2904, %v3226
  %v3263 = vadd.f32 %v2906, %v3228
  %v3264 = vadd.f32 %v2797, %v3119
  %v3265 = vadd.f32 %v2799, %v3121
  %v3266 = vadd.f32 %v2910, %v3232
  %v3267 = vadd.f32 %v2912, %v3234
  %3268 = vrot.lane.b32.xlu0 %v2253, 1
  %v3269 = vpop.permute.xlu0 %3268
  %3270 = vrot.lane.b32.xlu0 %v2257, 1
  %v3271 = vpop.permute.xlu0 %3270
  %3272 = vrot.lane.b32.xlu0 %v2261, 1
  %v3273 = vpop.permute.xlu0 %3272
  %3274 = vrot.lane.b32.xlu0 %v2265, 1
  %v3275 = vpop.permute.xlu0 %3274
  %3276 = vrot.lane.b32.xlu0 %v2254, 1
  %v3277 = vpop.permute.xlu0 %3276
  %3278 = vrot.lane.b32.xlu0 %v2258, 1
  %v3279 = vpop.permute.xlu0 %3278
  %3280 = vrot.lane.b32.xlu0 %v2262, 1
  %v3281 = vpop.permute.xlu0 %3280
  %3282 = vrot.lane.b32.xlu0 %v2266, 1
  %v3283 = vpop.permute.xlu0 %3282
  %3284 = vrot.lane.b32.xlu0 %v2255, 1
  %v3285 = vpop.permute.xlu0 %3284
  %3286 = vrot.lane.b32.xlu0 %v2259, 1
  %v3287 = vpop.permute.xlu0 %3286
  %3288 = vrot.lane.b32.xlu0 %v2263, 1
  %v3289 = vpop.permute.xlu0 %3288
  %3290 = vrot.lane.b32.xlu0 %v2267, 1
  %v3291 = vpop.permute.xlu0 %3290
  %3292 = vrot.lane.b32.xlu0 %v2256, 1
  %v3293 = vpop.permute.xlu0 %3292
  %3294 = vrot.lane.b32.xlu0 %v2260, 1
  %v3295 = vpop.permute.xlu0 %3294
  %3296 = vrot.lane.b32.xlu0 %v2264, 1
  %v3297 = vpop.permute.xlu0 %3296
  %3298 = vrot.lane.b32.xlu0 %v2268, 1
  %v3299 = vpop.permute.xlu0 %3298
  %v3300 = vsel %vm771, %v3285, %v3293
  %v3301 = vsel %vm771, %v3287, %v3295
  %v3302 = vsel %vm771, %v3289, %v3297
  %v3303 = vsel %vm771, %v3291, %v3299
  %v3304 = vsel %vm771, %v3277, %v3285
  %v3305 = vsel %vm771, %v3279, %v3287
  %v3306 = vsel %vm771, %v3281, %v3289
  %v3307 = vsel %vm771, %v3283, %v3291
  %v3308 = vsel %vm771, %v3269, %v3277
  %v3309 = vsel %vm771, %v3271, %v3279
  %v3310 = vsel %vm771, %v3273, %v3281
  %v3311 = vsel %vm771, %v3275, %v3283
  %v3312 = vsel %vm771, %v3293, %v3269
  %v3313 = vsel %vm771, %v3295, %v3271
  %v3314 = vsel %vm771, %v3297, %v3273
  %v3315 = vsel %vm771, %v3299, %v3275
  %v3316 = vmul.f32 %v3312, %v780
  %v3317 = vmul.f32 %v3308, %v784
  %v3318 = vmul.f32 %v3304, %v788
  %v3319 = vmul.f32 %v3300, %v792
  %v3320 = vmul.f32 %v3313, %v780
  %v3321 = vmul.f32 %v3309, %v784
  %v3322 = vmul.f32 %v3305, %v788
  %v3323 = vmul.f32 %v3301, %v792
  %v3324 = vmul.f32 %v3314, %v780
  %v3325 = vmul.f32 %v3310, %v784
  %v3326 = vmul.f32 %v3306, %v788
  %v3327 = vmul.f32 %v3302, %v792
  %v3328 = vmul.f32 %v3315, %v780
  %v3329 = vmul.f32 %v3311, %v784
  %v3330 = vmul.f32 %v3307, %v788
  %v3331 = vmul.f32 %v3303, %v792
  %3332 = vrot.lane.b32.xlu0 %v2333, 32
  %v3333 = vpop.permute.xlu0 %3332
  %3334 = vrot.lane.b32.xlu0 %v2334, 32
  %v3335 = vpop.permute.xlu0 %3334
  %3336 = vrot.lane.b32.xlu0 %v2335, 32
  %v3337 = vpop.permute.xlu0 %3336
  %3338 = vrot.lane.b32.xlu0 %v2336, 32
  %v3339 = vpop.permute.xlu0 %3338
  %3340 = vrot.lane.b32.xlu0 %v2337, 32
  %v3341 = vpop.permute.xlu0 %3340
  %3342 = vrot.lane.b32.xlu0 %v2338, 32
  %v3343 = vpop.permute.xlu0 %3342
  %3344 = vrot.lane.b32.xlu0 %v2339, 32
  %v3345 = vpop.permute.xlu0 %3344
  %3346 = vrot.lane.b32.xlu0 %v2340, 32
  %v3347 = vpop.permute.xlu0 %3346
  %v3348 = vsel %vm2429, %v3333, 0
  %v3350 = vsel %vm2429, %v3335, 0
  %v3352 = vsel %vm2429, %v3337, 0
  %v3354 = vsel %vm2429, %v3339, 0
  %v3356 = vsel %vm2429, %v3341, 0
  %v3358 = vsel %vm2429, %v3343, 0
  %v3360 = vsel %vm2429, %v3345, 0
  %v3362 = vsel %vm2429, %v3347, 0
  %3364 = vmatprep.subr.mxu0 0.0
  %3365 = vmatpush1.msra.mxu0 0.0
  %3366 = vmatprep.subr.mxu0 0.0
  %3367 = vmatpush1.msra.mxu0 0.0
  %3368 = vmatprep.subr.mxu0 0.0
  %3369 = vmatpush1.msra.mxu0 0.0
  %3370 = vmatprep.subr.mxu0 0.0
  %3371 = vmatpush1.msra.mxu0 0.0
  %3372 = vmatprep.subr.mxu0 0.0
  %3373 = vmatpush1.msra.mxu0 0.0
  %3374 = vmatprep.subr.mxu0 0.0
  %3375 = vmatpush1.msra.mxu0 0.0
  %3376 = vmatprep.subr.mxu0 0.0
  %3377 = vmatpush1.msra.mxu0 0.0
  %3378 = vmatprep.subr.mxu0 0.0
  %3379 = vmatpush1.msra.mxu0 0.0
  %3380 = vmatprep.subr.mxu0 0.0
  %3381 = vmatpush1.msra.mxu0 0.0
  %3382 = vmatprep.subr.mxu0 0.0
  %3383 = vmatpush1.msra.mxu0 0.0
  %3384 = vmatprep.subr.mxu0 0.0
  %3385 = vmatpush1.msra.mxu0 0.0
  %3386 = vmatprep.subr.mxu0 0.0
  %3387 = vmatpush1.msra.mxu0 0.0
  %3388 = vmatprep.subr.mxu0 %v3329
  %3389 = vmatpush1.msra.mxu0 %v3328
  %3390 = vmatprep.subr.mxu0 %v3325
  %3391 = vmatpush1.msra.mxu0 %v3324
  %3392 = vmatprep.subr.mxu0 %v3321
  %3393 = vmatpush1.msra.mxu0 %v3320
  %3394 = vmatprep.subr.mxu0 %v3317
  %3395 = vmatpush1.msra.mxu0 %v3316
  %3396 = vmatprep.subr.mxu0 0.0
  %3397 = vmatpush2.msra.mxu0 0.0
  %3398 = vmatprep.subr.mxu0 0.0
  %3399 = vmatpush2.msra.mxu0 0.0
  %3400 = vmatprep.subr.mxu0 0.0
  %3401 = vmatpush2.msra.mxu0 0.0
  %3402 = vmatprep.subr.mxu0 0.0
  %3403 = vmatpush2.msra.mxu0 0.0
  %3404 = vmatprep.subr.mxu0 0.0
  %3405 = vmatpush2.msra.mxu0 0.0
  %3406 = vmatprep.subr.mxu0 0.0
  %3407 = vmatpush2.msra.mxu0 0.0
  %3408 = vmatprep.subr.mxu0 0.0
  %3409 = vmatpush2.msra.mxu0 0.0
  %3410 = vmatprep.subr.mxu0 0.0
  %3411 = vmatpush2.msra.mxu0 0.0
  %3412 = vmatprep.subr.mxu0 0.0
  %3413 = vmatpush2.msra.mxu0 0.0
  %3414 = vmatprep.subr.mxu0 0.0
  %3415 = vmatpush2.msra.mxu0 0.0
  %3416 = vmatprep.subr.mxu0 0.0
  %3417 = vmatpush2.msra.mxu0 0.0
  %3418 = vmatprep.subr.mxu0 0.0
  %3419 = vmatpush2.msra.mxu0 0.0
  %3420 = vmatprep.subr.mxu0 0.0
  %3421 = vmatpush2.msra.mxu0 0.0
  %3422 = vmatprep.subr.mxu0 0.0
  %3423 = vmatpush2.msra.mxu0 0.0
  %3424 = vmatprep.subr.mxu0 0.0
  %3425 = vmatpush2.msra.mxu0 0.0
  %3426 = vmatprep.subr.mxu0 0.0
  %3427 = vmatpush2.msra.mxu0 0.0
  %3428 = vmatprep.mubr.f32.mxu0 0.0
  %3429 = vmatmul.mubr.f32.gmra.mxu0 %v3348
  %v3430 = vpop.f32.mrf.mxu0
  %v3431 = vadd.f32 0.0, %v3430
  %v3432 = vpop.f32.mrf.mxu0
  %v3433 = vadd.f32 0.0, %v3432
  %3434 = vmatprep.mubr.f32.mxu0 0.0
  %3435 = vmatmul.mubr.f32.gmra.mxu0 %v3350
  %v3436 = vpop.f32.mrf.mxu0
  %v3437 = vadd.f32 0.0, %v3436
  %v3438 = vpop.f32.mrf.mxu0
  %v3439 = vadd.f32 0.0, %v3438
  %3440 = vmatprep.mubr.f32.mxu0 0.0
  %3441 = vmatmul.mubr.f32.gmra.mxu0 %v3352
  %v3442 = vpop.f32.mrf.mxu0
  %v3443 = vadd.f32 0.0, %v3442
  %v3444 = vpop.f32.mrf.mxu0
  %v3445 = vadd.f32 0.0, %v3444
  %3446 = vmatprep.mubr.f32.mxu0 0.0
  %3447 = vmatmul.mubr.f32.gmra.mxu0 %v3354
  %v3448 = vpop.f32.mrf.mxu0
  %v3449 = vadd.f32 0.0, %v3448
  %v3450 = vpop.f32.mrf.mxu0
  %v3451 = vadd.f32 0.0, %v3450
  %3452 = vmatprep.mubr.f32.mxu0 0.0
  %3453 = vmatmul.mubr.f32.gmra.mxu0 %v3356
  %v3454 = vpop.f32.mrf.mxu0
  %v3455 = vadd.f32 0.0, %v3454
  %v3456 = vpop.f32.mrf.mxu0
  %v3457 = vadd.f32 0.0, %v3456
  %3458 = vmatprep.mubr.f32.mxu0 0.0
  %3459 = vmatmul.mubr.f32.gmra.mxu0 %v3358
  %v3460 = vpop.f32.mrf.mxu0
  %v3461 = vadd.f32 0.0, %v3460
  %v3462 = vpop.f32.mrf.mxu0
  %v3463 = vadd.f32 0.0, %v3462
  %3464 = vmatprep.mubr.f32.mxu0 0.0
  %3465 = vmatmul.mubr.f32.gmra.mxu0 %v3360
  %v3466 = vpop.f32.mrf.mxu0
  %v3467 = vadd.f32 0.0, %v3466
  %v3468 = vpop.f32.mrf.mxu0
  %v3469 = vadd.f32 0.0, %v3468
  %3470 = vmatprep.mubr.f32.mxu0 0.0
  %3471 = vmatmul.mubr.f32.gmra.mxu0 %v3362
  %v3472 = vpop.f32.mrf.mxu0
  %v3473 = vadd.f32 0.0, %v3472
  %v3474 = vpop.f32.mrf.mxu0
  %v3475 = vadd.f32 0.0, %v3474
  %3476 = vdwg.mxu0
  %3477 = vmatprep.subr.mxu0 0.0
  %3478 = vmatpush1.msra.mxu0 0.0
  %3479 = vmatprep.subr.mxu0 0.0
  %3480 = vmatpush1.msra.mxu0 0.0
  %3481 = vmatprep.subr.mxu0 0.0
  %3482 = vmatpush1.msra.mxu0 0.0
  %3483 = vmatprep.subr.mxu0 0.0
  %3484 = vmatpush1.msra.mxu0 0.0
  %3485 = vmatprep.subr.mxu0 0.0
  %3486 = vmatpush1.msra.mxu0 0.0
  %3487 = vmatprep.subr.mxu0 0.0
  %3488 = vmatpush1.msra.mxu0 0.0
  %3489 = vmatprep.subr.mxu0 0.0
  %3490 = vmatpush1.msra.mxu0 0.0
  %3491 = vmatprep.subr.mxu0 0.0
  %3492 = vmatpush1.msra.mxu0 0.0
  %3493 = vmatprep.subr.mxu0 0.0
  %3494 = vmatpush1.msra.mxu0 0.0
  %3495 = vmatprep.subr.mxu0 0.0
  %3496 = vmatpush1.msra.mxu0 0.0
  %3497 = vmatprep.subr.mxu0 0.0
  %3498 = vmatpush1.msra.mxu0 0.0
  %3499 = vmatprep.subr.mxu0 0.0
  %3500 = vmatpush1.msra.mxu0 0.0
  %3501 = vmatprep.subr.mxu0 %v3331
  %3502 = vmatpush1.msra.mxu0 %v3330
  %3503 = vmatprep.subr.mxu0 %v3327
  %3504 = vmatpush1.msra.mxu0 %v3326
  %3505 = vmatprep.subr.mxu0 %v3323
  %3506 = vmatpush1.msra.mxu0 %v3322
  %3507 = vmatprep.subr.mxu0 %v3319
  %3508 = vmatpush1.msra.mxu0 %v3318
  %3509 = vmatprep.subr.mxu0 0.0
  %3510 = vmatpush2.msra.mxu0 0.0
  %3511 = vmatprep.subr.mxu0 0.0
  %3512 = vmatpush2.msra.mxu0 0.0
  %3513 = vmatprep.subr.mxu0 0.0
  %3514 = vmatpush2.msra.mxu0 0.0
  %3515 = vmatprep.subr.mxu0 0.0
  %3516 = vmatpush2.msra.mxu0 0.0
  %3517 = vmatprep.subr.mxu0 0.0
  %3518 = vmatpush2.msra.mxu0 0.0
  %3519 = vmatprep.subr.mxu0 0.0
  %3520 = vmatpush2.msra.mxu0 0.0
  %3521 = vmatprep.subr.mxu0 0.0
  %3522 = vmatpush2.msra.mxu0 0.0
  %3523 = vmatprep.subr.mxu0 0.0
  %3524 = vmatpush2.msra.mxu0 0.0
  %3525 = vmatprep.subr.mxu0 0.0
  %3526 = vmatpush2.msra.mxu0 0.0
  %3527 = vmatprep.subr.mxu0 0.0
  %3528 = vmatpush2.msra.mxu0 0.0
  %3529 = vmatprep.subr.mxu0 0.0
  %3530 = vmatpush2.msra.mxu0 0.0
  %3531 = vmatprep.subr.mxu0 0.0
  %3532 = vmatpush2.msra.mxu0 0.0
  %3533 = vmatprep.subr.mxu0 0.0
  %3534 = vmatpush2.msra.mxu0 0.0
  %3535 = vmatprep.subr.mxu0 0.0
  %3536 = vmatpush2.msra.mxu0 0.0
  %3537 = vmatprep.subr.mxu0 0.0
  %3538 = vmatpush2.msra.mxu0 0.0
  %3539 = vmatprep.subr.mxu0 0.0
  %3540 = vmatpush2.msra.mxu0 0.0
  %3541 = vmatprep.mubr.f32.mxu0 0.0
  %3542 = vmatmul.mubr.f32.gmra.mxu0 %v3348
  %v3543 = vpop.f32.mrf.mxu0
  %v3544 = vadd.f32 0.0, %v3543
  %v3545 = vpop.f32.mrf.mxu0
  %v3546 = vadd.f32 0.0, %v3545
  %3547 = vmatprep.mubr.f32.mxu0 0.0
  %3548 = vmatmul.mubr.f32.gmra.mxu0 %v3350
  %v3549 = vpop.f32.mrf.mxu0
  %v3550 = vadd.f32 0.0, %v3549
  %v3551 = vpop.f32.mrf.mxu0
  %v3552 = vadd.f32 0.0, %v3551
  %3553 = vmatprep.mubr.f32.mxu0 0.0
  %3554 = vmatmul.mubr.f32.gmra.mxu0 %v3352
  %v3555 = vpop.f32.mrf.mxu0
  %v3556 = vadd.f32 0.0, %v3555
  %v3557 = vpop.f32.mrf.mxu0
  %v3558 = vadd.f32 0.0, %v3557
  %3559 = vmatprep.mubr.f32.mxu0 0.0
  %3560 = vmatmul.mubr.f32.gmra.mxu0 %v3354
  %v3561 = vpop.f32.mrf.mxu0
  %v3562 = vadd.f32 0.0, %v3561
  %v3563 = vpop.f32.mrf.mxu0
  %v3564 = vadd.f32 0.0, %v3563
  %3565 = vmatprep.mubr.f32.mxu0 0.0
  %3566 = vmatmul.mubr.f32.gmra.mxu0 %v3356
  %v3567 = vpop.f32.mrf.mxu0
  %v3568 = vadd.f32 0.0, %v3567
  %v3569 = vpop.f32.mrf.mxu0
  %v3570 = vadd.f32 0.0, %v3569
  %3571 = vmatprep.mubr.f32.mxu0 0.0
  %3572 = vmatmul.mubr.f32.gmra.mxu0 %v3358
  %v3573 = vpop.f32.mrf.mxu0
  %v3574 = vadd.f32 0.0, %v3573
  %v3575 = vpop.f32.mrf.mxu0
  %v3576 = vadd.f32 0.0, %v3575
  %3577 = vmatprep.mubr.f32.mxu0 0.0
  %3578 = vmatmul.mubr.f32.gmra.mxu0 %v3360
  %v3579 = vpop.f32.mrf.mxu0
  %v3580 = vadd.f32 0.0, %v3579
  %v3581 = vpop.f32.mrf.mxu0
  %v3582 = vadd.f32 0.0, %v3581
  %3583 = vmatprep.mubr.f32.mxu0 0.0
  %3584 = vmatmul.mubr.f32.gmra.mxu0 %v3362
  %v3585 = vpop.f32.mrf.mxu0
  %v3586 = vadd.f32 0.0, %v3585
  %v3587 = vpop.f32.mrf.mxu0
  %v3588 = vadd.f32 0.0, %v3587
  %3589 = vdwg.mxu0
  %v3590 = vadd.f32 %v3236, %v3431
  %v3591 = vadd.f32 %v3237, %v3433
  %v3592 = vadd.f32 %v3238, %v3544
  %v3593 = vadd.f32 %v3239, %v3546
  %v3594 = vadd.f32 %v3240, %v3437
  %v3595 = vadd.f32 %v3241, %v3439
  %v3596 = vadd.f32 %v3242, %v3550
  %v3597 = vadd.f32 %v3243, %v3552
  %v3598 = vadd.f32 %v3244, %v3443
  %v3599 = vadd.f32 %v3245, %v3445
  %v3600 = vadd.f32 %v3246, %v3556
  %v3601 = vadd.f32 %v3247, %v3558
  %v3602 = vadd.f32 %v3248, %v3449
  %v3603 = vadd.f32 %v3249, %v3451
  %v3604 = vadd.f32 %v3250, %v3562
  %v3605 = vadd.f32 %v3251, %v3564
  %v3606 = vadd.f32 %v3252, %v3455
  %v3607 = vadd.f32 %v3253, %v3457
  %v3608 = vadd.f32 %v3254, %v3568
  %v3609 = vadd.f32 %v3255, %v3570
  %v3610 = vadd.f32 %v3256, %v3461
  %v3611 = vadd.f32 %v3257, %v3463
  %v3612 = vadd.f32 %v3258, %v3574
  %v3613 = vadd.f32 %v3259, %v3576
  %v3614 = vadd.f32 %v3260, %v3467
  %v3615 = vadd.f32 %v3261, %v3469
  %v3616 = vadd.f32 %v3262, %v3580
  %v3617 = vadd.f32 %v3263, %v3582
  %v3618 = vadd.f32 %v3264, %v3473
  %v3619 = vadd.f32 %v3265, %v3475
  %v3620 = vadd.f32 %v3266, %v3586
  %v3621 = vadd.f32 %v3267, %v3588
  %v3622 = vld [vmem:[%s4 + $0x8] sm:$0xff]
  %v3623 = vld [vmem:[%s4 + $0x20] sm:$0xff]
  %v3624 = vld [vmem:[%s4 + $0x38] sm:$0xff]
  %v3625 = vld [vmem:[%s4 + $0x50] sm:$0xff]
  %v3626 = vld [vmem:[%s4 + $0x68] sm:$0xff]
  %v3627 = vld [vmem:[%s4 + $0x80] sm:$0xff]
  %v3628 = vld [vmem:[%s4 + $0x98] sm:$0xff]
  %v3629 = vld [vmem:[%s4 + $0xb0] sm:$0xff]
  %v3631 = vsel %vm2429, %v3622, 0
  %v3634 = vsel %vm2429, %v3623, 0
  %v3637 = vsel %vm2429, %v3624, 0
  %v3640 = vsel %vm2429, %v3625, 0
  %v3643 = vsel %vm2429, %v3626, 0
  %v3646 = vsel %vm2429, %v3627, 0
  %v3649 = vsel %vm2429, %v3628, 0
  %v3652 = vsel %vm2429, %v3629, 0
  %3654 = vmatprep.subr.mxu0 0.0
  %3655 = vmatpush1.msra.mxu0 0.0
  %3656 = vmatprep.subr.mxu0 0.0
  %3657 = vmatpush1.msra.mxu0 0.0
  %3658 = vmatprep.subr.mxu0 0.0
  %3659 = vmatpush1.msra.mxu0 0.0
  %3660 = vmatprep.subr.mxu0 0.0
  %3661 = vmatpush1.msra.mxu0 0.0
  %3662 = vmatprep.subr.mxu0 0.0
  %3663 = vmatpush1.msra.mxu0 0.0
  %3664 = vmatprep.subr.mxu0 0.0
  %3665 = vmatpush1.msra.mxu0 0.0
  %3666 = vmatprep.subr.mxu0 0.0
  %3667 = vmatpush1.msra.mxu0 0.0
  %3668 = vmatprep.subr.mxu0 0.0
  %3669 = vmatpush1.msra.mxu0 0.0
  %3670 = vmatprep.subr.mxu0 0.0
  %3671 = vmatpush1.msra.mxu0 0.0
  %3672 = vmatprep.subr.mxu0 0.0
  %3673 = vmatpush1.msra.mxu0 0.0
  %3674 = vmatprep.subr.mxu0 0.0
  %3675 = vmatpush1.msra.mxu0 0.0
  %3676 = vmatprep.subr.mxu0 0.0
  %3677 = vmatpush1.msra.mxu0 0.0
  %3678 = vmatprep.subr.mxu0 %v2266
  %3679 = vmatpush1.msra.mxu0 %v2265
  %3680 = vmatprep.subr.mxu0 %v2262
  %3681 = vmatpush1.msra.mxu0 %v2261
  %3682 = vmatprep.subr.mxu0 %v2258
  %3683 = vmatpush1.msra.mxu0 %v2257
  %3684 = vmatprep.subr.mxu0 %v2254
  %3685 = vmatpush1.msra.mxu0 %v2253
  %3686 = vmatprep.subr.mxu0 0.0
  %3687 = vmatpush2.msra.mxu0 0.0
  %3688 = vmatprep.subr.mxu0 0.0
  %3689 = vmatpush2.msra.mxu0 0.0
  %3690 = vmatprep.subr.mxu0 0.0
  %3691 = vmatpush2.msra.mxu0 0.0
  %3692 = vmatprep.subr.mxu0 0.0
  %3693 = vmatpush2.msra.mxu0 0.0
  %3694 = vmatprep.subr.mxu0 0.0
  %3695 = vmatpush2.msra.mxu0 0.0
  %3696 = vmatprep.subr.mxu0 0.0
  %3697 = vmatpush2.msra.mxu0 0.0
  %3698 = vmatprep.subr.mxu0 0.0
  %3699 = vmatpush2.msra.mxu0 0.0
  %3700 = vmatprep.subr.mxu0 0.0
  %3701 = vmatpush2.msra.mxu0 0.0
  %3702 = vmatprep.subr.mxu0 0.0
  %3703 = vmatpush2.msra.mxu0 0.0
  %3704 = vmatprep.subr.mxu0 0.0
  %3705 = vmatpush2.msra.mxu0 0.0
  %3706 = vmatprep.subr.mxu0 0.0
  %3707 = vmatpush2.msra.mxu0 0.0
  %3708 = vmatprep.subr.mxu0 0.0
  %3709 = vmatpush2.msra.mxu0 0.0
  %3710 = vmatprep.subr.mxu0 0.0
  %3711 = vmatpush2.msra.mxu0 0.0
  %3712 = vmatprep.subr.mxu0 0.0
  %3713 = vmatpush2.msra.mxu0 0.0
  %3714 = vmatprep.subr.mxu0 0.0
  %3715 = vmatpush2.msra.mxu0 0.0
  %3716 = vmatprep.subr.mxu0 0.0
  %3717 = vmatpush2.msra.mxu0 0.0
  %3718 = vmatprep.mubr.f32.mxu0 0.0
  %3719 = vmatmul.mubr.f32.gmra.mxu0 %v3631
  %v3720 = vpop.f32.mrf.mxu0
  %v3721 = vadd.f32 0.0, %v3720
  %v3722 = vpop.f32.mrf.mxu0
  %v3723 = vadd.f32 0.0, %v3722
  %3724 = vmatprep.mubr.f32.mxu0 0.0
  %3725 = vmatmul.mubr.f32.gmra.mxu0 %v3634
  %v3726 = vpop.f32.mrf.mxu0
  %v3727 = vadd.f32 0.0, %v3726
  %v3728 = vpop.f32.mrf.mxu0
  %v3729 = vadd.f32 0.0, %v3728
  %3730 = vmatprep.mubr.f32.mxu0 0.0
  %3731 = vmatmul.mubr.f32.gmra.mxu0 %v3637
  %v3732 = vpop.f32.mrf.mxu0
  %v3733 = vadd.f32 0.0, %v3732
  %v3734 = vpop.f32.mrf.mxu0
  %v3735 = vadd.f32 0.0, %v3734
  %3736 = vmatprep.mubr.f32.mxu0 0.0
  %3737 = vmatmul.mubr.f32.gmra.mxu0 %v3640
  %v3738 = vpop.f32.mrf.mxu0
  %v3739 = vadd.f32 0.0, %v3738
  %v3740 = vpop.f32.mrf.mxu0
  %v3741 = vadd.f32 0.0, %v3740
  %3742 = vmatprep.mubr.f32.mxu0 0.0
  %3743 = vmatmul.mubr.f32.gmra.mxu0 %v3643
  %v3744 = vpop.f32.mrf.mxu0
  %v3745 = vadd.f32 0.0, %v3744
  %v3746 = vpop.f32.mrf.mxu0
  %v3747 = vadd.f32 0.0, %v3746
  %3748 = vmatprep.mubr.f32.mxu0 0.0
  %3749 = vmatmul.mubr.f32.gmra.mxu0 %v3646
  %v3750 = vpop.f32.mrf.mxu0
  %v3751 = vadd.f32 0.0, %v3750
  %v3752 = vpop.f32.mrf.mxu0
  %v3753 = vadd.f32 0.0, %v3752
  %3754 = vmatprep.mubr.f32.mxu0 0.0
  %3755 = vmatmul.mubr.f32.gmra.mxu0 %v3649
  %v3756 = vpop.f32.mrf.mxu0
  %v3757 = vadd.f32 0.0, %v3756
  %v3758 = vpop.f32.mrf.mxu0
  %v3759 = vadd.f32 0.0, %v3758
  %3760 = vmatprep.mubr.f32.mxu0 0.0
  %3761 = vmatmul.mubr.f32.gmra.mxu0 %v3652
  %v3762 = vpop.f32.mrf.mxu0
  %v3763 = vadd.f32 0.0, %v3762
  %v3764 = vpop.f32.mrf.mxu0
  %v3765 = vadd.f32 0.0, %v3764
  %3766 = vdwg.mxu0
  %3767 = vmatprep.subr.mxu0 0.0
  %3768 = vmatpush1.msra.mxu0 0.0
  %3769 = vmatprep.subr.mxu0 0.0
  %3770 = vmatpush1.msra.mxu0 0.0
  %3771 = vmatprep.subr.mxu0 0.0
  %3772 = vmatpush1.msra.mxu0 0.0
  %3773 = vmatprep.subr.mxu0 0.0
  %3774 = vmatpush1.msra.mxu0 0.0
  %3775 = vmatprep.subr.mxu0 0.0
  %3776 = vmatpush1.msra.mxu0 0.0
  %3777 = vmatprep.subr.mxu0 0.0
  %3778 = vmatpush1.msra.mxu0 0.0
  %3779 = vmatprep.subr.mxu0 0.0
  %3780 = vmatpush1.msra.mxu0 0.0
  %3781 = vmatprep.subr.mxu0 0.0
  %3782 = vmatpush1.msra.mxu0 0.0
  %3783 = vmatprep.subr.mxu0 0.0
  %3784 = vmatpush1.msra.mxu0 0.0
  %3785 = vmatprep.subr.mxu0 0.0
  %3786 = vmatpush1.msra.mxu0 0.0
  %3787 = vmatprep.subr.mxu0 0.0
  %3788 = vmatpush1.msra.mxu0 0.0
  %3789 = vmatprep.subr.mxu0 0.0
  %3790 = vmatpush1.msra.mxu0 0.0
  %3791 = vmatprep.subr.mxu0 %v2268
  %3792 = vmatpush1.msra.mxu0 %v2267
  %3793 = vmatprep.subr.mxu0 %v2264
  %3794 = vmatpush1.msra.mxu0 %v2263
  %3795 = vmatprep.subr.mxu0 %v2260
  %3796 = vmatpush1.msra.mxu0 %v2259
  %3797 = vmatprep.subr.mxu0 %v2256
  %3798 = vmatpush1.msra.mxu0 %v2255
  %3799 = vmatprep.subr.mxu0 0.0
  %3800 = vmatpush2.msra.mxu0 0.0
  %3801 = vmatprep.subr.mxu0 0.0
  %3802 = vmatpush2.msra.mxu0 0.0
  %3803 = vmatprep.subr.mxu0 0.0
  %3804 = vmatpush2.msra.mxu0 0.0
  %3805 = vmatprep.subr.mxu0 0.0
  %3806 = vmatpush2.msra.mxu0 0.0
  %3807 = vmatprep.subr.mxu0 0.0
  %3808 = vmatpush2.msra.mxu0 0.0
  %3809 = vmatprep.subr.mxu0 0.0
  %3810 = vmatpush2.msra.mxu0 0.0
  %3811 = vmatprep.subr.mxu0 0.0
  %3812 = vmatpush2.msra.mxu0 0.0
  %3813 = vmatprep.subr.mxu0 0.0
  %3814 = vmatpush2.msra.mxu0 0.0
  %3815 = vmatprep.subr.mxu0 0.0
  %3816 = vmatpush2.msra.mxu0 0.0
  %3817 = vmatprep.subr.mxu0 0.0
  %3818 = vmatpush2.msra.mxu0 0.0
  %3819 = vmatprep.subr.mxu0 0.0
  %3820 = vmatpush2.msra.mxu0 0.0
  %3821 = vmatprep.subr.mxu0 0.0
  %3822 = vmatpush2.msra.mxu0 0.0
  %3823 = vmatprep.subr.mxu0 0.0
  %3824 = vmatpush2.msra.mxu0 0.0
  %3825 = vmatprep.subr.mxu0 0.0
  %3826 = vmatpush2.msra.mxu0 0.0
  %3827 = vmatprep.subr.mxu0 0.0
  %3828 = vmatpush2.msra.mxu0 0.0
  %3829 = vmatprep.subr.mxu0 0.0
  %3830 = vmatpush2.msra.mxu0 0.0
  %3831 = vmatprep.mubr.f32.mxu0 0.0
  %3832 = vmatmul.mubr.f32.gmra.mxu0 %v3631
  %v3833 = vpop.f32.mrf.mxu0
  %v3834 = vadd.f32 0.0, %v3833
  %v3835 = vpop.f32.mrf.mxu0
  %v3836 = vadd.f32 0.0, %v3835
  %3837 = vmatprep.mubr.f32.mxu0 0.0
  %3838 = vmatmul.mubr.f32.gmra.mxu0 %v3634
  %v3839 = vpop.f32.mrf.mxu0
  %v3840 = vadd.f32 0.0, %v3839
  %v3841 = vpop.f32.mrf.mxu0
  %v3842 = vadd.f32 0.0, %v3841
  %3843 = vmatprep.mubr.f32.mxu0 0.0
  %3844 = vmatmul.mubr.f32.gmra.mxu0 %v3637
  %v3845 = vpop.f32.mrf.mxu0
  %v3846 = vadd.f32 0.0, %v3845
  %v3847 = vpop.f32.mrf.mxu0
  %v3848 = vadd.f32 0.0, %v3847
  %3849 = vmatprep.mubr.f32.mxu0 0.0
  %3850 = vmatmul.mubr.f32.gmra.mxu0 %v3640
  %v3851 = vpop.f32.mrf.mxu0
  %v3852 = vadd.f32 0.0, %v3851
  %v3853 = vpop.f32.mrf.mxu0
  %v3854 = vadd.f32 0.0, %v3853
  %3855 = vmatprep.mubr.f32.mxu0 0.0
  %3856 = vmatmul.mubr.f32.gmra.mxu0 %v3643
  %v3857 = vpop.f32.mrf.mxu0
  %v3858 = vadd.f32 0.0, %v3857
  %v3859 = vpop.f32.mrf.mxu0
  %v3860 = vadd.f32 0.0, %v3859
  %3861 = vmatprep.mubr.f32.mxu0 0.0
  %3862 = vmatmul.mubr.f32.gmra.mxu0 %v3646
  %v3863 = vpop.f32.mrf.mxu0
  %v3864 = vadd.f32 0.0, %v3863
  %v3865 = vpop.f32.mrf.mxu0
  %v3866 = vadd.f32 0.0, %v3865
  %3867 = vmatprep.mubr.f32.mxu0 0.0
  %3868 = vmatmul.mubr.f32.gmra.mxu0 %v3649
  %v3869 = vpop.f32.mrf.mxu0
  %v3870 = vadd.f32 0.0, %v3869
  %v3871 = vpop.f32.mrf.mxu0
  %v3872 = vadd.f32 0.0, %v3871
  %3873 = vmatprep.mubr.f32.mxu0 0.0
  %3874 = vmatmul.mubr.f32.gmra.mxu0 %v3652
  %v3875 = vpop.f32.mrf.mxu0
  %v3876 = vadd.f32 0.0, %v3875
  %v3877 = vpop.f32.mrf.mxu0
  %v3878 = vadd.f32 0.0, %v3877
  %3879 = vdwg.mxu0
  %v3880 = vadd.f32 %v3590, %v3721
  %v3881 = vadd.f32 %v3591, %v3723
  %v3882 = vadd.f32 %v3592, %v3834
  %v3883 = vadd.f32 %v3593, %v3836
  %v3884 = vadd.f32 %v3594, %v3727
  %v3885 = vadd.f32 %v3595, %v3729
  %v3886 = vadd.f32 %v3596, %v3840
  %v3887 = vadd.f32 %v3597, %v3842
  %v3888 = vadd.f32 %v3598, %v3733
  %v3889 = vadd.f32 %v3599, %v3735
  %v3890 = vadd.f32 %v3600, %v3846
  %v3891 = vadd.f32 %v3601, %v3848
  %v3892 = vadd.f32 %v3602, %v3739
  %v3893 = vadd.f32 %v3603, %v3741
  %v3894 = vadd.f32 %v3604, %v3852
  %v3895 = vadd.f32 %v3605, %v3854
  %v3896 = vadd.f32 %v3606, %v3745
  %v3897 = vadd.f32 %v3607, %v3747
  %v3898 = vadd.f32 %v3608, %v3858
  %v3899 = vadd.f32 %v3609, %v3860
  %v3900 = vadd.f32 %v3610, %v3751
  %v3901 = vadd.f32 %v3611, %v3753
  %v3902 = vadd.f32 %v3612, %v3864
  %v3903 = vadd.f32 %v3613, %v3866
  %v3904 = vadd.f32 %v3614, %v3757
  %v3905 = vadd.f32 %v3615, %v3759
  %v3906 = vadd.f32 %v3616, %v3870
  %v3907 = vadd.f32 %v3617, %v3872
  %v3908 = vadd.f32 %v3618, %v3763
  %v3909 = vadd.f32 %v3619, %v3765
  %v3910 = vadd.f32 %v3620, %v3876
  %v3911 = vadd.f32 %v3621, %v3878
  %3912 = vrot.lane.b32.xlu0 %v2253, 127
  %v3913 = vpop.permute.xlu0 %3912
  %3914 = vrot.lane.b32.xlu0 %v2257, 127
  %v3915 = vpop.permute.xlu0 %3914
  %3916 = vrot.lane.b32.xlu0 %v2261, 127
  %v3917 = vpop.permute.xlu0 %3916
  %3918 = vrot.lane.b32.xlu0 %v2265, 127
  %v3919 = vpop.permute.xlu0 %3918
  %3920 = vrot.lane.b32.xlu0 %v2254, 127
  %v3921 = vpop.permute.xlu0 %3920
  %3922 = vrot.lane.b32.xlu0 %v2258, 127
  %v3923 = vpop.permute.xlu0 %3922
  %3924 = vrot.lane.b32.xlu0 %v2262, 127
  %v3925 = vpop.permute.xlu0 %3924
  %3926 = vrot.lane.b32.xlu0 %v2266, 127
  %v3927 = vpop.permute.xlu0 %3926
  %3928 = vrot.lane.b32.xlu0 %v2255, 127
  %v3929 = vpop.permute.xlu0 %3928
  %3930 = vrot.lane.b32.xlu0 %v2259, 127
  %v3931 = vpop.permute.xlu0 %3930
  %3932 = vrot.lane.b32.xlu0 %v2263, 127
  %v3933 = vpop.permute.xlu0 %3932
  %3934 = vrot.lane.b32.xlu0 %v2267, 127
  %v3935 = vpop.permute.xlu0 %3934
  %3936 = vrot.lane.b32.xlu0 %v2256, 127
  %v3937 = vpop.permute.xlu0 %3936
  %3938 = vrot.lane.b32.xlu0 %v2260, 127
  %v3939 = vpop.permute.xlu0 %3938
  %3940 = vrot.lane.b32.xlu0 %v2264, 127
  %v3941 = vpop.permute.xlu0 %3940
  %3942 = vrot.lane.b32.xlu0 %v2268, 127
  %v3943 = vpop.permute.xlu0 %3942
  %v3944 = vsel %vm1229, %v3929, %v3937
  %v3945 = vsel %vm1229, %v3931, %v3939
  %v3946 = vsel %vm1229, %v3933, %v3941
  %v3947 = vsel %vm1229, %v3935, %v3943
  %v3948 = vsel %vm1229, %v3921, %v3929
  %v3949 = vsel %vm1229, %v3923, %v3931
  %v3950 = vsel %vm1229, %v3925, %v3933
  %v3951 = vsel %vm1229, %v3927, %v3935
  %v3952 = vsel %vm1229, %v3913, %v3921
  %v3953 = vsel %vm1229, %v3915, %v3923
  %v3954 = vsel %vm1229, %v3917, %v3925
  %v3955 = vsel %vm1229, %v3919, %v3927
  %v3956 = vsel %vm1229, %v3937, %v3913
  %v3957 = vsel %vm1229, %v3939, %v3915
  %v3958 = vsel %vm1229, %v3941, %v3917
  %v3959 = vsel %vm1229, %v3943, %v3919
  %v3960 = vmul.f32 %v3952, %v1238
  %v3961 = vmul.f32 %v3948, %v1242
  %v3962 = vmul.f32 %v3944, %v1246
  %v3963 = vmul.f32 %v3956, %v1250
  %v3964 = vmul.f32 %v3953, %v1238
  %v3965 = vmul.f32 %v3949, %v1242
  %v3966 = vmul.f32 %v3945, %v1246
  %v3967 = vmul.f32 %v3957, %v1250
  %v3968 = vmul.f32 %v3954, %v1238
  %v3969 = vmul.f32 %v3950, %v1242
  %v3970 = vmul.f32 %v3946, %v1246
  %v3971 = vmul.f32 %v3958, %v1250
  %v3972 = vmul.f32 %v3955, %v1238
  %v3973 = vmul.f32 %v3951, %v1242
  %v3974 = vmul.f32 %v3947, %v1246
  %v3975 = vmul.f32 %v3959, %v1250
  %3976 = vrot.lane.b32.xlu0 %v3622, 96
  %v3977 = vpop.permute.xlu0 %3976
  %3978 = vrot.lane.b32.xlu0 %v3623, 96
  %v3979 = vpop.permute.xlu0 %3978
  %3980 = vrot.lane.b32.xlu0 %v3624, 96
  %v3981 = vpop.permute.xlu0 %3980
  %3982 = vrot.lane.b32.xlu0 %v3625, 96
  %v3983 = vpop.permute.xlu0 %3982
  %3984 = vrot.lane.b32.xlu0 %v3626, 96
  %v3985 = vpop.permute.xlu0 %3984
  %3986 = vrot.lane.b32.xlu0 %v3627, 96
  %v3987 = vpop.permute.xlu0 %3986
  %3988 = vrot.lane.b32.xlu0 %v3628, 96
  %v3989 = vpop.permute.xlu0 %3988
  %3990 = vrot.lane.b32.xlu0 %v3629, 96
  %v3991 = vpop.permute.xlu0 %3990
  %v3992 = vsel %vm2429, %v3977, 0
  %v3994 = vsel %vm2429, %v3979, 0
  %v3996 = vsel %vm2429, %v3981, 0
  %v3998 = vsel %vm2429, %v3983, 0
  %v4000 = vsel %vm2429, %v3985, 0
  %v4002 = vsel %vm2429, %v3987, 0
  %v4004 = vsel %vm2429, %v3989, 0
  %v4006 = vsel %vm2429, %v3991, 0
  %4008 = vmatprep.subr.mxu0 0.0
  %4009 = vmatpush1.msra.mxu0 0.0
  %4010 = vmatprep.subr.mxu0 0.0
  %4011 = vmatpush1.msra.mxu0 0.0
  %4012 = vmatprep.subr.mxu0 0.0
  %4013 = vmatpush1.msra.mxu0 0.0
  %4014 = vmatprep.subr.mxu0 0.0
  %4015 = vmatpush1.msra.mxu0 0.0
  %4016 = vmatprep.subr.mxu0 0.0
  %4017 = vmatpush1.msra.mxu0 0.0
  %4018 = vmatprep.subr.mxu0 0.0
  %4019 = vmatpush1.msra.mxu0 0.0
  %4020 = vmatprep.subr.mxu0 0.0
  %4021 = vmatpush1.msra.mxu0 0.0
  %4022 = vmatprep.subr.mxu0 0.0
  %4023 = vmatpush1.msra.mxu0 0.0
  %4024 = vmatprep.subr.mxu0 0.0
  %4025 = vmatpush1.msra.mxu0 0.0
  %4026 = vmatprep.subr.mxu0 0.0
  %4027 = vmatpush1.msra.mxu0 0.0
  %4028 = vmatprep.subr.mxu0 0.0
  %4029 = vmatpush1.msra.mxu0 0.0
  %4030 = vmatprep.subr.mxu0 0.0
  %4031 = vmatpush1.msra.mxu0 0.0
  %4032 = vmatprep.subr.mxu0 %v3973
  %4033 = vmatpush1.msra.mxu0 %v3972
  %4034 = vmatprep.subr.mxu0 %v3969
  %4035 = vmatpush1.msra.mxu0 %v3968
  %4036 = vmatprep.subr.mxu0 %v3965
  %4037 = vmatpush1.msra.mxu0 %v3964
  %4038 = vmatprep.subr.mxu0 %v3961
  %4039 = vmatpush1.msra.mxu0 %v3960
  %4040 = vmatprep.subr.mxu0 0.0
  %4041 = vmatpush2.msra.mxu0 0.0
  %4042 = vmatprep.subr.mxu0 0.0
  %4043 = vmatpush2.msra.mxu0 0.0
  %4044 = vmatprep.subr.mxu0 0.0
  %4045 = vmatpush2.msra.mxu0 0.0
  %4046 = vmatprep.subr.mxu0 0.0
  %4047 = vmatpush2.msra.mxu0 0.0
  %4048 = vmatprep.subr.mxu0 0.0
  %4049 = vmatpush2.msra.mxu0 0.0
  %4050 = vmatprep.subr.mxu0 0.0
  %4051 = vmatpush2.msra.mxu0 0.0
  %4052 = vmatprep.subr.mxu0 0.0
  %4053 = vmatpush2.msra.mxu0 0.0
  %4054 = vmatprep.subr.mxu0 0.0
  %4055 = vmatpush2.msra.mxu0 0.0
  %4056 = vmatprep.subr.mxu0 0.0
  %4057 = vmatpush2.msra.mxu0 0.0
  %4058 = vmatprep.subr.mxu0 0.0
  %4059 = vmatpush2.msra.mxu0 0.0
  %4060 = vmatprep.subr.mxu0 0.0
  %4061 = vmatpush2.msra.mxu0 0.0
  %4062 = vmatprep.subr.mxu0 0.0
  %4063 = vmatpush2.msra.mxu0 0.0
  %4064 = vmatprep.subr.mxu0 0.0
  %4065 = vmatpush2.msra.mxu0 0.0
  %4066 = vmatprep.subr.mxu0 0.0
  %4067 = vmatpush2.msra.mxu0 0.0
  %4068 = vmatprep.subr.mxu0 0.0
  %4069 = vmatpush2.msra.mxu0 0.0
  %4070 = vmatprep.subr.mxu0 0.0
  %4071 = vmatpush2.msra.mxu0 0.0
  %4072 = vmatprep.mubr.f32.mxu0 0.0
  %4073 = vmatmul.mubr.f32.gmra.mxu0 %v3992
  %v4074 = vpop.f32.mrf.mxu0
  %v4075 = vadd.f32 0.0, %v4074
  %v4076 = vpop.f32.mrf.mxu0
  %v4077 = vadd.f32 0.0, %v4076
  %4078 = vmatprep.mubr.f32.mxu0 0.0
  %4079 = vmatmul.mubr.f32.gmra.mxu0 %v3994
  %v4080 = vpop.f32.mrf.mxu0
  %v4081 = vadd.f32 0.0, %v4080
  %v4082 = vpop.f32.mrf.mxu0
  %v4083 = vadd.f32 0.0, %v4082
  %4084 = vmatprep.mubr.f32.mxu0 0.0
  %4085 = vmatmul.mubr.f32.gmra.mxu0 %v3996
  %v4086 = vpop.f32.mrf.mxu0
  %v4087 = vadd.f32 0.0, %v4086
  %v4088 = vpop.f32.mrf.mxu0
  %v4089 = vadd.f32 0.0, %v4088
  %4090 = vmatprep.mubr.f32.mxu0 0.0
  %4091 = vmatmul.mubr.f32.gmra.mxu0 %v3998
  %v4092 = vpop.f32.mrf.mxu0
  %v4093 = vadd.f32 0.0, %v4092
  %v4094 = vpop.f32.mrf.mxu0
  %v4095 = vadd.f32 0.0, %v4094
  %4096 = vmatprep.mubr.f32.mxu0 0.0
  %4097 = vmatmul.mubr.f32.gmra.mxu0 %v4000
  %v4098 = vpop.f32.mrf.mxu0
  %v4099 = vadd.f32 0.0, %v4098
  %v4100 = vpop.f32.mrf.mxu0
  %v4101 = vadd.f32 0.0, %v4100
  %4102 = vmatprep.mubr.f32.mxu0 0.0
  %4103 = vmatmul.mubr.f32.gmra.mxu0 %v4002
  %v4104 = vpop.f32.mrf.mxu0
  %v4105 = vadd.f32 0.0, %v4104
  %v4106 = vpop.f32.mrf.mxu0
  %v4107 = vadd.f32 0.0, %v4106
  %4108 = vmatprep.mubr.f32.mxu0 0.0
  %4109 = vmatmul.mubr.f32.gmra.mxu0 %v4004
  %v4110 = vpop.f32.mrf.mxu0
  %v4111 = vadd.f32 0.0, %v4110
  %v4112 = vpop.f32.mrf.mxu0
  %v4113 = vadd.f32 0.0, %v4112
  %4114 = vmatprep.mubr.f32.mxu0 0.0
  %4115 = vmatmul.mubr.f32.gmra.mxu0 %v4006
  %v4116 = vpop.f32.mrf.mxu0
  %v4117 = vadd.f32 0.0, %v4116
  %v4118 = vpop.f32.mrf.mxu0
  %v4119 = vadd.f32 0.0, %v4118
  %4120 = vdwg.mxu0
  %4121 = vmatprep.subr.mxu0 0.0
  %4122 = vmatpush1.msra.mxu0 0.0
  %4123 = vmatprep.subr.mxu0 0.0
  %4124 = vmatpush1.msra.mxu0 0.0
  %4125 = vmatprep.subr.mxu0 0.0
  %4126 = vmatpush1.msra.mxu0 0.0
  %4127 = vmatprep.subr.mxu0 0.0
  %4128 = vmatpush1.msra.mxu0 0.0
  %4129 = vmatprep.subr.mxu0 0.0
  %4130 = vmatpush1.msra.mxu0 0.0
  %4131 = vmatprep.subr.mxu0 0.0
  %4132 = vmatpush1.msra.mxu0 0.0
  %4133 = vmatprep.subr.mxu0 0.0
  %4134 = vmatpush1.msra.mxu0 0.0
  %4135 = vmatprep.subr.mxu0 0.0
  %4136 = vmatpush1.msra.mxu0 0.0
  %4137 = vmatprep.subr.mxu0 0.0
  %4138 = vmatpush1.msra.mxu0 0.0
  %4139 = vmatprep.subr.mxu0 0.0
  %4140 = vmatpush1.msra.mxu0 0.0
  %4141 = vmatprep.subr.mxu0 0.0
  %4142 = vmatpush1.msra.mxu0 0.0
  %4143 = vmatprep.subr.mxu0 0.0
  %4144 = vmatpush1.msra.mxu0 0.0
  %4145 = vmatprep.subr.mxu0 %v3975
  %4146 = vmatpush1.msra.mxu0 %v3974
  %4147 = vmatprep.subr.mxu0 %v3971
  %4148 = vmatpush1.msra.mxu0 %v3970
  %4149 = vmatprep.subr.mxu0 %v3967
  %4150 = vmatpush1.msra.mxu0 %v3966
  %4151 = vmatprep.subr.mxu0 %v3963
  %4152 = vmatpush1.msra.mxu0 %v3962
  %4153 = vmatprep.subr.mxu0 0.0
  %4154 = vmatpush2.msra.mxu0 0.0
  %4155 = vmatprep.subr.mxu0 0.0
  %4156 = vmatpush2.msra.mxu0 0.0
  %4157 = vmatprep.subr.mxu0 0.0
  %4158 = vmatpush2.msra.mxu0 0.0
  %4159 = vmatprep.subr.mxu0 0.0
  %4160 = vmatpush2.msra.mxu0 0.0
  %4161 = vmatprep.subr.mxu0 0.0
  %4162 = vmatpush2.msra.mxu0 0.0
  %4163 = vmatprep.subr.mxu0 0.0
  %4164 = vmatpush2.msra.mxu0 0.0
  %4165 = vmatprep.subr.mxu0 0.0
  %4166 = vmatpush2.msra.mxu0 0.0
  %4167 = vmatprep.subr.mxu0 0.0
  %4168 = vmatpush2.msra.mxu0 0.0
  %4169 = vmatprep.subr.mxu0 0.0
  %4170 = vmatpush2.msra.mxu0 0.0
  %4171 = vmatprep.subr.mxu0 0.0
  %4172 = vmatpush2.msra.mxu0 0.0
  %4173 = vmatprep.subr.mxu0 0.0
  %4174 = vmatpush2.msra.mxu0 0.0
  %4175 = vmatprep.subr.mxu0 0.0
  %4176 = vmatpush2.msra.mxu0 0.0
  %4177 = vmatprep.subr.mxu0 0.0
  %4178 = vmatpush2.msra.mxu0 0.0
  %4179 = vmatprep.subr.mxu0 0.0
  %4180 = vmatpush2.msra.mxu0 0.0
  %4181 = vmatprep.subr.mxu0 0.0
  %4182 = vmatpush2.msra.mxu0 0.0
  %4183 = vmatprep.subr.mxu0 0.0
  %4184 = vmatpush2.msra.mxu0 0.0
  %4185 = vmatprep.mubr.f32.mxu0 0.0
  %4186 = vmatmul.mubr.f32.gmra.mxu0 %v3992
  %v4187 = vpop.f32.mrf.mxu0
  %v4188 = vadd.f32 0.0, %v4187
  %v4189 = vpop.f32.mrf.mxu0
  %v4190 = vadd.f32 0.0, %v4189
  %4191 = vmatprep.mubr.f32.mxu0 0.0
  %4192 = vmatmul.mubr.f32.gmra.mxu0 %v3994
  %v4193 = vpop.f32.mrf.mxu0
  %v4194 = vadd.f32 0.0, %v4193
  %v4195 = vpop.f32.mrf.mxu0
  %v4196 = vadd.f32 0.0, %v4195
  %4197 = vmatprep.mubr.f32.mxu0 0.0
  %4198 = vmatmul.mubr.f32.gmra.mxu0 %v3996
  %v4199 = vpop.f32.mrf.mxu0
  %v4200 = vadd.f32 0.0, %v4199
  %v4201 = vpop.f32.mrf.mxu0
  %v4202 = vadd.f32 0.0, %v4201
  %4203 = vmatprep.mubr.f32.mxu0 0.0
  %4204 = vmatmul.mubr.f32.gmra.mxu0 %v3998
  %v4205 = vpop.f32.mrf.mxu0
  %v4206 = vadd.f32 0.0, %v4205
  %v4207 = vpop.f32.mrf.mxu0
  %v4208 = vadd.f32 0.0, %v4207
  %4209 = vmatprep.mubr.f32.mxu0 0.0
  %4210 = vmatmul.mubr.f32.gmra.mxu0 %v4000
  %v4211 = vpop.f32.mrf.mxu0
  %v4212 = vadd.f32 0.0, %v4211
  %v4213 = vpop.f32.mrf.mxu0
  %v4214 = vadd.f32 0.0, %v4213
  %4215 = vmatprep.mubr.f32.mxu0 0.0
  %4216 = vmatmul.mubr.f32.gmra.mxu0 %v4002
  %v4217 = vpop.f32.mrf.mxu0
  %v4218 = vadd.f32 0.0, %v4217
  %v4219 = vpop.f32.mrf.mxu0
  %v4220 = vadd.f32 0.0, %v4219
  %4221 = vmatprep.mubr.f32.mxu0 0.0
  %4222 = vmatmul.mubr.f32.gmra.mxu0 %v4004
  %v4223 = vpop.f32.mrf.mxu0
  %v4224 = vadd.f32 0.0, %v4223
  %v4225 = vpop.f32.mrf.mxu0
  %v4226 = vadd.f32 0.0, %v4225
  %4227 = vmatprep.mubr.f32.mxu0 0.0
  %4228 = vmatmul.mubr.f32.gmra.mxu0 %v4006
  %v4229 = vpop.f32.mrf.mxu0
  %v4230 = vadd.f32 0.0, %v4229
  %v4231 = vpop.f32.mrf.mxu0
  %v4232 = vadd.f32 0.0, %v4231
  %4233 = vdwg.mxu0
  %v4234 = vadd.f32 %v3880, %v4075
  %v4235 = vadd.f32 %v3881, %v4077
  %v4236 = vadd.f32 %v3882, %v4188
  %v4237 = vadd.f32 %v3883, %v4190
  %v4238 = vadd.f32 %v3884, %v4081
  %v4239 = vadd.f32 %v3885, %v4083
  %v4240 = vadd.f32 %v3886, %v4194
  %v4241 = vadd.f32 %v3887, %v4196
  %v4242 = vadd.f32 %v3888, %v4087
  %v4243 = vadd.f32 %v3889, %v4089
  %v4244 = vadd.f32 %v3890, %v4200
  %v4245 = vadd.f32 %v3891, %v4202
  %v4246 = vadd.f32 %v3892, %v4093
  %v4247 = vadd.f32 %v3893, %v4095
  %v4248 = vadd.f32 %v3894, %v4206
  %v4249 = vadd.f32 %v3895, %v4208
  %v4250 = vadd.f32 %v3896, %v4099
  %v4251 = vadd.f32 %v3897, %v4101
  %v4252 = vadd.f32 %v3898, %v4212
  %v4253 = vadd.f32 %v3899, %v4214
  %v4254 = vadd.f32 %v3900, %v4105
  %v4255 = vadd.f32 %v3901, %v4107
  %v4256 = vadd.f32 %v3902, %v4218
  %v4257 = vadd.f32 %v3903, %v4220
  %v4258 = vadd.f32 %v3904, %v4111
  %v4259 = vadd.f32 %v3905, %v4113
  %v4260 = vadd.f32 %v3906, %v4224
  %v4261 = vadd.f32 %v3907, %v4226
  %v4262 = vadd.f32 %v3908, %v4117
  %v4263 = vadd.f32 %v3909, %v4119
  %v4264 = vadd.f32 %v3910, %v4230
  %v4265 = vadd.f32 %v3911, %v4232
  %4266 = vrot.lane.b32.xlu0 %v2253, 113
  %v4267 = vpop.permute.xlu0 %4266
  %4268 = vrot.lane.b32.xlu0 %v2257, 113
  %v4269 = vpop.permute.xlu0 %4268
  %4270 = vrot.lane.b32.xlu0 %v2261, 113
  %v4271 = vpop.permute.xlu0 %4270
  %4272 = vrot.lane.b32.xlu0 %v2265, 113
  %v4273 = vpop.permute.xlu0 %4272
  %4274 = vrot.lane.b32.xlu0 %v2254, 113
  %v4275 = vpop.permute.xlu0 %4274
  %4276 = vrot.lane.b32.xlu0 %v2258, 113
  %v4277 = vpop.permute.xlu0 %4276
  %4278 = vrot.lane.b32.xlu0 %v2262, 113
  %v4279 = vpop.permute.xlu0 %4278
  %4280 = vrot.lane.b32.xlu0 %v2266, 113
  %v4281 = vpop.permute.xlu0 %4280
  %4282 = vrot.lane.b32.xlu0 %v2255, 113
  %v4283 = vpop.permute.xlu0 %4282
  %4284 = vrot.lane.b32.xlu0 %v2259, 113
  %v4285 = vpop.permute.xlu0 %4284
  %4286 = vrot.lane.b32.xlu0 %v2263, 113
  %v4287 = vpop.permute.xlu0 %4286
  %4288 = vrot.lane.b32.xlu0 %v2267, 113
  %v4289 = vpop.permute.xlu0 %4288
  %4290 = vrot.lane.b32.xlu0 %v2256, 113
  %v4291 = vpop.permute.xlu0 %4290
  %4292 = vrot.lane.b32.xlu0 %v2260, 113
  %v4293 = vpop.permute.xlu0 %4292
  %4294 = vrot.lane.b32.xlu0 %v2264, 113
  %v4295 = vpop.permute.xlu0 %4294
  %4296 = vrot.lane.b32.xlu0 %v2268, 113
  %v4297 = vpop.permute.xlu0 %4296
  %v4298 = vsel %vm1477, %v4283, %v4291
  %v4299 = vsel %vm1477, %v4285, %v4293
  %v4300 = vsel %vm1477, %v4287, %v4295
  %v4301 = vsel %vm1477, %v4289, %v4297
  %v4302 = vsel %vm1477, %v4275, %v4283
  %v4303 = vsel %vm1477, %v4277, %v4285
  %v4304 = vsel %vm1477, %v4279, %v4287
  %v4305 = vsel %vm1477, %v4281, %v4289
  %v4306 = vsel %vm1477, %v4267, %v4275
  %v4307 = vsel %vm1477, %v4269, %v4277
  %v4308 = vsel %vm1477, %v4271, %v4279
  %v4309 = vsel %vm1477, %v4273, %v4281
  %v4310 = vsel %vm1477, %v4291, %v4267
  %v4311 = vsel %vm1477, %v4293, %v4269
  %v4312 = vsel %vm1477, %v4295, %v4271
  %v4313 = vsel %vm1477, %v4297, %v4273
  %v4314 = vmul.f32 %v4306, %v1486
  %v4315 = vmul.f32 %v4302, %v1490
  %v4316 = vmul.f32 %v4298, %v1494
  %v4317 = vmul.f32 %v4310, %v1498
  %v4318 = vmul.f32 %v4307, %v1486
  %v4319 = vmul.f32 %v4303, %v1490
  %v4320 = vmul.f32 %v4299, %v1494
  %v4321 = vmul.f32 %v4311, %v1498
  %v4322 = vmul.f32 %v4308, %v1486
  %v4323 = vmul.f32 %v4304, %v1490
  %v4324 = vmul.f32 %v4300, %v1494
  %v4325 = vmul.f32 %v4312, %v1498
  %v4326 = vmul.f32 %v4309, %v1486
  %v4327 = vmul.f32 %v4305, %v1490
  %v4328 = vmul.f32 %v4301, %v1494
  %v4329 = vmul.f32 %v4313, %v1498
  %4330 = vrot.lane.b32.xlu0 %v3622, 64
  %v4331 = vpop.permute.xlu0 %4330
  %4332 = vrot.lane.b32.xlu0 %v3623, 64
  %v4333 = vpop.permute.xlu0 %4332
  %4334 = vrot.lane.b32.xlu0 %v3624, 64
  %v4335 = vpop.permute.xlu0 %4334
  %4336 = vrot.lane.b32.xlu0 %v3625, 64
  %v4337 = vpop.permute.xlu0 %4336
  %4338 = vrot.lane.b32.xlu0 %v3626, 64
  %v4339 = vpop.permute.xlu0 %4338
  %4340 = vrot.lane.b32.xlu0 %v3627, 64
  %v4341 = vpop.permute.xlu0 %4340
  %4342 = vrot.lane.b32.xlu0 %v3628, 64
  %v4343 = vpop.permute.xlu0 %4342
  %4344 = vrot.lane.b32.xlu0 %v3629, 64
  %v4345 = vpop.permute.xlu0 %4344
  %v4346 = vsel %vm2429, %v4331, 0
  %v4348 = vsel %vm2429, %v4333, 0
  %v4350 = vsel %vm2429, %v4335, 0
  %v4352 = vsel %vm2429, %v4337, 0
  %v4354 = vsel %vm2429, %v4339, 0
  %v4356 = vsel %vm2429, %v4341, 0
  %v4358 = vsel %vm2429, %v4343, 0
  %v4360 = vsel %vm2429, %v4345, 0
  %4362 = vmatprep.subr.mxu0 0.0
  %4363 = vmatpush1.msra.mxu0 0.0
  %4364 = vmatprep.subr.mxu0 0.0
  %4365 = vmatpush1.msra.mxu0 0.0
  %4366 = vmatprep.subr.mxu0 0.0
  %4367 = vmatpush1.msra.mxu0 0.0
  %4368 = vmatprep.subr.mxu0 0.0
  %4369 = vmatpush1.msra.mxu0 0.0
  %4370 = vmatprep.subr.mxu0 0.0
  %4371 = vmatpush1.msra.mxu0 0.0
  %4372 = vmatprep.subr.mxu0 0.0
  %4373 = vmatpush1.msra.mxu0 0.0
  %4374 = vmatprep.subr.mxu0 0.0
  %4375 = vmatpush1.msra.mxu0 0.0
  %4376 = vmatprep.subr.mxu0 0.0
  %4377 = vmatpush1.msra.mxu0 0.0
  %4378 = vmatprep.subr.mxu0 0.0
  %4379 = vmatpush1.msra.mxu0 0.0
  %4380 = vmatprep.subr.mxu0 0.0
  %4381 = vmatpush1.msra.mxu0 0.0
  %4382 = vmatprep.subr.mxu0 0.0
  %4383 = vmatpush1.msra.mxu0 0.0
  %4384 = vmatprep.subr.mxu0 0.0
  %4385 = vmatpush1.msra.mxu0 0.0
  %4386 = vmatprep.subr.mxu0 %v4327
  %4387 = vmatpush1.msra.mxu0 %v4326
  %4388 = vmatprep.subr.mxu0 %v4323
  %4389 = vmatpush1.msra.mxu0 %v4322
  %4390 = vmatprep.subr.mxu0 %v4319
  %4391 = vmatpush1.msra.mxu0 %v4318
  %4392 = vmatprep.subr.mxu0 %v4315
  %4393 = vmatpush1.msra.mxu0 %v4314
  %4394 = vmatprep.subr.mxu0 0.0
  %4395 = vmatpush2.msra.mxu0 0.0
  %4396 = vmatprep.subr.mxu0 0.0
  %4397 = vmatpush2.msra.mxu0 0.0
  %4398 = vmatprep.subr.mxu0 0.0
  %4399 = vmatpush2.msra.mxu0 0.0
  %4400 = vmatprep.subr.mxu0 0.0
  %4401 = vmatpush2.msra.mxu0 0.0
  %4402 = vmatprep.subr.mxu0 0.0
  %4403 = vmatpush2.msra.mxu0 0.0
  %4404 = vmatprep.subr.mxu0 0.0
  %4405 = vmatpush2.msra.mxu0 0.0
  %4406 = vmatprep.subr.mxu0 0.0
  %4407 = vmatpush2.msra.mxu0 0.0
  %4408 = vmatprep.subr.mxu0 0.0
  %4409 = vmatpush2.msra.mxu0 0.0
  %4410 = vmatprep.subr.mxu0 0.0
  %4411 = vmatpush2.msra.mxu0 0.0
  %4412 = vmatprep.subr.mxu0 0.0
  %4413 = vmatpush2.msra.mxu0 0.0
  %4414 = vmatprep.subr.mxu0 0.0
  %4415 = vmatpush2.msra.mxu0 0.0
  %4416 = vmatprep.subr.mxu0 0.0
  %4417 = vmatpush2.msra.mxu0 0.0
  %4418 = vmatprep.subr.mxu0 0.0
  %4419 = vmatpush2.msra.mxu0 0.0
  %4420 = vmatprep.subr.mxu0 0.0
  %4421 = vmatpush2.msra.mxu0 0.0
  %4422 = vmatprep.subr.mxu0 0.0
  %4423 = vmatpush2.msra.mxu0 0.0
  %4424 = vmatprep.subr.mxu0 0.0
  %4425 = vmatpush2.msra.mxu0 0.0
  %4426 = vmatprep.mubr.f32.mxu0 0.0
  %4427 = vmatmul.mubr.f32.gmra.mxu0 %v4346
  %v4428 = vpop.f32.mrf.mxu0
  %v4429 = vadd.f32 0.0, %v4428
  %v4430 = vpop.f32.mrf.mxu0
  %v4431 = vadd.f32 0.0, %v4430
  %4432 = vmatprep.mubr.f32.mxu0 0.0
  %4433 = vmatmul.mubr.f32.gmra.mxu0 %v4348
  %v4434 = vpop.f32.mrf.mxu0
  %v4435 = vadd.f32 0.0, %v4434
  %v4436 = vpop.f32.mrf.mxu0
  %v4437 = vadd.f32 0.0, %v4436
  %4438 = vmatprep.mubr.f32.mxu0 0.0
  %4439 = vmatmul.mubr.f32.gmra.mxu0 %v4350
  %v4440 = vpop.f32.mrf.mxu0
  %v4441 = vadd.f32 0.0, %v4440
  %v4442 = vpop.f32.mrf.mxu0
  %v4443 = vadd.f32 0.0, %v4442
  %4444 = vmatprep.mubr.f32.mxu0 0.0
  %4445 = vmatmul.mubr.f32.gmra.mxu0 %v4352
  %v4446 = vpop.f32.mrf.mxu0
  %v4447 = vadd.f32 0.0, %v4446
  %v4448 = vpop.f32.mrf.mxu0
  %v4449 = vadd.f32 0.0, %v4448
  %4450 = vmatprep.mubr.f32.mxu0 0.0
  %4451 = vmatmul.mubr.f32.gmra.mxu0 %v4354
  %v4452 = vpop.f32.mrf.mxu0
  %v4453 = vadd.f32 0.0, %v4452
  %v4454 = vpop.f32.mrf.mxu0
  %v4455 = vadd.f32 0.0, %v4454
  %4456 = vmatprep.mubr.f32.mxu0 0.0
  %4457 = vmatmul.mubr.f32.gmra.mxu0 %v4356
  %v4458 = vpop.f32.mrf.mxu0
  %v4459 = vadd.f32 0.0, %v4458
  %v4460 = vpop.f32.mrf.mxu0
  %v4461 = vadd.f32 0.0, %v4460
  %4462 = vmatprep.mubr.f32.mxu0 0.0
  %4463 = vmatmul.mubr.f32.gmra.mxu0 %v4358
  %v4464 = vpop.f32.mrf.mxu0
  %v4465 = vadd.f32 0.0, %v4464
  %v4466 = vpop.f32.mrf.mxu0
  %v4467 = vadd.f32 0.0, %v4466
  %4468 = vmatprep.mubr.f32.mxu0 0.0
  %4469 = vmatmul.mubr.f32.gmra.mxu0 %v4360
  %v4470 = vpop.f32.mrf.mxu0
  %v4471 = vadd.f32 0.0, %v4470
  %v4472 = vpop.f32.mrf.mxu0
  %v4473 = vadd.f32 0.0, %v4472
  %4474 = vdwg.mxu0
  %4475 = vmatprep.subr.mxu0 0.0
  %4476 = vmatpush1.msra.mxu0 0.0
  %4477 = vmatprep.subr.mxu0 0.0
  %4478 = vmatpush1.msra.mxu0 0.0
  %4479 = vmatprep.subr.mxu0 0.0
  %4480 = vmatpush1.msra.mxu0 0.0
  %4481 = vmatprep.subr.mxu0 0.0
  %4482 = vmatpush1.msra.mxu0 0.0
  %4483 = vmatprep.subr.mxu0 0.0
  %4484 = vmatpush1.msra.mxu0 0.0
  %4485 = vmatprep.subr.mxu0 0.0
  %4486 = vmatpush1.msra.mxu0 0.0
  %4487 = vmatprep.subr.mxu0 0.0
  %4488 = vmatpush1.msra.mxu0 0.0
  %4489 = vmatprep.subr.mxu0 0.0
  %4490 = vmatpush1.msra.mxu0 0.0
  %4491 = vmatprep.subr.mxu0 0.0
  %4492 = vmatpush1.msra.mxu0 0.0
  %4493 = vmatprep.subr.mxu0 0.0
  %4494 = vmatpush1.msra.mxu0 0.0
  %4495 = vmatprep.subr.mxu0 0.0
  %4496 = vmatpush1.msra.mxu0 0.0
  %4497 = vmatprep.subr.mxu0 0.0
  %4498 = vmatpush1.msra.mxu0 0.0
  %4499 = vmatprep.subr.mxu0 %v4329
  %4500 = vmatpush1.msra.mxu0 %v4328
  %4501 = vmatprep.subr.mxu0 %v4325
  %4502 = vmatpush1.msra.mxu0 %v4324
  %4503 = vmatprep.subr.mxu0 %v4321
  %4504 = vmatpush1.msra.mxu0 %v4320
  %4505 = vmatprep.subr.mxu0 %v4317
  %4506 = vmatpush1.msra.mxu0 %v4316
  %4507 = vmatprep.subr.mxu0 0.0
  %4508 = vmatpush2.msra.mxu0 0.0
  %4509 = vmatprep.subr.mxu0 0.0
  %4510 = vmatpush2.msra.mxu0 0.0
  %4511 = vmatprep.subr.mxu0 0.0
  %4512 = vmatpush2.msra.mxu0 0.0
  %4513 = vmatprep.subr.mxu0 0.0
  %4514 = vmatpush2.msra.mxu0 0.0
  %4515 = vmatprep.subr.mxu0 0.0
  %4516 = vmatpush2.msra.mxu0 0.0
  %4517 = vmatprep.subr.mxu0 0.0
  %4518 = vmatpush2.msra.mxu0 0.0
  %4519 = vmatprep.subr.mxu0 0.0
  %4520 = vmatpush2.msra.mxu0 0.0
  %4521 = vmatprep.subr.mxu0 0.0
  %4522 = vmatpush2.msra.mxu0 0.0
  %4523 = vmatprep.subr.mxu0 0.0
  %4524 = vmatpush2.msra.mxu0 0.0
  %4525 = vmatprep.subr.mxu0 0.0
  %4526 = vmatpush2.msra.mxu0 0.0
  %4527 = vmatprep.subr.mxu0 0.0
  %4528 = vmatpush2.msra.mxu0 0.0
  %4529 = vmatprep.subr.mxu0 0.0
  %4530 = vmatpush2.msra.mxu0 0.0
  %4531 = vmatprep.subr.mxu0 0.0
  %4532 = vmatpush2.msra.mxu0 0.0
  %4533 = vmatprep.subr.mxu0 0.0
  %4534 = vmatpush2.msra.mxu0 0.0
  %4535 = vmatprep.subr.mxu0 0.0
  %4536 = vmatpush2.msra.mxu0 0.0
  %4537 = vmatprep.subr.mxu0 0.0
  %4538 = vmatpush2.msra.mxu0 0.0
  %4539 = vmatprep.mubr.f32.mxu0 0.0
  %4540 = vmatmul.mubr.f32.gmra.mxu0 %v4346
  %v4541 = vpop.f32.mrf.mxu0
  %v4542 = vadd.f32 0.0, %v4541
  %v4543 = vpop.f32.mrf.mxu0
  %v4544 = vadd.f32 0.0, %v4543
  %4545 = vmatprep.mubr.f32.mxu0 0.0
  %4546 = vmatmul.mubr.f32.gmra.mxu0 %v4348
  %v4547 = vpop.f32.mrf.mxu0
  %v4548 = vadd.f32 0.0, %v4547
  %v4549 = vpop.f32.mrf.mxu0
  %v4550 = vadd.f32 0.0, %v4549
  %4551 = vmatprep.mubr.f32.mxu0 0.0
  %4552 = vmatmul.mubr.f32.gmra.mxu0 %v4350
  %v4553 = vpop.f32.mrf.mxu0
  %v4554 = vadd.f32 0.0, %v4553
  %v4555 = vpop.f32.mrf.mxu0
  %v4556 = vadd.f32 0.0, %v4555
  %4557 = vmatprep.mubr.f32.mxu0 0.0
  %4558 = vmatmul.mubr.f32.gmra.mxu0 %v4352
  %v4559 = vpop.f32.mrf.mxu0
  %v4560 = vadd.f32 0.0, %v4559
  %v4561 = vpop.f32.mrf.mxu0
  %v4562 = vadd.f32 0.0, %v4561
  %4563 = vmatprep.mubr.f32.mxu0 0.0
  %4564 = vmatmul.mubr.f32.gmra.mxu0 %v4354
  %v4565 = vpop.f32.mrf.mxu0
  %v4566 = vadd.f32 0.0, %v4565
  %v4567 = vpop.f32.mrf.mxu0
  %v4568 = vadd.f32 0.0, %v4567
  %4569 = vmatprep.mubr.f32.mxu0 0.0
  %4570 = vmatmul.mubr.f32.gmra.mxu0 %v4356
  %v4571 = vpop.f32.mrf.mxu0
  %v4572 = vadd.f32 0.0, %v4571
  %v4573 = vpop.f32.mrf.mxu0
  %v4574 = vadd.f32 0.0, %v4573
  %4575 = vmatprep.mubr.f32.mxu0 0.0
  %4576 = vmatmul.mubr.f32.gmra.mxu0 %v4358
  %v4577 = vpop.f32.mrf.mxu0
  %v4578 = vadd.f32 0.0, %v4577
  %v4579 = vpop.f32.mrf.mxu0
  %v4580 = vadd.f32 0.0, %v4579
  %4581 = vmatprep.mubr.f32.mxu0 0.0
  %4582 = vmatmul.mubr.f32.gmra.mxu0 %v4360
  %v4583 = vpop.f32.mrf.mxu0
  %v4584 = vadd.f32 0.0, %v4583
  %v4585 = vpop.f32.mrf.mxu0
  %v4586 = vadd.f32 0.0, %v4585
  %4587 = vdwg.mxu0
  %v4588 = vadd.f32 %v4234, %v4429
  %v4589 = vadd.f32 %v4235, %v4431
  %v4590 = vadd.f32 %v4236, %v4542
  %v4591 = vadd.f32 %v4237, %v4544
  %v4592 = vadd.f32 %v4238, %v4435
  %v4593 = vadd.f32 %v4239, %v4437
  %v4594 = vadd.f32 %v4240, %v4548
  %v4595 = vadd.f32 %v4241, %v4550
  %v4596 = vadd.f32 %v4242, %v4441
  %v4597 = vadd.f32 %v4243, %v4443
  %v4598 = vadd.f32 %v4244, %v4554
  %v4599 = vadd.f32 %v4245, %v4556
  %v4600 = vadd.f32 %v4246, %v4447
  %v4601 = vadd.f32 %v4247, %v4449
  %v4602 = vadd.f32 %v4248, %v4560
  %v4603 = vadd.f32 %v4249, %v4562
  %v4604 = vadd.f32 %v4250, %v4453
  %v4605 = vadd.f32 %v4251, %v4455
  %v4606 = vadd.f32 %v4252, %v4566
  %v4607 = vadd.f32 %v4253, %v4568
  %v4608 = vadd.f32 %v4254, %v4459
  %v4609 = vadd.f32 %v4255, %v4461
  %v4610 = vadd.f32 %v4256, %v4572
  %v4611 = vadd.f32 %v4257, %v4574
  %v4612 = vadd.f32 %v4258, %v4465
  %v4613 = vadd.f32 %v4259, %v4467
  %v4614 = vadd.f32 %v4260, %v4578
  %v4615 = vadd.f32 %v4261, %v4580
  %v4616 = vadd.f32 %v4262, %v4471
  %v4617 = vadd.f32 %v4263, %v4473
  %v4618 = vadd.f32 %v4264, %v4584
  %v4619 = vadd.f32 %v4265, %v4586
  %4620 = vrot.lane.b32.xlu0 %v2253, 112
  %v4621 = vpop.permute.xlu0 %4620
  %4622 = vrot.lane.b32.xlu0 %v2257, 112
  %v4623 = vpop.permute.xlu0 %4622
  %4624 = vrot.lane.b32.xlu0 %v2261, 112
  %v4625 = vpop.permute.xlu0 %4624
  %4626 = vrot.lane.b32.xlu0 %v2265, 112
  %v4627 = vpop.permute.xlu0 %4626
  %4628 = vrot.lane.b32.xlu0 %v2254, 112
  %v4629 = vpop.permute.xlu0 %4628
  %4630 = vrot.lane.b32.xlu0 %v2258, 112
  %v4631 = vpop.permute.xlu0 %4630
  %4632 = vrot.lane.b32.xlu0 %v2262, 112
  %v4633 = vpop.permute.xlu0 %4632
  %4634 = vrot.lane.b32.xlu0 %v2266, 112
  %v4635 = vpop.permute.xlu0 %4634
  %4636 = vrot.lane.b32.xlu0 %v2255, 112
  %v4637 = vpop.permute.xlu0 %4636
  %4638 = vrot.lane.b32.xlu0 %v2259, 112
  %v4639 = vpop.permute.xlu0 %4638
  %4640 = vrot.lane.b32.xlu0 %v2263, 112
  %v4641 = vpop.permute.xlu0 %4640
  %4642 = vrot.lane.b32.xlu0 %v2267, 112
  %v4643 = vpop.permute.xlu0 %4642
  %4644 = vrot.lane.b32.xlu0 %v2256, 112
  %v4645 = vpop.permute.xlu0 %4644
  %4646 = vrot.lane.b32.xlu0 %v2260, 112
  %v4647 = vpop.permute.xlu0 %4646
  %4648 = vrot.lane.b32.xlu0 %v2264, 112
  %v4649 = vpop.permute.xlu0 %4648
  %4650 = vrot.lane.b32.xlu0 %v2268, 112
  %v4651 = vpop.permute.xlu0 %4650
  %v4652 = vsel %vm1725, %v4637, %v4645
  %v4653 = vsel %vm1725, %v4639, %v4647
  %v4654 = vsel %vm1725, %v4641, %v4649
  %v4655 = vsel %vm1725, %v4643, %v4651
  %v4656 = vsel %vm1725, %v4629, %v4637
  %v4657 = vsel %vm1725, %v4631, %v4639
  %v4658 = vsel %vm1725, %v4633, %v4641
  %v4659 = vsel %vm1725, %v4635, %v4643
  %v4660 = vsel %vm1725, %v4621, %v4629
  %v4661 = vsel %vm1725, %v4623, %v4631
  %v4662 = vsel %vm1725, %v4625, %v4633
  %v4663 = vsel %vm1725, %v4627, %v4635
  %v4664 = vsel %vm1725, %v4645, %v4621
  %v4665 = vsel %vm1725, %v4647, %v4623
  %v4666 = vsel %vm1725, %v4649, %v4625
  %v4667 = vsel %vm1725, %v4651, %v4627
  %v4668 = vmul.f32 %v4660, %v1734
  %v4669 = vmul.f32 %v4656, %v1738
  %v4670 = vmul.f32 %v4652, %v1742
  %v4671 = vmul.f32 %v4664, %v1746
  %v4672 = vmul.f32 %v4661, %v1734
  %v4673 = vmul.f32 %v4657, %v1738
  %v4674 = vmul.f32 %v4653, %v1742
  %v4675 = vmul.f32 %v4665, %v1746
  %v4676 = vmul.f32 %v4662, %v1734
  %v4677 = vmul.f32 %v4658, %v1738
  %v4678 = vmul.f32 %v4654, %v1742
  %v4679 = vmul.f32 %v4666, %v1746
  %v4680 = vmul.f32 %v4663, %v1734
  %v4681 = vmul.f32 %v4659, %v1738
  %v4682 = vmul.f32 %v4655, %v1742
  %v4683 = vmul.f32 %v4667, %v1746
  %4684 = vrot.lane.b32.xlu0 %v3622, 32
  %v4685 = vpop.permute.xlu0 %4684
  %4686 = vrot.lane.b32.xlu0 %v3623, 32
  %v4687 = vpop.permute.xlu0 %4686
  %4688 = vrot.lane.b32.xlu0 %v3624, 32
  %v4689 = vpop.permute.xlu0 %4688
  %4690 = vrot.lane.b32.xlu0 %v3625, 32
  %v4691 = vpop.permute.xlu0 %4690
  %4692 = vrot.lane.b32.xlu0 %v3626, 32
  %v4693 = vpop.permute.xlu0 %4692
  %4694 = vrot.lane.b32.xlu0 %v3627, 32
  %v4695 = vpop.permute.xlu0 %4694
  %4696 = vrot.lane.b32.xlu0 %v3628, 32
  %v4697 = vpop.permute.xlu0 %4696
  %4698 = vrot.lane.b32.xlu0 %v3629, 32
  %v4699 = vpop.permute.xlu0 %4698
  %v4700 = vsel %vm2429, %v4685, 0
  %v4702 = vsel %vm2429, %v4687, 0
  %v4704 = vsel %vm2429, %v4689, 0
  %v4706 = vsel %vm2429, %v4691, 0
  %v4708 = vsel %vm2429, %v4693, 0
  %v4710 = vsel %vm2429, %v4695, 0
  %v4712 = vsel %vm2429, %v4697, 0
  %v4714 = vsel %vm2429, %v4699, 0
  %4716 = vmatprep.subr.mxu0 0.0
  %4717 = vmatpush1.msra.mxu0 0.0
  %4718 = vmatprep.subr.mxu0 0.0
  %4719 = vmatpush1.msra.mxu0 0.0
  %4720 = vmatprep.subr.mxu0 0.0
  %4721 = vmatpush1.msra.mxu0 0.0
  %4722 = vmatprep.subr.mxu0 0.0
  %4723 = vmatpush1.msra.mxu0 0.0
  %4724 = vmatprep.subr.mxu0 0.0
  %4725 = vmatpush1.msra.mxu0 0.0
  %4726 = vmatprep.subr.mxu0 0.0
  %4727 = vmatpush1.msra.mxu0 0.0
  %4728 = vmatprep.subr.mxu0 0.0
  %4729 = vmatpush1.msra.mxu0 0.0
  %4730 = vmatprep.subr.mxu0 0.0
  %4731 = vmatpush1.msra.mxu0 0.0
  %4732 = vmatprep.subr.mxu0 0.0
  %4733 = vmatpush1.msra.mxu0 0.0
  %4734 = vmatprep.subr.mxu0 0.0
  %4735 = vmatpush1.msra.mxu0 0.0
  %4736 = vmatprep.subr.mxu0 0.0
  %4737 = vmatpush1.msra.mxu0 0.0
  %4738 = vmatprep.subr.mxu0 0.0
  %4739 = vmatpush1.msra.mxu0 0.0
  %4740 = vmatprep.subr.mxu0 %v4681
  %4741 = vmatpush1.msra.mxu0 %v4680
  %4742 = vmatprep.subr.mxu0 %v4677
  %4743 = vmatpush1.msra.mxu0 %v4676
  %4744 = vmatprep.subr.mxu0 %v4673
  %4745 = vmatpush1.msra.mxu0 %v4672
  %4746 = vmatprep.subr.mxu0 %v4669
  %4747 = vmatpush1.msra.mxu0 %v4668
  %4748 = vmatprep.subr.mxu0 0.0
  %4749 = vmatpush2.msra.mxu0 0.0
  %4750 = vmatprep.subr.mxu0 0.0
  %4751 = vmatpush2.msra.mxu0 0.0
  %4752 = vmatprep.subr.mxu0 0.0
  %4753 = vmatpush2.msra.mxu0 0.0
  %4754 = vmatprep.subr.mxu0 0.0
  %4755 = vmatpush2.msra.mxu0 0.0
  %4756 = vmatprep.subr.mxu0 0.0
  %4757 = vmatpush2.msra.mxu0 0.0
  %4758 = vmatprep.subr.mxu0 0.0
  %4759 = vmatpush2.msra.mxu0 0.0
  %4760 = vmatprep.subr.mxu0 0.0
  %4761 = vmatpush2.msra.mxu0 0.0
  %4762 = vmatprep.subr.mxu0 0.0
  %4763 = vmatpush2.msra.mxu0 0.0
  %4764 = vmatprep.subr.mxu0 0.0
  %4765 = vmatpush2.msra.mxu0 0.0
  %4766 = vmatprep.subr.mxu0 0.0
  %4767 = vmatpush2.msra.mxu0 0.0
  %4768 = vmatprep.subr.mxu0 0.0
  %4769 = vmatpush2.msra.mxu0 0.0
  %4770 = vmatprep.subr.mxu0 0.0
  %4771 = vmatpush2.msra.mxu0 0.0
  %4772 = vmatprep.subr.mxu0 0.0
  %4773 = vmatpush2.msra.mxu0 0.0
  %4774 = vmatprep.subr.mxu0 0.0
  %4775 = vmatpush2.msra.mxu0 0.0
  %4776 = vmatprep.subr.mxu0 0.0
  %4777 = vmatpush2.msra.mxu0 0.0
  %4778 = vmatprep.subr.mxu0 0.0
  %4779 = vmatpush2.msra.mxu0 0.0
  %4780 = vmatprep.mubr.f32.mxu0 0.0
  %4781 = vmatmul.mubr.f32.gmra.mxu0 %v4700
  %v4782 = vpop.f32.mrf.mxu0
  %v4783 = vadd.f32 0.0, %v4782
  %v4784 = vpop.f32.mrf.mxu0
  %v4785 = vadd.f32 0.0, %v4784
  %4786 = vmatprep.mubr.f32.mxu0 0.0
  %4787 = vmatmul.mubr.f32.gmra.mxu0 %v4702
  %v4788 = vpop.f32.mrf.mxu0
  %v4789 = vadd.f32 0.0, %v4788
  %v4790 = vpop.f32.mrf.mxu0
  %v4791 = vadd.f32 0.0, %v4790
  %4792 = vmatprep.mubr.f32.mxu0 0.0
  %4793 = vmatmul.mubr.f32.gmra.mxu0 %v4704
  %v4794 = vpop.f32.mrf.mxu0
  %v4795 = vadd.f32 0.0, %v4794
  %v4796 = vpop.f32.mrf.mxu0
  %v4797 = vadd.f32 0.0, %v4796
  %4798 = vmatprep.mubr.f32.mxu0 0.0
  %4799 = vmatmul.mubr.f32.gmra.mxu0 %v4706
  %v4800 = vpop.f32.mrf.mxu0
  %v4801 = vadd.f32 0.0, %v4800
  %v4802 = vpop.f32.mrf.mxu0
  %v4803 = vadd.f32 0.0, %v4802
  %4804 = vmatprep.mubr.f32.mxu0 0.0
  %4805 = vmatmul.mubr.f32.gmra.mxu0 %v4708
  %v4806 = vpop.f32.mrf.mxu0
  %v4807 = vadd.f32 0.0, %v4806
  %v4808 = vpop.f32.mrf.mxu0
  %v4809 = vadd.f32 0.0, %v4808
  %4810 = vmatprep.mubr.f32.mxu0 0.0
  %4811 = vmatmul.mubr.f32.gmra.mxu0 %v4710
  %v4812 = vpop.f32.mrf.mxu0
  %v4813 = vadd.f32 0.0, %v4812
  %v4814 = vpop.f32.mrf.mxu0
  %v4815 = vadd.f32 0.0, %v4814
  %4816 = vmatprep.mubr.f32.mxu0 0.0
  %4817 = vmatmul.mubr.f32.gmra.mxu0 %v4712
  %v4818 = vpop.f32.mrf.mxu0
  %v4819 = vadd.f32 0.0, %v4818
  %v4820 = vpop.f32.mrf.mxu0
  %v4821 = vadd.f32 0.0, %v4820
  %4822 = vmatprep.mubr.f32.mxu0 0.0
  %4823 = vmatmul.mubr.f32.gmra.mxu0 %v4714
  %v4824 = vpop.f32.mrf.mxu0
  %v4825 = vadd.f32 0.0, %v4824
  %v4826 = vpop.f32.mrf.mxu0
  %v4827 = vadd.f32 0.0, %v4826
  %4828 = vdwg.mxu0
  %4829 = vmatprep.subr.mxu0 0.0
  %4830 = vmatpush1.msra.mxu0 0.0
  %4831 = vmatprep.subr.mxu0 0.0
  %4832 = vmatpush1.msra.mxu0 0.0
  %4833 = vmatprep.subr.mxu0 0.0
  %4834 = vmatpush1.msra.mxu0 0.0
  %4835 = vmatprep.subr.mxu0 0.0
  %4836 = vmatpush1.msra.mxu0 0.0
  %4837 = vmatprep.subr.mxu0 0.0
  %4838 = vmatpush1.msra.mxu0 0.0
  %4839 = vmatprep.subr.mxu0 0.0
  %4840 = vmatpush1.msra.mxu0 0.0
  %4841 = vmatprep.subr.mxu0 0.0
  %4842 = vmatpush1.msra.mxu0 0.0
  %4843 = vmatprep.subr.mxu0 0.0
  %4844 = vmatpush1.msra.mxu0 0.0
  %4845 = vmatprep.subr.mxu0 0.0
  %4846 = vmatpush1.msra.mxu0 0.0
  %4847 = vmatprep.subr.mxu0 0.0
  %4848 = vmatpush1.msra.mxu0 0.0
  %4849 = vmatprep.subr.mxu0 0.0
  %4850 = vmatpush1.msra.mxu0 0.0
  %4851 = vmatprep.subr.mxu0 0.0
  %4852 = vmatpush1.msra.mxu0 0.0
  %4853 = vmatprep.subr.mxu0 %v4683
  %4854 = vmatpush1.msra.mxu0 %v4682
  %4855 = vmatprep.subr.mxu0 %v4679
  %4856 = vmatpush1.msra.mxu0 %v4678
  %4857 = vmatprep.subr.mxu0 %v4675
  %4858 = vmatpush1.msra.mxu0 %v4674
  %4859 = vmatprep.subr.mxu0 %v4671
  %4860 = vmatpush1.msra.mxu0 %v4670
  %4861 = vmatprep.subr.mxu0 0.0
  %4862 = vmatpush2.msra.mxu0 0.0
  %4863 = vmatprep.subr.mxu0 0.0
  %4864 = vmatpush2.msra.mxu0 0.0
  %4865 = vmatprep.subr.mxu0 0.0
  %4866 = vmatpush2.msra.mxu0 0.0
  %4867 = vmatprep.subr.mxu0 0.0
  %4868 = vmatpush2.msra.mxu0 0.0
  %4869 = vmatprep.subr.mxu0 0.0
  %4870 = vmatpush2.msra.mxu0 0.0
  %4871 = vmatprep.subr.mxu0 0.0
  %4872 = vmatpush2.msra.mxu0 0.0
  %4873 = vmatprep.subr.mxu0 0.0
  %4874 = vmatpush2.msra.mxu0 0.0
  %4875 = vmatprep.subr.mxu0 0.0
  %4876 = vmatpush2.msra.mxu0 0.0
  %4877 = vmatprep.subr.mxu0 0.0
  %4878 = vmatpush2.msra.mxu0 0.0
  %4879 = vmatprep.subr.mxu0 0.0
  %4880 = vmatpush2.msra.mxu0 0.0
  %4881 = vmatprep.subr.mxu0 0.0
  %4882 = vmatpush2.msra.mxu0 0.0
  %4883 = vmatprep.subr.mxu0 0.0
  %4884 = vmatpush2.msra.mxu0 0.0
  %4885 = vmatprep.subr.mxu0 0.0
  %4886 = vmatpush2.msra.mxu0 0.0
  %4887 = vmatprep.subr.mxu0 0.0
  %4888 = vmatpush2.msra.mxu0 0.0
  %4889 = vmatprep.subr.mxu0 0.0
  %4890 = vmatpush2.msra.mxu0 0.0
  %4891 = vmatprep.subr.mxu0 0.0
  %4892 = vmatpush2.msra.mxu0 0.0
  %4893 = vmatprep.mubr.f32.mxu0 0.0
  %4894 = vmatmul.mubr.f32.gmra.mxu0 %v4700
  %v4895 = vpop.f32.mrf.mxu0
  %v4896 = vadd.f32 0.0, %v4895
  %v4897 = vpop.f32.mrf.mxu0
  %v4898 = vadd.f32 0.0, %v4897
  %4899 = vmatprep.mubr.f32.mxu0 0.0
  %4900 = vmatmul.mubr.f32.gmra.mxu0 %v4702
  %v4901 = vpop.f32.mrf.mxu0
  %v4902 = vadd.f32 0.0, %v4901
  %v4903 = vpop.f32.mrf.mxu0
  %v4904 = vadd.f32 0.0, %v4903
  %4905 = vmatprep.mubr.f32.mxu0 0.0
  %4906 = vmatmul.mubr.f32.gmra.mxu0 %v4704
  %v4907 = vpop.f32.mrf.mxu0
  %v4908 = vadd.f32 0.0, %v4907
  %v4909 = vpop.f32.mrf.mxu0
  %v4910 = vadd.f32 0.0, %v4909
  %4911 = vmatprep.mubr.f32.mxu0 0.0
  %4912 = vmatmul.mubr.f32.gmra.mxu0 %v4706
  %v4913 = vpop.f32.mrf.mxu0
  %v4914 = vadd.f32 0.0, %v4913
  %v4915 = vpop.f32.mrf.mxu0
  %v4916 = vadd.f32 0.0, %v4915
  %4917 = vmatprep.mubr.f32.mxu0 0.0
  %4918 = vmatmul.mubr.f32.gmra.mxu0 %v4708
  %v4919 = vpop.f32.mrf.mxu0
  %v4920 = vadd.f32 0.0, %v4919
  %v4921 = vpop.f32.mrf.mxu0
  %v4922 = vadd.f32 0.0, %v4921
  %4923 = vmatprep.mubr.f32.mxu0 0.0
  %4924 = vmatmul.mubr.f32.gmra.mxu0 %v4710
  %v4925 = vpop.f32.mrf.mxu0
  %v4926 = vadd.f32 0.0, %v4925
  %v4927 = vpop.f32.mrf.mxu0
  %v4928 = vadd.f32 0.0, %v4927
  %4929 = vmatprep.mubr.f32.mxu0 0.0
  %4930 = vmatmul.mubr.f32.gmra.mxu0 %v4712
  %v4931 = vpop.f32.mrf.mxu0
  %v4932 = vadd.f32 0.0, %v4931
  %v4933 = vpop.f32.mrf.mxu0
  %v4934 = vadd.f32 0.0, %v4933
  %4935 = vmatprep.mubr.f32.mxu0 0.0
  %4936 = vmatmul.mubr.f32.gmra.mxu0 %v4714
  %v4937 = vpop.f32.mrf.mxu0
  %v4938 = vadd.f32 0.0, %v4937
  %v4939 = vpop.f32.mrf.mxu0
  %v4940 = vadd.f32 0.0, %v4939
  %4941 = vdwg.mxu0
  %v4942 = vadd.f32 %v4588, %v4783
  %v4943 = vadd.f32 %v4589, %v4785
  %v4944 = vadd.f32 %v4590, %v4896
  %v4945 = vadd.f32 %v4591, %v4898
  %v4946 = vadd.f32 %v4592, %v4789
  %v4947 = vadd.f32 %v4593, %v4791
  %v4948 = vadd.f32 %v4594, %v4902
  %v4949 = vadd.f32 %v4595, %v4904
  %v4950 = vadd.f32 %v4596, %v4795
  %v4951 = vadd.f32 %v4597, %v4797
  %v4952 = vadd.f32 %v4598, %v4908
  %v4953 = vadd.f32 %v4599, %v4910
  %v4954 = vadd.f32 %v4600, %v4801
  %v4955 = vadd.f32 %v4601, %v4803
  %v4956 = vadd.f32 %v4602, %v4914
  %v4957 = vadd.f32 %v4603, %v4916
  %v4958 = vadd.f32 %v4604, %v4807
  %v4959 = vadd.f32 %v4605, %v4809
  %v4960 = vadd.f32 %v4606, %v4920
  %v4961 = vadd.f32 %v4607, %v4922
  %v4962 = vadd.f32 %v4608, %v4813
  %v4963 = vadd.f32 %v4609, %v4815
  %v4964 = vadd.f32 %v4610, %v4926
  %v4965 = vadd.f32 %v4611, %v4928
  %v4966 = vadd.f32 %v4612, %v4819
  %v4967 = vadd.f32 %v4613, %v4821
  %v4968 = vadd.f32 %v4614, %v4932
  %v4969 = vadd.f32 %v4615, %v4934
  %v4970 = vadd.f32 %v4616, %v4825
  %v4971 = vadd.f32 %v4617, %v4827
  %v4972 = vadd.f32 %v4618, %v4938
  %v4973 = vadd.f32 %v4619, %v4940
  %4974 = vrot.lane.b32.xlu0 %v2253, 111
  %v4975 = vpop.permute.xlu0 %4974
  %4976 = vrot.lane.b32.xlu0 %v2257, 111
  %v4977 = vpop.permute.xlu0 %4976
  %4978 = vrot.lane.b32.xlu0 %v2261, 111
  %v4979 = vpop.permute.xlu0 %4978
  %4980 = vrot.lane.b32.xlu0 %v2265, 111
  %v4981 = vpop.permute.xlu0 %4980
  %4982 = vrot.lane.b32.xlu0 %v2254, 111
  %v4983 = vpop.permute.xlu0 %4982
  %4984 = vrot.lane.b32.xlu0 %v2258, 111
  %v4985 = vpop.permute.xlu0 %4984
  %4986 = vrot.lane.b32.xlu0 %v2262, 111
  %v4987 = vpop.permute.xlu0 %4986
  %4988 = vrot.lane.b32.xlu0 %v2266, 111
  %v4989 = vpop.permute.xlu0 %4988
  %4990 = vrot.lane.b32.xlu0 %v2255, 111
  %v4991 = vpop.permute.xlu0 %4990
  %4992 = vrot.lane.b32.xlu0 %v2259, 111
  %v4993 = vpop.permute.xlu0 %4992
  %4994 = vrot.lane.b32.xlu0 %v2263, 111
  %v4995 = vpop.permute.xlu0 %4994
  %4996 = vrot.lane.b32.xlu0 %v2267, 111
  %v4997 = vpop.permute.xlu0 %4996
  %4998 = vrot.lane.b32.xlu0 %v2256, 111
  %v4999 = vpop.permute.xlu0 %4998
  %5000 = vrot.lane.b32.xlu0 %v2260, 111
  %v5001 = vpop.permute.xlu0 %5000
  %5002 = vrot.lane.b32.xlu0 %v2264, 111
  %v5003 = vpop.permute.xlu0 %5002
  %5004 = vrot.lane.b32.xlu0 %v2268, 111
  %v5005 = vpop.permute.xlu0 %5004
  %v5006 = vsel %vm1973, %v4991, %v4999
  %v5007 = vsel %vm1973, %v4993, %v5001
  %v5008 = vsel %vm1973, %v4995, %v5003
  %v5009 = vsel %vm1973, %v4997, %v5005
  %v5010 = vsel %vm1973, %v4983, %v4991
  %v5011 = vsel %vm1973, %v4985, %v4993
  %v5012 = vsel %vm1973, %v4987, %v4995
  %v5013 = vsel %vm1973, %v4989, %v4997
  %v5014 = vsel %vm1973, %v4975, %v4983
  %v5015 = vsel %vm1973, %v4977, %v4985
  %v5016 = vsel %vm1973, %v4979, %v4987
  %v5017 = vsel %vm1973, %v4981, %v4989
  %v5018 = vsel %vm1973, %v4999, %v4975
  %v5019 = vsel %vm1973, %v5001, %v4977
  %v5020 = vsel %vm1973, %v5003, %v4979
  %v5021 = vsel %vm1973, %v5005, %v4981
  %v5022 = vmul.f32 %v5014, %v1982
  %v5023 = vmul.f32 %v5010, %v1986
  %v5024 = vmul.f32 %v5006, %v1990
  %v5025 = vmul.f32 %v5018, %v1994
  %v5026 = vmul.f32 %v5015, %v1982
  %v5027 = vmul.f32 %v5011, %v1986
  %v5028 = vmul.f32 %v5007, %v1990
  %v5029 = vmul.f32 %v5019, %v1994
  %v5030 = vmul.f32 %v5016, %v1982
  %v5031 = vmul.f32 %v5012, %v1986
  %v5032 = vmul.f32 %v5008, %v1990
  %v5033 = vmul.f32 %v5020, %v1994
  %v5034 = vmul.f32 %v5017, %v1982
  %v5035 = vmul.f32 %v5013, %v1986
  %v5036 = vmul.f32 %v5009, %v1990
  %v5037 = vmul.f32 %v5021, %v1994
  %v5038 = vld [vmem:[%s4 + $0x10] sm:$0xff]
  %v5039 = vld [vmem:[%s4 + $0x28] sm:$0xff]
  %v5040 = vld [vmem:[%s4 + $0x40] sm:$0xff]
  %v5041 = vld [vmem:[%s4 + $0x58] sm:$0xff]
  %v5042 = vld [vmem:[%s4 + $0x70] sm:$0xff]
  %v5043 = vld [vmem:[%s4 + $0x88] sm:$0xff]
  %v5044 = vld [vmem:[%s4 + $0xa0] sm:$0xff]
  %v5045 = vld [vmem:[%s4 + $0xb8] sm:$0xff]
  %v5047 = vsel %vm2429, %v5038, 0
  %v5050 = vsel %vm2429, %v5039, 0
  %v5053 = vsel %vm2429, %v5040, 0
  %v5056 = vsel %vm2429, %v5041, 0
  %v5059 = vsel %vm2429, %v5042, 0
  %v5062 = vsel %vm2429, %v5043, 0
  %v5065 = vsel %vm2429, %v5044, 0
  %v5068 = vsel %vm2429, %v5045, 0
  %5070 = vmatprep.subr.mxu0 0.0
  %5071 = vmatpush1.msra.mxu0 0.0
  %5072 = vmatprep.subr.mxu0 0.0
  %5073 = vmatpush1.msra.mxu0 0.0
  %5074 = vmatprep.subr.mxu0 0.0
  %5075 = vmatpush1.msra.mxu0 0.0
  %5076 = vmatprep.subr.mxu0 0.0
  %5077 = vmatpush1.msra.mxu0 0.0
  %5078 = vmatprep.subr.mxu0 0.0
  %5079 = vmatpush1.msra.mxu0 0.0
  %5080 = vmatprep.subr.mxu0 0.0
  %5081 = vmatpush1.msra.mxu0 0.0
  %5082 = vmatprep.subr.mxu0 0.0
  %5083 = vmatpush1.msra.mxu0 0.0
  %5084 = vmatprep.subr.mxu0 0.0
  %5085 = vmatpush1.msra.mxu0 0.0
  %5086 = vmatprep.subr.mxu0 0.0
  %5087 = vmatpush1.msra.mxu0 0.0
  %5088 = vmatprep.subr.mxu0 0.0
  %5089 = vmatpush1.msra.mxu0 0.0
  %5090 = vmatprep.subr.mxu0 0.0
  %5091 = vmatpush1.msra.mxu0 0.0
  %5092 = vmatprep.subr.mxu0 0.0
  %5093 = vmatpush1.msra.mxu0 0.0
  %5094 = vmatprep.subr.mxu0 %v5035
  %5095 = vmatpush1.msra.mxu0 %v5034
  %5096 = vmatprep.subr.mxu0 %v5031
  %5097 = vmatpush1.msra.mxu0 %v5030
  %5098 = vmatprep.subr.mxu0 %v5027
  %5099 = vmatpush1.msra.mxu0 %v5026
  %5100 = vmatprep.subr.mxu0 %v5023
  %5101 = vmatpush1.msra.mxu0 %v5022
  %5102 = vmatprep.subr.mxu0 0.0
  %5103 = vmatpush2.msra.mxu0 0.0
  %5104 = vmatprep.subr.mxu0 0.0
  %5105 = vmatpush2.msra.mxu0 0.0
  %5106 = vmatprep.subr.mxu0 0.0
  %5107 = vmatpush2.msra.mxu0 0.0
  %5108 = vmatprep.subr.mxu0 0.0
  %5109 = vmatpush2.msra.mxu0 0.0
  %5110 = vmatprep.subr.mxu0 0.0
  %5111 = vmatpush2.msra.mxu0 0.0
  %5112 = vmatprep.subr.mxu0 0.0
  %5113 = vmatpush2.msra.mxu0 0.0
  %5114 = vmatprep.subr.mxu0 0.0
  %5115 = vmatpush2.msra.mxu0 0.0
  %5116 = vmatprep.subr.mxu0 0.0
  %5117 = vmatpush2.msra.mxu0 0.0
  %5118 = vmatprep.subr.mxu0 0.0
  %5119 = vmatpush2.msra.mxu0 0.0
  %5120 = vmatprep.subr.mxu0 0.0
  %5121 = vmatpush2.msra.mxu0 0.0
  %5122 = vmatprep.subr.mxu0 0.0
  %5123 = vmatpush2.msra.mxu0 0.0
  %5124 = vmatprep.subr.mxu0 0.0
  %5125 = vmatpush2.msra.mxu0 0.0
  %5126 = vmatprep.subr.mxu0 0.0
  %5127 = vmatpush2.msra.mxu0 0.0
  %5128 = vmatprep.subr.mxu0 0.0
  %5129 = vmatpush2.msra.mxu0 0.0
  %5130 = vmatprep.subr.mxu0 0.0
  %5131 = vmatpush2.msra.mxu0 0.0
  %5132 = vmatprep.subr.mxu0 0.0
  %5133 = vmatpush2.msra.mxu0 0.0
  %5134 = vmatprep.mubr.f32.mxu0 0.0
  %5135 = vmatmul.mubr.f32.gmra.mxu0 %v5047
  %v5136 = vpop.f32.mrf.mxu0
  %v5137 = vadd.f32 0.0, %v5136
  %v5138 = vpop.f32.mrf.mxu0
  %v5139 = vadd.f32 0.0, %v5138
  %5140 = vmatprep.mubr.f32.mxu0 0.0
  %5141 = vmatmul.mubr.f32.gmra.mxu0 %v5050
  %v5142 = vpop.f32.mrf.mxu0
  %v5143 = vadd.f32 0.0, %v5142
  %v5144 = vpop.f32.mrf.mxu0
  %v5145 = vadd.f32 0.0, %v5144
  %5146 = vmatprep.mubr.f32.mxu0 0.0
  %5147 = vmatmul.mubr.f32.gmra.mxu0 %v5053
  %v5148 = vpop.f32.mrf.mxu0
  %v5149 = vadd.f32 0.0, %v5148
  %v5150 = vpop.f32.mrf.mxu0
  %v5151 = vadd.f32 0.0, %v5150
  %5152 = vmatprep.mubr.f32.mxu0 0.0
  %5153 = vmatmul.mubr.f32.gmra.mxu0 %v5056
  %v5154 = vpop.f32.mrf.mxu0
  %v5155 = vadd.f32 0.0, %v5154
  %v5156 = vpop.f32.mrf.mxu0
  %v5157 = vadd.f32 0.0, %v5156
  %5158 = vmatprep.mubr.f32.mxu0 0.0
  %5159 = vmatmul.mubr.f32.gmra.mxu0 %v5059
  %v5160 = vpop.f32.mrf.mxu0
  %v5161 = vadd.f32 0.0, %v5160
  %v5162 = vpop.f32.mrf.mxu0
  %v5163 = vadd.f32 0.0, %v5162
  %5164 = vmatprep.mubr.f32.mxu0 0.0
  %5165 = vmatmul.mubr.f32.gmra.mxu0 %v5062
  %v5166 = vpop.f32.mrf.mxu0
  %v5167 = vadd.f32 0.0, %v5166
  %v5168 = vpop.f32.mrf.mxu0
  %v5169 = vadd.f32 0.0, %v5168
  %5170 = vmatprep.mubr.f32.mxu0 0.0
  %5171 = vmatmul.mubr.f32.gmra.mxu0 %v5065
  %v5172 = vpop.f32.mrf.mxu0
  %v5173 = vadd.f32 0.0, %v5172
  %v5174 = vpop.f32.mrf.mxu0
  %v5175 = vadd.f32 0.0, %v5174
  %5176 = vmatprep.mubr.f32.mxu0 0.0
  %5177 = vmatmul.mubr.f32.gmra.mxu0 %v5068
  %v5178 = vpop.f32.mrf.mxu0
  %v5179 = vadd.f32 0.0, %v5178
  %v5180 = vpop.f32.mrf.mxu0
  %v5181 = vadd.f32 0.0, %v5180
  %5182 = vdwg.mxu0
  %5183 = vmatprep.subr.mxu0 0.0
  %5184 = vmatpush1.msra.mxu0 0.0
  %5185 = vmatprep.subr.mxu0 0.0
  %5186 = vmatpush1.msra.mxu0 0.0
  %5187 = vmatprep.subr.mxu0 0.0
  %5188 = vmatpush1.msra.mxu0 0.0
  %5189 = vmatprep.subr.mxu0 0.0
  %5190 = vmatpush1.msra.mxu0 0.0
  %5191 = vmatprep.subr.mxu0 0.0
  %5192 = vmatpush1.msra.mxu0 0.0
  %5193 = vmatprep.subr.mxu0 0.0
  %5194 = vmatpush1.msra.mxu0 0.0
  %5195 = vmatprep.subr.mxu0 0.0
  %5196 = vmatpush1.msra.mxu0 0.0
  %5197 = vmatprep.subr.mxu0 0.0
  %5198 = vmatpush1.msra.mxu0 0.0
  %5199 = vmatprep.subr.mxu0 0.0
  %5200 = vmatpush1.msra.mxu0 0.0
  %5201 = vmatprep.subr.mxu0 0.0
  %5202 = vmatpush1.msra.mxu0 0.0
  %5203 = vmatprep.subr.mxu0 0.0
  %5204 = vmatpush1.msra.mxu0 0.0
  %5205 = vmatprep.subr.mxu0 0.0
  %5206 = vmatpush1.msra.mxu0 0.0
  %5207 = vmatprep.subr.mxu0 %v5037
  %5208 = vmatpush1.msra.mxu0 %v5036
  %5209 = vmatprep.subr.mxu0 %v5033
  %5210 = vmatpush1.msra.mxu0 %v5032
  %5211 = vmatprep.subr.mxu0 %v5029
  %5212 = vmatpush1.msra.mxu0 %v5028
  %5213 = vmatprep.subr.mxu0 %v5025
  %5214 = vmatpush1.msra.mxu0 %v5024
  %5215 = vmatprep.subr.mxu0 0.0
  %5216 = vmatpush2.msra.mxu0 0.0
  %5217 = vmatprep.subr.mxu0 0.0
  %5218 = vmatpush2.msra.mxu0 0.0
  %5219 = vmatprep.subr.mxu0 0.0
  %5220 = vmatpush2.msra.mxu0 0.0
  %5221 = vmatprep.subr.mxu0 0.0
  %5222 = vmatpush2.msra.mxu0 0.0
  %5223 = vmatprep.subr.mxu0 0.0
  %5224 = vmatpush2.msra.mxu0 0.0
  %5225 = vmatprep.subr.mxu0 0.0
  %5226 = vmatpush2.msra.mxu0 0.0
  %5227 = vmatprep.subr.mxu0 0.0
  %5228 = vmatpush2.msra.mxu0 0.0
  %5229 = vmatprep.subr.mxu0 0.0
  %5230 = vmatpush2.msra.mxu0 0.0
  %5231 = vmatprep.subr.mxu0 0.0
  %5232 = vmatpush2.msra.mxu0 0.0
  %5233 = vmatprep.subr.mxu0 0.0
  %5234 = vmatpush2.msra.mxu0 0.0
  %5235 = vmatprep.subr.mxu0 0.0
  %5236 = vmatpush2.msra.mxu0 0.0
  %5237 = vmatprep.subr.mxu0 0.0
  %5238 = vmatpush2.msra.mxu0 0.0
  %5239 = vmatprep.subr.mxu0 0.0
  %5240 = vmatpush2.msra.mxu0 0.0
  %5241 = vmatprep.subr.mxu0 0.0
  %5242 = vmatpush2.msra.mxu0 0.0
  %5243 = vmatprep.subr.mxu0 0.0
  %5244 = vmatpush2.msra.mxu0 0.0
  %5245 = vmatprep.subr.mxu0 0.0
  %5246 = vmatpush2.msra.mxu0 0.0
  %5247 = vmatprep.mubr.f32.mxu0 0.0
  %5248 = vmatmul.mubr.f32.gmra.mxu0 %v5047
  %v5249 = vpop.f32.mrf.mxu0
  %v5250 = vadd.f32 0.0, %v5249
  %v5251 = vpop.f32.mrf.mxu0
  %v5252 = vadd.f32 0.0, %v5251
  %5253 = vmatprep.mubr.f32.mxu0 0.0
  %5254 = vmatmul.mubr.f32.gmra.mxu0 %v5050
  %v5255 = vpop.f32.mrf.mxu0
  %v5256 = vadd.f32 0.0, %v5255
  %v5257 = vpop.f32.mrf.mxu0
  %v5258 = vadd.f32 0.0, %v5257
  %5259 = vmatprep.mubr.f32.mxu0 0.0
  %5260 = vmatmul.mubr.f32.gmra.mxu0 %v5053
  %v5261 = vpop.f32.mrf.mxu0
  %v5262 = vadd.f32 0.0, %v5261
  %v5263 = vpop.f32.mrf.mxu0
  %v5264 = vadd.f32 0.0, %v5263
  %5265 = vmatprep.mubr.f32.mxu0 0.0
  %5266 = vmatmul.mubr.f32.gmra.mxu0 %v5056
  %v5267 = vpop.f32.mrf.mxu0
  %v5268 = vadd.f32 0.0, %v5267
  %v5269 = vpop.f32.mrf.mxu0
  %v5270 = vadd.f32 0.0, %v5269
  %5271 = vmatprep.mubr.f32.mxu0 0.0
  %5272 = vmatmul.mubr.f32.gmra.mxu0 %v5059
  %v5273 = vpop.f32.mrf.mxu0
  %v5274 = vadd.f32 0.0, %v5273
  %v5275 = vpop.f32.mrf.mxu0
  %v5276 = vadd.f32 0.0, %v5275
  %5277 = vmatprep.mubr.f32.mxu0 0.0
  %5278 = vmatmul.mubr.f32.gmra.mxu0 %v5062
  %v5279 = vpop.f32.mrf.mxu0
  %v5280 = vadd.f32 0.0, %v5279
  %v5281 = vpop.f32.mrf.mxu0
  %v5282 = vadd.f32 0.0, %v5281
  %5283 = vmatprep.mubr.f32.mxu0 0.0
  %5284 = vmatmul.mubr.f32.gmra.mxu0 %v5065
  %v5285 = vpop.f32.mrf.mxu0
  %v5286 = vadd.f32 0.0, %v5285
  %v5287 = vpop.f32.mrf.mxu0
  %v5288 = vadd.f32 0.0, %v5287
  %5289 = vmatprep.mubr.f32.mxu0 0.0
  %5290 = vmatmul.mubr.f32.gmra.mxu0 %v5068
  %v5291 = vpop.f32.mrf.mxu0
  %v5292 = vadd.f32 0.0, %v5291
  %v5293 = vpop.f32.mrf.mxu0
  %v5294 = vadd.f32 0.0, %v5293
  %5295 = vdwg.mxu0
  %v5296 = vadd.f32 %v4942, %v5137
  %v5297 = vadd.f32 %v4943, %v5139
  %v5298 = vadd.f32 %v4944, %v5250
  %v5299 = vadd.f32 %v4945, %v5252
  %v5300 = vadd.f32 %v4946, %v5143
  %v5301 = vadd.f32 %v4947, %v5145
  %v5302 = vadd.f32 %v4948, %v5256
  %v5303 = vadd.f32 %v4949, %v5258
  %v5304 = vadd.f32 %v4950, %v5149
  %v5305 = vadd.f32 %v4951, %v5151
  %v5306 = vadd.f32 %v4952, %v5262
  %v5307 = vadd.f32 %v4953, %v5264
  %v5308 = vadd.f32 %v4954, %v5155
  %v5309 = vadd.f32 %v4955, %v5157
  %v5310 = vadd.f32 %v4956, %v5268
  %v5311 = vadd.f32 %v4957, %v5270
  %v5312 = vadd.f32 %v4958, %v5161
  %v5313 = vadd.f32 %v4959, %v5163
  %v5314 = vadd.f32 %v4960, %v5274
  %v5315 = vadd.f32 %v4961, %v5276
  %v5316 = vadd.f32 %v4962, %v5167
  %v5317 = vadd.f32 %v4963, %v5169
  %v5318 = vadd.f32 %v4964, %v5280
  %v5319 = vadd.f32 %v4965, %v5282
  %v5320 = vadd.f32 %v4966, %v5173
  %v5321 = vadd.f32 %v4967, %v5175
  %v5322 = vadd.f32 %v4968, %v5286
  %v5323 = vadd.f32 %v4969, %v5288
  %v5324 = vadd.f32 %v4970, %v5179
  %v5325 = vadd.f32 %v4971, %v5181
  %v5326 = vadd.f32 %v4972, %v5292
  %v5327 = vadd.f32 %v4973, %v5294
  %v5328 = vld [vmem:[%s5] sm:$0xff]
  %v5329 = vld [vmem:[%s5 + $0x8] sm:$0xff]
  %v5330 = vld [vmem:[%s5 + $0x10] sm:$0xff]
  %v5331 = vld [vmem:[%s5 + $0x18] sm:$0xff]
  %v5332 = vld [vmem:[%s5 + $0x20] sm:$0xff]
  %v5333 = vld [vmem:[%s5 + $0x28] sm:$0xff]
  %v5334 = vld [vmem:[%s5 + $0x30] sm:$0xff]
  %v5335 = vld [vmem:[%s5 + $0x38] sm:$0xff]
  %5337 = vset.pattern.permute.xlu0 0
  %5338 = vperm.xlu0 %5337, %v5328
  %v5339 = vpop.permute.xlu0 %5338
  %5342 = vset.pattern.permute.xlu0 0
  %5343 = vperm.xlu0 %5342, %v5329
  %v5344 = vpop.permute.xlu0 %5343
  %5347 = vset.pattern.permute.xlu0 0
  %5348 = vperm.xlu0 %5347, %v5330
  %v5349 = vpop.permute.xlu0 %5348
  %5352 = vset.pattern.permute.xlu0 0
  %5353 = vperm.xlu0 %5352, %v5331
  %v5354 = vpop.permute.xlu0 %5353
  %5357 = vset.pattern.permute.xlu0 0
  %5358 = vperm.xlu0 %5357, %v5332
  %v5359 = vpop.permute.xlu0 %5358
  %5362 = vset.pattern.permute.xlu0 0
  %5363 = vperm.xlu0 %5362, %v5333
  %v5364 = vpop.permute.xlu0 %5363
  %5367 = vset.pattern.permute.xlu0 0
  %5368 = vperm.xlu0 %5367, %v5334
  %v5369 = vpop.permute.xlu0 %5368
  %5372 = vset.pattern.permute.xlu0 0
  %5373 = vperm.xlu0 %5372, %v5335
  %v5374 = vpop.permute.xlu0 %5373
  %v5376 = vadd.f32 %v5296, %v5339
  %v5377 = vadd.f32 %v5297, %v5339
  %v5378 = vadd.f32 %v5298, %v5339
  %v5379 = vadd.f32 %v5299, %v5339
  %v5380 = vadd.f32 %v5300, %v5344
  %v5381 = vadd.f32 %v5301, %v5344
  %v5382 = vadd.f32 %v5302, %v5344
  %v5383 = vadd.f32 %v5303, %v5344
  %v5384 = vadd.f32 %v5304, %v5349
  %v5385 = vadd.f32 %v5305, %v5349
  %v5386 = vadd.f32 %v5306, %v5349
  %v5387 = vadd.f32 %v5307, %v5349
  %v5388 = vadd.f32 %v5308, %v5354
  %v5389 = vadd.f32 %v5309, %v5354
  %v5390 = vadd.f32 %v5310, %v5354
  %v5391 = vadd.f32 %v5311, %v5354
  %v5392 = vadd.f32 %v5312, %v5359
  %v5393 = vadd.f32 %v5313, %v5359
  %v5394 = vadd.f32 %v5314, %v5359
  %v5395 = vadd.f32 %v5315, %v5359
  %v5396 = vadd.f32 %v5316, %v5364
  %v5397 = vadd.f32 %v5317, %v5364
  %v5398 = vadd.f32 %v5318, %v5364
  %v5399 = vadd.f32 %v5319, %v5364
  %v5400 = vadd.f32 %v5320, %v5369
  %v5401 = vadd.f32 %v5321, %v5369
  %v5402 = vadd.f32 %v5322, %v5369
  %v5403 = vadd.f32 %v5323, %v5369
  %v5404 = vadd.f32 %v5324, %v5374
  %v5405 = vadd.f32 %v5325, %v5374
  %v5406 = vadd.f32 %v5326, %v5374
  %v5407 = vadd.f32 %v5327, %v5374
  %v5408 = vmax.f32 %v5376, 0.0
  %v5409 = vmax.f32 %v5377, 0.0
  %v5410 = vmax.f32 %v5378, 0.0
  %v5411 = vmax.f32 %v5379, 0.0
  %v5412 = vmax.f32 %v5380, 0.0
  %v5413 = vmax.f32 %v5381, 0.0
  %v5414 = vmax.f32 %v5382, 0.0
  %v5415 = vmax.f32 %v5383, 0.0
  %v5416 = vmax.f32 %v5384, 0.0
  %v5417 = vmax.f32 %v5385, 0.0
  %v5418 = vmax.f32 %v5386, 0.0
  %v5419 = vmax.f32 %v5387, 0.0
  %v5420 = vmax.f32 %v5388, 0.0
  %v5421 = vmax.f32 %v5389, 0.0
  %v5422 = vmax.f32 %v5390, 0.0
  %v5423 = vmax.f32 %v5391, 0.0
  %v5424 = vmax.f32 %v5392, 0.0
  %v5425 = vmax.f32 %v5393, 0.0
  %v5426 = vmax.f32 %v5394, 0.0
  %v5427 = vmax.f32 %v5395, 0.0
  %v5428 = vmax.f32 %v5396, 0.0
  %v5429 = vmax.f32 %v5397, 0.0
  %v5430 = vmax.f32 %v5398, 0.0
  %v5431 = vmax.f32 %v5399, 0.0
  %v5432 = vmax.f32 %v5400, 0.0
  %v5433 = vmax.f32 %v5401, 0.0
  %v5434 = vmax.f32 %v5402, 0.0
  %v5435 = vmax.f32 %v5403, 0.0
  %v5436 = vmax.f32 %v5404, 0.0
  %v5437 = vmax.f32 %v5405, 0.0
  %v5438 = vmax.f32 %v5406, 0.0
  %v5439 = vmax.f32 %v5407, 0.0
  %5440 = vrot.lane.b32.xlu0 %v5408, 17
  %v5441 = vpop.permute.xlu0 %5440
  %5442 = vrot.lane.b32.xlu0 %v5412, 17
  %v5443 = vpop.permute.xlu0 %5442
  %5444 = vrot.lane.b32.xlu0 %v5416, 17
  %v5445 = vpop.permute.xlu0 %5444
  %5446 = vrot.lane.b32.xlu0 %v5420, 17
  %v5447 = vpop.permute.xlu0 %5446
  %5448 = vrot.lane.b32.xlu0 %v5424, 17
  %v5449 = vpop.permute.xlu0 %5448
  %5450 = vrot.lane.b32.xlu0 %v5428, 17
  %v5451 = vpop.permute.xlu0 %5450
  %5452 = vrot.lane.b32.xlu0 %v5432, 17
  %v5453 = vpop.permute.xlu0 %5452
  %5454 = vrot.lane.b32.xlu0 %v5436, 17
  %v5455 = vpop.permute.xlu0 %5454
  %5456 = vrot.lane.b32.xlu0 %v5409, 17
  %v5457 = vpop.permute.xlu0 %5456
  %5458 = vrot.lane.b32.xlu0 %v5413, 17
  %v5459 = vpop.permute.xlu0 %5458
  %5460 = vrot.lane.b32.xlu0 %v5417, 17
  %v5461 = vpop.permute.xlu0 %5460
  %5462 = vrot.lane.b32.xlu0 %v5421, 17
  %v5463 = vpop.permute.xlu0 %5462
  %5464 = vrot.lane.b32.xlu0 %v5425, 17
  %v5465 = vpop.permute.xlu0 %5464
  %5466 = vrot.lane.b32.xlu0 %v5429, 17
  %v5467 = vpop.permute.xlu0 %5466
  %5468 = vrot.lane.b32.xlu0 %v5433, 17
  %v5469 = vpop.permute.xlu0 %5468
  %5470 = vrot.lane.b32.xlu0 %v5437, 17
  %v5471 = vpop.permute.xlu0 %5470
  %5472 = vrot.lane.b32.xlu0 %v5410, 17
  %v5473 = vpop.permute.xlu0 %5472
  %5474 = vrot.lane.b32.xlu0 %v5414, 17
  %v5475 = vpop.permute.xlu0 %5474
  %5476 = vrot.lane.b32.xlu0 %v5418, 17
  %v5477 = vpop.permute.xlu0 %5476
  %5478 = vrot.lane.b32.xlu0 %v5422, 17
  %v5479 = vpop.permute.xlu0 %5478
  %5480 = vrot.lane.b32.xlu0 %v5426, 17
  %v5481 = vpop.permute.xlu0 %5480
  %5482 = vrot.lane.b32.xlu0 %v5430, 17
  %v5483 = vpop.permute.xlu0 %5482
  %5484 = vrot.lane.b32.xlu0 %v5434, 17
  %v5485 = vpop.permute.xlu0 %5484
  %5486 = vrot.lane.b32.xlu0 %v5438, 17
  %v5487 = vpop.permute.xlu0 %5486
  %5488 = vrot.lane.b32.xlu0 %v5411, 17
  %v5489 = vpop.permute.xlu0 %5488
  %5490 = vrot.lane.b32.xlu0 %v5415, 17
  %v5491 = vpop.permute.xlu0 %5490
  %5492 = vrot.lane.b32.xlu0 %v5419, 17
  %v5493 = vpop.permute.xlu0 %5492
  %5494 = vrot.lane.b32.xlu0 %v5423, 17
  %v5495 = vpop.permute.xlu0 %5494
  %5496 = vrot.lane.b32.xlu0 %v5427, 17
  %v5497 = vpop.permute.xlu0 %5496
  %5498 = vrot.lane.b32.xlu0 %v5431, 17
  %v5499 = vpop.permute.xlu0 %5498
  %5500 = vrot.lane.b32.xlu0 %v5435, 17
  %v5501 = vpop.permute.xlu0 %5500
  %5502 = vrot.lane.b32.xlu0 %v5439, 17
  %v5503 = vpop.permute.xlu0 %5502
  %v5504 = vsel %vm58, %v5473, %v5489
  %v5505 = vsel %vm58, %v5475, %v5491
  %v5506 = vsel %vm58, %v5477, %v5493
  %v5507 = vsel %vm58, %v5479, %v5495
  %v5508 = vsel %vm58, %v5481, %v5497
  %v5509 = vsel %vm58, %v5483, %v5499
  %v5510 = vsel %vm58, %v5485, %v5501
  %v5511 = vsel %vm58, %v5487, %v5503
  %v5512 = vsel %vm58, %v5457, %v5473
  %v5513 = vsel %vm58, %v5459, %v5475
  %v5514 = vsel %vm58, %v5461, %v5477
  %v5515 = vsel %vm58, %v5463, %v5479
  %v5516 = vsel %vm58, %v5465, %v5481
  %v5517 = vsel %vm58, %v5467, %v5483
  %v5518 = vsel %vm58, %v5469, %v5485
  %v5519 = vsel %vm58, %v5471, %v5487
  %v5520 = vsel %vm58, %v5441, %v5457
  %v5521 = vsel %vm58, %v5443, %v5459
  %v5522 = vsel %vm58, %v5445, %v5461
  %v5523 = vsel %vm58, %v5447, %v5463
  %v5524 = vsel %vm58, %v5449, %v5465
  %v5525 = vsel %vm58, %v5451, %v5467
  %v5526 = vsel %vm58, %v5453, %v5469
  %v5527 = vsel %vm58, %v5455, %v5471
  %v5528 = vsel %vm58, %v5489, %v5441
  %v5529 = vsel %vm58, %v5491, %v5443
  %v5530 = vsel %vm58, %v5493, %v5445
  %v5531 = vsel %vm58, %v5495, %v5447
  %v5532 = vsel %vm58, %v5497, %v5449
  %v5533 = vsel %vm58, %v5499, %v5451
  %v5534 = vsel %vm58, %v5501, %v5453
  %v5535 = vsel %vm58, %v5503, %v5455
  %v5536 = vmul.f32 %v5528, %v67
  %v5537 = vmul.f32 %v5520, %v71
  %v5538 = vmul.f32 %v5512, %v75
  %v5539 = vmul.f32 %v5504, %v79
  %v5540 = vmul.f32 %v5529, %v67
  %v5541 = vmul.f32 %v5521, %v71
  %v5542 = vmul.f32 %v5513, %v75
  %v5543 = vmul.f32 %v5505, %v79
  %v5544 = vmul.f32 %v5530, %v67
  %v5545 = vmul.f32 %v5522, %v71
  %v5546 = vmul.f32 %v5514, %v75
  %v5547 = vmul.f32 %v5506, %v79
  %v5548 = vmul.f32 %v5531, %v67
  %v5549 = vmul.f32 %v5523, %v71
  %v5550 = vmul.f32 %v5515, %v75
  %v5551 = vmul.f32 %v5507, %v79
  %v5552 = vmul.f32 %v5532, %v67
  %v5553 = vmul.f32 %v5524, %v71
  %v5554 = vmul.f32 %v5516, %v75
  %v5555 = vmul.f32 %v5508, %v79
  %v5556 = vmul.f32 %v5533, %v67
  %v5557 = vmul.f32 %v5525, %v71
  %v5558 = vmul.f32 %v5517, %v75
  %v5559 = vmul.f32 %v5509, %v79
  %v5560 = vmul.f32 %v5534, %v67
  %v5561 = vmul.f32 %v5526, %v71
  %v5562 = vmul.f32 %v5518, %v75
  %v5563 = vmul.f32 %v5510, %v79
  %v5564 = vmul.f32 %v5535, %v67
  %v5565 = vmul.f32 %v5527, %v71
  %v5566 = vmul.f32 %v5519, %v75
  %v5567 = vmul.f32 %v5511, %v79
  %v5568 = vld [vmem:[%s6] sm:$0xff]
  %5569 = vrot.lane.b32.xlu0 %v5408, 16
  %v5570 = vpop.permute.xlu0 %5569
  %5571 = vrot.lane.b32.xlu0 %v5412, 16
  %v5572 = vpop.permute.xlu0 %5571
  %5573 = vrot.lane.b32.xlu0 %v5416, 16
  %v5574 = vpop.permute.xlu0 %5573
  %5575 = vrot.lane.b32.xlu0 %v5420, 16
  %v5576 = vpop.permute.xlu0 %5575
  %5577 = vrot.lane.b32.xlu0 %v5424, 16
  %v5578 = vpop.permute.xlu0 %5577
  %5579 = vrot.lane.b32.xlu0 %v5428, 16
  %v5580 = vpop.permute.xlu0 %5579
  %5581 = vrot.lane.b32.xlu0 %v5432, 16
  %v5582 = vpop.permute.xlu0 %5581
  %5583 = vrot.lane.b32.xlu0 %v5436, 16
  %v5584 = vpop.permute.xlu0 %5583
  %5585 = vrot.lane.b32.xlu0 %v5409, 16
  %v5586 = vpop.permute.xlu0 %5585
  %5587 = vrot.lane.b32.xlu0 %v5413, 16
  %v5588 = vpop.permute.xlu0 %5587
  %5589 = vrot.lane.b32.xlu0 %v5417, 16
  %v5590 = vpop.permute.xlu0 %5589
  %5591 = vrot.lane.b32.xlu0 %v5421, 16
  %v5592 = vpop.permute.xlu0 %5591
  %5593 = vrot.lane.b32.xlu0 %v5425, 16
  %v5594 = vpop.permute.xlu0 %5593
  %5595 = vrot.lane.b32.xlu0 %v5429, 16
  %v5596 = vpop.permute.xlu0 %5595
  %5597 = vrot.lane.b32.xlu0 %v5433, 16
  %v5598 = vpop.permute.xlu0 %5597
  %5599 = vrot.lane.b32.xlu0 %v5437, 16
  %v5600 = vpop.permute.xlu0 %5599
  %5601 = vrot.lane.b32.xlu0 %v5410, 16
  %v5602 = vpop.permute.xlu0 %5601
  %5603 = vrot.lane.b32.xlu0 %v5414, 16
  %v5604 = vpop.permute.xlu0 %5603
  %5605 = vrot.lane.b32.xlu0 %v5418, 16
  %v5606 = vpop.permute.xlu0 %5605
  %5607 = vrot.lane.b32.xlu0 %v5422, 16
  %v5608 = vpop.permute.xlu0 %5607
  %5609 = vrot.lane.b32.xlu0 %v5426, 16
  %v5610 = vpop.permute.xlu0 %5609
  %5611 = vrot.lane.b32.xlu0 %v5430, 16
  %v5612 = vpop.permute.xlu0 %5611
  %5613 = vrot.lane.b32.xlu0 %v5434, 16
  %v5614 = vpop.permute.xlu0 %5613
  %5615 = vrot.lane.b32.xlu0 %v5438, 16
  %v5616 = vpop.permute.xlu0 %5615
  %5617 = vrot.lane.b32.xlu0 %v5411, 16
  %v5618 = vpop.permute.xlu0 %5617
  %5619 = vrot.lane.b32.xlu0 %v5415, 16
  %v5620 = vpop.permute.xlu0 %5619
  %5621 = vrot.lane.b32.xlu0 %v5419, 16
  %v5622 = vpop.permute.xlu0 %5621
  %5623 = vrot.lane.b32.xlu0 %v5423, 16
  %v5624 = vpop.permute.xlu0 %5623
  %5625 = vrot.lane.b32.xlu0 %v5427, 16
  %v5626 = vpop.permute.xlu0 %5625
  %5627 = vrot.lane.b32.xlu0 %v5431, 16
  %v5628 = vpop.permute.xlu0 %5627
  %5629 = vrot.lane.b32.xlu0 %v5435, 16
  %v5630 = vpop.permute.xlu0 %5629
  %5631 = vrot.lane.b32.xlu0 %v5439, 16
  %v5632 = vpop.permute.xlu0 %5631
  %v5633 = vsel %vm100, %v5602, %v5618
  %v5634 = vsel %vm100, %v5604, %v5620
  %v5635 = vsel %vm100, %v5606, %v5622
  %v5636 = vsel %vm100, %v5608, %v5624
  %v5637 = vsel %vm100, %v5610, %v5626
  %v5638 = vsel %vm100, %v5612, %v5628
  %v5639 = vsel %vm100, %v5614, %v5630
  %v5640 = vsel %vm100, %v5616, %v5632
  %v5641 = vsel %vm100, %v5586, %v5602
  %v5642 = vsel %vm100, %v5588, %v5604
  %v5643 = vsel %vm100, %v5590, %v5606
  %v5644 = vsel %vm100, %v5592, %v5608
  %v5645 = vsel %vm100, %v5594, %v5610
  %v5646 = vsel %vm100, %v5596, %v5612
  %v5647 = vsel %vm100, %v5598, %v5614
  %v5648 = vsel %vm100, %v5600, %v5616
  %v5649 = vsel %vm100, %v5570, %v5586
  %v5650 = vsel %vm100, %v5572, %v5588
  %v5651 = vsel %vm100, %v5574, %v5590
  %v5652 = vsel %vm100, %v5576, %v5592
  %v5653 = vsel %vm100, %v5578, %v5594
  %v5654 = vsel %vm100, %v5580, %v5596
  %v5655 = vsel %vm100, %v5582, %v5598
  %v5656 = vsel %vm100, %v5584, %v5600
  %v5657 = vsel %vm100, %v5618, %v5570
  %v5658 = vsel %vm100, %v5620, %v5572
  %v5659 = vsel %vm100, %v5622, %v5574
  %v5660 = vsel %vm100, %v5624, %v5576
  %v5661 = vsel %vm100, %v5626, %v5578
  %v5662 = vsel %vm100, %v5628, %v5580
  %v5663 = vsel %vm100, %v5630, %v5582
  %v5664 = vsel %vm100, %v5632, %v5584
  %v5665 = vmul.f32 %v5657, %v109
  %v5666 = vmul.f32 %v5649, %v113
  %v5667 = vmul.f32 %v5641, %v117
  %v5668 = vmul.f32 %v5633, %v121
  %v5669 = vmul.f32 %v5658, %v109
  %v5670 = vmul.f32 %v5650, %v113
  %v5671 = vmul.f32 %v5642, %v117
  %v5672 = vmul.f32 %v5634, %v121
  %v5673 = vmul.f32 %v5659, %v109
  %v5674 = vmul.f32 %v5651, %v113
  %v5675 = vmul.f32 %v5643, %v117
  %v5676 = vmul.f32 %v5635, %v121
  %v5677 = vmul.f32 %v5660, %v109
  %v5678 = vmul.f32 %v5652, %v113
  %v5679 = vmul.f32 %v5644, %v117
  %v5680 = vmul.f32 %v5636, %v121
  %v5681 = vmul.f32 %v5661, %v109
  %v5682 = vmul.f32 %v5653, %v113
  %v5683 = vmul.f32 %v5645, %v117
  %v5684 = vmul.f32 %v5637, %v121
  %v5685 = vmul.f32 %v5662, %v109
  %v5686 = vmul.f32 %v5654, %v113
  %v5687 = vmul.f32 %v5646, %v117
  %v5688 = vmul.f32 %v5638, %v121
  %v5689 = vmul.f32 %v5663, %v109
  %v5690 = vmul.f32 %v5655, %v113
  %v5691 = vmul.f32 %v5647, %v117
  %v5692 = vmul.f32 %v5639, %v121
  %v5693 = vmul.f32 %v5664, %v109
  %v5694 = vmul.f32 %v5656, %v113
  %v5695 = vmul.f32 %v5648, %v117
  %v5696 = vmul.f32 %v5640, %v121
  %5698 = vrot.lane.b32.xlu0 %v5568, 64
  %v5699 = vpop.permute.xlu0 %5698
  %vm5700 = vcmask 523264
  %v5701 = vsel %vm5700, %v5699, 0
  %5703 = vmatprep.subr.mxu0 0.0
  %5704 = vmatpush1.msra.mxu0 0.0
  %5705 = vmatprep.subr.mxu0 0.0
  %5706 = vmatpush1.msra.mxu0 0.0
  %5707 = vmatprep.subr.mxu0 0.0
  %5708 = vmatpush1.msra.mxu0 0.0
  %5709 = vmatprep.subr.mxu0 0.0
  %5710 = vmatpush1.msra.mxu0 0.0
  %5711 = vmatprep.subr.mxu0 0.0
  %5712 = vmatpush1.msra.mxu0 0.0
  %5713 = vmatprep.subr.mxu0 0.0
  %5714 = vmatpush1.msra.mxu0 0.0
  %5715 = vmatprep.subr.mxu0 0.0
  %5716 = vmatpush1.msra.mxu0 0.0
  %5717 = vmatprep.subr.mxu0 0.0
  %5718 = vmatpush1.msra.mxu0 0.0
  %5719 = vmatprep.subr.mxu0 %v5694
  %5720 = vmatpush1.msra.mxu0 %v5693
  %5721 = vmatprep.subr.mxu0 %v5690
  %5722 = vmatpush1.msra.mxu0 %v5689
  %5723 = vmatprep.subr.mxu0 %v5686
  %5724 = vmatpush1.msra.mxu0 %v5685
  %5725 = vmatprep.subr.mxu0 %v5682
  %5726 = vmatpush1.msra.mxu0 %v5681
  %5727 = vmatprep.subr.mxu0 %v5678
  %5728 = vmatpush1.msra.mxu0 %v5677
  %5729 = vmatprep.subr.mxu0 %v5674
  %5730 = vmatpush1.msra.mxu0 %v5673
  %5731 = vmatprep.subr.mxu0 %v5670
  %5732 = vmatpush1.msra.mxu0 %v5669
  %5733 = vmatprep.subr.mxu0 %v5666
  %5734 = vmatpush1.msra.mxu0 %v5665
  %5735 = vmatprep.subr.mxu0 0.0
  %5736 = vmatpush2.msra.mxu0 0.0
  %5737 = vmatprep.subr.mxu0 0.0
  %5738 = vmatpush2.msra.mxu0 0.0
  %5739 = vmatprep.subr.mxu0 0.0
  %5740 = vmatpush2.msra.mxu0 0.0
  %5741 = vmatprep.subr.mxu0 0.0
  %5742 = vmatpush2.msra.mxu0 0.0
  %5743 = vmatprep.subr.mxu0 0.0
  %5744 = vmatpush2.msra.mxu0 0.0
  %5745 = vmatprep.subr.mxu0 0.0
  %5746 = vmatpush2.msra.mxu0 0.0
  %5747 = vmatprep.subr.mxu0 0.0
  %5748 = vmatpush2.msra.mxu0 0.0
  %5749 = vmatprep.subr.mxu0 0.0
  %5750 = vmatpush2.msra.mxu0 0.0
  %5751 = vmatprep.subr.mxu0 0.0
  %5752 = vmatpush2.msra.mxu0 0.0
  %5753 = vmatprep.subr.mxu0 0.0
  %5754 = vmatpush2.msra.mxu0 0.0
  %5755 = vmatprep.subr.mxu0 0.0
  %5756 = vmatpush2.msra.mxu0 0.0
  %5757 = vmatprep.subr.mxu0 0.0
  %5758 = vmatpush2.msra.mxu0 0.0
  %5759 = vmatprep.subr.mxu0 0.0
  %5760 = vmatpush2.msra.mxu0 0.0
  %5761 = vmatprep.subr.mxu0 0.0
  %5762 = vmatpush2.msra.mxu0 0.0
  %5763 = vmatprep.subr.mxu0 0.0
  %5764 = vmatpush2.msra.mxu0 0.0
  %5765 = vmatprep.subr.mxu0 0.0
  %5766 = vmatpush2.msra.mxu0 0.0
  %5767 = vmatprep.mubr.f32.mxu0 0.0
  %5768 = vmatmul.mubr.f32.gmra.mxu0 %v5701
  %v5769 = vpop.f32.mrf.mxu0
  %v5770 = vadd.f32 0.0, %v5769
  %v5771 = vpop.f32.mrf.mxu0
  %v5772 = vadd.f32 0.0, %v5771
  %5773 = vdwg.mxu0
  %5774 = vmatprep.subr.mxu0 0.0
  %5775 = vmatpush1.msra.mxu0 0.0
  %5776 = vmatprep.subr.mxu0 0.0
  %5777 = vmatpush1.msra.mxu0 0.0
  %5778 = vmatprep.subr.mxu0 0.0
  %5779 = vmatpush1.msra.mxu0 0.0
  %5780 = vmatprep.subr.mxu0 0.0
  %5781 = vmatpush1.msra.mxu0 0.0
  %5782 = vmatprep.subr.mxu0 0.0
  %5783 = vmatpush1.msra.mxu0 0.0
  %5784 = vmatprep.subr.mxu0 0.0
  %5785 = vmatpush1.msra.mxu0 0.0
  %5786 = vmatprep.subr.mxu0 0.0
  %5787 = vmatpush1.msra.mxu0 0.0
  %5788 = vmatprep.subr.mxu0 0.0
  %5789 = vmatpush1.msra.mxu0 0.0
  %5790 = vmatprep.subr.mxu0 %v5696
  %5791 = vmatpush1.msra.mxu0 %v5695
  %5792 = vmatprep.subr.mxu0 %v5692
  %5793 = vmatpush1.msra.mxu0 %v5691
  %5794 = vmatprep.subr.mxu0 %v5688
  %5795 = vmatpush1.msra.mxu0 %v5687
  %5796 = vmatprep.subr.mxu0 %v5684
  %5797 = vmatpush1.msra.mxu0 %v5683
  %5798 = vmatprep.subr.mxu0 %v5680
  %5799 = vmatpush1.msra.mxu0 %v5679
  %5800 = vmatprep.subr.mxu0 %v5676
  %5801 = vmatpush1.msra.mxu0 %v5675
  %5802 = vmatprep.subr.mxu0 %v5672
  %5803 = vmatpush1.msra.mxu0 %v5671
  %5804 = vmatprep.subr.mxu0 %v5668
  %5805 = vmatpush1.msra.mxu0 %v5667
  %5806 = vmatprep.subr.mxu0 0.0
  %5807 = vmatpush2.msra.mxu0 0.0
  %5808 = vmatprep.subr.mxu0 0.0
  %5809 = vmatpush2.msra.mxu0 0.0
  %5810 = vmatprep.subr.mxu0 0.0
  %5811 = vmatpush2.msra.mxu0 0.0
  %5812 = vmatprep.subr.mxu0 0.0
  %5813 = vmatpush2.msra.mxu0 0.0
  %5814 = vmatprep.subr.mxu0 0.0
  %5815 = vmatpush2.msra.mxu0 0.0
  %5816 = vmatprep.subr.mxu0 0.0
  %5817 = vmatpush2.msra.mxu0 0.0
  %5818 = vmatprep.subr.mxu0 0.0
  %5819 = vmatpush2.msra.mxu0 0.0
  %5820 = vmatprep.subr.mxu0 0.0
  %5821 = vmatpush2.msra.mxu0 0.0
  %5822 = vmatprep.subr.mxu0 0.0
  %5823 = vmatpush2.msra.mxu0 0.0
  %5824 = vmatprep.subr.mxu0 0.0
  %5825 = vmatpush2.msra.mxu0 0.0
  %5826 = vmatprep.subr.mxu0 0.0
  %5827 = vmatpush2.msra.mxu0 0.0
  %5828 = vmatprep.subr.mxu0 0.0
  %5829 = vmatpush2.msra.mxu0 0.0
  %5830 = vmatprep.subr.mxu0 0.0
  %5831 = vmatpush2.msra.mxu0 0.0
  %5832 = vmatprep.subr.mxu0 0.0
  %5833 = vmatpush2.msra.mxu0 0.0
  %5834 = vmatprep.subr.mxu0 0.0
  %5835 = vmatpush2.msra.mxu0 0.0
  %5836 = vmatprep.subr.mxu0 0.0
  %5837 = vmatpush2.msra.mxu0 0.0
  %5838 = vmatprep.mubr.f32.mxu0 0.0
  %5839 = vmatmul.mubr.f32.gmra.mxu0 %v5701
  %v5840 = vpop.f32.mrf.mxu0
  %v5841 = vadd.f32 0.0, %v5840
  %v5842 = vpop.f32.mrf.mxu0
  %v5843 = vadd.f32 0.0, %v5842
  %5844 = vdwg.mxu0
  %v5845 = vsel %vm5700, %v5568, 0
  %5847 = vmatprep.subr.mxu0 0.0
  %5848 = vmatpush1.msra.mxu0 0.0
  %5849 = vmatprep.subr.mxu0 0.0
  %5850 = vmatpush1.msra.mxu0 0.0
  %5851 = vmatprep.subr.mxu0 0.0
  %5852 = vmatpush1.msra.mxu0 0.0
  %5853 = vmatprep.subr.mxu0 0.0
  %5854 = vmatpush1.msra.mxu0 0.0
  %5855 = vmatprep.subr.mxu0 0.0
  %5856 = vmatpush1.msra.mxu0 0.0
  %5857 = vmatprep.subr.mxu0 0.0
  %5858 = vmatpush1.msra.mxu0 0.0
  %5859 = vmatprep.subr.mxu0 0.0
  %5860 = vmatpush1.msra.mxu0 0.0
  %5861 = vmatprep.subr.mxu0 0.0
  %5862 = vmatpush1.msra.mxu0 0.0
  %5863 = vmatprep.subr.mxu0 %v5565
  %5864 = vmatpush1.msra.mxu0 %v5564
  %5865 = vmatprep.subr.mxu0 %v5561
  %5866 = vmatpush1.msra.mxu0 %v5560
  %5867 = vmatprep.subr.mxu0 %v5557
  %5868 = vmatpush1.msra.mxu0 %v5556
  %5869 = vmatprep.subr.mxu0 %v5553
  %5870 = vmatpush1.msra.mxu0 %v5552
  %5871 = vmatprep.subr.mxu0 %v5549
  %5872 = vmatpush1.msra.mxu0 %v5548
  %5873 = vmatprep.subr.mxu0 %v5545
  %5874 = vmatpush1.msra.mxu0 %v5544
  %5875 = vmatprep.subr.mxu0 %v5541
  %5876 = vmatpush1.msra.mxu0 %v5540
  %5877 = vmatprep.subr.mxu0 %v5537
  %5878 = vmatpush1.msra.mxu0 %v5536
  %5879 = vmatprep.subr.mxu0 0.0
  %5880 = vmatpush2.msra.mxu0 0.0
  %5881 = vmatprep.subr.mxu0 0.0
  %5882 = vmatpush2.msra.mxu0 0.0
  %5883 = vmatprep.subr.mxu0 0.0
  %5884 = vmatpush2.msra.mxu0 0.0
  %5885 = vmatprep.subr.mxu0 0.0
  %5886 = vmatpush2.msra.mxu0 0.0
  %5887 = vmatprep.subr.mxu0 0.0
  %5888 = vmatpush2.msra.mxu0 0.0
  %5889 = vmatprep.subr.mxu0 0.0
  %5890 = vmatpush2.msra.mxu0 0.0
  %5891 = vmatprep.subr.mxu0 0.0
  %5892 = vmatpush2.msra.mxu0 0.0
  %5893 = vmatprep.subr.mxu0 0.0
  %5894 = vmatpush2.msra.mxu0 0.0
  %5895 = vmatprep.subr.mxu0 0.0
  %5896 = vmatpush2.msra.mxu0 0.0
  %5897 = vmatprep.subr.mxu0 0.0
  %5898 = vmatpush2.msra.mxu0 0.0
  %5899 = vmatprep.subr.mxu0 0.0
  %5900 = vmatpush2.msra.mxu0 0.0
  %5901 = vmatprep.subr.mxu0 0.0
  %5902 = vmatpush2.msra.mxu0 0.0
  %5903 = vmatprep.subr.mxu0 0.0
  %5904 = vmatpush2.msra.mxu0 0.0
  %5905 = vmatprep.subr.mxu0 0.0
  %5906 = vmatpush2.msra.mxu0 0.0
  %5907 = vmatprep.subr.mxu0 0.0
  %5908 = vmatpush2.msra.mxu0 0.0
  %5909 = vmatprep.subr.mxu0 0.0
  %5910 = vmatpush2.msra.mxu0 0.0
  %5911 = vmatprep.mubr.f32.mxu0 0.0
  %5912 = vmatmul.mubr.f32.gmra.mxu0 %v5845
  %v5913 = vpop.f32.mrf.mxu0
  %v5914 = vadd.f32 %v5770, %v5913
  %v5915 = vpop.f32.mrf.mxu0
  %v5916 = vadd.f32 %v5772, %v5915
  %5917 = vdwg.mxu0
  %5918 = vmatprep.subr.mxu0 0.0
  %5919 = vmatpush1.msra.mxu0 0.0
  %5920 = vmatprep.subr.mxu0 0.0
  %5921 = vmatpush1.msra.mxu0 0.0
  %5922 = vmatprep.subr.mxu0 0.0
  %5923 = vmatpush1.msra.mxu0 0.0
  %5924 = vmatprep.subr.mxu0 0.0
  %5925 = vmatpush1.msra.mxu0 0.0
  %5926 = vmatprep.subr.mxu0 0.0
  %5927 = vmatpush1.msra.mxu0 0.0
  %5928 = vmatprep.subr.mxu0 0.0
  %5929 = vmatpush1.msra.mxu0 0.0
  %5930 = vmatprep.subr.mxu0 0.0
  %5931 = vmatpush1.msra.mxu0 0.0
  %5932 = vmatprep.subr.mxu0 0.0
  %5933 = vmatpush1.msra.mxu0 0.0
  %5934 = vmatprep.subr.mxu0 %v5567
  %5935 = vmatpush1.msra.mxu0 %v5566
  %5936 = vmatprep.subr.mxu0 %v5563
  %5937 = vmatpush1.msra.mxu0 %v5562
  %5938 = vmatprep.subr.mxu0 %v5559
  %5939 = vmatpush1.msra.mxu0 %v5558
  %5940 = vmatprep.subr.mxu0 %v5555
  %5941 = vmatpush1.msra.mxu0 %v5554
  %5942 = vmatprep.subr.mxu0 %v5551
  %5943 = vmatpush1.msra.mxu0 %v5550
  %5944 = vmatprep.subr.mxu0 %v5547
  %5945 = vmatpush1.msra.mxu0 %v5546
  %5946 = vmatprep.subr.mxu0 %v5543
  %5947 = vmatpush1.msra.mxu0 %v5542
  %5948 = vmatprep.subr.mxu0 %v5539
  %5949 = vmatpush1.msra.mxu0 %v5538
  %5950 = vmatprep.subr.mxu0 0.0
  %5951 = vmatpush2.msra.mxu0 0.0
  %5952 = vmatprep.subr.mxu0 0.0
  %5953 = vmatpush2.msra.mxu0 0.0
  %5954 = vmatprep.subr.mxu0 0.0
  %5955 = vmatpush2.msra.mxu0 0.0
  %5956 = vmatprep.subr.mxu0 0.0
  %5957 = vmatpush2.msra.mxu0 0.0
  %5958 = vmatprep.subr.mxu0 0.0
  %5959 = vmatpush2.msra.mxu0 0.0
  %5960 = vmatprep.subr.mxu0 0.0
  %5961 = vmatpush2.msra.mxu0 0.0
  %5962 = vmatprep.subr.mxu0 0.0
  %5963 = vmatpush2.msra.mxu0 0.0
  %5964 = vmatprep.subr.mxu0 0.0
  %5965 = vmatpush2.msra.mxu0 0.0
  %5966 = vmatprep.subr.mxu0 0.0
  %5967 = vmatpush2.msra.mxu0 0.0
  %5968 = vmatprep.subr.mxu0 0.0
  %5969 = vmatpush2.msra.mxu0 0.0
  %5970 = vmatprep.subr.mxu0 0.0
  %5971 = vmatpush2.msra.mxu0 0.0
  %5972 = vmatprep.subr.mxu0 0.0
  %5973 = vmatpush2.msra.mxu0 0.0
  %5974 = vmatprep.subr.mxu0 0.0
  %5975 = vmatpush2.msra.mxu0 0.0
  %5976 = vmatprep.subr.mxu0 0.0
  %5977 = vmatpush2.msra.mxu0 0.0
  %5978 = vmatprep.subr.mxu0 0.0
  %5979 = vmatpush2.msra.mxu0 0.0
  %5980 = vmatprep.subr.mxu0 0.0
  %5981 = vmatpush2.msra.mxu0 0.0
  %5982 = vmatprep.mubr.f32.mxu0 0.0
  %5983 = vmatmul.mubr.f32.gmra.mxu0 %v5845
  %v5984 = vpop.f32.mrf.mxu0
  %v5985 = vadd.f32 %v5841, %v5984
  %v5986 = vpop.f32.mrf.mxu0
  %v5987 = vadd.f32 %v5843, %v5986
  %5988 = vdwg.mxu0
  %5989 = vrot.lane.b32.xlu0 %v5408, 15
  %v5990 = vpop.permute.xlu0 %5989
  %5991 = vrot.lane.b32.xlu0 %v5412, 15
  %v5992 = vpop.permute.xlu0 %5991
  %5993 = vrot.lane.b32.xlu0 %v5416, 15
  %v5994 = vpop.permute.xlu0 %5993
  %5995 = vrot.lane.b32.xlu0 %v5420, 15
  %v5996 = vpop.permute.xlu0 %5995
  %5997 = vrot.lane.b32.xlu0 %v5424, 15
  %v5998 = vpop.permute.xlu0 %5997
  %5999 = vrot.lane.b32.xlu0 %v5428, 15
  %v6000 = vpop.permute.xlu0 %5999
  %6001 = vrot.lane.b32.xlu0 %v5432, 15
  %v6002 = vpop.permute.xlu0 %6001
  %6003 = vrot.lane.b32.xlu0 %v5436, 15
  %v6004 = vpop.permute.xlu0 %6003
  %6005 = vrot.lane.b32.xlu0 %v5409, 15
  %v6006 = vpop.permute.xlu0 %6005
  %6007 = vrot.lane.b32.xlu0 %v5413, 15
  %v6008 = vpop.permute.xlu0 %6007
  %6009 = vrot.lane.b32.xlu0 %v5417, 15
  %v6010 = vpop.permute.xlu0 %6009
  %6011 = vrot.lane.b32.xlu0 %v5421, 15
  %v6012 = vpop.permute.xlu0 %6011
  %6013 = vrot.lane.b32.xlu0 %v5425, 15
  %v6014 = vpop.permute.xlu0 %6013
  %6015 = vrot.lane.b32.xlu0 %v5429, 15
  %v6016 = vpop.permute.xlu0 %6015
  %6017 = vrot.lane.b32.xlu0 %v5433, 15
  %v6018 = vpop.permute.xlu0 %6017
  %6019 = vrot.lane.b32.xlu0 %v5437, 15
  %v6020 = vpop.permute.xlu0 %6019
  %6021 = vrot.lane.b32.xlu0 %v5410, 15
  %v6022 = vpop.permute.xlu0 %6021
  %6023 = vrot.lane.b32.xlu0 %v5414, 15
  %v6024 = vpop.permute.xlu0 %6023
  %6025 = vrot.lane.b32.xlu0 %v5418, 15
  %v6026 = vpop.permute.xlu0 %6025
  %6027 = vrot.lane.b32.xlu0 %v5422, 15
  %v6028 = vpop.permute.xlu0 %6027
  %6029 = vrot.lane.b32.xlu0 %v5426, 15
  %v6030 = vpop.permute.xlu0 %6029
  %6031 = vrot.lane.b32.xlu0 %v5430, 15
  %v6032 = vpop.permute.xlu0 %6031
  %6033 = vrot.lane.b32.xlu0 %v5434, 15
  %v6034 = vpop.permute.xlu0 %6033
  %6035 = vrot.lane.b32.xlu0 %v5438, 15
  %v6036 = vpop.permute.xlu0 %6035
  %6037 = vrot.lane.b32.xlu0 %v5411, 15
  %v6038 = vpop.permute.xlu0 %6037
  %6039 = vrot.lane.b32.xlu0 %v5415, 15
  %v6040 = vpop.permute.xlu0 %6039
  %6041 = vrot.lane.b32.xlu0 %v5419, 15
  %v6042 = vpop.permute.xlu0 %6041
  %6043 = vrot.lane.b32.xlu0 %v5423, 15
  %v6044 = vpop.permute.xlu0 %6043
  %6045 = vrot.lane.b32.xlu0 %v5427, 15
  %v6046 = vpop.permute.xlu0 %6045
  %6047 = vrot.lane.b32.xlu0 %v5431, 15
  %v6048 = vpop.permute.xlu0 %6047
  %6049 = vrot.lane.b32.xlu0 %v5435, 15
  %v6050 = vpop.permute.xlu0 %6049
  %6051 = vrot.lane.b32.xlu0 %v5439, 15
  %v6052 = vpop.permute.xlu0 %6051
  %v6053 = vsel %vm523, %v6022, %v6038
  %v6054 = vsel %vm523, %v6024, %v6040
  %v6055 = vsel %vm523, %v6026, %v6042
  %v6056 = vsel %vm523, %v6028, %v6044
  %v6057 = vsel %vm523, %v6030, %v6046
  %v6058 = vsel %vm523, %v6032, %v6048
  %v6059 = vsel %vm523, %v6034, %v6050
  %v6060 = vsel %vm523, %v6036, %v6052
  %v6061 = vsel %vm523, %v6006, %v6022
  %v6062 = vsel %vm523, %v6008, %v6024
  %v6063 = vsel %vm523, %v6010, %v6026
  %v6064 = vsel %vm523, %v6012, %v6028
  %v6065 = vsel %vm523, %v6014, %v6030
  %v6066 = vsel %vm523, %v6016, %v6032
  %v6067 = vsel %vm523, %v6018, %v6034
  %v6068 = vsel %vm523, %v6020, %v6036
  %v6069 = vsel %vm523, %v5990, %v6006
  %v6070 = vsel %vm523, %v5992, %v6008
  %v6071 = vsel %vm523, %v5994, %v6010
  %v6072 = vsel %vm523, %v5996, %v6012
  %v6073 = vsel %vm523, %v5998, %v6014
  %v6074 = vsel %vm523, %v6000, %v6016
  %v6075 = vsel %vm523, %v6002, %v6018
  %v6076 = vsel %vm523, %v6004, %v6020
  %v6077 = vsel %vm523, %v6038, %v5990
  %v6078 = vsel %vm523, %v6040, %v5992
  %v6079 = vsel %vm523, %v6042, %v5994
  %v6080 = vsel %vm523, %v6044, %v5996
  %v6081 = vsel %vm523, %v6046, %v5998
  %v6082 = vsel %vm523, %v6048, %v6000
  %v6083 = vsel %vm523, %v6050, %v6002
  %v6084 = vsel %vm523, %v6052, %v6004
  %v6085 = vmul.f32 %v6077, %v532
  %v6086 = vmul.f32 %v6069, %v536
  %v6087 = vmul.f32 %v6061, %v540
  %v6088 = vmul.f32 %v6053, %v544
  %v6089 = vmul.f32 %v6078, %v532
  %v6090 = vmul.f32 %v6070, %v536
  %v6091 = vmul.f32 %v6062, %v540
  %v6092 = vmul.f32 %v6054, %v544
  %v6093 = vmul.f32 %v6079, %v532
  %v6094 = vmul.f32 %v6071, %v536
  %v6095 = vmul.f32 %v6063, %v540
  %v6096 = vmul.f32 %v6055, %v544
  %v6097 = vmul.f32 %v6080, %v532
  %v6098 = vmul.f32 %v6072, %v536
  %v6099 = vmul.f32 %v6064, %v540
  %v6100 = vmul.f32 %v6056, %v544
  %v6101 = vmul.f32 %v6081, %v532
  %v6102 = vmul.f32 %v6073, %v536
  %v6103 = vmul.f32 %v6065, %v540
  %v6104 = vmul.f32 %v6057, %v544
  %v6105 = vmul.f32 %v6082, %v532
  %v6106 = vmul.f32 %v6074, %v536
  %v6107 = vmul.f32 %v6066, %v540
  %v6108 = vmul.f32 %v6058, %v544
  %v6109 = vmul.f32 %v6083, %v532
  %v6110 = vmul.f32 %v6075, %v536
  %v6111 = vmul.f32 %v6067, %v540
  %v6112 = vmul.f32 %v6059, %v544
  %v6113 = vmul.f32 %v6084, %v532
  %v6114 = vmul.f32 %v6076, %v536
  %v6115 = vmul.f32 %v6068, %v540
  %v6116 = vmul.f32 %v6060, %v544
  %v6117 = vld [vmem:[%s6 + $0x8] sm:$0xff]
  %v6119 = vsel %vm5700, %v6117, 0
  %6121 = vmatprep.subr.mxu0 0.0
  %6122 = vmatpush1.msra.mxu0 0.0
  %6123 = vmatprep.subr.mxu0 0.0
  %6124 = vmatpush1.msra.mxu0 0.0
  %6125 = vmatprep.subr.mxu0 0.0
  %6126 = vmatpush1.msra.mxu0 0.0
  %6127 = vmatprep.subr.mxu0 0.0
  %6128 = vmatpush1.msra.mxu0 0.0
  %6129 = vmatprep.subr.mxu0 0.0
  %6130 = vmatpush1.msra.mxu0 0.0
  %6131 = vmatprep.subr.mxu0 0.0
  %6132 = vmatpush1.msra.mxu0 0.0
  %6133 = vmatprep.subr.mxu0 0.0
  %6134 = vmatpush1.msra.mxu0 0.0
  %6135 = vmatprep.subr.mxu0 0.0
  %6136 = vmatpush1.msra.mxu0 0.0
  %6137 = vmatprep.subr.mxu0 %v6114
  %6138 = vmatpush1.msra.mxu0 %v6113
  %6139 = vmatprep.subr.mxu0 %v6110
  %6140 = vmatpush1.msra.mxu0 %v6109
  %6141 = vmatprep.subr.mxu0 %v6106
  %6142 = vmatpush1.msra.mxu0 %v6105
  %6143 = vmatprep.subr.mxu0 %v6102
  %6144 = vmatpush1.msra.mxu0 %v6101
  %6145 = vmatprep.subr.mxu0 %v6098
  %6146 = vmatpush1.msra.mxu0 %v6097
  %6147 = vmatprep.subr.mxu0 %v6094
  %6148 = vmatpush1.msra.mxu0 %v6093
  %6149 = vmatprep.subr.mxu0 %v6090
  %6150 = vmatpush1.msra.mxu0 %v6089
  %6151 = vmatprep.subr.mxu0 %v6086
  %6152 = vmatpush1.msra.mxu0 %v6085
  %6153 = vmatprep.subr.mxu0 0.0
  %6154 = vmatpush2.msra.mxu0 0.0
  %6155 = vmatprep.subr.mxu0 0.0
  %6156 = vmatpush2.msra.mxu0 0.0
  %6157 = vmatprep.subr.mxu0 0.0
  %6158 = vmatpush2.msra.mxu0 0.0
  %6159 = vmatprep.subr.mxu0 0.0
  %6160 = vmatpush2.msra.mxu0 0.0
  %6161 = vmatprep.subr.mxu0 0.0
  %6162 = vmatpush2.msra.mxu0 0.0
  %6163 = vmatprep.subr.mxu0 0.0
  %6164 = vmatpush2.msra.mxu0 0.0
  %6165 = vmatprep.subr.mxu0 0.0
  %6166 = vmatpush2.msra.mxu0 0.0
  %6167 = vmatprep.subr.mxu0 0.0
  %6168 = vmatpush2.msra.mxu0 0.0
  %6169 = vmatprep.subr.mxu0 0.0
  %6170 = vmatpush2.msra.mxu0 0.0
  %6171 = vmatprep.subr.mxu0 0.0
  %6172 = vmatpush2.msra.mxu0 0.0
  %6173 = vmatprep.subr.mxu0 0.0
  %6174 = vmatpush2.msra.mxu0 0.0
  %6175 = vmatprep.subr.mxu0 0.0
  %6176 = vmatpush2.msra.mxu0 0.0
  %6177 = vmatprep.subr.mxu0 0.0
  %6178 = vmatpush2.msra.mxu0 0.0
  %6179 = vmatprep.subr.mxu0 0.0
  %6180 = vmatpush2.msra.mxu0 0.0
  %6181 = vmatprep.subr.mxu0 0.0
  %6182 = vmatpush2.msra.mxu0 0.0
  %6183 = vmatprep.subr.mxu0 0.0
  %6184 = vmatpush2.msra.mxu0 0.0
  %6185 = vmatprep.mubr.f32.mxu0 0.0
  %6186 = vmatmul.mubr.f32.gmra.mxu0 %v6119
  %v6187 = vpop.f32.mrf.mxu0
  %v6188 = vadd.f32 0.0, %v6187
  %v6189 = vpop.f32.mrf.mxu0
  %v6190 = vadd.f32 0.0, %v6189
  %6191 = vdwg.mxu0
  %6192 = vmatprep.subr.mxu0 0.0
  %6193 = vmatpush1.msra.mxu0 0.0
  %6194 = vmatprep.subr.mxu0 0.0
  %6195 = vmatpush1.msra.mxu0 0.0
  %6196 = vmatprep.subr.mxu0 0.0
  %6197 = vmatpush1.msra.mxu0 0.0
  %6198 = vmatprep.subr.mxu0 0.0
  %6199 = vmatpush1.msra.mxu0 0.0
  %6200 = vmatprep.subr.mxu0 0.0
  %6201 = vmatpush1.msra.mxu0 0.0
  %6202 = vmatprep.subr.mxu0 0.0
  %6203 = vmatpush1.msra.mxu0 0.0
  %6204 = vmatprep.subr.mxu0 0.0
  %6205 = vmatpush1.msra.mxu0 0.0
  %6206 = vmatprep.subr.mxu0 0.0
  %6207 = vmatpush1.msra.mxu0 0.0
  %6208 = vmatprep.subr.mxu0 %v6116
  %6209 = vmatpush1.msra.mxu0 %v6115
  %6210 = vmatprep.subr.mxu0 %v6112
  %6211 = vmatpush1.msra.mxu0 %v6111
  %6212 = vmatprep.subr.mxu0 %v6108
  %6213 = vmatpush1.msra.mxu0 %v6107
  %6214 = vmatprep.subr.mxu0 %v6104
  %6215 = vmatpush1.msra.mxu0 %v6103
  %6216 = vmatprep.subr.mxu0 %v6100
  %6217 = vmatpush1.msra.mxu0 %v6099
  %6218 = vmatprep.subr.mxu0 %v6096
  %6219 = vmatpush1.msra.mxu0 %v6095
  %6220 = vmatprep.subr.mxu0 %v6092
  %6221 = vmatpush1.msra.mxu0 %v6091
  %6222 = vmatprep.subr.mxu0 %v6088
  %6223 = vmatpush1.msra.mxu0 %v6087
  %6224 = vmatprep.subr.mxu0 0.0
  %6225 = vmatpush2.msra.mxu0 0.0
  %6226 = vmatprep.subr.mxu0 0.0
  %6227 = vmatpush2.msra.mxu0 0.0
  %6228 = vmatprep.subr.mxu0 0.0
  %6229 = vmatpush2.msra.mxu0 0.0
  %6230 = vmatprep.subr.mxu0 0.0
  %6231 = vmatpush2.msra.mxu0 0.0
  %6232 = vmatprep.subr.mxu0 0.0
  %6233 = vmatpush2.msra.mxu0 0.0
  %6234 = vmatprep.subr.mxu0 0.0
  %6235 = vmatpush2.msra.mxu0 0.0
  %6236 = vmatprep.subr.mxu0 0.0
  %6237 = vmatpush2.msra.mxu0 0.0
  %6238 = vmatprep.subr.mxu0 0.0
  %6239 = vmatpush2.msra.mxu0 0.0
  %6240 = vmatprep.subr.mxu0 0.0
  %6241 = vmatpush2.msra.mxu0 0.0
  %6242 = vmatprep.subr.mxu0 0.0
  %6243 = vmatpush2.msra.mxu0 0.0
  %6244 = vmatprep.subr.mxu0 0.0
  %6245 = vmatpush2.msra.mxu0 0.0
  %6246 = vmatprep.subr.mxu0 0.0
  %6247 = vmatpush2.msra.mxu0 0.0
  %6248 = vmatprep.subr.mxu0 0.0
  %6249 = vmatpush2.msra.mxu0 0.0
  %6250 = vmatprep.subr.mxu0 0.0
  %6251 = vmatpush2.msra.mxu0 0.0
  %6252 = vmatprep.subr.mxu0 0.0
  %6253 = vmatpush2.msra.mxu0 0.0
  %6254 = vmatprep.subr.mxu0 0.0
  %6255 = vmatpush2.msra.mxu0 0.0
  %6256 = vmatprep.mubr.f32.mxu0 0.0
  %6257 = vmatmul.mubr.f32.gmra.mxu0 %v6119
  %v6258 = vpop.f32.mrf.mxu0
  %v6259 = vadd.f32 0.0, %v6258
  %v6260 = vpop.f32.mrf.mxu0
  %v6261 = vadd.f32 0.0, %v6260
  %6262 = vdwg.mxu0
  %v6263 = vadd.f32 %v5914, %v6188
  %v6264 = vadd.f32 %v5916, %v6190
  %v6265 = vadd.f32 %v5985, %v6259
  %v6266 = vadd.f32 %v5987, %v6261
  %6267 = vrot.lane.b32.xlu0 %v5408, 1
  %v6268 = vpop.permute.xlu0 %6267
  %6269 = vrot.lane.b32.xlu0 %v5412, 1
  %v6270 = vpop.permute.xlu0 %6269
  %6271 = vrot.lane.b32.xlu0 %v5416, 1
  %v6272 = vpop.permute.xlu0 %6271
  %6273 = vrot.lane.b32.xlu0 %v5420, 1
  %v6274 = vpop.permute.xlu0 %6273
  %6275 = vrot.lane.b32.xlu0 %v5424, 1
  %v6276 = vpop.permute.xlu0 %6275
  %6277 = vrot.lane.b32.xlu0 %v5428, 1
  %v6278 = vpop.permute.xlu0 %6277
  %6279 = vrot.lane.b32.xlu0 %v5432, 1
  %v6280 = vpop.permute.xlu0 %6279
  %6281 = vrot.lane.b32.xlu0 %v5436, 1
  %v6282 = vpop.permute.xlu0 %6281
  %6283 = vrot.lane.b32.xlu0 %v5409, 1
  %v6284 = vpop.permute.xlu0 %6283
  %6285 = vrot.lane.b32.xlu0 %v5413, 1
  %v6286 = vpop.permute.xlu0 %6285
  %6287 = vrot.lane.b32.xlu0 %v5417, 1
  %v6288 = vpop.permute.xlu0 %6287
  %6289 = vrot.lane.b32.xlu0 %v5421, 1
  %v6290 = vpop.permute.xlu0 %6289
  %6291 = vrot.lane.b32.xlu0 %v5425, 1
  %v6292 = vpop.permute.xlu0 %6291
  %6293 = vrot.lane.b32.xlu0 %v5429, 1
  %v6294 = vpop.permute.xlu0 %6293
  %6295 = vrot.lane.b32.xlu0 %v5433, 1
  %v6296 = vpop.permute.xlu0 %6295
  %6297 = vrot.lane.b32.xlu0 %v5437, 1
  %v6298 = vpop.permute.xlu0 %6297
  %6299 = vrot.lane.b32.xlu0 %v5410, 1
  %v6300 = vpop.permute.xlu0 %6299
  %6301 = vrot.lane.b32.xlu0 %v5414, 1
  %v6302 = vpop.permute.xlu0 %6301
  %6303 = vrot.lane.b32.xlu0 %v5418, 1
  %v6304 = vpop.permute.xlu0 %6303
  %6305 = vrot.lane.b32.xlu0 %v5422, 1
  %v6306 = vpop.permute.xlu0 %6305
  %6307 = vrot.lane.b32.xlu0 %v5426, 1
  %v6308 = vpop.permute.xlu0 %6307
  %6309 = vrot.lane.b32.xlu0 %v5430, 1
  %v6310 = vpop.permute.xlu0 %6309
  %6311 = vrot.lane.b32.xlu0 %v5434, 1
  %v6312 = vpop.permute.xlu0 %6311
  %6313 = vrot.lane.b32.xlu0 %v5438, 1
  %v6314 = vpop.permute.xlu0 %6313
  %6315 = vrot.lane.b32.xlu0 %v5411, 1
  %v6316 = vpop.permute.xlu0 %6315
  %6317 = vrot.lane.b32.xlu0 %v5415, 1
  %v6318 = vpop.permute.xlu0 %6317
  %6319 = vrot.lane.b32.xlu0 %v5419, 1
  %v6320 = vpop.permute.xlu0 %6319
  %6321 = vrot.lane.b32.xlu0 %v5423, 1
  %v6322 = vpop.permute.xlu0 %6321
  %6323 = vrot.lane.b32.xlu0 %v5427, 1
  %v6324 = vpop.permute.xlu0 %6323
  %6325 = vrot.lane.b32.xlu0 %v5431, 1
  %v6326 = vpop.permute.xlu0 %6325
  %6327 = vrot.lane.b32.xlu0 %v5435, 1
  %v6328 = vpop.permute.xlu0 %6327
  %6329 = vrot.lane.b32.xlu0 %v5439, 1
  %v6330 = vpop.permute.xlu0 %6329
  %v6331 = vsel %vm771, %v6300, %v6316
  %v6332 = vsel %vm771, %v6302, %v6318
  %v6333 = vsel %vm771, %v6304, %v6320
  %v6334 = vsel %vm771, %v6306, %v6322
  %v6335 = vsel %vm771, %v6308, %v6324
  %v6336 = vsel %vm771, %v6310, %v6326
  %v6337 = vsel %vm771, %v6312, %v6328
  %v6338 = vsel %vm771, %v6314, %v6330
  %v6339 = vsel %vm771, %v6284, %v6300
  %v6340 = vsel %vm771, %v6286, %v6302
  %v6341 = vsel %vm771, %v6288, %v6304
  %v6342 = vsel %vm771, %v6290, %v6306
  %v6343 = vsel %vm771, %v6292, %v6308
  %v6344 = vsel %vm771, %v6294, %v6310
  %v6345 = vsel %vm771, %v6296, %v6312
  %v6346 = vsel %vm771, %v6298, %v6314
  %v6347 = vsel %vm771, %v6268, %v6284
  %v6348 = vsel %vm771, %v6270, %v6286
  %v6349 = vsel %vm771, %v6272, %v6288
  %v6350 = vsel %vm771, %v6274, %v6290
  %v6351 = vsel %vm771, %v6276, %v6292
  %v6352 = vsel %vm771, %v6278, %v6294
  %v6353 = vsel %vm771, %v6280, %v6296
  %v6354 = vsel %vm771, %v6282, %v6298
  %v6355 = vsel %vm771, %v6316, %v6268
  %v6356 = vsel %vm771, %v6318, %v6270
  %v6357 = vsel %vm771, %v6320, %v6272
  %v6358 = vsel %vm771, %v6322, %v6274
  %v6359 = vsel %vm771, %v6324, %v6276
  %v6360 = vsel %vm771, %v6326, %v6278
  %v6361 = vsel %vm771, %v6328, %v6280
  %v6362 = vsel %vm771, %v6330, %v6282
  %v6363 = vmul.f32 %v6355, %v780
  %v6364 = vmul.f32 %v6347, %v784
  %v6365 = vmul.f32 %v6339, %v788
  %v6366 = vmul.f32 %v6331, %v792
  %v6367 = vmul.f32 %v6356, %v780
  %v6368 = vmul.f32 %v6348, %v784
  %v6369 = vmul.f32 %v6340, %v788
  %v6370 = vmul.f32 %v6332, %v792
  %v6371 = vmul.f32 %v6357, %v780
  %v6372 = vmul.f32 %v6349, %v784
  %v6373 = vmul.f32 %v6341, %v788
  %v6374 = vmul.f32 %v6333, %v792
  %v6375 = vmul.f32 %v6358, %v780
  %v6376 = vmul.f32 %v6350, %v784
  %v6377 = vmul.f32 %v6342, %v788
  %v6378 = vmul.f32 %v6334, %v792
  %v6379 = vmul.f32 %v6359, %v780
  %v6380 = vmul.f32 %v6351, %v784
  %v6381 = vmul.f32 %v6343, %v788
  %v6382 = vmul.f32 %v6335, %v792
  %v6383 = vmul.f32 %v6360, %v780
  %v6384 = vmul.f32 %v6352, %v784
  %v6385 = vmul.f32 %v6344, %v788
  %v6386 = vmul.f32 %v6336, %v792
  %v6387 = vmul.f32 %v6361, %v780
  %v6388 = vmul.f32 %v6353, %v784
  %v6389 = vmul.f32 %v6345, %v788
  %v6390 = vmul.f32 %v6337, %v792
  %v6391 = vmul.f32 %v6362, %v780
  %v6392 = vmul.f32 %v6354, %v784
  %v6393 = vmul.f32 %v6346, %v788
  %v6394 = vmul.f32 %v6338, %v792
  %6395 = vrot.lane.b32.xlu0 %v6117, 64
  %v6396 = vpop.permute.xlu0 %6395
  %v6397 = vsel %vm5700, %v6396, 0
  %6399 = vmatprep.subr.mxu0 0.0
  %6400 = vmatpush1.msra.mxu0 0.0
  %6401 = vmatprep.subr.mxu0 0.0
  %6402 = vmatpush1.msra.mxu0 0.0
  %6403 = vmatprep.subr.mxu0 0.0
  %6404 = vmatpush1.msra.mxu0 0.0
  %6405 = vmatprep.subr.mxu0 0.0
  %6406 = vmatpush1.msra.mxu0 0.0
  %6407 = vmatprep.subr.mxu0 0.0
  %6408 = vmatpush1.msra.mxu0 0.0
  %6409 = vmatprep.subr.mxu0 0.0
  %6410 = vmatpush1.msra.mxu0 0.0
  %6411 = vmatprep.subr.mxu0 0.0
  %6412 = vmatpush1.msra.mxu0 0.0
  %6413 = vmatprep.subr.mxu0 0.0
  %6414 = vmatpush1.msra.mxu0 0.0
  %6415 = vmatprep.subr.mxu0 %v6392
  %6416 = vmatpush1.msra.mxu0 %v6391
  %6417 = vmatprep.subr.mxu0 %v6388
  %6418 = vmatpush1.msra.mxu0 %v6387
  %6419 = vmatprep.subr.mxu0 %v6384
  %6420 = vmatpush1.msra.mxu0 %v6383
  %6421 = vmatprep.subr.mxu0 %v6380
  %6422 = vmatpush1.msra.mxu0 %v6379
  %6423 = vmatprep.subr.mxu0 %v6376
  %6424 = vmatpush1.msra.mxu0 %v6375
  %6425 = vmatprep.subr.mxu0 %v6372
  %6426 = vmatpush1.msra.mxu0 %v6371
  %6427 = vmatprep.subr.mxu0 %v6368
  %6428 = vmatpush1.msra.mxu0 %v6367
  %6429 = vmatprep.subr.mxu0 %v6364
  %6430 = vmatpush1.msra.mxu0 %v6363
  %6431 = vmatprep.subr.mxu0 0.0
  %6432 = vmatpush2.msra.mxu0 0.0
  %6433 = vmatprep.subr.mxu0 0.0
  %6434 = vmatpush2.msra.mxu0 0.0
  %6435 = vmatprep.subr.mxu0 0.0
  %6436 = vmatpush2.msra.mxu0 0.0
  %6437 = vmatprep.subr.mxu0 0.0
  %6438 = vmatpush2.msra.mxu0 0.0
  %6439 = vmatprep.subr.mxu0 0.0
  %6440 = vmatpush2.msra.mxu0 0.0
  %6441 = vmatprep.subr.mxu0 0.0
  %6442 = vmatpush2.msra.mxu0 0.0
  %6443 = vmatprep.subr.mxu0 0.0
  %6444 = vmatpush2.msra.mxu0 0.0
  %6445 = vmatprep.subr.mxu0 0.0
  %6446 = vmatpush2.msra.mxu0 0.0
  %6447 = vmatprep.subr.mxu0 0.0
  %6448 = vmatpush2.msra.mxu0 0.0
  %6449 = vmatprep.subr.mxu0 0.0
  %6450 = vmatpush2.msra.mxu0 0.0
  %6451 = vmatprep.subr.mxu0 0.0
  %6452 = vmatpush2.msra.mxu0 0.0
  %6453 = vmatprep.subr.mxu0 0.0
  %6454 = vmatpush2.msra.mxu0 0.0
  %6455 = vmatprep.subr.mxu0 0.0
  %6456 = vmatpush2.msra.mxu0 0.0
  %6457 = vmatprep.subr.mxu0 0.0
  %6458 = vmatpush2.msra.mxu0 0.0
  %6459 = vmatprep.subr.mxu0 0.0
  %6460 = vmatpush2.msra.mxu0 0.0
  %6461 = vmatprep.subr.mxu0 0.0
  %6462 = vmatpush2.msra.mxu0 0.0
  %6463 = vmatprep.mubr.f32.mxu0 0.0
  %6464 = vmatmul.mubr.f32.gmra.mxu0 %v6397
  %v6465 = vpop.f32.mrf.mxu0
  %v6466 = vadd.f32 0.0, %v6465
  %v6467 = vpop.f32.mrf.mxu0
  %v6468 = vadd.f32 0.0, %v6467
  %6469 = vdwg.mxu0
  %6470 = vmatprep.subr.mxu0 0.0
  %6471 = vmatpush1.msra.mxu0 0.0
  %6472 = vmatprep.subr.mxu0 0.0
  %6473 = vmatpush1.msra.mxu0 0.0
  %6474 = vmatprep.subr.mxu0 0.0
  %6475 = vmatpush1.msra.mxu0 0.0
  %6476 = vmatprep.subr.mxu0 0.0
  %6477 = vmatpush1.msra.mxu0 0.0
  %6478 = vmatprep.subr.mxu0 0.0
  %6479 = vmatpush1.msra.mxu0 0.0
  %6480 = vmatprep.subr.mxu0 0.0
  %6481 = vmatpush1.msra.mxu0 0.0
  %6482 = vmatprep.subr.mxu0 0.0
  %6483 = vmatpush1.msra.mxu0 0.0
  %6484 = vmatprep.subr.mxu0 0.0
  %6485 = vmatpush1.msra.mxu0 0.0
  %6486 = vmatprep.subr.mxu0 %v6394
  %6487 = vmatpush1.msra.mxu0 %v6393
  %6488 = vmatprep.subr.mxu0 %v6390
  %6489 = vmatpush1.msra.mxu0 %v6389
  %6490 = vmatprep.subr.mxu0 %v6386
  %6491 = vmatpush1.msra.mxu0 %v6385
  %6492 = vmatprep.subr.mxu0 %v6382
  %6493 = vmatpush1.msra.mxu0 %v6381
  %6494 = vmatprep.subr.mxu0 %v6378
  %6495 = vmatpush1.msra.mxu0 %v6377
  %6496 = vmatprep.subr.mxu0 %v6374
  %6497 = vmatpush1.msra.mxu0 %v6373
  %6498 = vmatprep.subr.mxu0 %v6370
  %6499 = vmatpush1.msra.mxu0 %v6369
  %6500 = vmatprep.subr.mxu0 %v6366
  %6501 = vmatpush1.msra.mxu0 %v6365
  %6502 = vmatprep.subr.mxu0 0.0
  %6503 = vmatpush2.msra.mxu0 0.0
  %6504 = vmatprep.subr.mxu0 0.0
  %6505 = vmatpush2.msra.mxu0 0.0
  %6506 = vmatprep.subr.mxu0 0.0
  %6507 = vmatpush2.msra.mxu0 0.0
  %6508 = vmatprep.subr.mxu0 0.0
  %6509 = vmatpush2.msra.mxu0 0.0
  %6510 = vmatprep.subr.mxu0 0.0
  %6511 = vmatpush2.msra.mxu0 0.0
  %6512 = vmatprep.subr.mxu0 0.0
  %6513 = vmatpush2.msra.mxu0 0.0
  %6514 = vmatprep.subr.mxu0 0.0
  %6515 = vmatpush2.msra.mxu0 0.0
  %6516 = vmatprep.subr.mxu0 0.0
  %6517 = vmatpush2.msra.mxu0 0.0
  %6518 = vmatprep.subr.mxu0 0.0
  %6519 = vmatpush2.msra.mxu0 0.0
  %6520 = vmatprep.subr.mxu0 0.0
  %6521 = vmatpush2.msra.mxu0 0.0
  %6522 = vmatprep.subr.mxu0 0.0
  %6523 = vmatpush2.msra.mxu0 0.0
  %6524 = vmatprep.subr.mxu0 0.0
  %6525 = vmatpush2.msra.mxu0 0.0
  %6526 = vmatprep.subr.mxu0 0.0
  %6527 = vmatpush2.msra.mxu0 0.0
  %6528 = vmatprep.subr.mxu0 0.0
  %6529 = vmatpush2.msra.mxu0 0.0
  %6530 = vmatprep.subr.mxu0 0.0
  %6531 = vmatpush2.msra.mxu0 0.0
  %6532 = vmatprep.subr.mxu0 0.0
  %6533 = vmatpush2.msra.mxu0 0.0
  %6534 = vmatprep.mubr.f32.mxu0 0.0
  %6535 = vmatmul.mubr.f32.gmra.mxu0 %v6397
  %v6536 = vpop.f32.mrf.mxu0
  %v6537 = vadd.f32 0.0, %v6536
  %v6538 = vpop.f32.mrf.mxu0
  %v6539 = vadd.f32 0.0, %v6538
  %6540 = vdwg.mxu0
  %v6541 = vadd.f32 %v6263, %v6466
  %v6542 = vadd.f32 %v6264, %v6468
  %v6543 = vadd.f32 %v6265, %v6537
  %v6544 = vadd.f32 %v6266, %v6539
  %v6545 = vld [vmem:[%s6 + $0x10] sm:$0xff]
  %v6547 = vsel %vm5700, %v6545, 0
  %6549 = vmatprep.subr.mxu0 0.0
  %6550 = vmatpush1.msra.mxu0 0.0
  %6551 = vmatprep.subr.mxu0 0.0
  %6552 = vmatpush1.msra.mxu0 0.0
  %6553 = vmatprep.subr.mxu0 0.0
  %6554 = vmatpush1.msra.mxu0 0.0
  %6555 = vmatprep.subr.mxu0 0.0
  %6556 = vmatpush1.msra.mxu0 0.0
  %6557 = vmatprep.subr.mxu0 0.0
  %6558 = vmatpush1.msra.mxu0 0.0
  %6559 = vmatprep.subr.mxu0 0.0
  %6560 = vmatpush1.msra.mxu0 0.0
  %6561 = vmatprep.subr.mxu0 0.0
  %6562 = vmatpush1.msra.mxu0 0.0
  %6563 = vmatprep.subr.mxu0 0.0
  %6564 = vmatpush1.msra.mxu0 0.0
  %6565 = vmatprep.subr.mxu0 %v5437
  %6566 = vmatpush1.msra.mxu0 %v5436
  %6567 = vmatprep.subr.mxu0 %v5433
  %6568 = vmatpush1.msra.mxu0 %v5432
  %6569 = vmatprep.subr.mxu0 %v5429
  %6570 = vmatpush1.msra.mxu0 %v5428
  %6571 = vmatprep.subr.mxu0 %v5425
  %6572 = vmatpush1.msra.mxu0 %v5424
  %6573 = vmatprep.subr.mxu0 %v5421
  %6574 = vmatpush1.msra.mxu0 %v5420
  %6575 = vmatprep.subr.mxu0 %v5417
  %6576 = vmatpush1.msra.mxu0 %v5416
  %6577 = vmatprep.subr.mxu0 %v5413
  %6578 = vmatpush1.msra.mxu0 %v5412
  %6579 = vmatprep.subr.mxu0 %v5409
  %6580 = vmatpush1.msra.mxu0 %v5408
  %6581 = vmatprep.subr.mxu0 0.0
  %6582 = vmatpush2.msra.mxu0 0.0
  %6583 = vmatprep.subr.mxu0 0.0
  %6584 = vmatpush2.msra.mxu0 0.0
  %6585 = vmatprep.subr.mxu0 0.0
  %6586 = vmatpush2.msra.mxu0 0.0
  %6587 = vmatprep.subr.mxu0 0.0
  %6588 = vmatpush2.msra.mxu0 0.0
  %6589 = vmatprep.subr.mxu0 0.0
  %6590 = vmatpush2.msra.mxu0 0.0
  %6591 = vmatprep.subr.mxu0 0.0
  %6592 = vmatpush2.msra.mxu0 0.0
  %6593 = vmatprep.subr.mxu0 0.0
  %6594 = vmatpush2.msra.mxu0 0.0
  %6595 = vmatprep.subr.mxu0 0.0
  %6596 = vmatpush2.msra.mxu0 0.0
  %6597 = vmatprep.subr.mxu0 0.0
  %6598 = vmatpush2.msra.mxu0 0.0
  %6599 = vmatprep.subr.mxu0 0.0
  %6600 = vmatpush2.msra.mxu0 0.0
  %6601 = vmatprep.subr.mxu0 0.0
  %6602 = vmatpush2.msra.mxu0 0.0
  %6603 = vmatprep.subr.mxu0 0.0
  %6604 = vmatpush2.msra.mxu0 0.0
  %6605 = vmatprep.subr.mxu0 0.0
  %6606 = vmatpush2.msra.mxu0 0.0
  %6607 = vmatprep.subr.mxu0 0.0
  %6608 = vmatpush2.msra.mxu0 0.0
  %6609 = vmatprep.subr.mxu0 0.0
  %6610 = vmatpush2.msra.mxu0 0.0
  %6611 = vmatprep.subr.mxu0 0.0
  %6612 = vmatpush2.msra.mxu0 0.0
  %6613 = vmatprep.mubr.f32.mxu0 0.0
  %6614 = vmatmul.mubr.f32.gmra.mxu0 %v6547
  %v6615 = vpop.f32.mrf.mxu0
  %v6616 = vadd.f32 0.0, %v6615
  %v6617 = vpop.f32.mrf.mxu0
  %v6618 = vadd.f32 0.0, %v6617
  %6619 = vdwg.mxu0
  %6620 = vmatprep.subr.mxu0 0.0
  %6621 = vmatpush1.msra.mxu0 0.0
  %6622 = vmatprep.subr.mxu0 0.0
  %6623 = vmatpush1.msra.mxu0 0.0
  %6624 = vmatprep.subr.mxu0 0.0
  %6625 = vmatpush1.msra.mxu0 0.0
  %6626 = vmatprep.subr.mxu0 0.0
  %6627 = vmatpush1.msra.mxu0 0.0
  %6628 = vmatprep.subr.mxu0 0.0
  %6629 = vmatpush1.msra.mxu0 0.0
  %6630 = vmatprep.subr.mxu0 0.0
  %6631 = vmatpush1.msra.mxu0 0.0
  %6632 = vmatprep.subr.mxu0 0.0
  %6633 = vmatpush1.msra.mxu0 0.0
  %6634 = vmatprep.subr.mxu0 0.0
  %6635 = vmatpush1.msra.mxu0 0.0
  %6636 = vmatprep.subr.mxu0 %v5439
  %6637 = vmatpush1.msra.mxu0 %v5438
  %6638 = vmatprep.subr.mxu0 %v5435
  %6639 = vmatpush1.msra.mxu0 %v5434
  %6640 = vmatprep.subr.mxu0 %v5431
  %6641 = vmatpush1.msra.mxu0 %v5430
  %6642 = vmatprep.subr.mxu0 %v5427
  %6643 = vmatpush1.msra.mxu0 %v5426
  %6644 = vmatprep.subr.mxu0 %v5423
  %6645 = vmatpush1.msra.mxu0 %v5422
  %6646 = vmatprep.subr.mxu0 %v5419
  %6647 = vmatpush1.msra.mxu0 %v5418
  %6648 = vmatprep.subr.mxu0 %v5415
  %6649 = vmatpush1.msra.mxu0 %v5414
  %6650 = vmatprep.subr.mxu0 %v5411
  %6651 = vmatpush1.msra.mxu0 %v5410
  %6652 = vmatprep.subr.mxu0 0.0
  %6653 = vmatpush2.msra.mxu0 0.0
  %6654 = vmatprep.subr.mxu0 0.0
  %6655 = vmatpush2.msra.mxu0 0.0
  %6656 = vmatprep.subr.mxu0 0.0
  %6657 = vmatpush2.msra.mxu0 0.0
  %6658 = vmatprep.subr.mxu0 0.0
  %6659 = vmatpush2.msra.mxu0 0.0
  %6660 = vmatprep.subr.mxu0 0.0
  %6661 = vmatpush2.msra.mxu0 0.0
  %6662 = vmatprep.subr.mxu0 0.0
  %6663 = vmatpush2.msra.mxu0 0.0
  %6664 = vmatprep.subr.mxu0 0.0
  %6665 = vmatpush2.msra.mxu0 0.0
  %6666 = vmatprep.subr.mxu0 0.0
  %6667 = vmatpush2.msra.mxu0 0.0
  %6668 = vmatprep.subr.mxu0 0.0
  %6669 = vmatpush2.msra.mxu0 0.0
  %6670 = vmatprep.subr.mxu0 0.0
  %6671 = vmatpush2.msra.mxu0 0.0
  %6672 = vmatprep.subr.mxu0 0.0
  %6673 = vmatpush2.msra.mxu0 0.0
  %6674 = vmatprep.subr.mxu0 0.0
  %6675 = vmatpush2.msra.mxu0 0.0
  %6676 = vmatprep.subr.mxu0 0.0
  %6677 = vmatpush2.msra.mxu0 0.0
  %6678 = vmatprep.subr.mxu0 0.0
  %6679 = vmatpush2.msra.mxu0 0.0
  %6680 = vmatprep.subr.mxu0 0.0
  %6681 = vmatpush2.msra.mxu0 0.0
  %6682 = vmatprep.subr.mxu0 0.0
  %6683 = vmatpush2.msra.mxu0 0.0
  %6684 = vmatprep.mubr.f32.mxu0 0.0
  %6685 = vmatmul.mubr.f32.gmra.mxu0 %v6547
  %v6686 = vpop.f32.mrf.mxu0
  %v6687 = vadd.f32 0.0, %v6686
  %v6688 = vpop.f32.mrf.mxu0
  %v6689 = vadd.f32 0.0, %v6688
  %6690 = vdwg.mxu0
  %v6691 = vadd.f32 %v6541, %v6616
  %v6692 = vadd.f32 %v6542, %v6618
  %v6693 = vadd.f32 %v6543, %v6687
  %v6694 = vadd.f32 %v6544, %v6689
  %6695 = vrot.lane.b32.xlu0 %v5408, 127
  %v6696 = vpop.permute.xlu0 %6695
  %6697 = vrot.lane.b32.xlu0 %v5412, 127
  %v6698 = vpop.permute.xlu0 %6697
  %6699 = vrot.lane.b32.xlu0 %v5416, 127
  %v6700 = vpop.permute.xlu0 %6699
  %6701 = vrot.lane.b32.xlu0 %v5420, 127
  %v6702 = vpop.permute.xlu0 %6701
  %6703 = vrot.lane.b32.xlu0 %v5424, 127
  %v6704 = vpop.permute.xlu0 %6703
  %6705 = vrot.lane.b32.xlu0 %v5428, 127
  %v6706 = vpop.permute.xlu0 %6705
  %6707 = vrot.lane.b32.xlu0 %v5432, 127
  %v6708 = vpop.permute.xlu0 %6707
  %6709 = vrot.lane.b32.xlu0 %v5436, 127
  %v6710 = vpop.permute.xlu0 %6709
  %6711 = vrot.lane.b32.xlu0 %v5409, 127
  %v6712 = vpop.permute.xlu0 %6711
  %6713 = vrot.lane.b32.xlu0 %v5413, 127
  %v6714 = vpop.permute.xlu0 %6713
  %6715 = vrot.lane.b32.xlu0 %v5417, 127
  %v6716 = vpop.permute.xlu0 %6715
  %6717 = vrot.lane.b32.xlu0 %v5421, 127
  %v6718 = vpop.permute.xlu0 %6717
  %6719 = vrot.lane.b32.xlu0 %v5425, 127
  %v6720 = vpop.permute.xlu0 %6719
  %6721 = vrot.lane.b32.xlu0 %v5429, 127
  %v6722 = vpop.permute.xlu0 %6721
  %6723 = vrot.lane.b32.xlu0 %v5433, 127
  %v6724 = vpop.permute.xlu0 %6723
  %6725 = vrot.lane.b32.xlu0 %v5437, 127
  %v6726 = vpop.permute.xlu0 %6725
  %6727 = vrot.lane.b32.xlu0 %v5410, 127
  %v6728 = vpop.permute.xlu0 %6727
  %6729 = vrot.lane.b32.xlu0 %v5414, 127
  %v6730 = vpop.permute.xlu0 %6729
  %6731 = vrot.lane.b32.xlu0 %v5418, 127
  %v6732 = vpop.permute.xlu0 %6731
  %6733 = vrot.lane.b32.xlu0 %v5422, 127
  %v6734 = vpop.permute.xlu0 %6733
  %6735 = vrot.lane.b32.xlu0 %v5426, 127
  %v6736 = vpop.permute.xlu0 %6735
  %6737 = vrot.lane.b32.xlu0 %v5430, 127
  %v6738 = vpop.permute.xlu0 %6737
  %6739 = vrot.lane.b32.xlu0 %v5434, 127
  %v6740 = vpop.permute.xlu0 %6739
  %6741 = vrot.lane.b32.xlu0 %v5438, 127
  %v6742 = vpop.permute.xlu0 %6741
  %6743 = vrot.lane.b32.xlu0 %v5411, 127
  %v6744 = vpop.permute.xlu0 %6743
  %6745 = vrot.lane.b32.xlu0 %v5415, 127
  %v6746 = vpop.permute.xlu0 %6745
  %6747 = vrot.lane.b32.xlu0 %v5419, 127
  %v6748 = vpop.permute.xlu0 %6747
  %6749 = vrot.lane.b32.xlu0 %v5423, 127
  %v6750 = vpop.permute.xlu0 %6749
  %6751 = vrot.lane.b32.xlu0 %v5427, 127
  %v6752 = vpop.permute.xlu0 %6751
  %6753 = vrot.lane.b32.xlu0 %v5431, 127
  %v6754 = vpop.permute.xlu0 %6753
  %6755 = vrot.lane.b32.xlu0 %v5435, 127
  %v6756 = vpop.permute.xlu0 %6755
  %6757 = vrot.lane.b32.xlu0 %v5439, 127
  %v6758 = vpop.permute.xlu0 %6757
  %v6759 = vsel %vm1229, %v6728, %v6744
  %v6760 = vsel %vm1229, %v6730, %v6746
  %v6761 = vsel %vm1229, %v6732, %v6748
  %v6762 = vsel %vm1229, %v6734, %v6750
  %v6763 = vsel %vm1229, %v6736, %v6752
  %v6764 = vsel %vm1229, %v6738, %v6754
  %v6765 = vsel %vm1229, %v6740, %v6756
  %v6766 = vsel %vm1229, %v6742, %v6758
  %v6767 = vsel %vm1229, %v6712, %v6728
  %v6768 = vsel %vm1229, %v6714, %v6730
  %v6769 = vsel %vm1229, %v6716, %v6732
  %v6770 = vsel %vm1229, %v6718, %v6734
  %v6771 = vsel %vm1229, %v6720, %v6736
  %v6772 = vsel %vm1229, %v6722, %v6738
  %v6773 = vsel %vm1229, %v6724, %v6740
  %v6774 = vsel %vm1229, %v6726, %v6742
  %v6775 = vsel %vm1229, %v6696, %v6712
  %v6776 = vsel %vm1229, %v6698, %v6714
  %v6777 = vsel %vm1229, %v6700, %v6716
  %v6778 = vsel %vm1229, %v6702, %v6718
  %v6779 = vsel %vm1229, %v6704, %v6720
  %v6780 = vsel %vm1229, %v6706, %v6722
  %v6781 = vsel %vm1229, %v6708, %v6724
  %v6782 = vsel %vm1229, %v6710, %v6726
  %v6783 = vsel %vm1229, %v6744, %v6696
  %v6784 = vsel %vm1229, %v6746, %v6698
  %v6785 = vsel %vm1229, %v6748, %v6700
  %v6786 = vsel %vm1229, %v6750, %v6702
  %v6787 = vsel %vm1229, %v6752, %v6704
  %v6788 = vsel %vm1229, %v6754, %v6706
  %v6789 = vsel %vm1229, %v6756, %v6708
  %v6790 = vsel %vm1229, %v6758, %v6710
  %v6791 = vmul.f32 %v6775, %v1238
  %v6792 = vmul.f32 %v6767, %v1242
  %v6793 = vmul.f32 %v6759, %v1246
  %v6794 = vmul.f32 %v6783, %v1250
  %v6795 = vmul.f32 %v6776, %v1238
  %v6796 = vmul.f32 %v6768, %v1242
  %v6797 = vmul.f32 %v6760, %v1246
  %v6798 = vmul.f32 %v6784, %v1250
  %v6799 = vmul.f32 %v6777, %v1238
  %v6800 = vmul.f32 %v6769, %v1242
  %v6801 = vmul.f32 %v6761, %v1246
  %v6802 = vmul.f32 %v6785, %v1250
  %v6803 = vmul.f32 %v6778, %v1238
  %v6804 = vmul.f32 %v6770, %v1242
  %v6805 = vmul.f32 %v6762, %v1246
  %v6806 = vmul.f32 %v6786, %v1250
  %v6807 = vmul.f32 %v6779, %v1238
  %v6808 = vmul.f32 %v6771, %v1242
  %v6809 = vmul.f32 %v6763, %v1246
  %v6810 = vmul.f32 %v6787, %v1250
  %v6811 = vmul.f32 %v6780, %v1238
  %v6812 = vmul.f32 %v6772, %v1242
  %v6813 = vmul.f32 %v6764, %v1246
  %v6814 = vmul.f32 %v6788, %v1250
  %v6815 = vmul.f32 %v6781, %v1238
  %v6816 = vmul.f32 %v6773, %v1242
  %v6817 = vmul.f32 %v6765, %v1246
  %v6818 = vmul.f32 %v6789, %v1250
  %v6819 = vmul.f32 %v6782, %v1238
  %v6820 = vmul.f32 %v6774, %v1242
  %v6821 = vmul.f32 %v6766, %v1246
  %v6822 = vmul.f32 %v6790, %v1250
  %6823 = vrot.lane.b32.xlu0 %v6545, 64
  %v6824 = vpop.permute.xlu0 %6823
  %v6825 = vsel %vm5700, %v6824, 0
  %6827 = vmatprep.subr.mxu0 0.0
  %6828 = vmatpush1.msra.mxu0 0.0
  %6829 = vmatprep.subr.mxu0 0.0
  %6830 = vmatpush1.msra.mxu0 0.0
  %6831 = vmatprep.subr.mxu0 0.0
  %6832 = vmatpush1.msra.mxu0 0.0
  %6833 = vmatprep.subr.mxu0 0.0
  %6834 = vmatpush1.msra.mxu0 0.0
  %6835 = vmatprep.subr.mxu0 0.0
  %6836 = vmatpush1.msra.mxu0 0.0
  %6837 = vmatprep.subr.mxu0 0.0
  %6838 = vmatpush1.msra.mxu0 0.0
  %6839 = vmatprep.subr.mxu0 0.0
  %6840 = vmatpush1.msra.mxu0 0.0
  %6841 = vmatprep.subr.mxu0 0.0
  %6842 = vmatpush1.msra.mxu0 0.0
  %6843 = vmatprep.subr.mxu0 %v6820
  %6844 = vmatpush1.msra.mxu0 %v6819
  %6845 = vmatprep.subr.mxu0 %v6816
  %6846 = vmatpush1.msra.mxu0 %v6815
  %6847 = vmatprep.subr.mxu0 %v6812
  %6848 = vmatpush1.msra.mxu0 %v6811
  %6849 = vmatprep.subr.mxu0 %v6808
  %6850 = vmatpush1.msra.mxu0 %v6807
  %6851 = vmatprep.subr.mxu0 %v6804
  %6852 = vmatpush1.msra.mxu0 %v6803
  %6853 = vmatprep.subr.mxu0 %v6800
  %6854 = vmatpush1.msra.mxu0 %v6799
  %6855 = vmatprep.subr.mxu0 %v6796
  %6856 = vmatpush1.msra.mxu0 %v6795
  %6857 = vmatprep.subr.mxu0 %v6792
  %6858 = vmatpush1.msra.mxu0 %v6791
  %6859 = vmatprep.subr.mxu0 0.0
  %6860 = vmatpush2.msra.mxu0 0.0
  %6861 = vmatprep.subr.mxu0 0.0
  %6862 = vmatpush2.msra.mxu0 0.0
  %6863 = vmatprep.subr.mxu0 0.0
  %6864 = vmatpush2.msra.mxu0 0.0
  %6865 = vmatprep.subr.mxu0 0.0
  %6866 = vmatpush2.msra.mxu0 0.0
  %6867 = vmatprep.subr.mxu0 0.0
  %6868 = vmatpush2.msra.mxu0 0.0
  %6869 = vmatprep.subr.mxu0 0.0
  %6870 = vmatpush2.msra.mxu0 0.0
  %6871 = vmatprep.subr.mxu0 0.0
  %6872 = vmatpush2.msra.mxu0 0.0
  %6873 = vmatprep.subr.mxu0 0.0
  %6874 = vmatpush2.msra.mxu0 0.0
  %6875 = vmatprep.subr.mxu0 0.0
  %6876 = vmatpush2.msra.mxu0 0.0
  %6877 = vmatprep.subr.mxu0 0.0
  %6878 = vmatpush2.msra.mxu0 0.0
  %6879 = vmatprep.subr.mxu0 0.0
  %6880 = vmatpush2.msra.mxu0 0.0
  %6881 = vmatprep.subr.mxu0 0.0
  %6882 = vmatpush2.msra.mxu0 0.0
  %6883 = vmatprep.subr.mxu0 0.0
  %6884 = vmatpush2.msra.mxu0 0.0
  %6885 = vmatprep.subr.mxu0 0.0
  %6886 = vmatpush2.msra.mxu0 0.0
  %6887 = vmatprep.subr.mxu0 0.0
  %6888 = vmatpush2.msra.mxu0 0.0
  %6889 = vmatprep.subr.mxu0 0.0
  %6890 = vmatpush2.msra.mxu0 0.0
  %6891 = vmatprep.mubr.f32.mxu0 0.0
  %6892 = vmatmul.mubr.f32.gmra.mxu0 %v6825
  %v6893 = vpop.f32.mrf.mxu0
  %v6894 = vadd.f32 0.0, %v6893
  %v6895 = vpop.f32.mrf.mxu0
  %v6896 = vadd.f32 0.0, %v6895
  %6897 = vdwg.mxu0
  %6898 = vmatprep.subr.mxu0 0.0
  %6899 = vmatpush1.msra.mxu0 0.0
  %6900 = vmatprep.subr.mxu0 0.0
  %6901 = vmatpush1.msra.mxu0 0.0
  %6902 = vmatprep.subr.mxu0 0.0
  %6903 = vmatpush1.msra.mxu0 0.0
  %6904 = vmatprep.subr.mxu0 0.0
  %6905 = vmatpush1.msra.mxu0 0.0
  %6906 = vmatprep.subr.mxu0 0.0
  %6907 = vmatpush1.msra.mxu0 0.0
  %6908 = vmatprep.subr.mxu0 0.0
  %6909 = vmatpush1.msra.mxu0 0.0
  %6910 = vmatprep.subr.mxu0 0.0
  %6911 = vmatpush1.msra.mxu0 0.0
  %6912 = vmatprep.subr.mxu0 0.0
  %6913 = vmatpush1.msra.mxu0 0.0
  %6914 = vmatprep.subr.mxu0 %v6822
  %6915 = vmatpush1.msra.mxu0 %v6821
  %6916 = vmatprep.subr.mxu0 %v6818
  %6917 = vmatpush1.msra.mxu0 %v6817
  %6918 = vmatprep.subr.mxu0 %v6814
  %6919 = vmatpush1.msra.mxu0 %v6813
  %6920 = vmatprep.subr.mxu0 %v6810
  %6921 = vmatpush1.msra.mxu0 %v6809
  %6922 = vmatprep.subr.mxu0 %v6806
  %6923 = vmatpush1.msra.mxu0 %v6805
  %6924 = vmatprep.subr.mxu0 %v6802
  %6925 = vmatpush1.msra.mxu0 %v6801
  %6926 = vmatprep.subr.mxu0 %v6798
  %6927 = vmatpush1.msra.mxu0 %v6797
  %6928 = vmatprep.subr.mxu0 %v6794
  %6929 = vmatpush1.msra.mxu0 %v6793
  %6930 = vmatprep.subr.mxu0 0.0
  %6931 = vmatpush2.msra.mxu0 0.0
  %6932 = vmatprep.subr.mxu0 0.0
  %6933 = vmatpush2.msra.mxu0 0.0
  %6934 = vmatprep.subr.mxu0 0.0
  %6935 = vmatpush2.msra.mxu0 0.0
  %6936 = vmatprep.subr.mxu0 0.0
  %6937 = vmatpush2.msra.mxu0 0.0
  %6938 = vmatprep.subr.mxu0 0.0
  %6939 = vmatpush2.msra.mxu0 0.0
  %6940 = vmatprep.subr.mxu0 0.0
  %6941 = vmatpush2.msra.mxu0 0.0
  %6942 = vmatprep.subr.mxu0 0.0
  %6943 = vmatpush2.msra.mxu0 0.0
  %6944 = vmatprep.subr.mxu0 0.0
  %6945 = vmatpush2.msra.mxu0 0.0
  %6946 = vmatprep.subr.mxu0 0.0
  %6947 = vmatpush2.msra.mxu0 0.0
  %6948 = vmatprep.subr.mxu0 0.0
  %6949 = vmatpush2.msra.mxu0 0.0
  %6950 = vmatprep.subr.mxu0 0.0
  %6951 = vmatpush2.msra.mxu0 0.0
  %6952 = vmatprep.subr.mxu0 0.0
  %6953 = vmatpush2.msra.mxu0 0.0
  %6954 = vmatprep.subr.mxu0 0.0
  %6955 = vmatpush2.msra.mxu0 0.0
  %6956 = vmatprep.subr.mxu0 0.0
  %6957 = vmatpush2.msra.mxu0 0.0
  %6958 = vmatprep.subr.mxu0 0.0
  %6959 = vmatpush2.msra.mxu0 0.0
  %6960 = vmatprep.subr.mxu0 0.0
  %6961 = vmatpush2.msra.mxu0 0.0
  %6962 = vmatprep.mubr.f32.mxu0 0.0
  %6963 = vmatmul.mubr.f32.gmra.mxu0 %v6825
  %v6964 = vpop.f32.mrf.mxu0
  %v6965 = vadd.f32 0.0, %v6964
  %v6966 = vpop.f32.mrf.mxu0
  %v6967 = vadd.f32 0.0, %v6966
  %6968 = vdwg.mxu0
  %v6969 = vadd.f32 %v6691, %v6894
  %v6970 = vadd.f32 %v6692, %v6896
  %v6971 = vadd.f32 %v6693, %v6965
  %v6972 = vadd.f32 %v6694, %v6967
  %6973 = vrot.lane.b32.xlu0 %v5408, 113
  %v6974 = vpop.permute.xlu0 %6973
  %6975 = vrot.lane.b32.xlu0 %v5412, 113
  %v6976 = vpop.permute.xlu0 %6975
  %6977 = vrot.lane.b32.xlu0 %v5416, 113
  %v6978 = vpop.permute.xlu0 %6977
  %6979 = vrot.lane.b32.xlu0 %v5420, 113
  %v6980 = vpop.permute.xlu0 %6979
  %6981 = vrot.lane.b32.xlu0 %v5424, 113
  %v6982 = vpop.permute.xlu0 %6981
  %6983 = vrot.lane.b32.xlu0 %v5428, 113
  %v6984 = vpop.permute.xlu0 %6983
  %6985 = vrot.lane.b32.xlu0 %v5432, 113
  %v6986 = vpop.permute.xlu0 %6985
  %6987 = vrot.lane.b32.xlu0 %v5436, 113
  %v6988 = vpop.permute.xlu0 %6987
  %6989 = vrot.lane.b32.xlu0 %v5409, 113
  %v6990 = vpop.permute.xlu0 %6989
  %6991 = vrot.lane.b32.xlu0 %v5413, 113
  %v6992 = vpop.permute.xlu0 %6991
  %6993 = vrot.lane.b32.xlu0 %v5417, 113
  %v6994 = vpop.permute.xlu0 %6993
  %6995 = vrot.lane.b32.xlu0 %v5421, 113
  %v6996 = vpop.permute.xlu0 %6995
  %6997 = vrot.lane.b32.xlu0 %v5425, 113
  %v6998 = vpop.permute.xlu0 %6997
  %6999 = vrot.lane.b32.xlu0 %v5429, 113
  %v7000 = vpop.permute.xlu0 %6999
  %7001 = vrot.lane.b32.xlu0 %v5433, 113
  %v7002 = vpop.permute.xlu0 %7001
  %7003 = vrot.lane.b32.xlu0 %v5437, 113
  %v7004 = vpop.permute.xlu0 %7003
  %7005 = vrot.lane.b32.xlu0 %v5410, 113
  %v7006 = vpop.permute.xlu0 %7005
  %7007 = vrot.lane.b32.xlu0 %v5414, 113
  %v7008 = vpop.permute.xlu0 %7007
  %7009 = vrot.lane.b32.xlu0 %v5418, 113
  %v7010 = vpop.permute.xlu0 %7009
  %7011 = vrot.lane.b32.xlu0 %v5422, 113
  %v7012 = vpop.permute.xlu0 %7011
  %7013 = vrot.lane.b32.xlu0 %v5426, 113
  %v7014 = vpop.permute.xlu0 %7013
  %7015 = vrot.lane.b32.xlu0 %v5430, 113
  %v7016 = vpop.permute.xlu0 %7015
  %7017 = vrot.lane.b32.xlu0 %v5434, 113
  %v7018 = vpop.permute.xlu0 %7017
  %7019 = vrot.lane.b32.xlu0 %v5438, 113
  %v7020 = vpop.permute.xlu0 %7019
  %7021 = vrot.lane.b32.xlu0 %v5411, 113
  %v7022 = vpop.permute.xlu0 %7021
  %7023 = vrot.lane.b32.xlu0 %v5415, 113
  %v7024 = vpop.permute.xlu0 %7023
  %7025 = vrot.lane.b32.xlu0 %v5419, 113
  %v7026 = vpop.permute.xlu0 %7025
  %7027 = vrot.lane.b32.xlu0 %v5423, 113
  %v7028 = vpop.permute.xlu0 %7027
  %7029 = vrot.lane.b32.xlu0 %v5427, 113
  %v7030 = vpop.permute.xlu0 %7029
  %7031 = vrot.lane.b32.xlu0 %v5431, 113
  %v7032 = vpop.permute.xlu0 %7031
  %7033 = vrot.lane.b32.xlu0 %v5435, 113
  %v7034 = vpop.permute.xlu0 %7033
  %7035 = vrot.lane.b32.xlu0 %v5439, 113
  %v7036 = vpop.permute.xlu0 %7035
  %v7037 = vsel %vm1477, %v7006, %v7022
  %v7038 = vsel %vm1477, %v7008, %v7024
  %v7039 = vsel %vm1477, %v7010, %v7026
  %v7040 = vsel %vm1477, %v7012, %v7028
  %v7041 = vsel %vm1477, %v7014, %v7030
  %v7042 = vsel %vm1477, %v7016, %v7032
  %v7043 = vsel %vm1477, %v7018, %v7034
  %v7044 = vsel %vm1477, %v7020, %v7036
  %v7045 = vsel %vm1477, %v6990, %v7006
  %v7046 = vsel %vm1477, %v6992, %v7008
  %v7047 = vsel %vm1477, %v6994, %v7010
  %v7048 = vsel %vm1477, %v6996, %v7012
  %v7049 = vsel %vm1477, %v6998, %v7014
  %v7050 = vsel %vm1477, %v7000, %v7016
  %v7051 = vsel %vm1477, %v7002, %v7018
  %v7052 = vsel %vm1477, %v7004, %v7020
  %v7053 = vsel %vm1477, %v6974, %v6990
  %v7054 = vsel %vm1477, %v6976, %v6992
  %v7055 = vsel %vm1477, %v6978, %v6994
  %v7056 = vsel %vm1477, %v6980, %v6996
  %v7057 = vsel %vm1477, %v6982, %v6998
  %v7058 = vsel %vm1477, %v6984, %v7000
  %v7059 = vsel %vm1477, %v6986, %v7002
  %v7060 = vsel %vm1477, %v6988, %v7004
  %v7061 = vsel %vm1477, %v7022, %v6974
  %v7062 = vsel %vm1477, %v7024, %v6976
  %v7063 = vsel %vm1477, %v7026, %v6978
  %v7064 = vsel %vm1477, %v7028, %v6980
  %v7065 = vsel %vm1477, %v7030, %v6982
  %v7066 = vsel %vm1477, %v7032, %v6984
  %v7067 = vsel %vm1477, %v7034, %v6986
  %v7068 = vsel %vm1477, %v7036, %v6988
  %v7069 = vmul.f32 %v7053, %v1486
  %v7070 = vmul.f32 %v7045, %v1490
  %v7071 = vmul.f32 %v7037, %v1494
  %v7072 = vmul.f32 %v7061, %v1498
  %v7073 = vmul.f32 %v7054, %v1486
  %v7074 = vmul.f32 %v7046, %v1490
  %v7075 = vmul.f32 %v7038, %v1494
  %v7076 = vmul.f32 %v7062, %v1498
  %v7077 = vmul.f32 %v7055, %v1486
  %v7078 = vmul.f32 %v7047, %v1490
  %v7079 = vmul.f32 %v7039, %v1494
  %v7080 = vmul.f32 %v7063, %v1498
  %v7081 = vmul.f32 %v7056, %v1486
  %v7082 = vmul.f32 %v7048, %v1490
  %v7083 = vmul.f32 %v7040, %v1494
  %v7084 = vmul.f32 %v7064, %v1498
  %v7085 = vmul.f32 %v7057, %v1486
  %v7086 = vmul.f32 %v7049, %v1490
  %v7087 = vmul.f32 %v7041, %v1494
  %v7088 = vmul.f32 %v7065, %v1498
  %v7089 = vmul.f32 %v7058, %v1486
  %v7090 = vmul.f32 %v7050, %v1490
  %v7091 = vmul.f32 %v7042, %v1494
  %v7092 = vmul.f32 %v7066, %v1498
  %v7093 = vmul.f32 %v7059, %v1486
  %v7094 = vmul.f32 %v7051, %v1490
  %v7095 = vmul.f32 %v7043, %v1494
  %v7096 = vmul.f32 %v7067, %v1498
  %v7097 = vmul.f32 %v7060, %v1486
  %v7098 = vmul.f32 %v7052, %v1490
  %v7099 = vmul.f32 %v7044, %v1494
  %v7100 = vmul.f32 %v7068, %v1498
  %v7101 = vld [vmem:[%s6 + $0x18] sm:$0xff]
  %v7103 = vsel %vm5700, %v7101, 0
  %7105 = vmatprep.subr.mxu0 0.0
  %7106 = vmatpush1.msra.mxu0 0.0
  %7107 = vmatprep.subr.mxu0 0.0
  %7108 = vmatpush1.msra.mxu0 0.0
  %7109 = vmatprep.subr.mxu0 0.0
  %7110 = vmatpush1.msra.mxu0 0.0
  %7111 = vmatprep.subr.mxu0 0.0
  %7112 = vmatpush1.msra.mxu0 0.0
  %7113 = vmatprep.subr.mxu0 0.0
  %7114 = vmatpush1.msra.mxu0 0.0
  %7115 = vmatprep.subr.mxu0 0.0
  %7116 = vmatpush1.msra.mxu0 0.0
  %7117 = vmatprep.subr.mxu0 0.0
  %7118 = vmatpush1.msra.mxu0 0.0
  %7119 = vmatprep.subr.mxu0 0.0
  %7120 = vmatpush1.msra.mxu0 0.0
  %7121 = vmatprep.subr.mxu0 %v7098
  %7122 = vmatpush1.msra.mxu0 %v7097
  %7123 = vmatprep.subr.mxu0 %v7094
  %7124 = vmatpush1.msra.mxu0 %v7093
  %7125 = vmatprep.subr.mxu0 %v7090
  %7126 = vmatpush1.msra.mxu0 %v7089
  %7127 = vmatprep.subr.mxu0 %v7086
  %7128 = vmatpush1.msra.mxu0 %v7085
  %7129 = vmatprep.subr.mxu0 %v7082
  %7130 = vmatpush1.msra.mxu0 %v7081
  %7131 = vmatprep.subr.mxu0 %v7078
  %7132 = vmatpush1.msra.mxu0 %v7077
  %7133 = vmatprep.subr.mxu0 %v7074
  %7134 = vmatpush1.msra.mxu0 %v7073
  %7135 = vmatprep.subr.mxu0 %v7070
  %7136 = vmatpush1.msra.mxu0 %v7069
  %7137 = vmatprep.subr.mxu0 0.0
  %7138 = vmatpush2.msra.mxu0 0.0
  %7139 = vmatprep.subr.mxu0 0.0
  %7140 = vmatpush2.msra.mxu0 0.0
  %7141 = vmatprep.subr.mxu0 0.0
  %7142 = vmatpush2.msra.mxu0 0.0
  %7143 = vmatprep.subr.mxu0 0.0
  %7144 = vmatpush2.msra.mxu0 0.0
  %7145 = vmatprep.subr.mxu0 0.0
  %7146 = vmatpush2.msra.mxu0 0.0
  %7147 = vmatprep.subr.mxu0 0.0
  %7148 = vmatpush2.msra.mxu0 0.0
  %7149 = vmatprep.subr.mxu0 0.0
  %7150 = vmatpush2.msra.mxu0 0.0
  %7151 = vmatprep.subr.mxu0 0.0
  %7152 = vmatpush2.msra.mxu0 0.0
  %7153 = vmatprep.subr.mxu0 0.0
  %7154 = vmatpush2.msra.mxu0 0.0
  %7155 = vmatprep.subr.mxu0 0.0
  %7156 = vmatpush2.msra.mxu0 0.0
  %7157 = vmatprep.subr.mxu0 0.0
  %7158 = vmatpush2.msra.mxu0 0.0
  %7159 = vmatprep.subr.mxu0 0.0
  %7160 = vmatpush2.msra.mxu0 0.0
  %7161 = vmatprep.subr.mxu0 0.0
  %7162 = vmatpush2.msra.mxu0 0.0
  %7163 = vmatprep.subr.mxu0 0.0
  %7164 = vmatpush2.msra.mxu0 0.0
  %7165 = vmatprep.subr.mxu0 0.0
  %7166 = vmatpush2.msra.mxu0 0.0
  %7167 = vmatprep.subr.mxu0 0.0
  %7168 = vmatpush2.msra.mxu0 0.0
  %7169 = vmatprep.mubr.f32.mxu0 0.0
  %7170 = vmatmul.mubr.f32.gmra.mxu0 %v7103
  %v7171 = vpop.f32.mrf.mxu0
  %v7172 = vadd.f32 0.0, %v7171
  %v7173 = vpop.f32.mrf.mxu0
  %v7174 = vadd.f32 0.0, %v7173
  %7175 = vdwg.mxu0
  %7176 = vmatprep.subr.mxu0 0.0
  %7177 = vmatpush1.msra.mxu0 0.0
  %7178 = vmatprep.subr.mxu0 0.0
  %7179 = vmatpush1.msra.mxu0 0.0
  %7180 = vmatprep.subr.mxu0 0.0
  %7181 = vmatpush1.msra.mxu0 0.0
  %7182 = vmatprep.subr.mxu0 0.0
  %7183 = vmatpush1.msra.mxu0 0.0
  %7184 = vmatprep.subr.mxu0 0.0
  %7185 = vmatpush1.msra.mxu0 0.0
  %7186 = vmatprep.subr.mxu0 0.0
  %7187 = vmatpush1.msra.mxu0 0.0
  %7188 = vmatprep.subr.mxu0 0.0
  %7189 = vmatpush1.msra.mxu0 0.0
  %7190 = vmatprep.subr.mxu0 0.0
  %7191 = vmatpush1.msra.mxu0 0.0
  %7192 = vmatprep.subr.mxu0 %v7100
  %7193 = vmatpush1.msra.mxu0 %v7099
  %7194 = vmatprep.subr.mxu0 %v7096
  %7195 = vmatpush1.msra.mxu0 %v7095
  %7196 = vmatprep.subr.mxu0 %v7092
  %7197 = vmatpush1.msra.mxu0 %v7091
  %7198 = vmatprep.subr.mxu0 %v7088
  %7199 = vmatpush1.msra.mxu0 %v7087
  %7200 = vmatprep.subr.mxu0 %v7084
  %7201 = vmatpush1.msra.mxu0 %v7083
  %7202 = vmatprep.subr.mxu0 %v7080
  %7203 = vmatpush1.msra.mxu0 %v7079
  %7204 = vmatprep.subr.mxu0 %v7076
  %7205 = vmatpush1.msra.mxu0 %v7075
  %7206 = vmatprep.subr.mxu0 %v7072
  %7207 = vmatpush1.msra.mxu0 %v7071
  %7208 = vmatprep.subr.mxu0 0.0
  %7209 = vmatpush2.msra.mxu0 0.0
  %7210 = vmatprep.subr.mxu0 0.0
  %7211 = vmatpush2.msra.mxu0 0.0
  %7212 = vmatprep.subr.mxu0 0.0
  %7213 = vmatpush2.msra.mxu0 0.0
  %7214 = vmatprep.subr.mxu0 0.0
  %7215 = vmatpush2.msra.mxu0 0.0
  %7216 = vmatprep.subr.mxu0 0.0
  %7217 = vmatpush2.msra.mxu0 0.0
  %7218 = vmatprep.subr.mxu0 0.0
  %7219 = vmatpush2.msra.mxu0 0.0
  %7220 = vmatprep.subr.mxu0 0.0
  %7221 = vmatpush2.msra.mxu0 0.0
  %7222 = vmatprep.subr.mxu0 0.0
  %7223 = vmatpush2.msra.mxu0 0.0
  %7224 = vmatprep.subr.mxu0 0.0
  %7225 = vmatpush2.msra.mxu0 0.0
  %7226 = vmatprep.subr.mxu0 0.0
  %7227 = vmatpush2.msra.mxu0 0.0
  %7228 = vmatprep.subr.mxu0 0.0
  %7229 = vmatpush2.msra.mxu0 0.0
  %7230 = vmatprep.subr.mxu0 0.0
  %7231 = vmatpush2.msra.mxu0 0.0
  %7232 = vmatprep.subr.mxu0 0.0
  %7233 = vmatpush2.msra.mxu0 0.0
  %7234 = vmatprep.subr.mxu0 0.0
  %7235 = vmatpush2.msra.mxu0 0.0
  %7236 = vmatprep.subr.mxu0 0.0
  %7237 = vmatpush2.msra.mxu0 0.0
  %7238 = vmatprep.subr.mxu0 0.0
  %7239 = vmatpush2.msra.mxu0 0.0
  %7240 = vmatprep.mubr.f32.mxu0 0.0
  %7241 = vmatmul.mubr.f32.gmra.mxu0 %v7103
  %v7242 = vpop.f32.mrf.mxu0
  %v7243 = vadd.f32 0.0, %v7242
  %v7244 = vpop.f32.mrf.mxu0
  %v7245 = vadd.f32 0.0, %v7244
  %7246 = vdwg.mxu0
  %v7247 = vadd.f32 %v6969, %v7172
  %v7248 = vadd.f32 %v6970, %v7174
  %v7249 = vadd.f32 %v6971, %v7243
  %v7250 = vadd.f32 %v6972, %v7245
  %7251 = vrot.lane.b32.xlu0 %v5408, 112
  %v7252 = vpop.permute.xlu0 %7251
  %7253 = vrot.lane.b32.xlu0 %v5412, 112
  %v7254 = vpop.permute.xlu0 %7253
  %7255 = vrot.lane.b32.xlu0 %v5416, 112
  %v7256 = vpop.permute.xlu0 %7255
  %7257 = vrot.lane.b32.xlu0 %v5420, 112
  %v7258 = vpop.permute.xlu0 %7257
  %7259 = vrot.lane.b32.xlu0 %v5424, 112
  %v7260 = vpop.permute.xlu0 %7259
  %7261 = vrot.lane.b32.xlu0 %v5428, 112
  %v7262 = vpop.permute.xlu0 %7261
  %7263 = vrot.lane.b32.xlu0 %v5432, 112
  %v7264 = vpop.permute.xlu0 %7263
  %7265 = vrot.lane.b32.xlu0 %v5436, 112
  %v7266 = vpop.permute.xlu0 %7265
  %7267 = vrot.lane.b32.xlu0 %v5409, 112
  %v7268 = vpop.permute.xlu0 %7267
  %7269 = vrot.lane.b32.xlu0 %v5413, 112
  %v7270 = vpop.permute.xlu0 %7269
  %7271 = vrot.lane.b32.xlu0 %v5417, 112
  %v7272 = vpop.permute.xlu0 %7271
  %7273 = vrot.lane.b32.xlu0 %v5421, 112
  %v7274 = vpop.permute.xlu0 %7273
  %7275 = vrot.lane.b32.xlu0 %v5425, 112
  %v7276 = vpop.permute.xlu0 %7275
  %7277 = vrot.lane.b32.xlu0 %v5429, 112
  %v7278 = vpop.permute.xlu0 %7277
  %7279 = vrot.lane.b32.xlu0 %v5433, 112
  %v7280 = vpop.permute.xlu0 %7279
  %7281 = vrot.lane.b32.xlu0 %v5437, 112
  %v7282 = vpop.permute.xlu0 %7281
  %7283 = vrot.lane.b32.xlu0 %v5410, 112
  %v7284 = vpop.permute.xlu0 %7283
  %7285 = vrot.lane.b32.xlu0 %v5414, 112
  %v7286 = vpop.permute.xlu0 %7285
  %7287 = vrot.lane.b32.xlu0 %v5418, 112
  %v7288 = vpop.permute.xlu0 %7287
  %7289 = vrot.lane.b32.xlu0 %v5422, 112
  %v7290 = vpop.permute.xlu0 %7289
  %7291 = vrot.lane.b32.xlu0 %v5426, 112
  %v7292 = vpop.permute.xlu0 %7291
  %7293 = vrot.lane.b32.xlu0 %v5430, 112
  %v7294 = vpop.permute.xlu0 %7293
  %7295 = vrot.lane.b32.xlu0 %v5434, 112
  %v7296 = vpop.permute.xlu0 %7295
  %7297 = vrot.lane.b32.xlu0 %v5438, 112
  %v7298 = vpop.permute.xlu0 %7297
  %7299 = vrot.lane.b32.xlu0 %v5411, 112
  %v7300 = vpop.permute.xlu0 %7299
  %7301 = vrot.lane.b32.xlu0 %v5415, 112
  %v7302 = vpop.permute.xlu0 %7301
  %7303 = vrot.lane.b32.xlu0 %v5419, 112
  %v7304 = vpop.permute.xlu0 %7303
  %7305 = vrot.lane.b32.xlu0 %v5423, 112
  %v7306 = vpop.permute.xlu0 %7305
  %7307 = vrot.lane.b32.xlu0 %v5427, 112
  %v7308 = vpop.permute.xlu0 %7307
  %7309 = vrot.lane.b32.xlu0 %v5431, 112
  %v7310 = vpop.permute.xlu0 %7309
  %7311 = vrot.lane.b32.xlu0 %v5435, 112
  %v7312 = vpop.permute.xlu0 %7311
  %7313 = vrot.lane.b32.xlu0 %v5439, 112
  %v7314 = vpop.permute.xlu0 %7313
  %v7315 = vsel %vm1725, %v7284, %v7300
  %v7316 = vsel %vm1725, %v7286, %v7302
  %v7317 = vsel %vm1725, %v7288, %v7304
  %v7318 = vsel %vm1725, %v7290, %v7306
  %v7319 = vsel %vm1725, %v7292, %v7308
  %v7320 = vsel %vm1725, %v7294, %v7310
  %v7321 = vsel %vm1725, %v7296, %v7312
  %v7322 = vsel %vm1725, %v7298, %v7314
  %v7323 = vsel %vm1725, %v7268, %v7284
  %v7324 = vsel %vm1725, %v7270, %v7286
  %v7325 = vsel %vm1725, %v7272, %v7288
  %v7326 = vsel %vm1725, %v7274, %v7290
  %v7327 = vsel %vm1725, %v7276, %v7292
  %v7328 = vsel %vm1725, %v7278, %v7294
  %v7329 = vsel %vm1725, %v7280, %v7296
  %v7330 = vsel %vm1725, %v7282, %v7298
  %v7331 = vsel %vm1725, %v7252, %v7268
  %v7332 = vsel %vm1725, %v7254, %v7270
  %v7333 = vsel %vm1725, %v7256, %v7272
  %v7334 = vsel %vm1725, %v7258, %v7274
  %v7335 = vsel %vm1725, %v7260, %v7276
  %v7336 = vsel %vm1725, %v7262, %v7278
  %v7337 = vsel %vm1725, %v7264, %v7280
  %v7338 = vsel %vm1725, %v7266, %v7282
  %v7339 = vsel %vm1725, %v7300, %v7252
  %v7340 = vsel %vm1725, %v7302, %v7254
  %v7341 = vsel %vm1725, %v7304, %v7256
  %v7342 = vsel %vm1725, %v7306, %v7258
  %v7343 = vsel %vm1725, %v7308, %v7260
  %v7344 = vsel %vm1725, %v7310, %v7262
  %v7345 = vsel %vm1725, %v7312, %v7264
  %v7346 = vsel %vm1725, %v7314, %v7266
  %v7347 = vmul.f32 %v7331, %v1734
  %v7348 = vmul.f32 %v7323, %v1738
  %v7349 = vmul.f32 %v7315, %v1742
  %v7350 = vmul.f32 %v7339, %v1746
  %v7351 = vmul.f32 %v7332, %v1734
  %v7352 = vmul.f32 %v7324, %v1738
  %v7353 = vmul.f32 %v7316, %v1742
  %v7354 = vmul.f32 %v7340, %v1746
  %v7355 = vmul.f32 %v7333, %v1734
  %v7356 = vmul.f32 %v7325, %v1738
  %v7357 = vmul.f32 %v7317, %v1742
  %v7358 = vmul.f32 %v7341, %v1746
  %v7359 = vmul.f32 %v7334, %v1734
  %v7360 = vmul.f32 %v7326, %v1738
  %v7361 = vmul.f32 %v7318, %v1742
  %v7362 = vmul.f32 %v7342, %v1746
  %v7363 = vmul.f32 %v7335, %v1734
  %v7364 = vmul.f32 %v7327, %v1738
  %v7365 = vmul.f32 %v7319, %v1742
  %v7366 = vmul.f32 %v7343, %v1746
  %v7367 = vmul.f32 %v7336, %v1734
  %v7368 = vmul.f32 %v7328, %v1738
  %v7369 = vmul.f32 %v7320, %v1742
  %v7370 = vmul.f32 %v7344, %v1746
  %v7371 = vmul.f32 %v7337, %v1734
  %v7372 = vmul.f32 %v7329, %v1738
  %v7373 = vmul.f32 %v7321, %v1742
  %v7374 = vmul.f32 %v7345, %v1746
  %v7375 = vmul.f32 %v7338, %v1734
  %v7376 = vmul.f32 %v7330, %v1738
  %v7377 = vmul.f32 %v7322, %v1742
  %v7378 = vmul.f32 %v7346, %v1746
  %7379 = vrot.lane.b32.xlu0 %v7101, 64
  %v7380 = vpop.permute.xlu0 %7379
  %v7381 = vsel %vm5700, %v7380, 0
  %7383 = vmatprep.subr.mxu0 0.0
  %7384 = vmatpush1.msra.mxu0 0.0
  %7385 = vmatprep.subr.mxu0 0.0
  %7386 = vmatpush1.msra.mxu0 0.0
  %7387 = vmatprep.subr.mxu0 0.0
  %7388 = vmatpush1.msra.mxu0 0.0
  %7389 = vmatprep.subr.mxu0 0.0
  %7390 = vmatpush1.msra.mxu0 0.0
  %7391 = vmatprep.subr.mxu0 0.0
  %7392 = vmatpush1.msra.mxu0 0.0
  %7393 = vmatprep.subr.mxu0 0.0
  %7394 = vmatpush1.msra.mxu0 0.0
  %7395 = vmatprep.subr.mxu0 0.0
  %7396 = vmatpush1.msra.mxu0 0.0
  %7397 = vmatprep.subr.mxu0 0.0
  %7398 = vmatpush1.msra.mxu0 0.0
  %7399 = vmatprep.subr.mxu0 %v7376
  %7400 = vmatpush1.msra.mxu0 %v7375
  %7401 = vmatprep.subr.mxu0 %v7372
  %7402 = vmatpush1.msra.mxu0 %v7371
  %7403 = vmatprep.subr.mxu0 %v7368
  %7404 = vmatpush1.msra.mxu0 %v7367
  %7405 = vmatprep.subr.mxu0 %v7364
  %7406 = vmatpush1.msra.mxu0 %v7363
  %7407 = vmatprep.subr.mxu0 %v7360
  %7408 = vmatpush1.msra.mxu0 %v7359
  %7409 = vmatprep.subr.mxu0 %v7356
  %7410 = vmatpush1.msra.mxu0 %v7355
  %7411 = vmatprep.subr.mxu0 %v7352
  %7412 = vmatpush1.msra.mxu0 %v7351
  %7413 = vmatprep.subr.mxu0 %v7348
  %7414 = vmatpush1.msra.mxu0 %v7347
  %7415 = vmatprep.subr.mxu0 0.0
  %7416 = vmatpush2.msra.mxu0 0.0
  %7417 = vmatprep.subr.mxu0 0.0
  %7418 = vmatpush2.msra.mxu0 0.0
  %7419 = vmatprep.subr.mxu0 0.0
  %7420 = vmatpush2.msra.mxu0 0.0
  %7421 = vmatprep.subr.mxu0 0.0
  %7422 = vmatpush2.msra.mxu0 0.0
  %7423 = vmatprep.subr.mxu0 0.0
  %7424 = vmatpush2.msra.mxu0 0.0
  %7425 = vmatprep.subr.mxu0 0.0
  %7426 = vmatpush2.msra.mxu0 0.0
  %7427 = vmatprep.subr.mxu0 0.0
  %7428 = vmatpush2.msra.mxu0 0.0
  %7429 = vmatprep.subr.mxu0 0.0
  %7430 = vmatpush2.msra.mxu0 0.0
  %7431 = vmatprep.subr.mxu0 0.0
  %7432 = vmatpush2.msra.mxu0 0.0
  %7433 = vmatprep.subr.mxu0 0.0
  %7434 = vmatpush2.msra.mxu0 0.0
  %7435 = vmatprep.subr.mxu0 0.0
  %7436 = vmatpush2.msra.mxu0 0.0
  %7437 = vmatprep.subr.mxu0 0.0
  %7438 = vmatpush2.msra.mxu0 0.0
  %7439 = vmatprep.subr.mxu0 0.0
  %7440 = vmatpush2.msra.mxu0 0.0
  %7441 = vmatprep.subr.mxu0 0.0
  %7442 = vmatpush2.msra.mxu0 0.0
  %7443 = vmatprep.subr.mxu0 0.0
  %7444 = vmatpush2.msra.mxu0 0.0
  %7445 = vmatprep.subr.mxu0 0.0
  %7446 = vmatpush2.msra.mxu0 0.0
  %7447 = vmatprep.mubr.f32.mxu0 0.0
  %7448 = vmatmul.mubr.f32.gmra.mxu0 %v7381
  %v7449 = vpop.f32.mrf.mxu0
  %v7450 = vadd.f32 0.0, %v7449
  %v7451 = vpop.f32.mrf.mxu0
  %v7452 = vadd.f32 0.0, %v7451
  %7453 = vdwg.mxu0
  %7454 = vmatprep.subr.mxu0 0.0
  %7455 = vmatpush1.msra.mxu0 0.0
  %7456 = vmatprep.subr.mxu0 0.0
  %7457 = vmatpush1.msra.mxu0 0.0
  %7458 = vmatprep.subr.mxu0 0.0
  %7459 = vmatpush1.msra.mxu0 0.0
  %7460 = vmatprep.subr.mxu0 0.0
  %7461 = vmatpush1.msra.mxu0 0.0
  %7462 = vmatprep.subr.mxu0 0.0
  %7463 = vmatpush1.msra.mxu0 0.0
  %7464 = vmatprep.subr.mxu0 0.0
  %7465 = vmatpush1.msra.mxu0 0.0
  %7466 = vmatprep.subr.mxu0 0.0
  %7467 = vmatpush1.msra.mxu0 0.0
  %7468 = vmatprep.subr.mxu0 0.0
  %7469 = vmatpush1.msra.mxu0 0.0
  %7470 = vmatprep.subr.mxu0 %v7378
  %7471 = vmatpush1.msra.mxu0 %v7377
  %7472 = vmatprep.subr.mxu0 %v7374
  %7473 = vmatpush1.msra.mxu0 %v7373
  %7474 = vmatprep.subr.mxu0 %v7370
  %7475 = vmatpush1.msra.mxu0 %v7369
  %7476 = vmatprep.subr.mxu0 %v7366
  %7477 = vmatpush1.msra.mxu0 %v7365
  %7478 = vmatprep.subr.mxu0 %v7362
  %7479 = vmatpush1.msra.mxu0 %v7361
  %7480 = vmatprep.subr.mxu0 %v7358
  %7481 = vmatpush1.msra.mxu0 %v7357
  %7482 = vmatprep.subr.mxu0 %v7354
  %7483 = vmatpush1.msra.mxu0 %v7353
  %7484 = vmatprep.subr.mxu0 %v7350
  %7485 = vmatpush1.msra.mxu0 %v7349
  %7486 = vmatprep.subr.mxu0 0.0
  %7487 = vmatpush2.msra.mxu0 0.0
  %7488 = vmatprep.subr.mxu0 0.0
  %7489 = vmatpush2.msra.mxu0 0.0
  %7490 = vmatprep.subr.mxu0 0.0
  %7491 = vmatpush2.msra.mxu0 0.0
  %7492 = vmatprep.subr.mxu0 0.0
  %7493 = vmatpush2.msra.mxu0 0.0
  %7494 = vmatprep.subr.mxu0 0.0
  %7495 = vmatpush2.msra.mxu0 0.0
  %7496 = vmatprep.subr.mxu0 0.0
  %7497 = vmatpush2.msra.mxu0 0.0
  %7498 = vmatprep.subr.mxu0 0.0
  %7499 = vmatpush2.msra.mxu0 0.0
  %7500 = vmatprep.subr.mxu0 0.0
  %7501 = vmatpush2.msra.mxu0 0.0
  %7502 = vmatprep.subr.mxu0 0.0
  %7503 = vmatpush2.msra.mxu0 0.0
  %7504 = vmatprep.subr.mxu0 0.0
  %7505 = vmatpush2.msra.mxu0 0.0
  %7506 = vmatprep.subr.mxu0 0.0
  %7507 = vmatpush2.msra.mxu0 0.0
  %7508 = vmatprep.subr.mxu0 0.0
  %7509 = vmatpush2.msra.mxu0 0.0
  %7510 = vmatprep.subr.mxu0 0.0
  %7511 = vmatpush2.msra.mxu0 0.0
  %7512 = vmatprep.subr.mxu0 0.0
  %7513 = vmatpush2.msra.mxu0 0.0
  %7514 = vmatprep.subr.mxu0 0.0
  %7515 = vmatpush2.msra.mxu0 0.0
  %7516 = vmatprep.subr.mxu0 0.0
  %7517 = vmatpush2.msra.mxu0 0.0
  %7518 = vmatprep.mubr.f32.mxu0 0.0
  %7519 = vmatmul.mubr.f32.gmra.mxu0 %v7381
  %v7520 = vpop.f32.mrf.mxu0
  %v7521 = vadd.f32 0.0, %v7520
  %v7522 = vpop.f32.mrf.mxu0
  %v7523 = vadd.f32 0.0, %v7522
  %7524 = vdwg.mxu0
  %v7525 = vadd.f32 %v7247, %v7450
  %v7526 = vadd.f32 %v7248, %v7452
  %v7527 = vadd.f32 %v7249, %v7521
  %v7528 = vadd.f32 %v7250, %v7523
  %7529 = vrot.lane.b32.xlu0 %v5408, 111
  %v7530 = vpop.permute.xlu0 %7529
  %7531 = vrot.lane.b32.xlu0 %v5412, 111
  %v7532 = vpop.permute.xlu0 %7531
  %7533 = vrot.lane.b32.xlu0 %v5416, 111
  %v7534 = vpop.permute.xlu0 %7533
  %7535 = vrot.lane.b32.xlu0 %v5420, 111
  %v7536 = vpop.permute.xlu0 %7535
  %7537 = vrot.lane.b32.xlu0 %v5424, 111
  %v7538 = vpop.permute.xlu0 %7537
  %7539 = vrot.lane.b32.xlu0 %v5428, 111
  %v7540 = vpop.permute.xlu0 %7539
  %7541 = vrot.lane.b32.xlu0 %v5432, 111
  %v7542 = vpop.permute.xlu0 %7541
  %7543 = vrot.lane.b32.xlu0 %v5436, 111
  %v7544 = vpop.permute.xlu0 %7543
  %7545 = vrot.lane.b32.xlu0 %v5409, 111
  %v7546 = vpop.permute.xlu0 %7545
  %7547 = vrot.lane.b32.xlu0 %v5413, 111
  %v7548 = vpop.permute.xlu0 %7547
  %7549 = vrot.lane.b32.xlu0 %v5417, 111
  %v7550 = vpop.permute.xlu0 %7549
  %7551 = vrot.lane.b32.xlu0 %v5421, 111
  %v7552 = vpop.permute.xlu0 %7551
  %7553 = vrot.lane.b32.xlu0 %v5425, 111
  %v7554 = vpop.permute.xlu0 %7553
  %7555 = vrot.lane.b32.xlu0 %v5429, 111
  %v7556 = vpop.permute.xlu0 %7555
  %7557 = vrot.lane.b32.xlu0 %v5433, 111
  %v7558 = vpop.permute.xlu0 %7557
  %7559 = vrot.lane.b32.xlu0 %v5437, 111
  %v7560 = vpop.permute.xlu0 %7559
  %7561 = vrot.lane.b32.xlu0 %v5410, 111
  %v7562 = vpop.permute.xlu0 %7561
  %7563 = vrot.lane.b32.xlu0 %v5414, 111
  %v7564 = vpop.permute.xlu0 %7563
  %7565 = vrot.lane.b32.xlu0 %v5418, 111
  %v7566 = vpop.permute.xlu0 %7565
  %7567 = vrot.lane.b32.xlu0 %v5422, 111
  %v7568 = vpop.permute.xlu0 %7567
  %7569 = vrot.lane.b32.xlu0 %v5426, 111
  %v7570 = vpop.permute.xlu0 %7569
  %7571 = vrot.lane.b32.xlu0 %v5430, 111
  %v7572 = vpop.permute.xlu0 %7571
  %7573 = vrot.lane.b32.xlu0 %v5434, 111
  %v7574 = vpop.permute.xlu0 %7573
  %7575 = vrot.lane.b32.xlu0 %v5438, 111
  %v7576 = vpop.permute.xlu0 %7575
  %7577 = vrot.lane.b32.xlu0 %v5411, 111
  %v7578 = vpop.permute.xlu0 %7577
  %7579 = vrot.lane.b32.xlu0 %v5415, 111
  %v7580 = vpop.permute.xlu0 %7579
  %7581 = vrot.lane.b32.xlu0 %v5419, 111
  %v7582 = vpop.permute.xlu0 %7581
  %7583 = vrot.lane.b32.xlu0 %v5423, 111
  %v7584 = vpop.permute.xlu0 %7583
  %7585 = vrot.lane.b32.xlu0 %v5427, 111
  %v7586 = vpop.permute.xlu0 %7585
  %7587 = vrot.lane.b32.xlu0 %v5431, 111
  %v7588 = vpop.permute.xlu0 %7587
  %7589 = vrot.lane.b32.xlu0 %v5435, 111
  %v7590 = vpop.permute.xlu0 %7589
  %7591 = vrot.lane.b32.xlu0 %v5439, 111
  %v7592 = vpop.permute.xlu0 %7591
  %v7593 = vsel %vm1973, %v7562, %v7578
  %v7594 = vsel %vm1973, %v7564, %v7580
  %v7595 = vsel %vm1973, %v7566, %v7582
  %v7596 = vsel %vm1973, %v7568, %v7584
  %v7597 = vsel %vm1973, %v7570, %v7586
  %v7598 = vsel %vm1973, %v7572, %v7588
  %v7599 = vsel %vm1973, %v7574, %v7590
  %v7600 = vsel %vm1973, %v7576, %v7592
  %v7601 = vsel %vm1973, %v7546, %v7562
  %v7602 = vsel %vm1973, %v7548, %v7564
  %v7603 = vsel %vm1973, %v7550, %v7566
  %v7604 = vsel %vm1973, %v7552, %v7568
  %v7605 = vsel %vm1973, %v7554, %v7570
  %v7606 = vsel %vm1973, %v7556, %v7572
  %v7607 = vsel %vm1973, %v7558, %v7574
  %v7608 = vsel %vm1973, %v7560, %v7576
  %v7609 = vsel %vm1973, %v7530, %v7546
  %v7610 = vsel %vm1973, %v7532, %v7548
  %v7611 = vsel %vm1973, %v7534, %v7550
  %v7612 = vsel %vm1973, %v7536, %v7552
  %v7613 = vsel %vm1973, %v7538, %v7554
  %v7614 = vsel %vm1973, %v7540, %v7556
  %v7615 = vsel %vm1973, %v7542, %v7558
  %v7616 = vsel %vm1973, %v7544, %v7560
  %v7617 = vsel %vm1973, %v7578, %v7530
  %v7618 = vsel %vm1973, %v7580, %v7532
  %v7619 = vsel %vm1973, %v7582, %v7534
  %v7620 = vsel %vm1973, %v7584, %v7536
  %v7621 = vsel %vm1973, %v7586, %v7538
  %v7622 = vsel %vm1973, %v7588, %v7540
  %v7623 = vsel %vm1973, %v7590, %v7542
  %v7624 = vsel %vm1973, %v7592, %v7544
  %v7625 = vmul.f32 %v7609, %v1982
  %v7626 = vmul.f32 %v7601, %v1986
  %v7627 = vmul.f32 %v7593, %v1990
  %v7628 = vmul.f32 %v7617, %v1994
  %v7629 = vmul.f32 %v7610, %v1982
  %v7630 = vmul.f32 %v7602, %v1986
  %v7631 = vmul.f32 %v7594, %v1990
  %v7632 = vmul.f32 %v7618, %v1994
  %v7633 = vmul.f32 %v7611, %v1982
  %v7634 = vmul.f32 %v7603, %v1986
  %v7635 = vmul.f32 %v7595, %v1990
  %v7636 = vmul.f32 %v7619, %v1994
  %v7637 = vmul.f32 %v7612, %v1982
  %v7638 = vmul.f32 %v7604, %v1986
  %v7639 = vmul.f32 %v7596, %v1990
  %v7640 = vmul.f32 %v7620, %v1994
  %v7641 = vmul.f32 %v7613, %v1982
  %v7642 = vmul.f32 %v7605, %v1986
  %v7643 = vmul.f32 %v7597, %v1990
  %v7644 = vmul.f32 %v7621, %v1994
  %v7645 = vmul.f32 %v7614, %v1982
  %v7646 = vmul.f32 %v7606, %v1986
  %v7647 = vmul.f32 %v7598, %v1990
  %v7648 = vmul.f32 %v7622, %v1994
  %v7649 = vmul.f32 %v7615, %v1982
  %v7650 = vmul.f32 %v7607, %v1986
  %v7651 = vmul.f32 %v7599, %v1990
  %v7652 = vmul.f32 %v7623, %v1994
  %v7653 = vmul.f32 %v7616, %v1982
  %v7654 = vmul.f32 %v7608, %v1986
  %v7655 = vmul.f32 %v7600, %v1990
  %v7656 = vmul.f32 %v7624, %v1994
  %v7657 = vld [vmem:[%s6 + $0x20] sm:$0xff]
  %v7659 = vsel %vm5700, %v7657, 0
  %7661 = vmatprep.subr.mxu0 0.0
  %7662 = vmatpush1.msra.mxu0 0.0
  %7663 = vmatprep.subr.mxu0 0.0
  %7664 = vmatpush1.msra.mxu0 0.0
  %7665 = vmatprep.subr.mxu0 0.0
  %7666 = vmatpush1.msra.mxu0 0.0
  %7667 = vmatprep.subr.mxu0 0.0
  %7668 = vmatpush1.msra.mxu0 0.0
  %7669 = vmatprep.subr.mxu0 0.0
  %7670 = vmatpush1.msra.mxu0 0.0
  %7671 = vmatprep.subr.mxu0 0.0
  %7672 = vmatpush1.msra.mxu0 0.0
  %7673 = vmatprep.subr.mxu0 0.0
  %7674 = vmatpush1.msra.mxu0 0.0
  %7675 = vmatprep.subr.mxu0 0.0
  %7676 = vmatpush1.msra.mxu0 0.0
  %7677 = vmatprep.subr.mxu0 %v7654
  %7678 = vmatpush1.msra.mxu0 %v7653
  %7679 = vmatprep.subr.mxu0 %v7650
  %7680 = vmatpush1.msra.mxu0 %v7649
  %7681 = vmatprep.subr.mxu0 %v7646
  %7682 = vmatpush1.msra.mxu0 %v7645
  %7683 = vmatprep.subr.mxu0 %v7642
  %7684 = vmatpush1.msra.mxu0 %v7641
  %7685 = vmatprep.subr.mxu0 %v7638
  %7686 = vmatpush1.msra.mxu0 %v7637
  %7687 = vmatprep.subr.mxu0 %v7634
  %7688 = vmatpush1.msra.mxu0 %v7633
  %7689 = vmatprep.subr.mxu0 %v7630
  %7690 = vmatpush1.msra.mxu0 %v7629
  %7691 = vmatprep.subr.mxu0 %v7626
  %7692 = vmatpush1.msra.mxu0 %v7625
  %7693 = vmatprep.subr.mxu0 0.0
  %7694 = vmatpush2.msra.mxu0 0.0
  %7695 = vmatprep.subr.mxu0 0.0
  %7696 = vmatpush2.msra.mxu0 0.0
  %7697 = vmatprep.subr.mxu0 0.0
  %7698 = vmatpush2.msra.mxu0 0.0
  %7699 = vmatprep.subr.mxu0 0.0
  %7700 = vmatpush2.msra.mxu0 0.0
  %7701 = vmatprep.subr.mxu0 0.0
  %7702 = vmatpush2.msra.mxu0 0.0
  %7703 = vmatprep.subr.mxu0 0.0
  %7704 = vmatpush2.msra.mxu0 0.0
  %7705 = vmatprep.subr.mxu0 0.0
  %7706 = vmatpush2.msra.mxu0 0.0
  %7707 = vmatprep.subr.mxu0 0.0
  %7708 = vmatpush2.msra.mxu0 0.0
  %7709 = vmatprep.subr.mxu0 0.0
  %7710 = vmatpush2.msra.mxu0 0.0
  %7711 = vmatprep.subr.mxu0 0.0
  %7712 = vmatpush2.msra.mxu0 0.0
  %7713 = vmatprep.subr.mxu0 0.0
  %7714 = vmatpush2.msra.mxu0 0.0
  %7715 = vmatprep.subr.mxu0 0.0
  %7716 = vmatpush2.msra.mxu0 0.0
  %7717 = vmatprep.subr.mxu0 0.0
  %7718 = vmatpush2.msra.mxu0 0.0
  %7719 = vmatprep.subr.mxu0 0.0
  %7720 = vmatpush2.msra.mxu0 0.0
  %7721 = vmatprep.subr.mxu0 0.0
  %7722 = vmatpush2.msra.mxu0 0.0
  %7723 = vmatprep.subr.mxu0 0.0
  %7724 = vmatpush2.msra.mxu0 0.0
  %7725 = vmatprep.mubr.f32.mxu0 0.0
  %7726 = vmatmul.mubr.f32.gmra.mxu0 %v7659
  %v7727 = vpop.f32.mrf.mxu0
  %v7728 = vadd.f32 0.0, %v7727
  %v7729 = vpop.f32.mrf.mxu0
  %v7730 = vadd.f32 0.0, %v7729
  %7731 = vdwg.mxu0
  %7732 = vmatprep.subr.mxu0 0.0
  %7733 = vmatpush1.msra.mxu0 0.0
  %7734 = vmatprep.subr.mxu0 0.0
  %7735 = vmatpush1.msra.mxu0 0.0
  %7736 = vmatprep.subr.mxu0 0.0
  %7737 = vmatpush1.msra.mxu0 0.0
  %7738 = vmatprep.subr.mxu0 0.0
  %7739 = vmatpush1.msra.mxu0 0.0
  %7740 = vmatprep.subr.mxu0 0.0
  %7741 = vmatpush1.msra.mxu0 0.0
  %7742 = vmatprep.subr.mxu0 0.0
  %7743 = vmatpush1.msra.mxu0 0.0
  %7744 = vmatprep.subr.mxu0 0.0
  %7745 = vmatpush1.msra.mxu0 0.0
  %7746 = vmatprep.subr.mxu0 0.0
  %7747 = vmatpush1.msra.mxu0 0.0
  %7748 = vmatprep.subr.mxu0 %v7656
  %7749 = vmatpush1.msra.mxu0 %v7655
  %7750 = vmatprep.subr.mxu0 %v7652
  %7751 = vmatpush1.msra.mxu0 %v7651
  %7752 = vmatprep.subr.mxu0 %v7648
  %7753 = vmatpush1.msra.mxu0 %v7647
  %7754 = vmatprep.subr.mxu0 %v7644
  %7755 = vmatpush1.msra.mxu0 %v7643
  %7756 = vmatprep.subr.mxu0 %v7640
  %7757 = vmatpush1.msra.mxu0 %v7639
  %7758 = vmatprep.subr.mxu0 %v7636
  %7759 = vmatpush1.msra.mxu0 %v7635
  %7760 = vmatprep.subr.mxu0 %v7632
  %7761 = vmatpush1.msra.mxu0 %v7631
  %7762 = vmatprep.subr.mxu0 %v7628
  %7763 = vmatpush1.msra.mxu0 %v7627
  %7764 = vmatprep.subr.mxu0 0.0
  %7765 = vmatpush2.msra.mxu0 0.0
  %7766 = vmatprep.subr.mxu0 0.0
  %7767 = vmatpush2.msra.mxu0 0.0
  %7768 = vmatprep.subr.mxu0 0.0
  %7769 = vmatpush2.msra.mxu0 0.0
  %7770 = vmatprep.subr.mxu0 0.0
  %7771 = vmatpush2.msra.mxu0 0.0
  %7772 = vmatprep.subr.mxu0 0.0
  %7773 = vmatpush2.msra.mxu0 0.0
  %7774 = vmatprep.subr.mxu0 0.0
  %7775 = vmatpush2.msra.mxu0 0.0
  %7776 = vmatprep.subr.mxu0 0.0
  %7777 = vmatpush2.msra.mxu0 0.0
  %7778 = vmatprep.subr.mxu0 0.0
  %7779 = vmatpush2.msra.mxu0 0.0
  %7780 = vmatprep.subr.mxu0 0.0
  %7781 = vmatpush2.msra.mxu0 0.0
  %7782 = vmatprep.subr.mxu0 0.0
  %7783 = vmatpush2.msra.mxu0 0.0
  %7784 = vmatprep.subr.mxu0 0.0
  %7785 = vmatpush2.msra.mxu0 0.0
  %7786 = vmatprep.subr.mxu0 0.0
  %7787 = vmatpush2.msra.mxu0 0.0
  %7788 = vmatprep.subr.mxu0 0.0
  %7789 = vmatpush2.msra.mxu0 0.0
  %7790 = vmatprep.subr.mxu0 0.0
  %7791 = vmatpush2.msra.mxu0 0.0
  %7792 = vmatprep.subr.mxu0 0.0
  %7793 = vmatpush2.msra.mxu0 0.0
  %7794 = vmatprep.subr.mxu0 0.0
  %7795 = vmatpush2.msra.mxu0 0.0
  %7796 = vmatprep.mubr.f32.mxu0 0.0
  %7797 = vmatmul.mubr.f32.gmra.mxu0 %v7659
  %v7798 = vpop.f32.mrf.mxu0
  %v7799 = vadd.f32 0.0, %v7798
  %v7800 = vpop.f32.mrf.mxu0
  %v7801 = vadd.f32 0.0, %v7800
  %7802 = vdwg.mxu0
  %v7803 = vadd.f32 %v7525, %v7728
  %v7804 = vadd.f32 %v7526, %v7730
  %v7805 = vadd.f32 %v7527, %v7799
  %v7806 = vadd.f32 %v7528, %v7801
  %v7807 = vld [vmem:[%s7] sm:$0xff]
  %7809 = vset.pattern.permute.xlu0 0
  %7810 = vperm.xlu0 %7809, %v7807
  %v7811 = vpop.permute.xlu0 %7810
  %v7813 = vadd.f32 %v7803, %v7811
  %v7814 = vadd.f32 %v7804, %v7811
  %v7815 = vadd.f32 %v7805, %v7811
  %v7816 = vadd.f32 %v7806, %v7811
  %7817 = vst [vmem:[%s8] sm:$0xff] %v7813
  %7818 = vst [vmem:[%s8 + $0x8] sm:$0xff] %v7814
  %7819 = vst [vmem:[%s8 + $0x10] sm:$0xff] %v7815
  %7820 = vst [vmem:[%s8 + $0x18] sm:$0xff] %v7816
  // Predicated region
  $region34: #{pinn_with_cnn_forward.1} parent=0 // pred_check
    _
  $region35: #{pinn_with_cnn_forward.1} parent=0 // pred_check_branch
    %7822 = sbr.rel (0) target = $region37
  $region36: #{pinn_with_cnn_forward.1} parent=0 // pred_region
    _
  $region37: #{pinn_with_cnn_forward.1} parent=0 // pred_fallthru
    _
  // Predicated region
  $region38: #{pinn_with_cnn_forward.1} parent=0 // pred_check
    _
  $region39: #{pinn_with_cnn_forward.1} parent=0 // pred_check_branch
    %7824 = sbr.rel (0) target = $region41
  $region40: #{pinn_with_cnn_forward.1} parent=0 // pred_region
    _
  $region41: #{pinn_with_cnn_forward.1} parent=0 // pred_fallthru
    _

</llo_original>
